<compile_context>
chip_gen: v6e
topology: v6e:2x2x1
jax: 0.10.0
libtpu: 0.0.40
codegen_flags: <defaults>
</compile_context>

<pallas_src>
import jax
import jax.numpy as jnp
from jax import lax
from jax.experimental import pallas as pl
from jax.experimental.pallas import tpu as pltpu

_EPS = 1e-5


# ---------------------------------------------------------------------------
# Static geometry
# ---------------------------------------------------------------------------
def _pool_out(n):
    return (n - 1) // 2 + 1          # MaxPool2d(kernel=3, stride=2, padding=1)


def _layer_plan(H_in, W_in):
    """Per-sample geometry of each conv-output / pool-input stage.

    Each stage is a flat VMEM layout of R=(H+2)*Wa rows (sublanes) x channels
    (lanes).  Wa = next_pow2(W+2) so row shifts of +-Wa are 8-aligned and the
    interior mask needs only shift/and.  M is the 8-aligned top/bottom margin
    that keeps shifted reads of the frame rows in bounds.
    """
    H = (H_in + 2 * 2 - 5) // 2 + 1      # conv1: k5 s2 p2
    W = (W_in + 2 * 2 - 5) // 2 + 1
    plan = []
    for _ in range(4):
        Wa = max(8, pl.next_power_of_2(W + 2))
        g = dict(H=H, W=W, Wa=Wa, R=(H + 2) * Wa, M=Wa + 8,
                 Hp=_pool_out(H), Wp=_pool_out(W))
        plan.append(g)
        H, W = g["Hp"], g["Wp"]
    Wa = max(8, pl.next_power_of_2(W + 2))
    fin = dict(H=H, W=W, Wa=Wa, R=(H + 2) * Wa, M=Wa + 8)
    return plan, fin


# ---------------------------------------------------------------------------
# Fused forward kernel (built per static geometry; one sample per program)
# ---------------------------------------------------------------------------
def _make_kernel(plan, fin, widths):
    c1, c2, c3, c4 = widths
    g1, g2, g3, g4 = plan

    def bn_relu_mask(acc, sc_ref, sh_ref, g):
        # folded BN + ReLU in f32, then zero every non-interior row of the
        # padded grid (iota-based mask: Wa is a power of two).
        P, Wa = g["R"], g["Wa"]
        r = lax.broadcasted_iota(jnp.int32, (P, 1), 0)
        w = r & (Wa - 1)
        interior = ((r >= Wa) & (r < (g["H"] + 1) * Wa)
                    & (w >= 1) & (w <= g["W"]))
        return jnp.where(interior,
                         jnp.maximum(acc * sc_ref[...] + sh_ref[...], 0.0),
                         0.0)

    def conv3x3(x_ref, st_ref, g, cin, w_ref, sc_ref, sh_ref, y_ref):
        # 3x3 / s1 / p1 conv as 3 matmuls of depth K = 3*cin:
        #   st[:, t*cin:(t+1)*cin] = x shifted by dj = t-1   (column taps)
        #   y = sum_di dot(st shifted by (di-1)*Wa, W_di[3*cin, cout])
        Wa, M, P = g["Wa"], g["M"], g["R"]
        ext = P + 2 * Wa
        for t, dj in enumerate((-1, 0, 1)):
            st_ref[pl.ds(M - Wa, ext), pl.ds(t * cin, cin)] = (
                x_ref[pl.ds(M - Wa + dj, ext), :])
        acc = None
        for t in range(3):                                   # di = t - 1
            lhs = st_ref[pl.ds(M + (t - 1) * Wa, P), :].astype(jnp.bfloat16)
            rhs = w_ref[pl.ds(t * 3 * cin, 3 * cin), :]
            part = jnp.dot(lhs, rhs, preferred_element_type=jnp.float32)
            acc = part if acc is None else acc + part
        y_ref[pl.ds(M, P), :] = bn_relu_mask(acc, sc_ref, sh_ref, g)

    def pool_into(src_ref, g, dst_ref, gn):
        # MaxPool2d(3,2,1): evaluate only the Hp*Wp output positions and write
        # straight into the interior of the next layer's zero-padded input.
        # (src frame rows/cols are exact zeros and activations are >= 0.)
        Wa, M, Hp, Wp = g["Wa"], g["M"], g["Hp"], g["Wp"]
        for ho in range(Hp):
            m = None
            for di in range(3):
                base = M + (2 * ho + di) * Wa
                for dj in range(3):
                    if Wp > 1:
                        v = src_ref[pl.ds(base + dj, Wp, stride=2), :]
                    else:
                        v = src_ref[pl.ds(base + dj, 1), :]
                    m = v if m is None else jnp.maximum(m, v)
            dst_ref[pl.ds(gn["M"] + (ho + 1) * gn["Wa"] + 1, Wp), :] = m

    def kernel(p1_ref, w1_ref, s1_ref, b1_ref,
               w2_ref, s2_ref, b2_ref,
               w3_ref, s3_ref, b3_ref,
               w4_ref, s4_ref, b4_ref,
               wfc_ref, bfc_ref,
               o_ref,
               y1, x2, st2, y2, x3, st3, y3, x4, st4, y4, x5):
        # Zero only the conv-input buffers (their frames supply the conv/pool
        # zero padding); everything else is fully rewritten before it is read.
        for ref in (x2, x3, x4, x5):
            ref[...] = jnp.zeros(ref.shape, ref.dtype)

        # ---- layer 1: conv 5x5 / s2 (pre-packed patches) + BN + ReLU + pool
        acc1 = jnp.dot(p1_ref[...], w1_ref[...],
                       preferred_element_type=jnp.float32)
        y1[pl.ds(g1["M"], g1["R"]), :] = bn_relu_mask(acc1, s1_ref, b1_ref, g1)
        pool_into(y1, g1, x2, g2)

        # ---- layers 2-4: fused conv3x3 + BN + ReLU + maxpool, all in VMEM
        conv3x3(x2, st2, g2, c1, w2_ref, s2_ref, b2_ref, y2)
        pool_into(y2, g2, x3, g3)
        conv3x3(x3, st3, g3, c2, w3_ref, s3_ref, b3_ref, y3)
        pool_into(y3, g3, x4, g4)
        conv3x3(x4, st4, g4, c3, w4_ref, s4_ref, b4_ref, y4)
        pool_into(y4, g4, x5, fin)

        # ---- head: adaptive avg pool over the final interior + Linear (bf16)
        Hf, Wf, Waf, Mf = fin["H"], fin["W"], fin["Wa"], fin["M"]
        s = None
        for h in range(1, Hf + 1):
            v = x5[pl.ds(Mf + h * Waf + 1, Wf), :]
            row = jnp.sum(v, axis=0, keepdims=True) if Wf > 1 else v
            s = row if s is None else s + row
        pooled = (s * (1.0 / float(Hf * Wf))).astype(jnp.bfloat16)
        o_ref[0] = (jnp.dot(pooled, wfc_ref[...],
                            preferred_element_type=jnp.float32) + bfc_ref[...])

    return kernel


# ---------------------------------------------------------------------------
# Wrapper: one pallas_call for the whole forward pass
# ---------------------------------------------------------------------------
def _fused_forward(x_nhwc, params):
    N, H_in, W_in, Cin = x_nhwc.shape
    num_classes = params["fc_w"].shape[1]
    widths = [params[f"conv{l + 1}"][0].shape[1] for l in range(4)]
    c1, c2, c3, c4 = widths
    plan, fin = _layer_plan(H_in, W_in)
    g1, g2, g3, g4 = plan

    # conv1 patches, pre-packed per sample into the aligned padded-grid layout.
    w1, s1, b1 = params["conv1"]
    K1p = w1.shape[0]                   # 5*5*Cin zero-padded to a multiple of 32
    H1, W1, Wa1 = g1["H"], g1["W"], g1["Wa"]
    xp = jnp.pad(x_nhwc, ((0, 0), (2, 2), (2, 2), (0, 0)))
    taps = [xp[:, i:i + 2 * (H1 - 1) + 1:2, j:j + 2 * (W1 - 1) + 1:2, :]
            for i in range(5) for j in range(5)]
    pat = jnp.concatenate(taps, axis=-1)                  # [N, H1, W1, 25*Cin]
    pat = jnp.pad(pat, ((0, 0), (1, 1), (1, Wa1 - W1 - 1),
                        (0, K1p - pat.shape[-1])))
    p1 = pat.reshape(N * g1["R"], K1p).astype(jnp.bfloat16)

    w2, s2, b2 = params["conv2"]
    w3, s3, b3 = params["conv3"]
    w4, s4, b4 = params["conv4"]
    nc_pad = -(-num_classes // 128) * 128                 # lane-dense FC output
    wfc = jnp.pad(params["fc_w"],
                  ((0, 0), (0, nc_pad - num_classes))).astype(jnp.bfloat16)
    bfc = jnp.pad(params["fc_b"], ((0, 0), (0, nc_pad - num_classes)))

    inputs = [p1,
              w1.astype(jnp.bfloat16), s1, b1,
              w2.astype(jnp.bfloat16), s2, b2,
              w3.astype(jnp.bfloat16), s3, b3,
              w4.astype(jnp.bfloat16), s4, b4,
              wfc, bfc]
    # p1 is blocked per sample; every other operand is a single block revisited
    # by all programs (no re-DMA across grid steps).
    in_specs = ([pl.BlockSpec((g1["R"], K1p), lambda n: (n, 0))]
                + [pl.BlockSpec(a.shape, lambda n: (0, 0)) for a in inputs[1:]])

    def rows(g):
        return 2 * g["M"] + g["R"]

    scratch = [
        pltpu.VMEM((rows(g1), c1), jnp.float32),          # y1
        pltpu.VMEM((rows(g2), c1), jnp.float32),          # x2
        pltpu.VMEM((rows(g2), 3 * c1), jnp.float32),      # st2 (conv2 staging)
        pltpu.VMEM((rows(g2), c2), jnp.float32),          # y2
        pltpu.VMEM((rows(g3), c2), jnp.float32),          # x3
        pltpu.VMEM((rows(g3), 3 * c2), jnp.float32),      # st3
        pltpu.VMEM((rows(g3), c3), jnp.float32),          # y3
        pltpu.VMEM((rows(g4), c3), jnp.float32),          # x4
        pltpu.VMEM((rows(g4), 3 * c3), jnp.float32),      # st4
        pltpu.VMEM((rows(g4), c4), jnp.float32),          # y4
        pltpu.VMEM((rows(fin), c4), jnp.float32),         # x5
    ]

    kernel = _make_kernel(plan, fin, widths)
    out = pl.pallas_call(
        kernel,
        out_shape=jax.ShapeDtypeStruct((N, 1, nc_pad), jnp.float32),
        grid=(N,),
        in_specs=in_specs,
        out_specs=pl.BlockSpec((1, 1, nc_pad), lambda n: (n, 0, 0)),
        scratch_shapes=scratch,
        compiler_params=pltpu.CompilerParams(
            dimension_semantics=("parallel",)),
    )(*inputs)
    return out.reshape(N, nc_pad)[:, :num_classes]


def discriminator_2d_forward(x_nchw, params):
    x = jnp.transpose(x_nchw, (0, 2, 3, 1)).astype(jnp.float32)   # NCHW -> NHWC
    return _fused_forward(x, params)


# ---------------------------------------------------------------------------
# Parameters (deterministic synthetic init; shapes follow the PyTorch module)
# ---------------------------------------------------------------------------
def init_params(key, num_classes=2, init_width=32, input_channels=1):
    widths = [init_width, init_width * 2, init_width * 4, init_width * 8]
    cfgs = [(input_channels, widths[0], 5), (widths[0], widths[1], 3),
            (widths[1], widths[2], 3), (widths[2], widths[3], 3)]
    params = {}
    for li, (cin, cout, k) in enumerate(cfgs):
        key, kw_, kg, kb, km, kv = jax.random.split(key, 6)
        kk = k * k * cin
        kk_pad = -(-kk // 32) * 32 if li == 0 else kk   # pad conv1 K for the MXU
        # To load real PyTorch weights [Cout, Cin, kh, kw]: permute to
        # (kh, kw, Cin, Cout), reshape to [k*k*Cin, Cout], then zero-pad rows.
        w = jnp.zeros((kk_pad, cout), jnp.float32).at[:kk, :].set(
            0.1 * jax.random.normal(kw_, (kk, cout), jnp.float32))
        gamma = 1.0 + 0.1 * jax.random.normal(kg, (cout,), jnp.float32)
        beta = 0.1 * jax.random.normal(kb, (cout,), jnp.float32)
        rmean = 0.1 * jax.random.normal(km, (cout,), jnp.float32)
        rvar = 1.0 + 0.1 * jax.random.uniform(kv, (cout,), jnp.float32)
        scale = gamma / jnp.sqrt(rvar + _EPS)            # fold BN (eval mode)
        shift = beta - rmean * scale
        params[f"conv{li + 1}"] = (w, scale.reshape(1, cout), shift.reshape(1, cout))
    key, kfw, kfb = jax.random.split(key, 3)
    params["fc_w"] = 0.1 * jax.random.normal(kfw, (widths[3], num_classes), jnp.float32)
    params["fc_b"] = 0.1 * jax.random.normal(kfb, (1, num_classes), jnp.float32)
    return params


# ---------------------------------------------------------------------------
# Pure-JAX reference (same bf16 matmul inputs / f32 epilogues)
# ---------------------------------------------------------------------------
def reference_forward(x_nchw, params):
    x = jnp.transpose(x_nchw, (0, 2, 3, 1)).astype(jnp.float32)
    cfgs = [(5, 2, 2), (3, 1, 1), (3, 1, 1), (3, 1, 1)]
    for li, (k, s, p) in enumerate(cfgs):
        w, scale, shift = params[f"conv{li + 1}"]
        cin = x.shape[-1]
        wk = w.astype(jnp.bfloat16)[:k * k * cin].reshape(k, k, cin, -1)
        y = lax.conv_general_dilated(
            x.astype(jnp.bfloat16), wk, (s, s), [(p, p), (p, p)],
            dimension_numbers=("NHWC", "HWIO", "NHWC"),
            preferred_element_type=jnp.float32)
        y = jnp.maximum(y * scale.reshape(1, 1, 1, -1) + shift.reshape(1, 1, 1, -1), 0.0)
        x = lax.reduce_window(y, -jnp.inf, lax.max, (1, 3, 3, 1), (1, 2, 2, 1),
                              [(0, 0), (1, 1), (1, 1), (0, 0)])
    pooled = jnp.mean(x, axis=(1, 2))
    return jnp.dot(pooled, params["fc_w"]) + params["fc_b"]


if __name__ == "__main__":
    key = jax.random.PRNGKey(0)
    kx, kp = jax.random.split(key)
    # NCHW input consistent with the module: batch=2, channels=1, 32x32.
    x = jax.random.normal(kx, (2, 1, 32, 32), jnp.float32)
    params = init_params(kp, num_classes=2, init_width=32, input_channels=1)

    out = jax.block_until_ready(jax.jit(discriminator_2d_forward)(x, params))

    assert out.shape == (2, 2), out.shape
    assert bool(jnp.all(jnp.isfinite(out)))

    ref = jax.block_until_ready(jax.jit(reference_forward)(x, params))
    assert bool(jnp.allclose(out, ref, rtol=5e-2, atol=5e-2)), (
        "max|diff|=" + str(float(jnp.max(jnp.abs(out - ref)))))
    print("KERNEL_OK")
</pallas_src>

<mosaic_0001>
module attributes {stable_mosaic.version = 11 : i64} {
  func.func @kernel(%arg0: i32, %arg1: memref<576x32xbf16, #tpu.memory_space<vmem>>, %arg2: memref<32x32xbf16, #tpu.memory_space<vmem>>, %arg3: memref<1x32xf32, #tpu.memory_space<vmem>>, %arg4: memref<1x32xf32, #tpu.memory_space<vmem>>, %arg5: memref<288x64xbf16, #tpu.memory_space<vmem>>, %arg6: memref<1x64xf32, #tpu.memory_space<vmem>>, %arg7: memref<1x64xf32, #tpu.memory_space<vmem>>, %arg8: memref<576x128xbf16, #tpu.memory_space<vmem>>, %arg9: memref<1x128xf32, #tpu.memory_space<vmem>>, %arg10: memref<1x128xf32, #tpu.memory_space<vmem>>, %arg11: memref<1152x256xbf16, #tpu.memory_space<vmem>>, %arg12: memref<1x256xf32, #tpu.memory_space<vmem>>, %arg13: memref<1x256xf32, #tpu.memory_space<vmem>>, %arg14: memref<256x128xbf16, #tpu.memory_space<vmem>>, %arg15: memref<1x128xf32, #tpu.memory_space<vmem>>, %arg16: memref<1x1x128xf32, #tpu.memory_space<vmem>>, %arg17: memref<656x32xf32, #tpu.memory_space<vmem>>, %arg18: memref<208x32xf32, #tpu.memory_space<vmem>>, %arg19: memref<208x96xf32, #tpu.memory_space<vmem>>, %arg20: memref<208x64xf32, #tpu.memory_space<vmem>>, %arg21: memref<80x64xf32, #tpu.memory_space<vmem>>, %arg22: memref<80x192xf32, #tpu.memory_space<vmem>>, %arg23: memref<80x128xf32, #tpu.memory_space<vmem>>, %arg24: memref<64x128xf32, #tpu.memory_space<vmem>>, %arg25: memref<64x384xf32, #tpu.memory_space<vmem>>, %arg26: memref<64x256xf32, #tpu.memory_space<vmem>>, %arg27: memref<56x256xf32, #tpu.memory_space<vmem>>) attributes {dimension_semantics = [#tpu.dimension_semantics<parallel>], iteration_bounds = array<i64: 2>, scalar_prefetch = 0 : i64, scratch_operands = 11 : i64, tpu.core_type = #tpu.core_type<tc>, window_params = [{transform_indices = @transform_0, window_bounds = array<i64: 576, 32>}, {pipeline_mode = #tpu.pipeline_mode<synchronous>, transform_indices = @transform_1, window_bounds = array<i64: 32, 32>}, {pipeline_mode = #tpu.pipeline_mode<synchronous>, transform_indices = @transform_2, window_bounds = array<i64: 1, 32>}, {pipeline_mode = #tpu.pipeline_mode<synchronous>, transform_indices = @transform_3, window_bounds = array<i64: 1, 32>}, {pipeline_mode = #tpu.pipeline_mode<synchronous>, transform_indices = @transform_4, window_bounds = array<i64: 288, 64>}, {pipeline_mode = #tpu.pipeline_mode<synchronous>, transform_indices = @transform_5, window_bounds = array<i64: 1, 64>}, {pipeline_mode = #tpu.pipeline_mode<synchronous>, transform_indices = @transform_6, window_bounds = array<i64: 1, 64>}, {pipeline_mode = #tpu.pipeline_mode<synchronous>, transform_indices = @transform_7, window_bounds = array<i64: 576, 128>}, {pipeline_mode = #tpu.pipeline_mode<synchronous>, transform_indices = @transform_8, window_bounds = array<i64: 1, 128>}, {pipeline_mode = #tpu.pipeline_mode<synchronous>, transform_indices = @transform_9, window_bounds = array<i64: 1, 128>}, {pipeline_mode = #tpu.pipeline_mode<synchronous>, transform_indices = @transform_10, window_bounds = array<i64: 1152, 256>}, {pipeline_mode = #tpu.pipeline_mode<synchronous>, transform_indices = @transform_11, window_bounds = array<i64: 1, 256>}, {pipeline_mode = #tpu.pipeline_mode<synchronous>, transform_indices = @transform_12, window_bounds = array<i64: 1, 256>}, {pipeline_mode = #tpu.pipeline_mode<synchronous>, transform_indices = @transform_13, window_bounds = array<i64: 256, 128>}, {pipeline_mode = #tpu.pipeline_mode<synchronous>, transform_indices = @transform_14, window_bounds = array<i64: 1, 128>}, {transform_indices = @transform_15, window_bounds = array<i64: 1, 1, 128>}]} {
    %cst = arith.constant 0.000000e+00 : f32
    %0 = vector.broadcast %cst : f32 to vector<208x32xf32>
    %c0 = arith.constant 0 : index
    %c0_0 = arith.constant 0 : index
    %1 = vector.load %arg18[%c0, %c0_0] : memref<208x32xf32, #tpu.memory_space<vmem>>, vector<208x32xf32>
    tpu.vector_store %arg18[%c0, %c0_0], %0 {strides = array<i32>} : memref<208x32xf32, #tpu.memory_space<vmem>>, vector<208x32xf32>,
    %cst_1 = arith.constant 0.000000e+00 : f32
    %2 = vector.broadcast %cst_1 : f32 to vector<80x64xf32>
    %c0_2 = arith.constant 0 : index
    %c0_3 = arith.constant 0 : index
    %3 = vector.load %arg21[%c0_2, %c0_3] : memref<80x64xf32, #tpu.memory_space<vmem>>, vector<80x64xf32>
    tpu.vector_store %arg21[%c0_2, %c0_3], %2 {strides = array<i32>} : memref<80x64xf32, #tpu.memory_space<vmem>>, vector<80x64xf32>,
    %cst_4 = arith.constant 0.000000e+00 : f32
    %4 = vector.broadcast %cst_4 : f32 to vector<64x128xf32>
    %c0_5 = arith.constant 0 : index
    %c0_6 = arith.constant 0 : index
    %5 = vector.load %arg24[%c0_5, %c0_6] : memref<64x128xf32, #tpu.memory_space<vmem>>, vector<64x128xf32>
    tpu.vector_store %arg24[%c0_5, %c0_6], %4 {strides = array<i32>} : memref<64x128xf32, #tpu.memory_space<vmem>>, vector<64x128xf32>,
    %cst_7 = arith.constant 0.000000e+00 : f32
    %6 = vector.broadcast %cst_7 : f32 to vector<56x256xf32>
    %c0_8 = arith.constant 0 : index
    %c0_9 = arith.constant 0 : index
    %7 = vector.load %arg27[%c0_8, %c0_9] : memref<56x256xf32, #tpu.memory_space<vmem>>, vector<56x256xf32>
    tpu.vector_store %arg27[%c0_8, %c0_9], %6 {strides = array<i32>} : memref<56x256xf32, #tpu.memory_space<vmem>>, vector<56x256xf32>,
    %c0_10 = arith.constant 0 : index
    %c0_11 = arith.constant 0 : index
    %8 = vector.load %arg1[%c0_10, %c0_11] : memref<576x32xbf16, #tpu.memory_space<vmem>>, vector<576x32xbf16>
    %c0_12 = arith.constant 0 : index
    %c0_13 = arith.constant 0 : index
    %9 = vector.load %arg2[%c0_12, %c0_13] : memref<32x32xbf16, #tpu.memory_space<vmem>>, vector<32x32xbf16>
    %cst_14 = arith.constant dense<0.000000e+00> : vector<576x32xf32>
    %10 = tpu.matmul %8, %9, %cst_14 {dimension_numbers = #tpu.dot_dimension_numbers<[1], [0], [0], [1], [0, 0, 1, 1], [], []>} : vector<576x32xbf16>, vector<32x32xbf16>, vector<576x32xf32> -> vector<576x32xf32>
    %11 = tpu.iota {dimensions = array<i32: 0>} : vector<576x1xi32>
    %c31_i32 = arith.constant 31 : i32
    %12 = vector.broadcast %c31_i32 : i32 to vector<576x1xi32>
    %13 = arith.andi %11, %12 : vector<576x1xi32>
    %c32_i32 = arith.constant 32 : i32
    %14 = vector.broadcast %c32_i32 : i32 to vector<576x1xi32>
    %15 = arith.cmpi sge, %11, %14 : vector<576x1xi32>
    %c544_i32 = arith.constant 544 : i32
    %16 = vector.broadcast %c544_i32 : i32 to vector<576x1xi32>
    %17 = arith.cmpi slt, %11, %16 : vector<576x1xi32>
    %18 = arith.andi %15, %17 : vector<576x1xi1>
    %c1_i32 = arith.constant 1 : i32
    %19 = vector.broadcast %c1_i32 : i32 to vector<576x1xi32>
    %20 = arith.cmpi sge, %13, %19 : vector<576x1xi32>
    %21 = arith.andi %18, %20 : vector<576x1xi1>
    %c16_i32 = arith.constant 16 : i32
    %22 = vector.broadcast %c16_i32 : i32 to vector<576x1xi32>
    %23 = arith.cmpi sle, %13, %22 : vector<576x1xi32>
    %24 = arith.andi %21, %23 : vector<576x1xi1>
    %c0_15 = arith.constant 0 : index
    %c0_16 = arith.constant 0 : index
    %25 = vector.load %arg3[%c0_15, %c0_16] : memref<1x32xf32, #tpu.memory_space<vmem>>, vector<1x32xf32>
    %26 = vector.broadcast %25 : vector<1x32xf32> to vector<576x32xf32>
    %27 = arith.mulf %10, %26 : vector<576x32xf32>
    %c0_17 = arith.constant 0 : index
    %c0_18 = arith.constant 0 : index
    %28 = vector.load %arg4[%c0_17, %c0_18] : memref<1x32xf32, #tpu.memory_space<vmem>>, vector<1x32xf32>
    %29 = vector.broadcast %28 : vector<1x32xf32> to vector<576x32xf32>
    %30 = arith.addf %27, %29 : vector<576x32xf32>
    %cst_19 = arith.constant 0.000000e+00 : f32
    %31 = vector.broadcast %cst_19 : f32 to vector<576x32xf32>
    %32 = arith.maximumf %30, %31 : vector<576x32xf32>
    %cst_20 = arith.constant 0.000000e+00 : f32
    %33 = vector.shape_cast %24 : vector<576x1xi1> to vector<576x1xi1>
    %34 = vector.broadcast %33 : vector<576x1xi1> to vector<576x32xi1>
    %35 = vector.broadcast %cst_20 : f32 to vector<576x32xf32>
    %36 = arith.select %34, %32, %35 : vector<576x32xi1>, vector<576x32xf32>
    %c40 = arith.constant 40 : index
    %c0_21 = arith.constant 0 : index
    %37 = vector.load %arg17[%c40, %c0_21] : memref<656x32xf32, #tpu.memory_space<vmem>>, vector<576x32xf32>
    tpu.vector_store %arg17[%c40, %c0_21], %36 {strides = array<i32>} : memref<656x32xf32, #tpu.memory_space<vmem>>, vector<576x32xf32>,
    %c40_22 = arith.constant 40 : index
    %c0_23 = arith.constant 0 : index
    %38 = tpu.strided_load %arg17[%c40_22, %c0_23] {strides = array<i32: 2, 1>} : memref<656x32xf32, #tpu.memory_space<vmem>>, vector<8x32xf32>
    %c41 = arith.constant 41 : index
    %c0_24 = arith.constant 0 : index
    %39 = tpu.strided_load %arg17[%c41, %c0_24] {strides = array<i32: 2, 1>} : memref<656x32xf32, #tpu.memory_space<vmem>>, vector<8x32xf32>
    %40 = arith.maximumf %38, %39 : vector<8x32xf32>
    %c42 = arith.constant 42 : index
    %c0_25 = arith.constant 0 : index
    %41 = tpu.strided_load %arg17[%c42, %c0_25] {strides = array<i32: 2, 1>} : memref<656x32xf32, #tpu.memory_space<vmem>>, vector<8x32xf32>
    %42 = arith.maximumf %40, %41 : vector<8x32xf32>
    %c72 = arith.constant 72 : index
    %c0_26 = arith.constant 0 : index
    %43 = tpu.strided_load %arg17[%c72, %c0_26] {strides = array<i32: 2, 1>} : memref<656x32xf32, #tpu.memory_space<vmem>>, vector<8x32xf32>
    %44 = arith.maximumf %42, %43 : vector<8x32xf32>
    %c73 = arith.constant 73 : index
    %c0_27 = arith.constant 0 : index
    %45 = tpu.strided_load %arg17[%c73, %c0_27] {strides = array<i32: 2, 1>} : memref<656x32xf32, #tpu.memory_space<vmem>>, vector<8x32xf32>
    %46 = arith.maximumf %44, %45 : vector<8x32xf32>
    %c74 = arith.constant 74 : index
    %c0_28 = arith.constant 0 : index
    %47 = tpu.strided_load %arg17[%c74, %c0_28] {strides = array<i32: 2, 1>} : memref<656x32xf32, #tpu.memory_space<vmem>>, vector<8x32xf32>
    %48 = arith.maximumf %46, %47 : vector<8x32xf32>
    %c104 = arith.constant 104 : index
    %c0_29 = arith.constant 0 : index
    %49 = tpu.strided_load %arg17[%c104, %c0_29] {strides = array<i32: 2, 1>} : memref<656x32xf32, #tpu.memory_space<vmem>>, vector<8x32xf32>
    %50 = arith.maximumf %48, %49 : vector<8x32xf32>
    %c105 = arith.constant 105 : index
    %c0_30 = arith.constant 0 : index
    %51 = tpu.strided_load %arg17[%c105, %c0_30] {strides = array<i32: 2, 1>} : memref<656x32xf32, #tpu.memory_space<vmem>>, vector<8x32xf32>
    %52 = arith.maximumf %50, %51 : vector<8x32xf32>
    %c106 = arith.constant 106 : index
    %c0_31 = arith.constant 0 : index
    %53 = tpu.strided_load %arg17[%c106, %c0_31] {strides = array<i32: 2, 1>} : memref<656x32xf32, #tpu.memory_space<vmem>>, vector<8x32xf32>
    %54 = arith.maximumf %52, %53 : vector<8x32xf32>
    %c41_32 = arith.constant 41 : index
    %c0_33 = arith.constant 0 : index
    %55 = vector.load %arg18[%c41_32, %c0_33] : memref<208x32xf32, #tpu.memory_space<vmem>>, vector<8x32xf32>
    tpu.vector_store %arg18[%c41_32, %c0_33], %54 {strides = array<i32>} : memref<208x32xf32, #tpu.memory_space<vmem>>, vector<8x32xf32>,
    %c104_34 = arith.constant 104 : index
    %c0_35 = arith.constant 0 : index
    %56 = tpu.strided_load %arg17[%c104_34, %c0_35] {strides = array<i32: 2, 1>} : memref<656x32xf32, #tpu.memory_space<vmem>>, vector<8x32xf32>
    %c105_36 = arith.constant 105 : index
    %c0_37 = arith.constant 0 : index
    %57 = tpu.strided_load %arg17[%c105_36, %c0_37] {strides = array<i32: 2, 1>} : memref<656x32xf32, #tpu.memory_space<vmem>>, vector<8x32xf32>
    %58 = arith.maximumf %56, %57 : vector<8x32xf32>
    %c106_38 = arith.constant 106 : index
    %c0_39 = arith.constant 0 : index
    %59 = tpu.strided_load %arg17[%c106_38, %c0_39] {strides = array<i32: 2, 1>} : memref<656x32xf32, #tpu.memory_space<vmem>>, vector<8x32xf32>
    %60 = arith.maximumf %58, %59 : vector<8x32xf32>
    %c136 = arith.constant 136 : index
    %c0_40 = arith.constant 0 : index
    %61 = tpu.strided_load %arg17[%c136, %c0_40] {strides = array<i32: 2, 1>} : memref<656x32xf32, #tpu.memory_space<vmem>>, vector<8x32xf32>
    %62 = arith.maximumf %60, %61 : vector<8x32xf32>
    %c137 = arith.constant 137 : index
    %c0_41 = arith.constant 0 : index
    %63 = tpu.strided_load %arg17[%c137, %c0_41] {strides = array<i32: 2, 1>} : memref<656x32xf32, #tpu.memory_space<vmem>>, vector<8x32xf32>
    %64 = arith.maximumf %62, %63 : vector<8x32xf32>
    %c138 = arith.constant 138 : index
    %c0_42 = arith.constant 0 : index
    %65 = tpu.strided_load %arg17[%c138, %c0_42] {strides = array<i32: 2, 1>} : memref<656x32xf32, #tpu.memory_space<vmem>>, vector<8x32xf32>
    %66 = arith.maximumf %64, %65 : vector<8x32xf32>
    %c168 = arith.constant 168 : index
    %c0_43 = arith.constant 0 : index
    %67 = tpu.strided_load %arg17[%c168, %c0_43] {strides = array<i32: 2, 1>} : memref<656x32xf32, #tpu.memory_space<vmem>>, vector<8x32xf32>
    %68 = arith.maximumf %66, %67 : vector<8x32xf32>
    %c169 = arith.constant 169 : index
    %c0_44 = arith.constant 0 : index
    %69 = tpu.strided_load %arg17[%c169, %c0_44] {strides = array<i32: 2, 1>} : memref<656x32xf32, #tpu.memory_space<vmem>>, vector<8x32xf32>
    %70 = arith.maximumf %68, %69 : vector<8x32xf32>
    %c170 = arith.constant 170 : index
    %c0_45 = arith.constant 0 : index
    %71 = tpu.strided_load %arg17[%c170, %c0_45] {strides = array<i32: 2, 1>} : memref<656x32xf32, #tpu.memory_space<vmem>>, vector<8x32xf32>
    %72 = arith.maximumf %70, %71 : vector<8x32xf32>
    %c57 = arith.constant 57 : index
    %c0_46 = arith.constant 0 : index
    %73 = vector.load %arg18[%c57, %c0_46] : memref<208x32xf32, #tpu.memory_space<vmem>>, vector<8x32xf32>
    tpu.vector_store %arg18[%c57, %c0_46], %72 {strides = array<i32>} : memref<208x32xf32, #tpu.memory_space<vmem>>, vector<8x32xf32>,
    %c168_47 = arith.constant 168 : index
    %c0_48 = arith.constant 0 : index
    %74 = tpu.strided_load %arg17[%c168_47, %c0_48] {strides = array<i32: 2, 1>} : memref<656x32xf32, #tpu.memory_space<vmem>>, vector<8x32xf32>
    %c169_49 = arith.constant 169 : index
    %c0_50 = arith.constant 0 : index
    %75 = tpu.strided_load %arg17[%c169_49, %c0_50] {strides = array<i32: 2, 1>} : memref<656x32xf32, #tpu.memory_space<vmem>>, vector<8x32xf32>
    %76 = arith.maximumf %74, %75 : vector<8x32xf32>
    %c170_51 = arith.constant 170 : index
    %c0_52 = arith.constant 0 : index
    %77 = tpu.strided_load %arg17[%c170_51, %c0_52] {strides = array<i32: 2, 1>} : memref<656x32xf32, #tpu.memory_space<vmem>>, vector<8x32xf32>
    %78 = arith.maximumf %76, %77 : vector<8x32xf32>
    %c200 = arith.constant 200 : index
    %c0_53 = arith.constant 0 : index
    %79 = tpu.strided_load %arg17[%c200, %c0_53] {strides = array<i32: 2, 1>} : memref<656x32xf32, #tpu.memory_space<vmem>>, vector<8x32xf32>
    %80 = arith.maximumf %78, %79 : vector<8x32xf32>
    %c201 = arith.constant 201 : index
    %c0_54 = arith.constant 0 : index
    %81 = tpu.strided_load %arg17[%c201, %c0_54] {strides = array<i32: 2, 1>} : memref<656x32xf32, #tpu.memory_space<vmem>>, vector<8x32xf32>
    %82 = arith.maximumf %80, %81 : vector<8x32xf32>
    %c202 = arith.constant 202 : index
    %c0_55 = arith.constant 0 : index
    %83 = tpu.strided_load %arg17[%c202, %c0_55] {strides = array<i32: 2, 1>} : memref<656x32xf32, #tpu.memory_space<vmem>>, vector<8x32xf32>
    %84 = arith.maximumf %82, %83 : vector<8x32xf32>
    %c232 = arith.constant 232 : index
    %c0_56 = arith.constant 0 : index
    %85 = tpu.strided_load %arg17[%c232, %c0_56] {strides = array<i32: 2, 1>} : memref<656x32xf32, #tpu.memory_space<vmem>>, vector<8x32xf32>
    %86 = arith.maximumf %84, %85 : vector<8x32xf32>
    %c233 = arith.constant 233 : index
    %c0_57 = arith.constant 0 : index
    %87 = tpu.strided_load %arg17[%c233, %c0_57] {strides = array<i32: 2, 1>} : memref<656x32xf32, #tpu.memory_space<vmem>>, vector<8x32xf32>
    %88 = arith.maximumf %86, %87 : vector<8x32xf32>
    %c234 = arith.constant 234 : index
    %c0_58 = arith.constant 0 : index
    %89 = tpu.strided_load %arg17[%c234, %c0_58] {strides = array<i32: 2, 1>} : memref<656x32xf32, #tpu.memory_space<vmem>>, vector<8x32xf32>
    %90 = arith.maximumf %88, %89 : vector<8x32xf32>
    %c73_59 = arith.constant 73 : index
    %c0_60 = arith.constant 0 : index
    %91 = vector.load %arg18[%c73_59, %c0_60] : memref<208x32xf32, #tpu.memory_space<vmem>>, vector<8x32xf32>
    tpu.vector_store %arg18[%c73_59, %c0_60], %90 {strides = array<i32>} : memref<208x32xf32, #tpu.memory_space<vmem>>, vector<8x32xf32>,
    %c232_61 = arith.constant 232 : index
    %c0_62 = arith.constant 0 : index
    %92 = tpu.strided_load %arg17[%c232_61, %c0_62] {strides = array<i32: 2, 1>} : memref<656x32xf32, #tpu.memory_space<vmem>>, vector<8x32xf32>
    %c233_63 = arith.constant 233 : index
    %c0_64 = arith.constant 0 : index
    %93 = tpu.strided_load %arg17[%c233_63, %c0_64] {strides = array<i32: 2, 1>} : memref<656x32xf32, #tpu.memory_space<vmem>>, vector<8x32xf32>
    %94 = arith.maximumf %92, %93 : vector<8x32xf32>
    %c234_65 = arith.constant 234 : index
    %c0_66 = arith.constant 0 : index
    %95 = tpu.strided_load %arg17[%c234_65, %c0_66] {strides = array<i32: 2, 1>} : memref<656x32xf32, #tpu.memory_space<vmem>>, vector<8x32xf32>
    %96 = arith.maximumf %94, %95 : vector<8x32xf32>
    %c264 = arith.constant 264 : index
    %c0_67 = arith.constant 0 : index
    %97 = tpu.strided_load %arg17[%c264, %c0_67] {strides = array<i32: 2, 1>} : memref<656x32xf32, #tpu.memory_space<vmem>>, vector<8x32xf32>
    %98 = arith.maximumf %96, %97 : vector<8x32xf32>
    %c265 = arith.constant 265 : index
    %c0_68 = arith.constant 0 : index
    %99 = tpu.strided_load %arg17[%c265, %c0_68] {strides = array<i32: 2, 1>} : memref<656x32xf32, #tpu.memory_space<vmem>>, vector<8x32xf32>
    %100 = arith.maximumf %98, %99 : vector<8x32xf32>
    %c266 = arith.constant 266 : index
    %c0_69 = arith.constant 0 : index
    %101 = tpu.strided_load %arg17[%c266, %c0_69] {strides = array<i32: 2, 1>} : memref<656x32xf32, #tpu.memory_space<vmem>>, vector<8x32xf32>
    %102 = arith.maximumf %100, %101 : vector<8x32xf32>
    %c296 = arith.constant 296 : index
    %c0_70 = arith.constant 0 : index
    %103 = tpu.strided_load %arg17[%c296, %c0_70] {strides = array<i32: 2, 1>} : memref<656x32xf32, #tpu.memory_space<vmem>>, vector<8x32xf32>
    %104 = arith.maximumf %102, %103 : vector<8x32xf32>
    %c297 = arith.constant 297 : index
    %c0_71 = arith.constant 0 : index
    %105 = tpu.strided_load %arg17[%c297, %c0_71] {strides = array<i32: 2, 1>} : memref<656x32xf32, #tpu.memory_space<vmem>>, vector<8x32xf32>
    %106 = arith.maximumf %104, %105 : vector<8x32xf32>
    %c298 = arith.constant 298 : index
    %c0_72 = arith.constant 0 : index
    %107 = tpu.strided_load %arg17[%c298, %c0_72] {strides = array<i32: 2, 1>} : memref<656x32xf32, #tpu.memory_space<vmem>>, vector<8x32xf32>
    %108 = arith.maximumf %106, %107 : vector<8x32xf32>
    %c89 = arith.constant 89 : index
    %c0_73 = arith.constant 0 : index
    %109 = vector.load %arg18[%c89, %c0_73] : memref<208x32xf32, #tpu.memory_space<vmem>>, vector<8x32xf32>
    tpu.vector_store %arg18[%c89, %c0_73], %108 {strides = array<i32>} : memref<208x32xf32, #tpu.memory_space<vmem>>, vector<8x32xf32>,
    %c296_74 = arith.constant 296 : index
    %c0_75 = arith.constant 0 : index
    %110 = tpu.strided_load %arg17[%c296_74, %c0_75] {strides = array<i32: 2, 1>} : memref<656x32xf32, #tpu.memory_space<vmem>>, vector<8x32xf32>
    %c297_76 = arith.constant 297 : index
    %c0_77 = arith.constant 0 : index
    %111 = tpu.strided_load %arg17[%c297_76, %c0_77] {strides = array<i32: 2, 1>} : memref<656x32xf32, #tpu.memory_space<vmem>>, vector<8x32xf32>
    %112 = arith.maximumf %110, %111 : vector<8x32xf32>
    %c298_78 = arith.constant 298 : index
    %c0_79 = arith.constant 0 : index
    %113 = tpu.strided_load %arg17[%c298_78, %c0_79] {strides = array<i32: 2, 1>} : memref<656x32xf32, #tpu.memory_space<vmem>>, vector<8x32xf32>
    %114 = arith.maximumf %112, %113 : vector<8x32xf32>
    %c328 = arith.constant 328 : index
    %c0_80 = arith.constant 0 : index
    %115 = tpu.strided_load %arg17[%c328, %c0_80] {strides = array<i32: 2, 1>} : memref<656x32xf32, #tpu.memory_space<vmem>>, vector<8x32xf32>
    %116 = arith.maximumf %114, %115 : vector<8x32xf32>
    %c329 = arith.constant 329 : index
    %c0_81 = arith.constant 0 : index
    %117 = tpu.strided_load %arg17[%c329, %c0_81] {strides = array<i32: 2, 1>} : memref<656x32xf32, #tpu.memory_space<vmem>>, vector<8x32xf32>
    %118 = arith.maximumf %116, %117 : vector<8x32xf32>
    %c330 = arith.constant 330 : index
    %c0_82 = arith.constant 0 : index
    %119 = tpu.strided_load %arg17[%c330, %c0_82] {strides = array<i32: 2, 1>} : memref<656x32xf32, #tpu.memory_space<vmem>>, vector<8x32xf32>
    %120 = arith.maximumf %118, %119 : vector<8x32xf32>
    %c360 = arith.constant 360 : index
    %c0_83 = arith.constant 0 : index
    %121 = tpu.strided_load %arg17[%c360, %c0_83] {strides = array<i32: 2, 1>} : memref<656x32xf32, #tpu.memory_space<vmem>>, vector<8x32xf32>
    %122 = arith.maximumf %120, %121 : vector<8x32xf32>
    %c361 = arith.constant 361 : index
    %c0_84 = arith.constant 0 : index
    %123 = tpu.strided_load %arg17[%c361, %c0_84] {strides = array<i32: 2, 1>} : memref<656x32xf32, #tpu.memory_space<vmem>>, vector<8x32xf32>
    %124 = arith.maximumf %122, %123 : vector<8x32xf32>
    %c362 = arith.constant 362 : index
    %c0_85 = arith.constant 0 : index
    %125 = tpu.strided_load %arg17[%c362, %c0_85] {strides = array<i32: 2, 1>} : memref<656x32xf32, #tpu.memory_space<vmem>>, vector<8x32xf32>
    %126 = arith.maximumf %124, %125 : vector<8x32xf32>
    %c105_86 = arith.constant 105 : index
    %c0_87 = arith.constant 0 : index
    %127 = vector.load %arg18[%c105_86, %c0_87] : memref<208x32xf32, #tpu.memory_space<vmem>>, vector<8x32xf32>
    tpu.vector_store %arg18[%c105_86, %c0_87], %126 {strides = array<i32>} : memref<208x32xf32, #tpu.memory_space<vmem>>, vector<8x32xf32>,
    %c360_88 = arith.constant 360 : index
    %c0_89 = arith.constant 0 : index
    %128 = tpu.strided_load %arg17[%c360_88, %c0_89] {strides = array<i32: 2, 1>} : memref<656x32xf32, #tpu.memory_space<vmem>>, vector<8x32xf32>
    %c361_90 = arith.constant 361 : index
    %c0_91 = arith.constant 0 : index
    %129 = tpu.strided_load %arg17[%c361_90, %c0_91] {strides = array<i32: 2, 1>} : memref<656x32xf32, #tpu.memory_space<vmem>>, vector<8x32xf32>
    %130 = arith.maximumf %128, %129 : vector<8x32xf32>
    %c362_92 = arith.constant 362 : index
    %c0_93 = arith.constant 0 : index
    %131 = tpu.strided_load %arg17[%c362_92, %c0_93] {strides = array<i32: 2, 1>} : memref<656x32xf32, #tpu.memory_space<vmem>>, vector<8x32xf32>
    %132 = arith.maximumf %130, %131 : vector<8x32xf32>
    %c392 = arith.constant 392 : index
    %c0_94 = arith.constant 0 : index
    %133 = tpu.strided_load %arg17[%c392, %c0_94] {strides = array<i32: 2, 1>} : memref<656x32xf32, #tpu.memory_space<vmem>>, vector<8x32xf32>
    %134 = arith.maximumf %132, %133 : vector<8x32xf32>
    %c393 = arith.constant 393 : index
    %c0_95 = arith.constant 0 : index
    %135 = tpu.strided_load %arg17[%c393, %c0_95] {strides = array<i32: 2, 1>} : memref<656x32xf32, #tpu.memory_space<vmem>>, vector<8x32xf32>
    %136 = arith.maximumf %134, %135 : vector<8x32xf32>
    %c394 = arith.constant 394 : index
    %c0_96 = arith.constant 0 : index
    %137 = tpu.strided_load %arg17[%c394, %c0_96] {strides = array<i32: 2, 1>} : memref<656x32xf32, #tpu.memory_space<vmem>>, vector<8x32xf32>
    %138 = arith.maximumf %136, %137 : vector<8x32xf32>
    %c424 = arith.constant 424 : index
    %c0_97 = arith.constant 0 : index
    %139 = tpu.strided_load %arg17[%c424, %c0_97] {strides = array<i32: 2, 1>} : memref<656x32xf32, #tpu.memory_space<vmem>>, vector<8x32xf32>
    %140 = arith.maximumf %138, %139 : vector<8x32xf32>
    %c425 = arith.constant 425 : index
    %c0_98 = arith.constant 0 : index
    %141 = tpu.strided_load %arg17[%c425, %c0_98] {strides = array<i32: 2, 1>} : memref<656x32xf32, #tpu.memory_space<vmem>>, vector<8x32xf32>
    %142 = arith.maximumf %140, %141 : vector<8x32xf32>
    %c426 = arith.constant 426 : index
    %c0_99 = arith.constant 0 : index
    %143 = tpu.strided_load %arg17[%c426, %c0_99] {strides = array<i32: 2, 1>} : memref<656x32xf32, #tpu.memory_space<vmem>>, vector<8x32xf32>
    %144 = arith.maximumf %142, %143 : vector<8x32xf32>
    %c121 = arith.constant 121 : index
    %c0_100 = arith.constant 0 : index
    %145 = vector.load %arg18[%c121, %c0_100] : memref<208x32xf32, #tpu.memory_space<vmem>>, vector<8x32xf32>
    tpu.vector_store %arg18[%c121, %c0_100], %144 {strides = array<i32>} : memref<208x32xf32, #tpu.memory_space<vmem>>, vector<8x32xf32>,
    %c424_101 = arith.constant 424 : index
    %c0_102 = arith.constant 0 : index
    %146 = tpu.strided_load %arg17[%c424_101, %c0_102] {strides = array<i32: 2, 1>} : memref<656x32xf32, #tpu.memory_space<vmem>>, vector<8x32xf32>
    %c425_103 = arith.constant 425 : index
    %c0_104 = arith.constant 0 : index
    %147 = tpu.strided_load %arg17[%c425_103, %c0_104] {strides = array<i32: 2, 1>} : memref<656x32xf32, #tpu.memory_space<vmem>>, vector<8x32xf32>
    %148 = arith.maximumf %146, %147 : vector<8x32xf32>
    %c426_105 = arith.constant 426 : index
    %c0_106 = arith.constant 0 : index
    %149 = tpu.strided_load %arg17[%c426_105, %c0_106] {strides = array<i32: 2, 1>} : memref<656x32xf32, #tpu.memory_space<vmem>>, vector<8x32xf32>
    %150 = arith.maximumf %148, %149 : vector<8x32xf32>
    %c456 = arith.constant 456 : index
    %c0_107 = arith.constant 0 : index
    %151 = tpu.strided_load %arg17[%c456, %c0_107] {strides = array<i32: 2, 1>} : memref<656x32xf32, #tpu.memory_space<vmem>>, vector<8x32xf32>
    %152 = arith.maximumf %150, %151 : vector<8x32xf32>
    %c457 = arith.constant 457 : index
    %c0_108 = arith.constant 0 : index
    %153 = tpu.strided_load %arg17[%c457, %c0_108] {strides = array<i32: 2, 1>} : memref<656x32xf32, #tpu.memory_space<vmem>>, vector<8x32xf32>
    %154 = arith.maximumf %152, %153 : vector<8x32xf32>
    %c458 = arith.constant 458 : index
    %c0_109 = arith.constant 0 : index
    %155 = tpu.strided_load %arg17[%c458, %c0_109] {strides = array<i32: 2, 1>} : memref<656x32xf32, #tpu.memory_space<vmem>>, vector<8x32xf32>
    %156 = arith.maximumf %154, %155 : vector<8x32xf32>
    %c488 = arith.constant 488 : index
    %c0_110 = arith.constant 0 : index
    %157 = tpu.strided_load %arg17[%c488, %c0_110] {strides = array<i32: 2, 1>} : memref<656x32xf32, #tpu.memory_space<vmem>>, vector<8x32xf32>
    %158 = arith.maximumf %156, %157 : vector<8x32xf32>
    %c489 = arith.constant 489 : index
    %c0_111 = arith.constant 0 : index
    %159 = tpu.strided_load %arg17[%c489, %c0_111] {strides = array<i32: 2, 1>} : memref<656x32xf32, #tpu.memory_space<vmem>>, vector<8x32xf32>
    %160 = arith.maximumf %158, %159 : vector<8x32xf32>
    %c490 = arith.constant 490 : index
    %c0_112 = arith.constant 0 : index
    %161 = tpu.strided_load %arg17[%c490, %c0_112] {strides = array<i32: 2, 1>} : memref<656x32xf32, #tpu.memory_space<vmem>>, vector<8x32xf32>
    %162 = arith.maximumf %160, %161 : vector<8x32xf32>
    %c137_113 = arith.constant 137 : index
    %c0_114 = arith.constant 0 : index
    %163 = vector.load %arg18[%c137_113, %c0_114] : memref<208x32xf32, #tpu.memory_space<vmem>>, vector<8x32xf32>
    tpu.vector_store %arg18[%c137_113, %c0_114], %162 {strides = array<i32>} : memref<208x32xf32, #tpu.memory_space<vmem>>, vector<8x32xf32>,
    %c488_115 = arith.constant 488 : index
    %c0_116 = arith.constant 0 : index
    %164 = tpu.strided_load %arg17[%c488_115, %c0_116] {strides = array<i32: 2, 1>} : memref<656x32xf32, #tpu.memory_space<vmem>>, vector<8x32xf32>
    %c489_117 = arith.constant 489 : index
    %c0_118 = arith.constant 0 : index
    %165 = tpu.strided_load %arg17[%c489_117, %c0_118] {strides = array<i32: 2, 1>} : memref<656x32xf32, #tpu.memory_space<vmem>>, vector<8x32xf32>
    %166 = arith.maximumf %164, %165 : vector<8x32xf32>
    %c490_119 = arith.constant 490 : index
    %c0_120 = arith.constant 0 : index
    %167 = tpu.strided_load %arg17[%c490_119, %c0_120] {strides = array<i32: 2, 1>} : memref<656x32xf32, #tpu.memory_space<vmem>>, vector<8x32xf32>
    %168 = arith.maximumf %166, %167 : vector<8x32xf32>
    %c520 = arith.constant 520 : index
    %c0_121 = arith.constant 0 : index
    %169 = tpu.strided_load %arg17[%c520, %c0_121] {strides = array<i32: 2, 1>} : memref<656x32xf32, #tpu.memory_space<vmem>>, vector<8x32xf32>
    %170 = arith.maximumf %168, %169 : vector<8x32xf32>
    %c521 = arith.constant 521 : index
    %c0_122 = arith.constant 0 : index
    %171 = tpu.strided_load %arg17[%c521, %c0_122] {strides = array<i32: 2, 1>} : memref<656x32xf32, #tpu.memory_space<vmem>>, vector<8x32xf32>
    %172 = arith.maximumf %170, %171 : vector<8x32xf32>
    %c522 = arith.constant 522 : index
    %c0_123 = arith.constant 0 : index
    %173 = tpu.strided_load %arg17[%c522, %c0_123] {strides = array<i32: 2, 1>} : memref<656x32xf32, #tpu.memory_space<vmem>>, vector<8x32xf32>
    %174 = arith.maximumf %172, %173 : vector<8x32xf32>
    %c552 = arith.constant 552 : index
    %c0_124 = arith.constant 0 : index
    %175 = tpu.strided_load %arg17[%c552, %c0_124] {strides = array<i32: 2, 1>} : memref<656x32xf32, #tpu.memory_space<vmem>>, vector<8x32xf32>
    %176 = arith.maximumf %174, %175 : vector<8x32xf32>
    %c553 = arith.constant 553 : index
    %c0_125 = arith.constant 0 : index
    %177 = tpu.strided_load %arg17[%c553, %c0_125] {strides = array<i32: 2, 1>} : memref<656x32xf32, #tpu.memory_space<vmem>>, vector<8x32xf32>
    %178 = arith.maximumf %176, %177 : vector<8x32xf32>
    %c554 = arith.constant 554 : index
    %c0_126 = arith.constant 0 : index
    %179 = tpu.strided_load %arg17[%c554, %c0_126] {strides = array<i32: 2, 1>} : memref<656x32xf32, #tpu.memory_space<vmem>>, vector<8x32xf32>
    %180 = arith.maximumf %178, %179 : vector<8x32xf32>
    %c153 = arith.constant 153 : index
    %c0_127 = arith.constant 0 : index
    %181 = vector.load %arg18[%c153, %c0_127] : memref<208x32xf32, #tpu.memory_space<vmem>>, vector<8x32xf32>
    tpu.vector_store %arg18[%c153, %c0_127], %180 {strides = array<i32>} : memref<208x32xf32, #tpu.memory_space<vmem>>, vector<8x32xf32>,
    %c7 = arith.constant 7 : index
    %c0_128 = arith.constant 0 : index
    %182 = vector.load %arg18[%c7, %c0_128] : memref<208x32xf32, #tpu.memory_space<vmem>>, vector<192x32xf32>
    %c8 = arith.constant 8 : index
    %c0_129 = arith.constant 0 : index
    %183 = vector.load %arg19[%c8, %c0_129] : memref<208x96xf32, #tpu.memory_space<vmem>>, vector<192x32xf32>
    tpu.vector_store %arg19[%c8, %c0_129], %182 {strides = array<i32>} : memref<208x96xf32, #tpu.memory_space<vmem>>, vector<192x32xf32>,
    %c8_130 = arith.constant 8 : index
    %c0_131 = arith.constant 0 : index
    %184 = vector.load %arg18[%c8_130, %c0_131] : memref<208x32xf32, #tpu.memory_space<vmem>>, vector<192x32xf32>
    %c8_132 = arith.constant 8 : index
    %c32 = arith.constant 32 : index
    %185 = vector.load %arg19[%c8_132, %c32] : memref<208x96xf32, #tpu.memory_space<vmem>>, vector<192x32xf32>
    tpu.vector_store %arg19[%c8_132, %c32], %184 {strides = array<i32>} : memref<208x96xf32, #tpu.memory_space<vmem>>, vector<192x32xf32>,
    %c9 = arith.constant 9 : index
    %c0_133 = arith.constant 0 : index
    %186 = vector.load %arg18[%c9, %c0_133] : memref<208x32xf32, #tpu.memory_space<vmem>>, vector<192x32xf32>
    %c8_134 = arith.constant 8 : index
    %c64 = arith.constant 64 : index
    %187 = vector.load %arg19[%c8_134, %c64] : memref<208x96xf32, #tpu.memory_space<vmem>>, vector<192x32xf32>
    tpu.vector_store %arg19[%c8_134, %c64], %186 {strides = array<i32>} : memref<208x96xf32, #tpu.memory_space<vmem>>, vector<192x32xf32>,
    %c8_135 = arith.constant 8 : index
    %c0_136 = arith.constant 0 : index
    %188 = vector.load %arg19[%c8_135, %c0_136] : memref<208x96xf32, #tpu.memory_space<vmem>>, vector<160x96xf32>
    %189 = arith.truncf %188 : vector<160x96xf32> to vector<160x96xbf16>
    %c0_137 = arith.constant 0 : index
    %c0_138 = arith.constant 0 : index
    %190 = vector.load %arg5[%c0_137, %c0_138] : memref<288x64xbf16, #tpu.memory_space<vmem>>, vector<96x64xbf16>
    %cst_139 = arith.constant dense<0.000000e+00> : vector<160x64xf32>
    %191 = tpu.matmul %189, %190, %cst_139 {dimension_numbers = #tpu.dot_dimension_numbers<[1], [0], [0], [1], [0, 0, 1, 1], [], []>} : vector<160x96xbf16>, vector<96x64xbf16>, vector<160x64xf32> -> vector<160x64xf32>
    %c24 = arith.constant 24 : index
    %c0_140 = arith.constant 0 : index
    %192 = vector.load %arg19[%c24, %c0_140] : memref<208x96xf32, #tpu.memory_space<vmem>>, vector<160x96xf32>
    %193 = arith.truncf %192 : vector<160x96xf32> to vector<160x96xbf16>
    %c96 = arith.constant 96 : index
    %c0_141 = arith.constant 0 : index
    %194 = vector.load %arg5[%c96, %c0_141] : memref<288x64xbf16, #tpu.memory_space<vmem>>, vector<96x64xbf16>
    %cst_142 = arith.constant dense<0.000000e+00> : vector<160x64xf32>
    %195 = tpu.matmul %193, %194, %cst_142 {dimension_numbers = #tpu.dot_dimension_numbers<[1], [0], [0], [1], [0, 0, 1, 1], [], []>} : vector<160x96xbf16>, vector<96x64xbf16>, vector<160x64xf32> -> vector<160x64xf32>
    %196 = arith.addf %191, %195 : vector<160x64xf32>
    %c40_143 = arith.constant 40 : index
    %c0_144 = arith.constant 0 : index
    %197 = vector.load %arg19[%c40_143, %c0_144] : memref<208x96xf32, #tpu.memory_space<vmem>>, vector<160x96xf32>
    %198 = arith.truncf %197 : vector<160x96xf32> to vector<160x96xbf16>
    %c192 = arith.constant 192 : index
    %c0_145 = arith.constant 0 : index
    %199 = vector.load %arg5[%c192, %c0_145] : memref<288x64xbf16, #tpu.memory_space<vmem>>, vector<96x64xbf16>
    %cst_146 = arith.constant dense<0.000000e+00> : vector<160x64xf32>
    %200 = tpu.matmul %198, %199, %cst_146 {dimension_numbers = #tpu.dot_dimension_numbers<[1], [0], [0], [1], [0, 0, 1, 1], [], []>} : vector<160x96xbf16>, vector<96x64xbf16>, vector<160x64xf32> -> vector<160x64xf32>
    %201 = arith.addf %196, %200 : vector<160x64xf32>
    %202 = tpu.iota {dimensions = array<i32: 0>} : vector<160x1xi32>
    %c15_i32 = arith.constant 15 : i32
    %203 = vector.broadcast %c15_i32 : i32 to vector<160x1xi32>
    %204 = arith.andi %202, %203 : vector<160x1xi32>
    %c16_i32_147 = arith.constant 16 : i32
    %205 = vector.broadcast %c16_i32_147 : i32 to vector<160x1xi32>
    %206 = arith.cmpi sge, %202, %205 : vector<160x1xi32>
    %c144_i32 = arith.constant 144 : i32
    %207 = vector.broadcast %c144_i32 : i32 to vector<160x1xi32>
    %208 = arith.cmpi slt, %202, %207 : vector<160x1xi32>
    %209 = arith.andi %206, %208 : vector<160x1xi1>
    %c1_i32_148 = arith.constant 1 : i32
    %210 = vector.broadcast %c1_i32_148 : i32 to vector<160x1xi32>
    %211 = arith.cmpi sge, %204, %210 : vector<160x1xi32>
    %212 = arith.andi %209, %211 : vector<160x1xi1>
    %c8_i32 = arith.constant 8 : i32
    %213 = vector.broadcast %c8_i32 : i32 to vector<160x1xi32>
    %214 = arith.cmpi sle, %204, %213 : vector<160x1xi32>
    %215 = arith.andi %212, %214 : vector<160x1xi1>
    %c0_149 = arith.constant 0 : index
    %c0_150 = arith.constant 0 : index
    %216 = vector.load %arg6[%c0_149, %c0_150] : memref<1x64xf32, #tpu.memory_space<vmem>>, vector<1x64xf32>
    %217 = vector.broadcast %216 : vector<1x64xf32> to vector<160x64xf32>
    %218 = arith.mulf %201, %217 : vector<160x64xf32>
    %c0_151 = arith.constant 0 : index
    %c0_152 = arith.constant 0 : index
    %219 = vector.load %arg7[%c0_151, %c0_152] : memref<1x64xf32, #tpu.memory_space<vmem>>, vector<1x64xf32>
    %220 = vector.broadcast %219 : vector<1x64xf32> to vector<160x64xf32>
    %221 = arith.addf %218, %220 : vector<160x64xf32>
    %cst_153 = arith.constant 0.000000e+00 : f32
    %222 = vector.broadcast %cst_153 : f32 to vector<160x64xf32>
    %223 = arith.maximumf %221, %222 : vector<160x64xf32>
    %cst_154 = arith.constant 0.000000e+00 : f32
    %224 = vector.shape_cast %215 : vector<160x1xi1> to vector<160x1xi1>
    %225 = vector.broadcast %224 : vector<160x1xi1> to vector<160x64xi1>
    %226 = vector.broadcast %cst_154 : f32 to vector<160x64xf32>
    %227 = arith.select %225, %223, %226 : vector<160x64xi1>, vector<160x64xf32>
    %c24_155 = arith.constant 24 : index
    %c0_156 = arith.constant 0 : index
    %228 = vector.load %arg20[%c24_155, %c0_156] : memref<208x64xf32, #tpu.memory_space<vmem>>, vector<160x64xf32>
    tpu.vector_store %arg20[%c24_155, %c0_156], %227 {strides = array<i32>} : memref<208x64xf32, #tpu.memory_space<vmem>>, vector<160x64xf32>,
    %c24_157 = arith.constant 24 : index
    %c0_158 = arith.constant 0 : index
    %229 = tpu.strided_load %arg20[%c24_157, %c0_158] {strides = array<i32: 2, 1>} : memref<208x64xf32, #tpu.memory_space<vmem>>, vector<4x64xf32>
    %c25 = arith.constant 25 : index
    %c0_159 = arith.constant 0 : index
    %230 = tpu.strided_load %arg20[%c25, %c0_159] {strides = array<i32: 2, 1>} : memref<208x64xf32, #tpu.memory_space<vmem>>, vector<4x64xf32>
    %231 = arith.maximumf %229, %230 : vector<4x64xf32>
    %c26 = arith.constant 26 : index
    %c0_160 = arith.constant 0 : index
    %232 = tpu.strided_load %arg20[%c26, %c0_160] {strides = array<i32: 2, 1>} : memref<208x64xf32, #tpu.memory_space<vmem>>, vector<4x64xf32>
    %233 = arith.maximumf %231, %232 : vector<4x64xf32>
    %c40_161 = arith.constant 40 : index
    %c0_162 = arith.constant 0 : index
    %234 = tpu.strided_load %arg20[%c40_161, %c0_162] {strides = array<i32: 2, 1>} : memref<208x64xf32, #tpu.memory_space<vmem>>, vector<4x64xf32>
    %235 = arith.maximumf %233, %234 : vector<4x64xf32>
    %c41_163 = arith.constant 41 : index
    %c0_164 = arith.constant 0 : index
    %236 = tpu.strided_load %arg20[%c41_163, %c0_164] {strides = array<i32: 2, 1>} : memref<208x64xf32, #tpu.memory_space<vmem>>, vector<4x64xf32>
    %237 = arith.maximumf %235, %236 : vector<4x64xf32>
    %c42_165 = arith.constant 42 : index
    %c0_166 = arith.constant 0 : index
    %238 = tpu.strided_load %arg20[%c42_165, %c0_166] {strides = array<i32: 2, 1>} : memref<208x64xf32, #tpu.memory_space<vmem>>, vector<4x64xf32>
    %239 = arith.maximumf %237, %238 : vector<4x64xf32>
    %c56 = arith.constant 56 : index
    %c0_167 = arith.constant 0 : index
    %240 = tpu.strided_load %arg20[%c56, %c0_167] {strides = array<i32: 2, 1>} : memref<208x64xf32, #tpu.memory_space<vmem>>, vector<4x64xf32>
    %241 = arith.maximumf %239, %240 : vector<4x64xf32>
    %c57_168 = arith.constant 57 : index
    %c0_169 = arith.constant 0 : index
    %242 = tpu.strided_load %arg20[%c57_168, %c0_169] {strides = array<i32: 2, 1>} : memref<208x64xf32, #tpu.memory_space<vmem>>, vector<4x64xf32>
    %243 = arith.maximumf %241, %242 : vector<4x64xf32>
    %c58 = arith.constant 58 : index
    %c0_170 = arith.constant 0 : index
    %244 = tpu.strided_load %arg20[%c58, %c0_170] {strides = array<i32: 2, 1>} : memref<208x64xf32, #tpu.memory_space<vmem>>, vector<4x64xf32>
    %245 = arith.maximumf %243, %244 : vector<4x64xf32>
    %c25_171 = arith.constant 25 : index
    %c0_172 = arith.constant 0 : index
    %246 = vector.load %arg21[%c25_171, %c0_172] : memref<80x64xf32, #tpu.memory_space<vmem>>, vector<4x64xf32>
    tpu.vector_store %arg21[%c25_171, %c0_172], %245 {strides = array<i32>} : memref<80x64xf32, #tpu.memory_space<vmem>>, vector<4x64xf32>,
    %c56_173 = arith.constant 56 : index
    %c0_174 = arith.constant 0 : index
    %247 = tpu.strided_load %arg20[%c56_173, %c0_174] {strides = array<i32: 2, 1>} : memref<208x64xf32, #tpu.memory_space<vmem>>, vector<4x64xf32>
    %c57_175 = arith.constant 57 : index
    %c0_176 = arith.constant 0 : index
    %248 = tpu.strided_load %arg20[%c57_175, %c0_176] {strides = array<i32: 2, 1>} : memref<208x64xf32, #tpu.memory_space<vmem>>, vector<4x64xf32>
    %249 = arith.maximumf %247, %248 : vector<4x64xf32>
    %c58_177 = arith.constant 58 : index
    %c0_178 = arith.constant 0 : index
    %250 = tpu.strided_load %arg20[%c58_177, %c0_178] {strides = array<i32: 2, 1>} : memref<208x64xf32, #tpu.memory_space<vmem>>, vector<4x64xf32>
    %251 = arith.maximumf %249, %250 : vector<4x64xf32>
    %c72_179 = arith.constant 72 : index
    %c0_180 = arith.constant 0 : index
    %252 = tpu.strided_load %arg20[%c72_179, %c0_180] {strides = array<i32: 2, 1>} : memref<208x64xf32, #tpu.memory_space<vmem>>, vector<4x64xf32>
    %253 = arith.maximumf %251, %252 : vector<4x64xf32>
    %c73_181 = arith.constant 73 : index
    %c0_182 = arith.constant 0 : index
    %254 = tpu.strided_load %arg20[%c73_181, %c0_182] {strides = array<i32: 2, 1>} : memref<208x64xf32, #tpu.memory_space<vmem>>, vector<4x64xf32>
    %255 = arith.maximumf %253, %254 : vector<4x64xf32>
    %c74_183 = arith.constant 74 : index
    %c0_184 = arith.constant 0 : index
    %256 = tpu.strided_load %arg20[%c74_183, %c0_184] {strides = array<i32: 2, 1>} : memref<208x64xf32, #tpu.memory_space<vmem>>, vector<4x64xf32>
    %257 = arith.maximumf %255, %256 : vector<4x64xf32>
    %c88 = arith.constant 88 : index
    %c0_185 = arith.constant 0 : index
    %258 = tpu.strided_load %arg20[%c88, %c0_185] {strides = array<i32: 2, 1>} : memref<208x64xf32, #tpu.memory_space<vmem>>, vector<4x64xf32>
    %259 = arith.maximumf %257, %258 : vector<4x64xf32>
    %c89_186 = arith.constant 89 : index
    %c0_187 = arith.constant 0 : index
    %260 = tpu.strided_load %arg20[%c89_186, %c0_187] {strides = array<i32: 2, 1>} : memref<208x64xf32, #tpu.memory_space<vmem>>, vector<4x64xf32>
    %261 = arith.maximumf %259, %260 : vector<4x64xf32>
    %c90 = arith.constant 90 : index
    %c0_188 = arith.constant 0 : index
    %262 = tpu.strided_load %arg20[%c90, %c0_188] {strides = array<i32: 2, 1>} : memref<208x64xf32, #tpu.memory_space<vmem>>, vector<4x64xf32>
    %263 = arith.maximumf %261, %262 : vector<4x64xf32>
    %c33 = arith.constant 33 : index
    %c0_189 = arith.constant 0 : index
    %264 = vector.load %arg21[%c33, %c0_189] : memref<80x64xf32, #tpu.memory_space<vmem>>, vector<4x64xf32>
    tpu.vector_store %arg21[%c33, %c0_189], %263 {strides = array<i32>} : memref<80x64xf32, #tpu.memory_space<vmem>>, vector<4x64xf32>,
    %c88_190 = arith.constant 88 : index
    %c0_191 = arith.constant 0 : index
    %265 = tpu.strided_load %arg20[%c88_190, %c0_191] {strides = array<i32: 2, 1>} : memref<208x64xf32, #tpu.memory_space<vmem>>, vector<4x64xf32>
    %c89_192 = arith.constant 89 : index
    %c0_193 = arith.constant 0 : index
    %266 = tpu.strided_load %arg20[%c89_192, %c0_193] {strides = array<i32: 2, 1>} : memref<208x64xf32, #tpu.memory_space<vmem>>, vector<4x64xf32>
    %267 = arith.maximumf %265, %266 : vector<4x64xf32>
    %c90_194 = arith.constant 90 : index
    %c0_195 = arith.constant 0 : index
    %268 = tpu.strided_load %arg20[%c90_194, %c0_195] {strides = array<i32: 2, 1>} : memref<208x64xf32, #tpu.memory_space<vmem>>, vector<4x64xf32>
    %269 = arith.maximumf %267, %268 : vector<4x64xf32>
    %c104_196 = arith.constant 104 : index
    %c0_197 = arith.constant 0 : index
    %270 = tpu.strided_load %arg20[%c104_196, %c0_197] {strides = array<i32: 2, 1>} : memref<208x64xf32, #tpu.memory_space<vmem>>, vector<4x64xf32>
    %271 = arith.maximumf %269, %270 : vector<4x64xf32>
    %c105_198 = arith.constant 105 : index
    %c0_199 = arith.constant 0 : index
    %272 = tpu.strided_load %arg20[%c105_198, %c0_199] {strides = array<i32: 2, 1>} : memref<208x64xf32, #tpu.memory_space<vmem>>, vector<4x64xf32>
    %273 = arith.maximumf %271, %272 : vector<4x64xf32>
    %c106_200 = arith.constant 106 : index
    %c0_201 = arith.constant 0 : index
    %274 = tpu.strided_load %arg20[%c106_200, %c0_201] {strides = array<i32: 2, 1>} : memref<208x64xf32, #tpu.memory_space<vmem>>, vector<4x64xf32>
    %275 = arith.maximumf %273, %274 : vector<4x64xf32>
    %c120 = arith.constant 120 : index
    %c0_202 = arith.constant 0 : index
    %276 = tpu.strided_load %arg20[%c120, %c0_202] {strides = array<i32: 2, 1>} : memref<208x64xf32, #tpu.memory_space<vmem>>, vector<4x64xf32>
    %277 = arith.maximumf %275, %276 : vector<4x64xf32>
    %c121_203 = arith.constant 121 : index
    %c0_204 = arith.constant 0 : index
    %278 = tpu.strided_load %arg20[%c121_203, %c0_204] {strides = array<i32: 2, 1>} : memref<208x64xf32, #tpu.memory_space<vmem>>, vector<4x64xf32>
    %279 = arith.maximumf %277, %278 : vector<4x64xf32>
    %c122 = arith.constant 122 : index
    %c0_205 = arith.constant 0 : index
    %280 = tpu.strided_load %arg20[%c122, %c0_205] {strides = array<i32: 2, 1>} : memref<208x64xf32, #tpu.memory_space<vmem>>, vector<4x64xf32>
    %281 = arith.maximumf %279, %280 : vector<4x64xf32>
    %c41_206 = arith.constant 41 : index
    %c0_207 = arith.constant 0 : index
    %282 = vector.load %arg21[%c41_206, %c0_207] : memref<80x64xf32, #tpu.memory_space<vmem>>, vector<4x64xf32>
    tpu.vector_store %arg21[%c41_206, %c0_207], %281 {strides = array<i32>} : memref<80x64xf32, #tpu.memory_space<vmem>>, vector<4x64xf32>,
    %c120_208 = arith.constant 120 : index
    %c0_209 = arith.constant 0 : index
    %283 = tpu.strided_load %arg20[%c120_208, %c0_209] {strides = array<i32: 2, 1>} : memref<208x64xf32, #tpu.memory_space<vmem>>, vector<4x64xf32>
    %c121_210 = arith.constant 121 : index
    %c0_211 = arith.constant 0 : index
    %284 = tpu.strided_load %arg20[%c121_210, %c0_211] {strides = array<i32: 2, 1>} : memref<208x64xf32, #tpu.memory_space<vmem>>, vector<4x64xf32>
    %285 = arith.maximumf %283, %284 : vector<4x64xf32>
    %c122_212 = arith.constant 122 : index
    %c0_213 = arith.constant 0 : index
    %286 = tpu.strided_load %arg20[%c122_212, %c0_213] {strides = array<i32: 2, 1>} : memref<208x64xf32, #tpu.memory_space<vmem>>, vector<4x64xf32>
    %287 = arith.maximumf %285, %286 : vector<4x64xf32>
    %c136_214 = arith.constant 136 : index
    %c0_215 = arith.constant 0 : index
    %288 = tpu.strided_load %arg20[%c136_214, %c0_215] {strides = array<i32: 2, 1>} : memref<208x64xf32, #tpu.memory_space<vmem>>, vector<4x64xf32>
    %289 = arith.maximumf %287, %288 : vector<4x64xf32>
    %c137_216 = arith.constant 137 : index
    %c0_217 = arith.constant 0 : index
    %290 = tpu.strided_load %arg20[%c137_216, %c0_217] {strides = array<i32: 2, 1>} : memref<208x64xf32, #tpu.memory_space<vmem>>, vector<4x64xf32>
    %291 = arith.maximumf %289, %290 : vector<4x64xf32>
    %c138_218 = arith.constant 138 : index
    %c0_219 = arith.constant 0 : index
    %292 = tpu.strided_load %arg20[%c138_218, %c0_219] {strides = array<i32: 2, 1>} : memref<208x64xf32, #tpu.memory_space<vmem>>, vector<4x64xf32>
    %293 = arith.maximumf %291, %292 : vector<4x64xf32>
    %c152 = arith.constant 152 : index
    %c0_220 = arith.constant 0 : index
    %294 = tpu.strided_load %arg20[%c152, %c0_220] {strides = array<i32: 2, 1>} : memref<208x64xf32, #tpu.memory_space<vmem>>, vector<4x64xf32>
    %295 = arith.maximumf %293, %294 : vector<4x64xf32>
    %c153_221 = arith.constant 153 : index
    %c0_222 = arith.constant 0 : index
    %296 = tpu.strided_load %arg20[%c153_221, %c0_222] {strides = array<i32: 2, 1>} : memref<208x64xf32, #tpu.memory_space<vmem>>, vector<4x64xf32>
    %297 = arith.maximumf %295, %296 : vector<4x64xf32>
    %c154 = arith.constant 154 : index
    %c0_223 = arith.constant 0 : index
    %298 = tpu.strided_load %arg20[%c154, %c0_223] {strides = array<i32: 2, 1>} : memref<208x64xf32, #tpu.memory_space<vmem>>, vector<4x64xf32>
    %299 = arith.maximumf %297, %298 : vector<4x64xf32>
    %c49 = arith.constant 49 : index
    %c0_224 = arith.constant 0 : index
    %300 = vector.load %arg21[%c49, %c0_224] : memref<80x64xf32, #tpu.memory_space<vmem>>, vector<4x64xf32>
    tpu.vector_store %arg21[%c49, %c0_224], %299 {strides = array<i32>} : memref<80x64xf32, #tpu.memory_space<vmem>>, vector<4x64xf32>,
    %c7_225 = arith.constant 7 : index
    %c0_226 = arith.constant 0 : index
    %301 = vector.load %arg21[%c7_225, %c0_226] : memref<80x64xf32, #tpu.memory_space<vmem>>, vector<64x64xf32>
    %c8_227 = arith.constant 8 : index
    %c0_228 = arith.constant 0 : index
    %302 = vector.load %arg22[%c8_227, %c0_228] : memref<80x192xf32, #tpu.memory_space<vmem>>, vector<64x64xf32>
    tpu.vector_store %arg22[%c8_227, %c0_228], %301 {strides = array<i32>} : memref<80x192xf32, #tpu.memory_space<vmem>>, vector<64x64xf32>,
    %c8_229 = arith.constant 8 : index
    %c0_230 = arith.constant 0 : index
    %303 = vector.load %arg21[%c8_229, %c0_230] : memref<80x64xf32, #tpu.memory_space<vmem>>, vector<64x64xf32>
    %c8_231 = arith.constant 8 : index
    %c64_232 = arith.constant 64 : index
    %304 = vector.load %arg22[%c8_231, %c64_232] : memref<80x192xf32, #tpu.memory_space<vmem>>, vector<64x64xf32>
    tpu.vector_store %arg22[%c8_231, %c64_232], %303 {strides = array<i32>} : memref<80x192xf32, #tpu.memory_space<vmem>>, vector<64x64xf32>,
    %c9_233 = arith.constant 9 : index
    %c0_234 = arith.constant 0 : index
    %305 = vector.load %arg21[%c9_233, %c0_234] : memref<80x64xf32, #tpu.memory_space<vmem>>, vector<64x64xf32>
    %c8_235 = arith.constant 8 : index
    %c128 = arith.constant 128 : index
    %306 = vector.load %arg22[%c8_235, %c128] : memref<80x192xf32, #tpu.memory_space<vmem>>, vector<64x64xf32>
    tpu.vector_store %arg22[%c8_235, %c128], %305 {strides = array<i32>} : memref<80x192xf32, #tpu.memory_space<vmem>>, vector<64x64xf32>,
    %c8_236 = arith.constant 8 : index
    %c0_237 = arith.constant 0 : index
    %307 = vector.load %arg22[%c8_236, %c0_237] : memref<80x192xf32, #tpu.memory_space<vmem>>, vector<48x192xf32>
    %308 = arith.truncf %307 : vector<48x192xf32> to vector<48x192xbf16>
    %c0_238 = arith.constant 0 : index
    %c0_239 = arith.constant 0 : index
    %309 = vector.load %arg8[%c0_238, %c0_239] : memref<576x128xbf16, #tpu.memory_space<vmem>>, vector<192x128xbf16>
    %cst_240 = arith.constant dense<0.000000e+00> : vector<48x128xf32>
    %310 = tpu.matmul %308, %309, %cst_240 {dimension_numbers = #tpu.dot_dimension_numbers<[1], [0], [0], [1], [0, 0, 1, 1], [], []>} : vector<48x192xbf16>, vector<192x128xbf16>, vector<48x128xf32> -> vector<48x128xf32>
    %c16 = arith.constant 16 : index
    %c0_241 = arith.constant 0 : index
    %311 = vector.load %arg22[%c16, %c0_241] : memref<80x192xf32, #tpu.memory_space<vmem>>, vector<48x192xf32>
    %312 = arith.truncf %311 : vector<48x192xf32> to vector<48x192xbf16>
    %c192_242 = arith.constant 192 : index
    %c0_243 = arith.constant 0 : index
    %313 = vector.load %arg8[%c192_242, %c0_243] : memref<576x128xbf16, #tpu.memory_space<vmem>>, vector<192x128xbf16>
    %cst_244 = arith.constant dense<0.000000e+00> : vector<48x128xf32>
    %314 = tpu.matmul %312, %313, %cst_244 {dimension_numbers = #tpu.dot_dimension_numbers<[1], [0], [0], [1], [0, 0, 1, 1], [], []>} : vector<48x192xbf16>, vector<192x128xbf16>, vector<48x128xf32> -> vector<48x128xf32>
    %315 = arith.addf %310, %314 : vector<48x128xf32>
    %c24_245 = arith.constant 24 : index
    %c0_246 = arith.constant 0 : index
    %316 = vector.load %arg22[%c24_245, %c0_246] : memref<80x192xf32, #tpu.memory_space<vmem>>, vector<48x192xf32>
    %317 = arith.truncf %316 : vector<48x192xf32> to vector<48x192xbf16>
    %c384 = arith.constant 384 : index
    %c0_247 = arith.constant 0 : index
    %318 = vector.load %arg8[%c384, %c0_247] : memref<576x128xbf16, #tpu.memory_space<vmem>>, vector<192x128xbf16>
    %cst_248 = arith.constant dense<0.000000e+00> : vector<48x128xf32>
    %319 = tpu.matmul %317, %318, %cst_248 {dimension_numbers = #tpu.dot_dimension_numbers<[1], [0], [0], [1], [0, 0, 1, 1], [], []>} : vector<48x192xbf16>, vector<192x128xbf16>, vector<48x128xf32> -> vector<48x128xf32>
    %320 = arith.addf %315, %319 : vector<48x128xf32>
    %321 = tpu.iota {dimensions = array<i32: 0>} : vector<48x1xi32>
    %c7_i32 = arith.constant 7 : i32
    %322 = vector.broadcast %c7_i32 : i32 to vector<48x1xi32>
    %323 = arith.andi %321, %322 : vector<48x1xi32>
    %c8_i32_249 = arith.constant 8 : i32
    %324 = vector.broadcast %c8_i32_249 : i32 to vector<48x1xi32>
    %325 = arith.cmpi sge, %321, %324 : vector<48x1xi32>
    %c40_i32 = arith.constant 40 : i32
    %326 = vector.broadcast %c40_i32 : i32 to vector<48x1xi32>
    %327 = arith.cmpi slt, %321, %326 : vector<48x1xi32>
    %328 = arith.andi %325, %327 : vector<48x1xi1>
    %c1_i32_250 = arith.constant 1 : i32
    %329 = vector.broadcast %c1_i32_250 : i32 to vector<48x1xi32>
    %330 = arith.cmpi sge, %323, %329 : vector<48x1xi32>
    %331 = arith.andi %328, %330 : vector<48x1xi1>
    %c4_i32 = arith.constant 4 : i32
    %332 = vector.broadcast %c4_i32 : i32 to vector<48x1xi32>
    %333 = arith.cmpi sle, %323, %332 : vector<48x1xi32>
    %334 = arith.andi %331, %333 : vector<48x1xi1>
    %c0_251 = arith.constant 0 : index
    %c0_252 = arith.constant 0 : index
    %335 = vector.load %arg9[%c0_251, %c0_252] : memref<1x128xf32, #tpu.memory_space<vmem>>, vector<1x128xf32>
    %336 = vector.broadcast %335 : vector<1x128xf32> to vector<48x128xf32>
    %337 = arith.mulf %320, %336 : vector<48x128xf32>
    %c0_253 = arith.constant 0 : index
    %c0_254 = arith.constant 0 : index
    %338 = vector.load %arg10[%c0_253, %c0_254] : memref<1x128xf32, #tpu.memory_space<vmem>>, vector<1x128xf32>
    %339 = vector.broadcast %338 : vector<1x128xf32> to vector<48x128xf32>
    %340 = arith.addf %337, %339 : vector<48x128xf32>
    %cst_255 = arith.constant 0.000000e+00 : f32
    %341 = vector.broadcast %cst_255 : f32 to vector<48x128xf32>
    %342 = arith.maximumf %340, %341 : vector<48x128xf32>
    %cst_256 = arith.constant 0.000000e+00 : f32
    %343 = vector.shape_cast %334 : vector<48x1xi1> to vector<48x1xi1>
    %344 = vector.broadcast %343 : vector<48x1xi1> to vector<48x128xi1>
    %345 = vector.broadcast %cst_256 : f32 to vector<48x128xf32>
    %346 = arith.select %344, %342, %345 : vector<48x128xi1>, vector<48x128xf32>
    %c16_257 = arith.constant 16 : index
    %c0_258 = arith.constant 0 : index
    %347 = vector.load %arg23[%c16_257, %c0_258] : memref<80x128xf32, #tpu.memory_space<vmem>>, vector<48x128xf32>
    tpu.vector_store %arg23[%c16_257, %c0_258], %346 {strides = array<i32>} : memref<80x128xf32, #tpu.memory_space<vmem>>, vector<48x128xf32>,
    %c16_259 = arith.constant 16 : index
    %c0_260 = arith.constant 0 : index
    %348 = tpu.strided_load %arg23[%c16_259, %c0_260] {strides = array<i32: 2, 1>} : memref<80x128xf32, #tpu.memory_space<vmem>>, vector<2x128xf32>
    %c17 = arith.constant 17 : index
    %c0_261 = arith.constant 0 : index
    %349 = tpu.strided_load %arg23[%c17, %c0_261] {strides = array<i32: 2, 1>} : memref<80x128xf32, #tpu.memory_space<vmem>>, vector<2x128xf32>
    %350 = arith.maximumf %348, %349 : vector<2x128xf32>
    %c18 = arith.constant 18 : index
    %c0_262 = arith.constant 0 : index
    %351 = tpu.strided_load %arg23[%c18, %c0_262] {strides = array<i32: 2, 1>} : memref<80x128xf32, #tpu.memory_space<vmem>>, vector<2x128xf32>
    %352 = arith.maximumf %350, %351 : vector<2x128xf32>
    %c24_263 = arith.constant 24 : index
    %c0_264 = arith.constant 0 : index
    %353 = tpu.strided_load %arg23[%c24_263, %c0_264] {strides = array<i32: 2, 1>} : memref<80x128xf32, #tpu.memory_space<vmem>>, vector<2x128xf32>
    %354 = arith.maximumf %352, %353 : vector<2x128xf32>
    %c25_265 = arith.constant 25 : index
    %c0_266 = arith.constant 0 : index
    %355 = tpu.strided_load %arg23[%c25_265, %c0_266] {strides = array<i32: 2, 1>} : memref<80x128xf32, #tpu.memory_space<vmem>>, vector<2x128xf32>
    %356 = arith.maximumf %354, %355 : vector<2x128xf32>
    %c26_267 = arith.constant 26 : index
    %c0_268 = arith.constant 0 : index
    %357 = tpu.strided_load %arg23[%c26_267, %c0_268] {strides = array<i32: 2, 1>} : memref<80x128xf32, #tpu.memory_space<vmem>>, vector<2x128xf32>
    %358 = arith.maximumf %356, %357 : vector<2x128xf32>
    %c32_269 = arith.constant 32 : index
    %c0_270 = arith.constant 0 : index
    %359 = tpu.strided_load %arg23[%c32_269, %c0_270] {strides = array<i32: 2, 1>} : memref<80x128xf32, #tpu.memory_space<vmem>>, vector<2x128xf32>
    %360 = arith.maximumf %358, %359 : vector<2x128xf32>
    %c33_271 = arith.constant 33 : index
    %c0_272 = arith.constant 0 : index
    %361 = tpu.strided_load %arg23[%c33_271, %c0_272] {strides = array<i32: 2, 1>} : memref<80x128xf32, #tpu.memory_space<vmem>>, vector<2x128xf32>
    %362 = arith.maximumf %360, %361 : vector<2x128xf32>
    %c34 = arith.constant 34 : index
    %c0_273 = arith.constant 0 : index
    %363 = tpu.strided_load %arg23[%c34, %c0_273] {strides = array<i32: 2, 1>} : memref<80x128xf32, #tpu.memory_space<vmem>>, vector<2x128xf32>
    %364 = arith.maximumf %362, %363 : vector<2x128xf32>
    %c25_274 = arith.constant 25 : index
    %c0_275 = arith.constant 0 : index
    %365 = vector.load %arg24[%c25_274, %c0_275] : memref<64x128xf32, #tpu.memory_space<vmem>>, vector<2x128xf32>
    tpu.vector_store %arg24[%c25_274, %c0_275], %364 {strides = array<i32>} : memref<64x128xf32, #tpu.memory_space<vmem>>, vector<2x128xf32>,
    %c32_276 = arith.constant 32 : index
    %c0_277 = arith.constant 0 : index
    %366 = tpu.strided_load %arg23[%c32_276, %c0_277] {strides = array<i32: 2, 1>} : memref<80x128xf32, #tpu.memory_space<vmem>>, vector<2x128xf32>
    %c33_278 = arith.constant 33 : index
    %c0_279 = arith.constant 0 : index
    %367 = tpu.strided_load %arg23[%c33_278, %c0_279] {strides = array<i32: 2, 1>} : memref<80x128xf32, #tpu.memory_space<vmem>>, vector<2x128xf32>
    %368 = arith.maximumf %366, %367 : vector<2x128xf32>
    %c34_280 = arith.constant 34 : index
    %c0_281 = arith.constant 0 : index
    %369 = tpu.strided_load %arg23[%c34_280, %c0_281] {strides = array<i32: 2, 1>} : memref<80x128xf32, #tpu.memory_space<vmem>>, vector<2x128xf32>
    %370 = arith.maximumf %368, %369 : vector<2x128xf32>
    %c40_282 = arith.constant 40 : index
    %c0_283 = arith.constant 0 : index
    %371 = tpu.strided_load %arg23[%c40_282, %c0_283] {strides = array<i32: 2, 1>} : memref<80x128xf32, #tpu.memory_space<vmem>>, vector<2x128xf32>
    %372 = arith.maximumf %370, %371 : vector<2x128xf32>
    %c41_284 = arith.constant 41 : index
    %c0_285 = arith.constant 0 : index
    %373 = tpu.strided_load %arg23[%c41_284, %c0_285] {strides = array<i32: 2, 1>} : memref<80x128xf32, #tpu.memory_space<vmem>>, vector<2x128xf32>
    %374 = arith.maximumf %372, %373 : vector<2x128xf32>
    %c42_286 = arith.constant 42 : index
    %c0_287 = arith.constant 0 : index
    %375 = tpu.strided_load %arg23[%c42_286, %c0_287] {strides = array<i32: 2, 1>} : memref<80x128xf32, #tpu.memory_space<vmem>>, vector<2x128xf32>
    %376 = arith.maximumf %374, %375 : vector<2x128xf32>
    %c48 = arith.constant 48 : index
    %c0_288 = arith.constant 0 : index
    %377 = tpu.strided_load %arg23[%c48, %c0_288] {strides = array<i32: 2, 1>} : memref<80x128xf32, #tpu.memory_space<vmem>>, vector<2x128xf32>
    %378 = arith.maximumf %376, %377 : vector<2x128xf32>
    %c49_289 = arith.constant 49 : index
    %c0_290 = arith.constant 0 : index
    %379 = tpu.strided_load %arg23[%c49_289, %c0_290] {strides = array<i32: 2, 1>} : memref<80x128xf32, #tpu.memory_space<vmem>>, vector<2x128xf32>
    %380 = arith.maximumf %378, %379 : vector<2x128xf32>
    %c50 = arith.constant 50 : index
    %c0_291 = arith.constant 0 : index
    %381 = tpu.strided_load %arg23[%c50, %c0_291] {strides = array<i32: 2, 1>} : memref<80x128xf32, #tpu.memory_space<vmem>>, vector<2x128xf32>
    %382 = arith.maximumf %380, %381 : vector<2x128xf32>
    %c33_292 = arith.constant 33 : index
    %c0_293 = arith.constant 0 : index
    %383 = vector.load %arg24[%c33_292, %c0_293] : memref<64x128xf32, #tpu.memory_space<vmem>>, vector<2x128xf32>
    tpu.vector_store %arg24[%c33_292, %c0_293], %382 {strides = array<i32>} : memref<64x128xf32, #tpu.memory_space<vmem>>, vector<2x128xf32>,
    %c7_294 = arith.constant 7 : index
    %c0_295 = arith.constant 0 : index
    %384 = vector.load %arg24[%c7_294, %c0_295] : memref<64x128xf32, #tpu.memory_space<vmem>>, vector<48x128xf32>
    %c8_296 = arith.constant 8 : index
    %c0_297 = arith.constant 0 : index
    %385 = vector.load %arg25[%c8_296, %c0_297] : memref<64x384xf32, #tpu.memory_space<vmem>>, vector<48x128xf32>
    tpu.vector_store %arg25[%c8_296, %c0_297], %384 {strides = array<i32>} : memref<64x384xf32, #tpu.memory_space<vmem>>, vector<48x128xf32>,
    %c8_298 = arith.constant 8 : index
    %c0_299 = arith.constant 0 : index
    %386 = vector.load %arg24[%c8_298, %c0_299] : memref<64x128xf32, #tpu.memory_space<vmem>>, vector<48x128xf32>
    %c8_300 = arith.constant 8 : index
    %c128_301 = arith.constant 128 : index
    %387 = vector.load %arg25[%c8_300, %c128_301] : memref<64x384xf32, #tpu.memory_space<vmem>>, vector<48x128xf32>
    tpu.vector_store %arg25[%c8_300, %c128_301], %386 {strides = array<i32>} : memref<64x384xf32, #tpu.memory_space<vmem>>, vector<48x128xf32>,
    %c9_302 = arith.constant 9 : index
    %c0_303 = arith.constant 0 : index
    %388 = vector.load %arg24[%c9_302, %c0_303] : memref<64x128xf32, #tpu.memory_space<vmem>>, vector<48x128xf32>
    %c8_304 = arith.constant 8 : index
    %c256 = arith.constant 256 : index
    %389 = vector.load %arg25[%c8_304, %c256] : memref<64x384xf32, #tpu.memory_space<vmem>>, vector<48x128xf32>
    tpu.vector_store %arg25[%c8_304, %c256], %388 {strides = array<i32>} : memref<64x384xf32, #tpu.memory_space<vmem>>, vector<48x128xf32>,
    %c8_305 = arith.constant 8 : index
    %c0_306 = arith.constant 0 : index
    %390 = vector.load %arg25[%c8_305, %c0_306] : memref<64x384xf32, #tpu.memory_space<vmem>>, vector<32x384xf32>
    %391 = arith.truncf %390 : vector<32x384xf32> to vector<32x384xbf16>
    %c0_307 = arith.constant 0 : index
    %c0_308 = arith.constant 0 : index
    %392 = vector.load %arg11[%c0_307, %c0_308] : memref<1152x256xbf16, #tpu.memory_space<vmem>>, vector<384x256xbf16>
    %cst_309 = arith.constant dense<0.000000e+00> : vector<32x256xf32>
    %393 = tpu.matmul %391, %392, %cst_309 {dimension_numbers = #tpu.dot_dimension_numbers<[1], [0], [0], [1], [0, 0, 1, 1], [], []>} : vector<32x384xbf16>, vector<384x256xbf16>, vector<32x256xf32> -> vector<32x256xf32>
    %c16_310 = arith.constant 16 : index
    %c0_311 = arith.constant 0 : index
    %394 = vector.load %arg25[%c16_310, %c0_311] : memref<64x384xf32, #tpu.memory_space<vmem>>, vector<32x384xf32>
    %395 = arith.truncf %394 : vector<32x384xf32> to vector<32x384xbf16>
    %c384_312 = arith.constant 384 : index
    %c0_313 = arith.constant 0 : index
    %396 = vector.load %arg11[%c384_312, %c0_313] : memref<1152x256xbf16, #tpu.memory_space<vmem>>, vector<384x256xbf16>
    %cst_314 = arith.constant dense<0.000000e+00> : vector<32x256xf32>
    %397 = tpu.matmul %395, %396, %cst_314 {dimension_numbers = #tpu.dot_dimension_numbers<[1], [0], [0], [1], [0, 0, 1, 1], [], []>} : vector<32x384xbf16>, vector<384x256xbf16>, vector<32x256xf32> -> vector<32x256xf32>
    %398 = arith.addf %393, %397 : vector<32x256xf32>
    %c24_315 = arith.constant 24 : index
    %c0_316 = arith.constant 0 : index
    %399 = vector.load %arg25[%c24_315, %c0_316] : memref<64x384xf32, #tpu.memory_space<vmem>>, vector<32x384xf32>
    %400 = arith.truncf %399 : vector<32x384xf32> to vector<32x384xbf16>
    %c768 = arith.constant 768 : index
    %c0_317 = arith.constant 0 : index
    %401 = vector.load %arg11[%c768, %c0_317] : memref<1152x256xbf16, #tpu.memory_space<vmem>>, vector<384x256xbf16>
    %cst_318 = arith.constant dense<0.000000e+00> : vector<32x256xf32>
    %402 = tpu.matmul %400, %401, %cst_318 {dimension_numbers = #tpu.dot_dimension_numbers<[1], [0], [0], [1], [0, 0, 1, 1], [], []>} : vector<32x384xbf16>, vector<384x256xbf16>, vector<32x256xf32> -> vector<32x256xf32>
    %403 = arith.addf %398, %402 : vector<32x256xf32>
    %404 = tpu.iota {dimensions = array<i32: 0>} : vector<32x1xi32>
    %c7_i32_319 = arith.constant 7 : i32
    %405 = vector.broadcast %c7_i32_319 : i32 to vector<32x1xi32>
    %406 = arith.andi %404, %405 : vector<32x1xi32>
    %c8_i32_320 = arith.constant 8 : i32
    %407 = vector.broadcast %c8_i32_320 : i32 to vector<32x1xi32>
    %408 = arith.cmpi sge, %404, %407 : vector<32x1xi32>
    %c24_i32 = arith.constant 24 : i32
    %409 = vector.broadcast %c24_i32 : i32 to vector<32x1xi32>
    %410 = arith.cmpi slt, %404, %409 : vector<32x1xi32>
    %411 = arith.andi %408, %410 : vector<32x1xi1>
    %c1_i32_321 = arith.constant 1 : i32
    %412 = vector.broadcast %c1_i32_321 : i32 to vector<32x1xi32>
    %413 = arith.cmpi sge, %406, %412 : vector<32x1xi32>
    %414 = arith.andi %411, %413 : vector<32x1xi1>
    %c2_i32 = arith.constant 2 : i32
    %415 = vector.broadcast %c2_i32 : i32 to vector<32x1xi32>
    %416 = arith.cmpi sle, %406, %415 : vector<32x1xi32>
    %417 = arith.andi %414, %416 : vector<32x1xi1>
    %c0_322 = arith.constant 0 : index
    %c0_323 = arith.constant 0 : index
    %418 = vector.load %arg12[%c0_322, %c0_323] : memref<1x256xf32, #tpu.memory_space<vmem>>, vector<1x256xf32>
    %419 = vector.broadcast %418 : vector<1x256xf32> to vector<32x256xf32>
    %420 = arith.mulf %403, %419 : vector<32x256xf32>
    %c0_324 = arith.constant 0 : index
    %c0_325 = arith.constant 0 : index
    %421 = vector.load %arg13[%c0_324, %c0_325] : memref<1x256xf32, #tpu.memory_space<vmem>>, vector<1x256xf32>
    %422 = vector.broadcast %421 : vector<1x256xf32> to vector<32x256xf32>
    %423 = arith.addf %420, %422 : vector<32x256xf32>
    %cst_326 = arith.constant 0.000000e+00 : f32
    %424 = vector.broadcast %cst_326 : f32 to vector<32x256xf32>
    %425 = arith.maximumf %423, %424 : vector<32x256xf32>
    %cst_327 = arith.constant 0.000000e+00 : f32
    %426 = vector.shape_cast %417 : vector<32x1xi1> to vector<32x1xi1>
    %427 = vector.broadcast %426 : vector<32x1xi1> to vector<32x256xi1>
    %428 = vector.broadcast %cst_327 : f32 to vector<32x256xf32>
    %429 = arith.select %427, %425, %428 : vector<32x256xi1>, vector<32x256xf32>
    %c16_328 = arith.constant 16 : index
    %c0_329 = arith.constant 0 : index
    %430 = vector.load %arg26[%c16_328, %c0_329] : memref<64x256xf32, #tpu.memory_space<vmem>>, vector<32x256xf32>
    tpu.vector_store %arg26[%c16_328, %c0_329], %429 {strides = array<i32>} : memref<64x256xf32, #tpu.memory_space<vmem>>, vector<32x256xf32>,
    %c16_330 = arith.constant 16 : index
    %c0_331 = arith.constant 0 : index
    %431 = vector.load %arg26[%c16_330, %c0_331] : memref<64x256xf32, #tpu.memory_space<vmem>>, vector<1x256xf32>
    %c17_332 = arith.constant 17 : index
    %c0_333 = arith.constant 0 : index
    %432 = vector.load %arg26[%c17_332, %c0_333] : memref<64x256xf32, #tpu.memory_space<vmem>>, vector<1x256xf32>
    %433 = arith.maximumf %431, %432 : vector<1x256xf32>
    %c18_334 = arith.constant 18 : index
    %c0_335 = arith.constant 0 : index
    %434 = vector.load %arg26[%c18_334, %c0_335] : memref<64x256xf32, #tpu.memory_space<vmem>>, vector<1x256xf32>
    %435 = arith.maximumf %433, %434 : vector<1x256xf32>
    %c24_336 = arith.constant 24 : index
    %c0_337 = arith.constant 0 : index
    %436 = vector.load %arg26[%c24_336, %c0_337] : memref<64x256xf32, #tpu.memory_space<vmem>>, vector<1x256xf32>
    %437 = arith.maximumf %435, %436 : vector<1x256xf32>
    %c25_338 = arith.constant 25 : index
    %c0_339 = arith.constant 0 : index
    %438 = vector.load %arg26[%c25_338, %c0_339] : memref<64x256xf32, #tpu.memory_space<vmem>>, vector<1x256xf32>
    %439 = arith.maximumf %437, %438 : vector<1x256xf32>
    %c26_340 = arith.constant 26 : index
    %c0_341 = arith.constant 0 : index
    %440 = vector.load %arg26[%c26_340, %c0_341] : memref<64x256xf32, #tpu.memory_space<vmem>>, vector<1x256xf32>
    %441 = arith.maximumf %439, %440 : vector<1x256xf32>
    %c32_342 = arith.constant 32 : index
    %c0_343 = arith.constant 0 : index
    %442 = vector.load %arg26[%c32_342, %c0_343] : memref<64x256xf32, #tpu.memory_space<vmem>>, vector<1x256xf32>
    %443 = arith.maximumf %441, %442 : vector<1x256xf32>
    %c33_344 = arith.constant 33 : index
    %c0_345 = arith.constant 0 : index
    %444 = vector.load %arg26[%c33_344, %c0_345] : memref<64x256xf32, #tpu.memory_space<vmem>>, vector<1x256xf32>
    %445 = arith.maximumf %443, %444 : vector<1x256xf32>
    %c34_346 = arith.constant 34 : index
    %c0_347 = arith.constant 0 : index
    %446 = vector.load %arg26[%c34_346, %c0_347] : memref<64x256xf32, #tpu.memory_space<vmem>>, vector<1x256xf32>
    %447 = arith.maximumf %445, %446 : vector<1x256xf32>
    %c25_348 = arith.constant 25 : index
    %c0_349 = arith.constant 0 : index
    %448 = vector.load %arg27[%c25_348, %c0_349] : memref<56x256xf32, #tpu.memory_space<vmem>>, vector<1x256xf32>
    tpu.vector_store %arg27[%c25_348, %c0_349], %447 {strides = array<i32>} : memref<56x256xf32, #tpu.memory_space<vmem>>, vector<1x256xf32>,
    %c25_350 = arith.constant 25 : index
    %c0_351 = arith.constant 0 : index
    %449 = vector.load %arg27[%c25_350, %c0_351] : memref<56x256xf32, #tpu.memory_space<vmem>>, vector<1x256xf32>
    %cst_352 = arith.constant 1.000000e+00 : f32
    %450 = vector.broadcast %cst_352 : f32 to vector<1x256xf32>
    %451 = arith.mulf %449, %450 : vector<1x256xf32>
    %452 = arith.truncf %451 : vector<1x256xf32> to vector<1x256xbf16>
    %c0_353 = arith.constant 0 : index
    %c0_354 = arith.constant 0 : index
    %453 = vector.load %arg14[%c0_353, %c0_354] : memref<256x128xbf16, #tpu.memory_space<vmem>>, vector<256x128xbf16>
    %cst_355 = arith.constant dense<0.000000e+00> : vector<1x128xf32>
    %454 = tpu.matmul %452, %453, %cst_355 {dimension_numbers = #tpu.dot_dimension_numbers<[1], [0], [0], [1], [0, 0, 1, 1], [], []>} : vector<1x256xbf16>, vector<256x128xbf16>, vector<1x128xf32> -> vector<1x128xf32>
    %c0_356 = arith.constant 0 : index
    %c0_357 = arith.constant 0 : index
    %455 = vector.load %arg15[%c0_356, %c0_357] : memref<1x128xf32, #tpu.memory_space<vmem>>, vector<1x128xf32>
    %456 = arith.addf %454, %455 : vector<1x128xf32>
    %c0_358 = arith.constant 0 : index
    %c0_359 = arith.constant 0 : index
    %c0_360 = arith.constant 0 : index
    %457 = vector.load %arg16[%c0_358, %c0_359, %c0_360] : memref<1x1x128xf32, #tpu.memory_space<vmem>>, vector<1x1x128xf32>
    %458 = vector.shape_cast %457 : vector<1x1x128xf32> to vector<1x128xf32>
    %459 = vector.shape_cast %456 : vector<1x128xf32> to vector<1x1x128xf32>
    tpu.vector_store %arg16[%c0_358, %c0_359, %c0_360], %459 {strides = array<i32>} : memref<1x1x128xf32, #tpu.memory_space<vmem>>, vector<1x1x128xf32>,
    return
  }
  func.func @transform_0(%arg0: i32) -> (i32, i32) {
    %c0_i32 = arith.constant 0 : i32
    %c0_i32_0 = arith.constant 0 : i32
    return %arg0, %c0_i32 : i32, i32
  }
  func.func @transform_1(%arg0: i32) -> (i32, i32) {
    %c0_i32 = arith.constant 0 : i32
    %c0_i32_0 = arith.constant 0 : i32
    %c0_i32_1 = arith.constant 0 : i32
    return %c0_i32, %c0_i32_0 : i32, i32
  }
  func.func @transform_2(%arg0: i32) -> (i32, i32) {
    %c0_i32 = arith.constant 0 : i32
    %c0_i32_0 = arith.constant 0 : i32
    %c0_i32_1 = arith.constant 0 : i32
    return %c0_i32, %c0_i32_0 : i32, i32
  }
  func.func @transform_3(%arg0: i32) -> (i32, i32) {
    %c0_i32 = arith.constant 0 : i32
    %c0_i32_0 = arith.constant 0 : i32
    %c0_i32_1 = arith.constant 0 : i32
    return %c0_i32, %c0_i32_0 : i32, i32
  }
  func.func @transform_4(%arg0: i32) -> (i32, i32) {
    %c0_i32 = arith.constant 0 : i32
    %c0_i32_0 = arith.constant 0 : i32
    %c0_i32_1 = arith.constant 0 : i32
    return %c0_i32, %c0_i32_0 : i32, i32
  }
  func.func @transform_5(%arg0: i32) -> (i32, i32) {
    %c0_i32 = arith.constant 0 : i32
    %c0_i32_0 = arith.constant 0 : i32
    %c0_i32_1 = arith.constant 0 : i32
    return %c0_i32, %c0_i32_0 : i32, i32
  }
  func.func @transform_6(%arg0: i32) -> (i32, i32) {
    %c0_i32 = arith.constant 0 : i32
    %c0_i32_0 = arith.constant 0 : i32
    %c0_i32_1 = arith.constant 0 : i32
    return %c0_i32, %c0_i32_0 : i32, i32
  }
  func.func @transform_7(%arg0: i32) -> (i32, i32) {
    %c0_i32 = arith.constant 0 : i32
    %c0_i32_0 = arith.constant 0 : i32
    %c0_i32_1 = arith.constant 0 : i32
    return %c0_i32, %c0_i32_0 : i32, i32
  }
  func.func @transform_8(%arg0: i32) -> (i32, i32) {
    %c0_i32 = arith.constant 0 : i32
    %c0_i32_0 = arith.constant 0 : i32
    %c0_i32_1 = arith.constant 0 : i32
    return %c0_i32, %c0_i32_0 : i32, i32
  }
  func.func @transform_9(%arg0: i32) -> (i32, i32) {
    %c0_i32 = arith.constant 0 : i32
    %c0_i32_0 = arith.constant 0 : i32
    %c0_i32_1 = arith.constant 0 : i32
    return %c0_i32, %c0_i32_0 : i32, i32
  }
  func.func @transform_10(%arg0: i32) -> (i32, i32) {
    %c0_i32 = arith.constant 0 : i32
    %c0_i32_0 = arith.constant 0 : i32
    %c0_i32_1 = arith.constant 0 : i32
    return %c0_i32, %c0_i32_0 : i32, i32
  }
  func.func @transform_11(%arg0: i32) -> (i32, i32) {
    %c0_i32 = arith.constant 0 : i32
    %c0_i32_0 = arith.constant 0 : i32
    %c0_i32_1 = arith.constant 0 : i32
    return %c0_i32, %c0_i32_0 : i32, i32
  }
  func.func @transform_12(%arg0: i32) -> (i32, i32) {
    %c0_i32 = arith.constant 0 : i32
    %c0_i32_0 = arith.constant 0 : i32
    %c0_i32_1 = arith.constant 0 : i32
    return %c0_i32, %c0_i32_0 : i32, i32
  }
  func.func @transform_13(%arg0: i32) -> (i32, i32) {
    %c0_i32 = arith.constant 0 : i32
    %c0_i32_0 = arith.constant 0 : i32
    %c0_i32_1 = arith.constant 0 : i32
    return %c0_i32, %c0_i32_0 : i32, i32
  }
  func.func @transform_14(%arg0: i32) -> (i32, i32) {
    %c0_i32 = arith.constant 0 : i32
    %c0_i32_0 = arith.constant 0 : i32
    %c0_i32_1 = arith.constant 0 : i32
    return %c0_i32, %c0_i32_0 : i32, i32
  }
  func.func @transform_15(%arg0: i32) -> (i32, i32, i32) {
    %c0_i32 = arith.constant 0 : i32
    %c0_i32_0 = arith.constant 0 : i32
    %c0_i32_1 = arith.constant 0 : i32
    return %arg0, %c0_i32, %c0_i32_0 : i32, i32, i32
  }
}

</mosaic_0001>

<llo_original>
// kernel: discriminator_2d_forward.1
$region0: #{discriminator_2d_forward.1}
  #allocation0 [shape = 'u32[]', space=smem, size = 0x4, offset = 0x4, fixed_abs, tag = 'smem constant byte address 0x4 - core index']
  #allocation1 [shape = 'u32[144,128]{1,0:T(1,128)}', space=vmem, size = 0x12000, scoped, tag = 'internal scratch']
  #allocation2 [shape = 'f32[656,32]{1,0:T(8,128)}', space=vmem, size = 0x52000, scoped, tag = 'scratch operand']
  #allocation3 [shape = 'f32[208,32]{1,0:T(8,128)}', space=vmem, size = 0x1a000, scoped, tag = 'scratch operand']
  #allocation4 [shape = 'f32[208,96]{1,0:T(8,128)}', space=vmem, size = 0x1a000, scoped, tag = 'scratch operand']
  #allocation5 [shape = 'f32[208,64]{1,0:T(8,128)}', space=vmem, size = 0x1a000, scoped, tag = 'scratch operand']
  #allocation6 [shape = 'f32[80,64]{1,0:T(8,128)}', space=vmem, size = 0xa000, scoped, tag = 'scratch operand']
  #allocation7 [shape = 'f32[80,192]{1,0:T(8,128)}', space=vmem, size = 0x14000, scoped, tag = 'scratch operand']
  #allocation8 [shape = 'f32[80,128]{1,0:T(8,128)}', space=vmem, size = 0xa000, scoped, tag = 'scratch operand']
  #allocation9 [shape = 'f32[64,128]{1,0:T(8,128)}', space=vmem, size = 0x8000, scoped, tag = 'scratch operand']
  #allocation10 [shape = 'f32[64,384]{1,0:T(8,128)}', space=vmem, size = 0x18000, scoped, tag = 'scratch operand']
  #allocation11 [shape = 'f32[64,256]{1,0:T(8,128)}', space=vmem, size = 0x10000, scoped, tag = 'scratch operand']
  #allocation12 [shape = 'f32[56,256]{1,0:T(8,128)}', space=vmem, size = 0xe000, scoped, tag = 'scratch operand']
  %s0 = inlined_call_operand.vmem [shape: bf16[1152,32], index: 0, kind: input, shape index: {}]
  %s1 = inlined_call_operand.vmem [shape: bf16[32,32], index: 1, kind: input, shape index: {}]
  %s2 = inlined_call_operand.vmem [shape: f32[1,32], index: 2, kind: input, shape index: {}]
  %s3 = inlined_call_operand.vmem [shape: f32[1,32], index: 3, kind: input, shape index: {}]
  %s4 = inlined_call_operand.vmem [shape: bf16[288,64], index: 4, kind: input, shape index: {}]
  %s5 = inlined_call_operand.vmem [shape: f32[1,64], index: 5, kind: input, shape index: {}]
  %s6 = inlined_call_operand.vmem [shape: f32[1,64], index: 6, kind: input, shape index: {}]
  %s7 = inlined_call_operand.vmem [shape: bf16[576,128], index: 7, kind: input, shape index: {}]
  %s8 = inlined_call_operand.vmem [shape: f32[1,128], index: 8, kind: input, shape index: {}]
  %s9 = inlined_call_operand.vmem [shape: f32[1,128], index: 9, kind: input, shape index: {}]
  %s10 = inlined_call_operand.vmem [shape: bf16[1152,256], index: 10, kind: input, shape index: {}]
  %s11 = inlined_call_operand.vmem [shape: f32[1,256], index: 11, kind: input, shape index: {}]
  %s12 = inlined_call_operand.vmem [shape: f32[1,256], index: 12, kind: input, shape index: {}]
  %s13 = inlined_call_operand.vmem [shape: bf16[256,128], index: 13, kind: input, shape index: {}]
  %s14 = inlined_call_operand.vmem [shape: f32[1,128], index: 14, kind: input, shape index: {}]
  %s15 = inlined_call_operand.hbm [shape: f32[2,1,128], index: 15, kind: output, shape index: {}]
  %s16 = sld [smem:[#allocation0]]
  $region93: #{discriminator_2d_forward.1} parent=0
    _
  %s18 = ssub.s32 1, %s16
  %s19 = scalar_select 0, %s18, %s16
  $region1: #{discriminator_2d_forward.1} parent=0
    #allocation13 [shape = 'u8[1024]{0}', space=vmem, size = 0x400, scoped, tag = 'output window, operand 0']
    #allocation14 [shape = 's32[2]{0}', space=sflag, size = 0x8, scoped, tag = 'scoped memory for discriminator_2d_forward.1']
    %20 = vsyncpa [#allocation14], 0
    %s21 = scalar_lea.sflag [#allocation14], 1
    %22 = vsyncpa %s21, 0
    loop: start=0, step=1, limit=4
    $region2: #{discriminator_2d_forward.1} parent=1 // loop_pre_header
      _
    $region3: #{discriminator_2d_forward.1} parent=1 // loop_header
      %s24 = sphi 0, %s28
      %p25 = scmp.ge.s32.totalorder %s24, 4
      %s34 = sphi 0, %s36
      %s37 = sphi 0, %s34
      %s38 = sphi 0, %s37
      %s54 = sphi 0, %s38
      %s58 = sphi 0, %s58
      %s60 = sphi 0, %s58
      %s61 = sphi 0, %s60
      %s75 = sphi 0, %s61
      %s79 = sphi 0, %s79
      %s81 = sphi 0, %s79
      %s82 = sphi 0, %s81
      %s96 = sphi 0, %s82
      %s100 = sphi 0, %s100
      %s102 = sphi 0, %s100
      %s103 = sphi 0, %s102
      %s117 = sphi 0, %s103
      %s121 = sphi 0, %s121
      %s123 = sphi 0, %s121
      %s124 = sphi 0, %s123
      %s138 = sphi 0, %s124
      %s142 = sphi 0, %s142
      %s144 = sphi 0, %s142
      %s145 = sphi 0, %s144
      %s159 = sphi 0, %s145
      %s163 = sphi 0, %s163
      %s165 = sphi 0, %s163
      %s166 = sphi 0, %s165
      %s180 = sphi 0, %s166
      %s184 = sphi 0, %s184
      %s186 = sphi 0, %s184
      %s187 = sphi 0, %s186
      %s201 = sphi 0, %s187
      %s205 = sphi 0, %s205
      %s207 = sphi 0, %s205
      %s208 = sphi 0, %s207
      %s222 = sphi 0, %s208
      %s226 = sphi 0, %s226
      %s228 = sphi 0, %s226
      %s229 = sphi 0, %s228
      %s243 = sphi 0, %s229
      %s247 = sphi 0, %s247
      %s249 = sphi 0, %s247
      %s250 = sphi 0, %s249
      %s264 = sphi 0, %s250
      %s268 = sphi 0, %s268
      %s270 = sphi 0, %s268
      %s271 = sphi 0, %s270
      %s285 = sphi 0, %s271
      %s289 = sphi 0, %s289
      %s291 = sphi 0, %s289
      %s292 = sphi 0, %s291
      %s306 = sphi 0, %s292
      %s310 = sphi 0, %s310
      %s312 = sphi 0, %s310
      %s313 = sphi 0, %s312
      %s327 = sphi 0, %s313
      %s331 = sphi 0, %s331
      %s333 = sphi 0, %s331
      %s334 = sphi 0, %s333
      %s348 = sphi 0, %s334
      %s354 = sphi 0, %s356
      %s357 = sphi 0, %s354
      %s358 = sphi 0, %s357
      %s374 = sphi 0, %s358
    $region4: #{discriminator_2d_forward.1} parent=1 // loop_header_branch
      %27 = sbr.rel (%p25) target = $region8
    $region5: #{discriminator_2d_forward.1} parent=1 // loop_body
      %s29 = ssub.s32 %s24, 1
      %s30 = ssub.s32 %s24, 2
      %s31 = sadd.s32 %s24, 1
      %s32 = ssub.s32 %s24, %s31
      %p33 = scmp.eq.s32.totalorder %s32, 0
      %s35 = sadd.s32 %s34, 1
      %s36 = scalar_select %p33, %s34, %s35
      %p39 = pneg %p33
      %p40 = scmp.eq.s32.totalorder %s24, 1
      %p41 = por %p39, %p40
      %p42 = scmp.ne.s32.totalorder %s34, %s37
      %p43 = scmp.eq.s32.totalorder %s24, 0
      %p44 = por %p42, %p43
      %p45 = scmp.ne.s32.totalorder %s34, %s37
      %p46 = scmp.eq.s32.totalorder %s29, 1
      %p47 = por %p45, %p46
      %p48 = scmp.ne.s32.totalorder %s37, %s38
      %p49 = scmp.eq.s32.totalorder %s29, 0
      %p50 = por %p48, %p49
      %p51 = scmp.ne.s32.totalorder %s37, %s38
      %p52 = scmp.eq.s32.totalorder %s30, 1
      %p53 = por %p51, %p52
      %p55 = scmp.ne.s32.totalorder %s38, %s54
      %p56 = scmp.eq.s32.totalorder %s30, 0
      %p57 = por %p55, %p56
      %s59 = sadd.s32 %s58, 1
      %p62 = scmp.eq.s32.totalorder %s24, 1
      %p63 = scmp.ne.s32.totalorder %s58, %s60
      %p64 = scmp.eq.s32.totalorder %s24, 0
      %p65 = por %p63, %p64
      %p66 = scmp.ne.s32.totalorder %s58, %s60
      %p67 = scmp.eq.s32.totalorder %s29, 1
      %p68 = por %p66, %p67
      %p69 = scmp.ne.s32.totalorder %s60, %s61
      %p70 = scmp.eq.s32.totalorder %s29, 0
      %p71 = por %p69, %p70
      %p72 = scmp.ne.s32.totalorder %s60, %s61
      %p73 = scmp.eq.s32.totalorder %s30, 1
      %p74 = por %p72, %p73
      %p76 = scmp.ne.s32.totalorder %s61, %s75
      %p77 = scmp.eq.s32.totalorder %s30, 0
      %p78 = por %p76, %p77
      %s80 = sadd.s32 %s79, 1
      %p83 = scmp.eq.s32.totalorder %s24, 1
      %p84 = scmp.ne.s32.totalorder %s79, %s81
      %p85 = scmp.eq.s32.totalorder %s24, 0
      %p86 = por %p84, %p85
      %p87 = scmp.ne.s32.totalorder %s79, %s81
      %p88 = scmp.eq.s32.totalorder %s29, 1
      %p89 = por %p87, %p88
      %p90 = scmp.ne.s32.totalorder %s81, %s82
      %p91 = scmp.eq.s32.totalorder %s29, 0
      %p92 = por %p90, %p91
      %p93 = scmp.ne.s32.totalorder %s81, %s82
      %p94 = scmp.eq.s32.totalorder %s30, 1
      %p95 = por %p93, %p94
      %p97 = scmp.ne.s32.totalorder %s82, %s96
      %p98 = scmp.eq.s32.totalorder %s30, 0
      %p99 = por %p97, %p98
      %s101 = sadd.s32 %s100, 1
      %p104 = scmp.eq.s32.totalorder %s24, 1
      %p105 = scmp.ne.s32.totalorder %s100, %s102
      %p106 = scmp.eq.s32.totalorder %s24, 0
      %p107 = por %p105, %p106
      %p108 = scmp.ne.s32.totalorder %s100, %s102
      %p109 = scmp.eq.s32.totalorder %s29, 1
      %p110 = por %p108, %p109
      %p111 = scmp.ne.s32.totalorder %s102, %s103
      %p112 = scmp.eq.s32.totalorder %s29, 0
      %p113 = por %p111, %p112
      %p114 = scmp.ne.s32.totalorder %s102, %s103
      %p115 = scmp.eq.s32.totalorder %s30, 1
      %p116 = por %p114, %p115
      %p118 = scmp.ne.s32.totalorder %s103, %s117
      %p119 = scmp.eq.s32.totalorder %s30, 0
      %p120 = por %p118, %p119
      %s122 = sadd.s32 %s121, 1
      %p125 = scmp.eq.s32.totalorder %s24, 1
      %p126 = scmp.ne.s32.totalorder %s121, %s123
      %p127 = scmp.eq.s32.totalorder %s24, 0
      %p128 = por %p126, %p127
      %p129 = scmp.ne.s32.totalorder %s121, %s123
      %p130 = scmp.eq.s32.totalorder %s29, 1
      %p131 = por %p129, %p130
      %p132 = scmp.ne.s32.totalorder %s123, %s124
      %p133 = scmp.eq.s32.totalorder %s29, 0
      %p134 = por %p132, %p133
      %p135 = scmp.ne.s32.totalorder %s123, %s124
      %p136 = scmp.eq.s32.totalorder %s30, 1
      %p137 = por %p135, %p136
      %p139 = scmp.ne.s32.totalorder %s124, %s138
      %p140 = scmp.eq.s32.totalorder %s30, 0
      %p141 = por %p139, %p140
      %s143 = sadd.s32 %s142, 1
      %p146 = scmp.eq.s32.totalorder %s24, 1
      %p147 = scmp.ne.s32.totalorder %s142, %s144
      %p148 = scmp.eq.s32.totalorder %s24, 0
      %p149 = por %p147, %p148
      %p150 = scmp.ne.s32.totalorder %s142, %s144
      %p151 = scmp.eq.s32.totalorder %s29, 1
      %p152 = por %p150, %p151
      %p153 = scmp.ne.s32.totalorder %s144, %s145
      %p154 = scmp.eq.s32.totalorder %s29, 0
      %p155 = por %p153, %p154
      %p156 = scmp.ne.s32.totalorder %s144, %s145
      %p157 = scmp.eq.s32.totalorder %s30, 1
      %p158 = por %p156, %p157
      %p160 = scmp.ne.s32.totalorder %s145, %s159
      %p161 = scmp.eq.s32.totalorder %s30, 0
      %p162 = por %p160, %p161
      %s164 = sadd.s32 %s163, 1
      %p167 = scmp.eq.s32.totalorder %s24, 1
      %p168 = scmp.ne.s32.totalorder %s163, %s165
      %p169 = scmp.eq.s32.totalorder %s24, 0
      %p170 = por %p168, %p169
      %p171 = scmp.ne.s32.totalorder %s163, %s165
      %p172 = scmp.eq.s32.totalorder %s29, 1
      %p173 = por %p171, %p172
      %p174 = scmp.ne.s32.totalorder %s165, %s166
      %p175 = scmp.eq.s32.totalorder %s29, 0
      %p176 = por %p174, %p175
      %p177 = scmp.ne.s32.totalorder %s165, %s166
      %p178 = scmp.eq.s32.totalorder %s30, 1
      %p179 = por %p177, %p178
      %p181 = scmp.ne.s32.totalorder %s166, %s180
      %p182 = scmp.eq.s32.totalorder %s30, 0
      %p183 = por %p181, %p182
      %s185 = sadd.s32 %s184, 1
      %p188 = scmp.eq.s32.totalorder %s24, 1
      %p189 = scmp.ne.s32.totalorder %s184, %s186
      %p190 = scmp.eq.s32.totalorder %s24, 0
      %p191 = por %p189, %p190
      %p192 = scmp.ne.s32.totalorder %s184, %s186
      %p193 = scmp.eq.s32.totalorder %s29, 1
      %p194 = por %p192, %p193
      %p195 = scmp.ne.s32.totalorder %s186, %s187
      %p196 = scmp.eq.s32.totalorder %s29, 0
      %p197 = por %p195, %p196
      %p198 = scmp.ne.s32.totalorder %s186, %s187
      %p199 = scmp.eq.s32.totalorder %s30, 1
      %p200 = por %p198, %p199
      %p202 = scmp.ne.s32.totalorder %s187, %s201
      %p203 = scmp.eq.s32.totalorder %s30, 0
      %p204 = por %p202, %p203
      %s206 = sadd.s32 %s205, 1
      %p209 = scmp.eq.s32.totalorder %s24, 1
      %p210 = scmp.ne.s32.totalorder %s205, %s207
      %p211 = scmp.eq.s32.totalorder %s24, 0
      %p212 = por %p210, %p211
      %p213 = scmp.ne.s32.totalorder %s205, %s207
      %p214 = scmp.eq.s32.totalorder %s29, 1
      %p215 = por %p213, %p214
      %p216 = scmp.ne.s32.totalorder %s207, %s208
      %p217 = scmp.eq.s32.totalorder %s29, 0
      %p218 = por %p216, %p217
      %p219 = scmp.ne.s32.totalorder %s207, %s208
      %p220 = scmp.eq.s32.totalorder %s30, 1
      %p221 = por %p219, %p220
      %p223 = scmp.ne.s32.totalorder %s208, %s222
      %p224 = scmp.eq.s32.totalorder %s30, 0
      %p225 = por %p223, %p224
      %s227 = sadd.s32 %s226, 1
      %p230 = scmp.eq.s32.totalorder %s24, 1
      %p231 = scmp.ne.s32.totalorder %s226, %s228
      %p232 = scmp.eq.s32.totalorder %s24, 0
      %p233 = por %p231, %p232
      %p234 = scmp.ne.s32.totalorder %s226, %s228
      %p235 = scmp.eq.s32.totalorder %s29, 1
      %p236 = por %p234, %p235
      %p237 = scmp.ne.s32.totalorder %s228, %s229
      %p238 = scmp.eq.s32.totalorder %s29, 0
      %p239 = por %p237, %p238
      %p240 = scmp.ne.s32.totalorder %s228, %s229
      %p241 = scmp.eq.s32.totalorder %s30, 1
      %p242 = por %p240, %p241
      %p244 = scmp.ne.s32.totalorder %s229, %s243
      %p245 = scmp.eq.s32.totalorder %s30, 0
      %p246 = por %p244, %p245
      %s248 = sadd.s32 %s247, 1
      %p251 = scmp.eq.s32.totalorder %s24, 1
      %p252 = scmp.ne.s32.totalorder %s247, %s249
      %p253 = scmp.eq.s32.totalorder %s24, 0
      %p254 = por %p252, %p253
      %p255 = scmp.ne.s32.totalorder %s247, %s249
      %p256 = scmp.eq.s32.totalorder %s29, 1
      %p257 = por %p255, %p256
      %p258 = scmp.ne.s32.totalorder %s249, %s250
      %p259 = scmp.eq.s32.totalorder %s29, 0
      %p260 = por %p258, %p259
      %p261 = scmp.ne.s32.totalorder %s249, %s250
      %p262 = scmp.eq.s32.totalorder %s30, 1
      %p263 = por %p261, %p262
      %p265 = scmp.ne.s32.totalorder %s250, %s264
      %p266 = scmp.eq.s32.totalorder %s30, 0
      %p267 = por %p265, %p266
      %s269 = sadd.s32 %s268, 1
      %p272 = scmp.eq.s32.totalorder %s24, 1
      %p273 = scmp.ne.s32.totalorder %s268, %s270
      %p274 = scmp.eq.s32.totalorder %s24, 0
      %p275 = por %p273, %p274
      %p276 = scmp.ne.s32.totalorder %s268, %s270
      %p277 = scmp.eq.s32.totalorder %s29, 1
      %p278 = por %p276, %p277
      %p279 = scmp.ne.s32.totalorder %s270, %s271
      %p280 = scmp.eq.s32.totalorder %s29, 0
      %p281 = por %p279, %p280
      %p282 = scmp.ne.s32.totalorder %s270, %s271
      %p283 = scmp.eq.s32.totalorder %s30, 1
      %p284 = por %p282, %p283
      %p286 = scmp.ne.s32.totalorder %s271, %s285
      %p287 = scmp.eq.s32.totalorder %s30, 0
      %p288 = por %p286, %p287
      %s290 = sadd.s32 %s289, 1
      %p293 = scmp.eq.s32.totalorder %s24, 1
      %p294 = scmp.ne.s32.totalorder %s289, %s291
      %p295 = scmp.eq.s32.totalorder %s24, 0
      %p296 = por %p294, %p295
      %p297 = scmp.ne.s32.totalorder %s289, %s291
      %p298 = scmp.eq.s32.totalorder %s29, 1
      %p299 = por %p297, %p298
      %p300 = scmp.ne.s32.totalorder %s291, %s292
      %p301 = scmp.eq.s32.totalorder %s29, 0
      %p302 = por %p300, %p301
      %p303 = scmp.ne.s32.totalorder %s291, %s292
      %p304 = scmp.eq.s32.totalorder %s30, 1
      %p305 = por %p303, %p304
      %p307 = scmp.ne.s32.totalorder %s292, %s306
      %p308 = scmp.eq.s32.totalorder %s30, 0
      %p309 = por %p307, %p308
      %s311 = sadd.s32 %s310, 1
      %p314 = scmp.eq.s32.totalorder %s24, 1
      %p315 = scmp.ne.s32.totalorder %s310, %s312
      %p316 = scmp.eq.s32.totalorder %s24, 0
      %p317 = por %p315, %p316
      %p318 = scmp.ne.s32.totalorder %s310, %s312
      %p319 = scmp.eq.s32.totalorder %s29, 1
      %p320 = por %p318, %p319
      %p321 = scmp.ne.s32.totalorder %s312, %s313
      %p322 = scmp.eq.s32.totalorder %s29, 0
      %p323 = por %p321, %p322
      %p324 = scmp.ne.s32.totalorder %s312, %s313
      %p325 = scmp.eq.s32.totalorder %s30, 1
      %p326 = por %p324, %p325
      %p328 = scmp.ne.s32.totalorder %s313, %s327
      %p329 = scmp.eq.s32.totalorder %s30, 0
      %p330 = por %p328, %p329
      %s332 = sadd.s32 %s331, 1
      %p335 = scmp.eq.s32.totalorder %s24, 1
      %p336 = scmp.ne.s32.totalorder %s331, %s333
      %p337 = scmp.eq.s32.totalorder %s24, 0
      %p338 = por %p336, %p337
      %p339 = scmp.ne.s32.totalorder %s331, %s333
      %p340 = scmp.eq.s32.totalorder %s29, 1
      %p341 = por %p339, %p340
      %p342 = scmp.ne.s32.totalorder %s333, %s334
      %p343 = scmp.eq.s32.totalorder %s29, 0
      %p344 = por %p342, %p343
      %p345 = scmp.ne.s32.totalorder %s333, %s334
      %p346 = scmp.eq.s32.totalorder %s30, 1
      %p347 = por %p345, %p346
      %p349 = scmp.ne.s32.totalorder %s334, %s348
      %p350 = scmp.eq.s32.totalorder %s30, 0
      %p351 = por %p349, %p350
      %s352 = ssub.s32 %s24, %s31
      %p353 = scmp.eq.s32.totalorder %s352, 0
      %s355 = sadd.s32 %s354, 1
      %s356 = scalar_select %p353, %s354, %s355
      %p359 = pneg %p353
      %p360 = scmp.eq.s32.totalorder %s24, 1
      %p361 = por %p359, %p360
      %p362 = scmp.ne.s32.totalorder %s354, %s357
      %p363 = scmp.eq.s32.totalorder %s24, 0
      %p364 = por %p362, %p363
      %p365 = scmp.ne.s32.totalorder %s354, %s357
      %p366 = scmp.eq.s32.totalorder %s29, 1
      %p367 = por %p365, %p366
      %p368 = scmp.ne.s32.totalorder %s357, %s358
      %p369 = scmp.eq.s32.totalorder %s29, 0
      %p370 = por %p368, %p369
      %p371 = scmp.ne.s32.totalorder %s357, %s358
      %p372 = scmp.eq.s32.totalorder %s30, 1
      %p373 = por %p371, %p372
      %p375 = scmp.ne.s32.totalorder %s358, %s374
      %p376 = scmp.eq.s32.totalorder %s30, 0
      %p377 = por %p375, %p376
      %p378 = scmp.le.s32.totalorder 1, %s24
      %p379 = scmp.lt.s32.totalorder %s24, 3
      %p380 = pnand %p378, %p379
      %p381 = pneg %p380
      // Predicated region
      $region9: #{discriminator_2d_forward.1} parent=5 // pred_check
        _
      $region10: #{discriminator_2d_forward.1} parent=5 // pred_check_branch
        %383 = sbr.rel (%p380) target = $region12
      $region11: #{discriminator_2d_forward.1} parent=5 // pred_region
        %s384 = ssub.s32 %s24, 1
        // Predicated region
        $region13: #{discriminator_2d_forward.1} parent=11 // pred_check
          %p385 = pneg %p71
        $region14: #{discriminator_2d_forward.1} parent=11 // pred_check_branch
          %387 = sbr.rel (%p385) target = $region16
        $region15: #{discriminator_2d_forward.1} parent=11 // pred_region
          _
        $region16: #{discriminator_2d_forward.1} parent=11 // pred_fallthru
          _
        // Predicated region
        $region17: #{discriminator_2d_forward.1} parent=11 // pred_check
          %p388 = pneg %p92
        $region18: #{discriminator_2d_forward.1} parent=11 // pred_check_branch
          %390 = sbr.rel (%p388) target = $region20
        $region19: #{discriminator_2d_forward.1} parent=11 // pred_region
          _
        $region20: #{discriminator_2d_forward.1} parent=11 // pred_fallthru
          _
        // Predicated region
        $region21: #{discriminator_2d_forward.1} parent=11 // pred_check
          %p391 = pneg %p113
        $region22: #{discriminator_2d_forward.1} parent=11 // pred_check_branch
          %393 = sbr.rel (%p391) target = $region24
        $region23: #{discriminator_2d_forward.1} parent=11 // pred_region
          _
        $region24: #{discriminator_2d_forward.1} parent=11 // pred_fallthru
          _
        // Predicated region
        $region25: #{discriminator_2d_forward.1} parent=11 // pred_check
          %p394 = pneg %p134
        $region26: #{discriminator_2d_forward.1} parent=11 // pred_check_branch
          %396 = sbr.rel (%p394) target = $region28
        $region27: #{discriminator_2d_forward.1} parent=11 // pred_region
          _
        $region28: #{discriminator_2d_forward.1} parent=11 // pred_fallthru
          _
        // Predicated region
        $region29: #{discriminator_2d_forward.1} parent=11 // pred_check
          %p397 = pneg %p155
        $region30: #{discriminator_2d_forward.1} parent=11 // pred_check_branch
          %399 = sbr.rel (%p397) target = $region32
        $region31: #{discriminator_2d_forward.1} parent=11 // pred_region
          _
        $region32: #{discriminator_2d_forward.1} parent=11 // pred_fallthru
          _
        // Predicated region
        $region33: #{discriminator_2d_forward.1} parent=11 // pred_check
          %p400 = pneg %p176
        $region34: #{discriminator_2d_forward.1} parent=11 // pred_check_branch
          %402 = sbr.rel (%p400) target = $region36
        $region35: #{discriminator_2d_forward.1} parent=11 // pred_region
          _
        $region36: #{discriminator_2d_forward.1} parent=11 // pred_fallthru
          _
        // Predicated region
        $region37: #{discriminator_2d_forward.1} parent=11 // pred_check
          %p403 = pneg %p197
        $region38: #{discriminator_2d_forward.1} parent=11 // pred_check_branch
          %405 = sbr.rel (%p403) target = $region40
        $region39: #{discriminator_2d_forward.1} parent=11 // pred_region
          _
        $region40: #{discriminator_2d_forward.1} parent=11 // pred_fallthru
          _
        // Predicated region
        $region41: #{discriminator_2d_forward.1} parent=11 // pred_check
          %p406 = pneg %p218
        $region42: #{discriminator_2d_forward.1} parent=11 // pred_check_branch
          %408 = sbr.rel (%p406) target = $region44
        $region43: #{discriminator_2d_forward.1} parent=11 // pred_region
          _
        $region44: #{discriminator_2d_forward.1} parent=11 // pred_fallthru
          _
        // Predicated region
        $region45: #{discriminator_2d_forward.1} parent=11 // pred_check
          %p409 = pneg %p239
        $region46: #{discriminator_2d_forward.1} parent=11 // pred_check_branch
          %411 = sbr.rel (%p409) target = $region48
        $region47: #{discriminator_2d_forward.1} parent=11 // pred_region
          _
        $region48: #{discriminator_2d_forward.1} parent=11 // pred_fallthru
          _
        // Predicated region
        $region49: #{discriminator_2d_forward.1} parent=11 // pred_check
          %p412 = pneg %p260
        $region50: #{discriminator_2d_forward.1} parent=11 // pred_check_branch
          %414 = sbr.rel (%p412) target = $region52
        $region51: #{discriminator_2d_forward.1} parent=11 // pred_region
          _
        $region52: #{discriminator_2d_forward.1} parent=11 // pred_fallthru
          _
        // Predicated region
        $region53: #{discriminator_2d_forward.1} parent=11 // pred_check
          %p415 = pneg %p281
        $region54: #{discriminator_2d_forward.1} parent=11 // pred_check_branch
          %417 = sbr.rel (%p415) target = $region56
        $region55: #{discriminator_2d_forward.1} parent=11 // pred_region
          _
        $region56: #{discriminator_2d_forward.1} parent=11 // pred_fallthru
          _
        // Predicated region
        $region57: #{discriminator_2d_forward.1} parent=11 // pred_check
          %p418 = pneg %p302
        $region58: #{discriminator_2d_forward.1} parent=11 // pred_check_branch
          %420 = sbr.rel (%p418) target = $region60
        $region59: #{discriminator_2d_forward.1} parent=11 // pred_region
          _
        $region60: #{discriminator_2d_forward.1} parent=11 // pred_fallthru
          _
        // Predicated region
        $region61: #{discriminator_2d_forward.1} parent=11 // pred_check
          %p421 = pneg %p323
        $region62: #{discriminator_2d_forward.1} parent=11 // pred_check_branch
          %423 = sbr.rel (%p421) target = $region64
        $region63: #{discriminator_2d_forward.1} parent=11 // pred_region
          _
        $region64: #{discriminator_2d_forward.1} parent=11 // pred_fallthru
          _
        // Predicated region
        $region65: #{discriminator_2d_forward.1} parent=11 // pred_check
          %p424 = pneg %p344
        $region66: #{discriminator_2d_forward.1} parent=11 // pred_check_branch
          %426 = sbr.rel (%p424) target = $region68
        $region67: #{discriminator_2d_forward.1} parent=11 // pred_region
          _
        $region68: #{discriminator_2d_forward.1} parent=11 // pred_fallthru
          _
      $region12: #{discriminator_2d_forward.1} parent=5 // pred_fallthru
        _
      %p427 = scmp.lt.s32.totalorder %s24, 2
      // Predicated region
      $region69: #{discriminator_2d_forward.1} parent=5 // pred_check
        %p428 = pneg %p427
      $region70: #{discriminator_2d_forward.1} parent=5 // pred_check_branch
        %430 = sbr.rel (%p428) target = $region72
      $region71: #{discriminator_2d_forward.1} parent=5 // pred_region
        // Predicated region
        $region73: #{discriminator_2d_forward.1} parent=71 // pred_check
          %p431 = pneg %p44
        $region74: #{discriminator_2d_forward.1} parent=71 // pred_check_branch
          %433 = sbr.rel (%p431) target = $region76
        $region75: #{discriminator_2d_forward.1} parent=71 // pred_region
          %s434 = smul.u32 72, %s24
          %p435 = scmp.lt.s32.totalorder %s434, 143
          %s436 = scalar_select %p435, %s434, 143
          %s437 = smul.addr %s436, 4
          %s438 = scalar_lea.vmem %s0, %s437
          %s439 = smul.u32 72, %s24
        $region76: #{discriminator_2d_forward.1} parent=71 // pred_fallthru
          _
      $region72: #{discriminator_2d_forward.1} parent=5 // pred_fallthru
        _
      %p440 = scmp.le.s32.totalorder 1, %s24
      %p441 = scmp.lt.s32.totalorder %s24, 3
      %p442 = pnand %p440, %p441
      %p443 = pneg %p442
      // Predicated region
      $region77: #{discriminator_2d_forward.1} parent=5 // pred_check
        _
      $region78: #{discriminator_2d_forward.1} parent=5 // pred_check_branch
        %445 = sbr.rel (%p442) target = $region80
      $region79: #{discriminator_2d_forward.1} parent=5 // pred_region
        %s446 = ssub.s32 %s24, 1
        %s447 = smul.u32 72, %s29
        %p448 = scmp.lt.s32.totalorder %s447, 143
        %s449 = scalar_select %p448, %s447, 143
        %s450 = smul.addr %s449, 4
        %s451 = scalar_lea.vmem %s0, %s450
        %p452 = pneg %p50
        %p453 = pneg %p47
        %p454 = pneg %p71
        %p455 = pneg %p68
        %p456 = pneg %p92
        %p457 = pneg %p89
        %p458 = pneg %p113
        %p459 = pneg %p110
        %p460 = pneg %p134
        %p461 = pneg %p131
        %p462 = pneg %p155
        %p463 = pneg %p152
        %p464 = pneg %p176
        %p465 = pneg %p173
        %p466 = pneg %p197
        %p467 = pneg %p194
        %p468 = pneg %p218
        %p469 = pneg %p215
        %p470 = pneg %p239
        %p471 = pneg %p236
        %p472 = pneg %p260
        %p473 = pneg %p257
        %p474 = pneg %p281
        %p475 = pneg %p278
        %p476 = pneg %p302
        %p477 = pneg %p299
        %p478 = pneg %p323
        %p479 = pneg %p320
        %p480 = pneg %p344
        %p481 = pneg %p341
        %p482 = pneg %p370
        %p483 = pneg %p367
        %s484 = sand.u32 %s357, 1
        %s485 = scalar_lea.sflag [#allocation14], %s484
        %s486 = sand.u32 %s357, 1
        %s487 = scalar_lea.vmem [#allocation13], %s486
        %s488 = smul.u32 72, %s29
        %p489 = scmp.lt.s32.totalorder %s488, 143
        %s490 = scalar_select %p489, %s488, 143
        %s491 = smul.addr %s490, 4
        %s492 = scalar_lea.vmem %s0, %s491
        %s493 = smul.u32 72, %s29
        %vm495 = vcmask 261120
        %496 = vst.msk [vmem:[#allocation3] sm:$0xff] %vm495, 0.0
        %497 = vst.msk [vmem:[#allocation3 + $0x8] sm:$0xff] %vm495, 0.0
        %498 = vst.msk [vmem:[#allocation3 + $0x10] sm:$0xff] %vm495, 0.0
        %499 = vst.msk [vmem:[#allocation3 + $0x18] sm:$0xff] %vm495, 0.0
        %500 = vst.msk [vmem:[#allocation3 + $0x20] sm:$0xff] %vm495, 0.0
        %501 = vst.msk [vmem:[#allocation3 + $0x28] sm:$0xff] %vm495, 0.0
        %502 = vst.msk [vmem:[#allocation3 + $0x30] sm:$0xff] %vm495, 0.0
        %503 = vst.msk [vmem:[#allocation3 + $0x38] sm:$0xff] %vm495, 0.0
        %504 = vst.msk [vmem:[#allocation3 + $0x40] sm:$0xff] %vm495, 0.0
        %505 = vst.msk [vmem:[#allocation3 + $0x48] sm:$0xff] %vm495, 0.0
        %506 = vst.msk [vmem:[#allocation3 + $0x50] sm:$0xff] %vm495, 0.0
        %507 = vst.msk [vmem:[#allocation3 + $0x58] sm:$0xff] %vm495, 0.0
        %508 = vst.msk [vmem:[#allocation3 + $0x60] sm:$0xff] %vm495, 0.0
        %509 = vst.msk [vmem:[#allocation3 + $0x68] sm:$0xff] %vm495, 0.0
        %510 = vst.msk [vmem:[#allocation3 + $0x70] sm:$0xff] %vm495, 0.0
        %511 = vst.msk [vmem:[#allocation3 + $0x78] sm:$0xff] %vm495, 0.0
        %512 = vst.msk [vmem:[#allocation3 + $0x80] sm:$0xff] %vm495, 0.0
        %513 = vst.msk [vmem:[#allocation3 + $0x88] sm:$0xff] %vm495, 0.0
        %514 = vst.msk [vmem:[#allocation3 + $0x90] sm:$0xff] %vm495, 0.0
        %515 = vst.msk [vmem:[#allocation3 + $0x98] sm:$0xff] %vm495, 0.0
        %516 = vst.msk [vmem:[#allocation3 + $0xa0] sm:$0xff] %vm495, 0.0
        %517 = vst.msk [vmem:[#allocation3 + $0xa8] sm:$0xff] %vm495, 0.0
        %518 = vst.msk [vmem:[#allocation3 + $0xb0] sm:$0xff] %vm495, 0.0
        %519 = vst.msk [vmem:[#allocation3 + $0xb8] sm:$0xff] %vm495, 0.0
        %520 = vst.msk [vmem:[#allocation3 + $0xc0] sm:$0xff] %vm495, 0.0
        %521 = vst.msk [vmem:[#allocation3 + $0xc8] sm:$0xff] %vm495, 0.0
        %vm522 = vcmask 523264
        %523 = vst.msk [vmem:[#allocation6] sm:$0xff] %vm522, 0.0
        %524 = vst.msk [vmem:[#allocation6 + $0x8] sm:$0xff] %vm522, 0.0
        %525 = vst.msk [vmem:[#allocation6 + $0x10] sm:$0xff] %vm522, 0.0
        %526 = vst.msk [vmem:[#allocation6 + $0x18] sm:$0xff] %vm522, 0.0
        %527 = vst.msk [vmem:[#allocation6 + $0x20] sm:$0xff] %vm522, 0.0
        %528 = vst.msk [vmem:[#allocation6 + $0x28] sm:$0xff] %vm522, 0.0
        %529 = vst.msk [vmem:[#allocation6 + $0x30] sm:$0xff] %vm522, 0.0
        %530 = vst.msk [vmem:[#allocation6 + $0x38] sm:$0xff] %vm522, 0.0
        %531 = vst.msk [vmem:[#allocation6 + $0x40] sm:$0xff] %vm522, 0.0
        %532 = vst.msk [vmem:[#allocation6 + $0x48] sm:$0xff] %vm522, 0.0
        %533 = vst [vmem:[#allocation9] sm:$0xff] 0.0
        %534 = vst [vmem:[#allocation9 + $0x8] sm:$0xff] 0.0
        %535 = vst [vmem:[#allocation9 + $0x10] sm:$0xff] 0.0
        %536 = vst [vmem:[#allocation9 + $0x18] sm:$0xff] 0.0
        %537 = vst [vmem:[#allocation9 + $0x20] sm:$0xff] 0.0
        %538 = vst [vmem:[#allocation9 + $0x28] sm:$0xff] 0.0
        %539 = vst [vmem:[#allocation9 + $0x30] sm:$0xff] 0.0
        %540 = vst [vmem:[#allocation9 + $0x38] sm:$0xff] 0.0
        %541 = vst [vmem:[#allocation12] sm:$0xff] 0.0
        %542 = vst [vmem:[#allocation12 + $0x8] sm:$0xff] 0.0
        %543 = vst [vmem:[#allocation12 + $0x10] sm:$0xff] 0.0
        %544 = vst [vmem:[#allocation12 + $0x18] sm:$0xff] 0.0
        %545 = vst [vmem:[#allocation12 + $0x20] sm:$0xff] 0.0
        %546 = vst [vmem:[#allocation12 + $0x28] sm:$0xff] 0.0
        %547 = vst [vmem:[#allocation12 + $0x30] sm:$0xff] 0.0
        %548 = vst [vmem:[#allocation12 + $0x38] sm:$0xff] 0.0
        %549 = vst [vmem:[#allocation12 + $0x40] sm:$0xff] 0.0
        %550 = vst [vmem:[#allocation12 + $0x48] sm:$0xff] 0.0
        %551 = vst [vmem:[#allocation12 + $0x50] sm:$0xff] 0.0
        %552 = vst [vmem:[#allocation12 + $0x58] sm:$0xff] 0.0
        %553 = vst [vmem:[#allocation12 + $0x60] sm:$0xff] 0.0
        %554 = vst [vmem:[#allocation12 + $0x68] sm:$0xff] 0.0
        %v555 = vld [vmem:[%s492] sm:$0xf]
        %v556 = vld [vmem:[%s492 + $0x4] sm:$0xf]
        %v557 = vld [vmem:[%s492 + $0x8] sm:$0xf]
        %v558 = vld [vmem:[%s492 + $0xc] sm:$0xf]
        %v559 = vld [vmem:[%s492 + $0x10] sm:$0xf]
        %v560 = vld [vmem:[%s492 + $0x14] sm:$0xf]
        %v561 = vld [vmem:[%s492 + $0x18] sm:$0xf]
        %v562 = vld [vmem:[%s492 + $0x1c] sm:$0xf]
        %v563 = vld [vmem:[%s492 + $0x20] sm:$0xf]
        %v564 = vld [vmem:[%s492 + $0x24] sm:$0xf]
        %v565 = vld [vmem:[%s492 + $0x28] sm:$0xf]
        %v566 = vld [vmem:[%s492 + $0x2c] sm:$0xf]
        %v567 = vld [vmem:[%s492 + $0x30] sm:$0xf]
        %v568 = vld [vmem:[%s492 + $0x34] sm:$0xf]
        %v569 = vld [vmem:[%s492 + $0x38] sm:$0xf]
        %v570 = vld [vmem:[%s492 + $0x3c] sm:$0xf]
        %v571 = vld [vmem:[%s492 + $0x40] sm:$0xf]
        %v572 = vld [vmem:[%s492 + $0x44] sm:$0xf]
        %v573 = vld [vmem:[%s492 + $0x48] sm:$0xf]
        %v574 = vld [vmem:[%s492 + $0x4c] sm:$0xf]
        %v575 = vld [vmem:[%s492 + $0x50] sm:$0xf]
        %v576 = vld [vmem:[%s492 + $0x54] sm:$0xf]
        %v577 = vld [vmem:[%s492 + $0x58] sm:$0xf]
        %v578 = vld [vmem:[%s492 + $0x5c] sm:$0xf]
        %v579 = vld [vmem:[%s492 + $0x60] sm:$0xf]
        %v580 = vld [vmem:[%s492 + $0x64] sm:$0xf]
        %v581 = vld [vmem:[%s492 + $0x68] sm:$0xf]
        %v582 = vld [vmem:[%s492 + $0x6c] sm:$0xf]
        %v583 = vld [vmem:[%s492 + $0x70] sm:$0xf]
        %v584 = vld [vmem:[%s492 + $0x74] sm:$0xf]
        %v585 = vld [vmem:[%s492 + $0x78] sm:$0xf]
        %v586 = vld [vmem:[%s492 + $0x7c] sm:$0xf]
        %v587 = vld [vmem:[%s492 + $0x80] sm:$0xf]
        %v588 = vld [vmem:[%s492 + $0x84] sm:$0xf]
        %v589 = vld [vmem:[%s492 + $0x88] sm:$0xf]
        %v590 = vld [vmem:[%s492 + $0x8c] sm:$0xf]
        %v591 = vld [vmem:[%s492 + $0x90] sm:$0xf]
        %v592 = vld [vmem:[%s492 + $0x94] sm:$0xf]
        %v593 = vld [vmem:[%s492 + $0x98] sm:$0xf]
        %v594 = vld [vmem:[%s492 + $0x9c] sm:$0xf]
        %v595 = vld [vmem:[%s492 + $0xa0] sm:$0xf]
        %v596 = vld [vmem:[%s492 + $0xa4] sm:$0xf]
        %v597 = vld [vmem:[%s492 + $0xa8] sm:$0xf]
        %v598 = vld [vmem:[%s492 + $0xac] sm:$0xf]
        %v599 = vld [vmem:[%s492 + $0xb0] sm:$0xf]
        %v600 = vld [vmem:[%s492 + $0xb4] sm:$0xf]
        %v601 = vld [vmem:[%s492 + $0xb8] sm:$0xf]
        %v602 = vld [vmem:[%s492 + $0xbc] sm:$0xf]
        %v603 = vld [vmem:[%s492 + $0xc0] sm:$0xf]
        %v604 = vld [vmem:[%s492 + $0xc4] sm:$0xf]
        %v605 = vld [vmem:[%s492 + $0xc8] sm:$0xf]
        %v606 = vld [vmem:[%s492 + $0xcc] sm:$0xf]
        %v607 = vld [vmem:[%s492 + $0xd0] sm:$0xf]
        %v608 = vld [vmem:[%s492 + $0xd4] sm:$0xf]
        %v609 = vld [vmem:[%s492 + $0xd8] sm:$0xf]
        %v610 = vld [vmem:[%s492 + $0xdc] sm:$0xf]
        %v611 = vld [vmem:[%s492 + $0xe0] sm:$0xf]
        %v612 = vld [vmem:[%s492 + $0xe4] sm:$0xf]
        %v613 = vld [vmem:[%s492 + $0xe8] sm:$0xf]
        %v614 = vld [vmem:[%s492 + $0xec] sm:$0xf]
        %v615 = vld [vmem:[%s492 + $0xf0] sm:$0xf]
        %v616 = vld [vmem:[%s492 + $0xf4] sm:$0xf]
        %v617 = vld [vmem:[%s492 + $0xf8] sm:$0xf]
        %v618 = vld [vmem:[%s492 + $0xfc] sm:$0xf]
        %v619 = vld [vmem:[%s492 + $0x100] sm:$0xf]
        %v620 = vld [vmem:[%s492 + $0x104] sm:$0xf]
        %v621 = vld [vmem:[%s492 + $0x108] sm:$0xf]
        %v622 = vld [vmem:[%s492 + $0x10c] sm:$0xf]
        %v623 = vld [vmem:[%s492 + $0x110] sm:$0xf]
        %v624 = vld [vmem:[%s492 + $0x114] sm:$0xf]
        %v625 = vld [vmem:[%s492 + $0x118] sm:$0xf]
        %v626 = vld [vmem:[%s492 + $0x11c] sm:$0xf]
        %v627 = vld [vmem:[%s1] sm:$0xf]
        %v628 = vld [vmem:[%s1 + $0x4] sm:$0xf]
        %v629 = vld [vmem:[%s1 + $0x8] sm:$0xf]
        %v630 = vld [vmem:[%s1 + $0xc] sm:$0xf]
        %v703 = vunpack.c.l.b16 %v555
        %v704 = vunpack.c.l.b16 %v556
        %v705 = vunpack.c.l.b16 %v557
        %v706 = vunpack.c.l.b16 %v558
        %v707 = vunpack.c.l.b16 %v559
        %v708 = vunpack.c.l.b16 %v560
        %v709 = vunpack.c.l.b16 %v561
        %v710 = vunpack.c.l.b16 %v562
        %v711 = vunpack.c.l.b16 %v563
        %v712 = vunpack.c.l.b16 %v564
        %v713 = vunpack.c.l.b16 %v565
        %v714 = vunpack.c.l.b16 %v566
        %v715 = vunpack.c.l.b16 %v567
        %v716 = vunpack.c.l.b16 %v568
        %v717 = vunpack.c.l.b16 %v569
        %v718 = vunpack.c.l.b16 %v570
        %v719 = vunpack.c.l.b16 %v571
        %v720 = vunpack.c.l.b16 %v572
        %v721 = vunpack.c.l.b16 %v573
        %v722 = vunpack.c.l.b16 %v574
        %v723 = vunpack.c.l.b16 %v575
        %v724 = vunpack.c.l.b16 %v576
        %v725 = vunpack.c.l.b16 %v577
        %v726 = vunpack.c.l.b16 %v578
        %v727 = vunpack.c.l.b16 %v579
        %v728 = vunpack.c.l.b16 %v580
        %v729 = vunpack.c.l.b16 %v581
        %v730 = vunpack.c.l.b16 %v582
        %v731 = vunpack.c.l.b16 %v583
        %v732 = vunpack.c.l.b16 %v584
        %v733 = vunpack.c.l.b16 %v585
        %v734 = vunpack.c.l.b16 %v586
        %v735 = vunpack.c.l.b16 %v587
        %v736 = vunpack.c.l.b16 %v588
        %v737 = vunpack.c.l.b16 %v589
        %v738 = vunpack.c.l.b16 %v590
        %v739 = vunpack.c.l.b16 %v591
        %v740 = vunpack.c.l.b16 %v592
        %v741 = vunpack.c.l.b16 %v593
        %v742 = vunpack.c.l.b16 %v594
        %v743 = vunpack.c.l.b16 %v595
        %v744 = vunpack.c.l.b16 %v596
        %v745 = vunpack.c.l.b16 %v597
        %v746 = vunpack.c.l.b16 %v598
        %v747 = vunpack.c.l.b16 %v599
        %v748 = vunpack.c.l.b16 %v600
        %v749 = vunpack.c.l.b16 %v601
        %v750 = vunpack.c.l.b16 %v602
        %v751 = vunpack.c.l.b16 %v603
        %v752 = vunpack.c.l.b16 %v604
        %v753 = vunpack.c.l.b16 %v605
        %v754 = vunpack.c.l.b16 %v606
        %v755 = vunpack.c.l.b16 %v607
        %v756 = vunpack.c.l.b16 %v608
        %v757 = vunpack.c.l.b16 %v609
        %v758 = vunpack.c.l.b16 %v610
        %v759 = vunpack.c.l.b16 %v611
        %v760 = vunpack.c.l.b16 %v612
        %v761 = vunpack.c.l.b16 %v613
        %v762 = vunpack.c.l.b16 %v614
        %v763 = vunpack.c.l.b16 %v615
        %v764 = vunpack.c.l.b16 %v616
        %v765 = vunpack.c.l.b16 %v617
        %v766 = vunpack.c.l.b16 %v618
        %v767 = vunpack.c.l.b16 %v619
        %v768 = vunpack.c.l.b16 %v620
        %v769 = vunpack.c.l.b16 %v621
        %v770 = vunpack.c.l.b16 %v622
        %v771 = vunpack.c.l.b16 %v623
        %v772 = vunpack.c.l.b16 %v624
        %v773 = vunpack.c.l.b16 %v625
        %v774 = vunpack.c.l.b16 %v626
        %v775 = vpack.c.b16 %v704, %v703
        %v776 = vpack.c.b16 %v706, %v705
        %v777 = vpack.c.b16 %v708, %v707
        %v778 = vpack.c.b16 %v710, %v709
        %v779 = vpack.c.b16 %v712, %v711
        %v780 = vpack.c.b16 %v714, %v713
        %v781 = vpack.c.b16 %v716, %v715
        %v782 = vpack.c.b16 %v718, %v717
        %v783 = vpack.c.b16 %v720, %v719
        %v784 = vpack.c.b16 %v722, %v721
        %v785 = vpack.c.b16 %v724, %v723
        %v786 = vpack.c.b16 %v726, %v725
        %v787 = vpack.c.b16 %v728, %v727
        %v788 = vpack.c.b16 %v730, %v729
        %v789 = vpack.c.b16 %v732, %v731
        %v790 = vpack.c.b16 %v734, %v733
        %v791 = vpack.c.b16 %v736, %v735
        %v792 = vpack.c.b16 %v738, %v737
        %v793 = vpack.c.b16 %v740, %v739
        %v794 = vpack.c.b16 %v742, %v741
        %v795 = vpack.c.b16 %v744, %v743
        %v796 = vpack.c.b16 %v746, %v745
        %v797 = vpack.c.b16 %v748, %v747
        %v798 = vpack.c.b16 %v750, %v749
        %v799 = vpack.c.b16 %v752, %v751
        %v800 = vpack.c.b16 %v754, %v753
        %v801 = vpack.c.b16 %v756, %v755
        %v802 = vpack.c.b16 %v758, %v757
        %v803 = vpack.c.b16 %v760, %v759
        %v804 = vpack.c.b16 %v762, %v761
        %v805 = vpack.c.b16 %v764, %v763
        %v806 = vpack.c.b16 %v766, %v765
        %v807 = vpack.c.b16 %v768, %v767
        %v808 = vpack.c.b16 %v770, %v769
        %v809 = vpack.c.b16 %v772, %v771
        %v810 = vpack.c.b16 %v774, %v773
        %v815 = vunpack.c.l.b16 %v627
        %v816 = vunpack.c.l.b16 %v628
        %v817 = vunpack.c.l.b16 %v629
        %v818 = vunpack.c.l.b16 %v630
        %v819 = vpack.c.b16 %v816, %v815
        %v820 = vpack.c.b16 %v818, %v817
        %v824 = vsel %vm495, %v775, 0
        %v827 = vsel %vm495, %v776, 0
        %v830 = vsel %vm495, %v777, 0
        %v833 = vsel %vm495, %v778, 0
        %v836 = vsel %vm495, %v779, 0
        %v839 = vsel %vm495, %v780, 0
        %v842 = vsel %vm495, %v781, 0
        %v845 = vsel %vm495, %v782, 0
        %v848 = vsel %vm495, %v783, 0
        %v851 = vsel %vm495, %v784, 0
        %v854 = vsel %vm495, %v785, 0
        %v857 = vsel %vm495, %v786, 0
        %v860 = vsel %vm495, %v787, 0
        %v863 = vsel %vm495, %v788, 0
        %v866 = vsel %vm495, %v789, 0
        %v869 = vsel %vm495, %v790, 0
        %v872 = vsel %vm495, %v791, 0
        %v875 = vsel %vm495, %v792, 0
        %v878 = vsel %vm495, %v793, 0
        %v881 = vsel %vm495, %v794, 0
        %v884 = vsel %vm495, %v795, 0
        %v887 = vsel %vm495, %v796, 0
        %v890 = vsel %vm495, %v797, 0
        %v893 = vsel %vm495, %v798, 0
        %v896 = vsel %vm495, %v799, 0
        %v899 = vsel %vm495, %v800, 0
        %v902 = vsel %vm495, %v801, 0
        %v905 = vsel %vm495, %v802, 0
        %v908 = vsel %vm495, %v803, 0
        %v911 = vsel %vm495, %v804, 0
        %v914 = vsel %vm495, %v805, 0
        %v917 = vsel %vm495, %v806, 0
        %v920 = vsel %vm495, %v807, 0
        %v923 = vsel %vm495, %v808, 0
        %v926 = vsel %vm495, %v809, 0
        %v929 = vsel %vm495, %v810, 0
        %931 = vmatprep.subr.bf16.mxu0 0
        %932 = vmatpush1.bf16.msra.mxu0 0
        %933 = vmatprep.subr.bf16.mxu0 0
        %934 = vmatpush1.bf16.msra.mxu0 0
        %935 = vmatprep.subr.bf16.mxu0 0
        %936 = vmatpush1.bf16.msra.mxu0 0
        %937 = vmatprep.subr.bf16.mxu0 0
        %938 = vmatpush1.bf16.msra.mxu0 0
        %939 = vmatprep.subr.bf16.mxu0 0
        %940 = vmatpush1.bf16.msra.mxu0 0
        %941 = vmatprep.subr.bf16.mxu0 0
        %942 = vmatpush1.bf16.msra.mxu0 0
        %943 = vmatprep.subr.bf16.mxu0 0
        %944 = vmatpush1.bf16.msra.mxu0 %v820
        %945 = vmatprep.subr.bf16.mxu0 0
        %946 = vmatpush1.bf16.msra.mxu0 %v819
        %947 = vmatprep.subr.bf16.mxu0 0
        %948 = vmatpush2.bf16.msra.mxu0 0
        %949 = vmatprep.subr.bf16.mxu0 0
        %950 = vmatpush2.bf16.msra.mxu0 0
        %951 = vmatprep.subr.bf16.mxu0 0
        %952 = vmatpush2.bf16.msra.mxu0 0
        %953 = vmatprep.subr.bf16.mxu0 0
        %954 = vmatpush2.bf16.msra.mxu0 0
        %955 = vmatprep.subr.bf16.mxu0 0
        %956 = vmatpush2.bf16.msra.mxu0 0
        %957 = vmatprep.subr.bf16.mxu0 0
        %958 = vmatpush2.bf16.msra.mxu0 0
        %959 = vmatprep.subr.bf16.mxu0 0
        %960 = vmatpush2.bf16.msra.mxu0 0
        %961 = vmatprep.subr.bf16.mxu0 0
        %962 = vmatpush2.bf16.msra.mxu0 0
        %963 = vmatprep.mubr.bf16.mxu0 0
        %964 = vmatmul.mubr.bf16.gmra.mxu0 %v824
        %v965 = vpop.f32.mrf.mxu0
        %v966 = vadd.f32 0.0, %v965
        %v967 = vpop.f32.mrf.mxu0
        %v968 = vpop.f32.mrf.mxu0
        %v969 = vadd.f32 0.0, %v968
        %v970 = vpop.f32.mrf.mxu0
        %971 = vmatprep.mubr.bf16.mxu0 0
        %972 = vmatmul.mubr.bf16.gmra.mxu0 %v827
        %v973 = vpop.f32.mrf.mxu0
        %v974 = vadd.f32 0.0, %v973
        %v975 = vpop.f32.mrf.mxu0
        %v976 = vpop.f32.mrf.mxu0
        %v977 = vadd.f32 0.0, %v976
        %v978 = vpop.f32.mrf.mxu0
        %979 = vmatprep.mubr.bf16.mxu0 0
        %980 = vmatmul.mubr.bf16.gmra.mxu0 %v830
        %v981 = vpop.f32.mrf.mxu0
        %v982 = vadd.f32 0.0, %v981
        %v983 = vpop.f32.mrf.mxu0
        %v984 = vpop.f32.mrf.mxu0
        %v985 = vadd.f32 0.0, %v984
        %v986 = vpop.f32.mrf.mxu0
        %987 = vmatprep.mubr.bf16.mxu0 0
        %988 = vmatmul.mubr.bf16.gmra.mxu0 %v833
        %v989 = vpop.f32.mrf.mxu0
        %v990 = vadd.f32 0.0, %v989
        %v991 = vpop.f32.mrf.mxu0
        %v992 = vpop.f32.mrf.mxu0
        %v993 = vadd.f32 0.0, %v992
        %v994 = vpop.f32.mrf.mxu0
        %995 = vmatprep.mubr.bf16.mxu0 0
        %996 = vmatmul.mubr.bf16.gmra.mxu0 %v836
        %v997 = vpop.f32.mrf.mxu0
        %v998 = vadd.f32 0.0, %v997
        %v999 = vpop.f32.mrf.mxu0
        %v1000 = vpop.f32.mrf.mxu0
        %v1001 = vadd.f32 0.0, %v1000
        %v1002 = vpop.f32.mrf.mxu0
        %1003 = vmatprep.mubr.bf16.mxu0 0
        %1004 = vmatmul.mubr.bf16.gmra.mxu0 %v839
        %v1005 = vpop.f32.mrf.mxu0
        %v1006 = vadd.f32 0.0, %v1005
        %v1007 = vpop.f32.mrf.mxu0
        %v1008 = vpop.f32.mrf.mxu0
        %v1009 = vadd.f32 0.0, %v1008
        %v1010 = vpop.f32.mrf.mxu0
        %1011 = vmatprep.mubr.bf16.mxu0 0
        %1012 = vmatmul.mubr.bf16.gmra.mxu0 %v842
        %v1013 = vpop.f32.mrf.mxu0
        %v1014 = vadd.f32 0.0, %v1013
        %v1015 = vpop.f32.mrf.mxu0
        %v1016 = vpop.f32.mrf.mxu0
        %v1017 = vadd.f32 0.0, %v1016
        %v1018 = vpop.f32.mrf.mxu0
        %1019 = vmatprep.mubr.bf16.mxu0 0
        %1020 = vmatmul.mubr.bf16.gmra.mxu0 %v845
        %v1021 = vpop.f32.mrf.mxu0
        %v1022 = vadd.f32 0.0, %v1021
        %v1023 = vpop.f32.mrf.mxu0
        %v1024 = vpop.f32.mrf.mxu0
        %v1025 = vadd.f32 0.0, %v1024
        %v1026 = vpop.f32.mrf.mxu0
        %1027 = vmatprep.mubr.bf16.mxu0 0
        %1028 = vmatmul.mubr.bf16.gmra.mxu0 %v848
        %v1029 = vpop.f32.mrf.mxu0
        %v1030 = vadd.f32 0.0, %v1029
        %v1031 = vpop.f32.mrf.mxu0
        %v1032 = vpop.f32.mrf.mxu0
        %v1033 = vadd.f32 0.0, %v1032
        %v1034 = vpop.f32.mrf.mxu0
        %1035 = vmatprep.mubr.bf16.mxu0 0
        %1036 = vmatmul.mubr.bf16.gmra.mxu0 %v851
        %v1037 = vpop.f32.mrf.mxu0
        %v1038 = vadd.f32 0.0, %v1037
        %v1039 = vpop.f32.mrf.mxu0
        %v1040 = vpop.f32.mrf.mxu0
        %v1041 = vadd.f32 0.0, %v1040
        %v1042 = vpop.f32.mrf.mxu0
        %1043 = vmatprep.mubr.bf16.mxu0 0
        %1044 = vmatmul.mubr.bf16.gmra.mxu0 %v854
        %v1045 = vpop.f32.mrf.mxu0
        %v1046 = vadd.f32 0.0, %v1045
        %v1047 = vpop.f32.mrf.mxu0
        %v1048 = vpop.f32.mrf.mxu0
        %v1049 = vadd.f32 0.0, %v1048
        %v1050 = vpop.f32.mrf.mxu0
        %1051 = vmatprep.mubr.bf16.mxu0 0
        %1052 = vmatmul.mubr.bf16.gmra.mxu0 %v857
        %v1053 = vpop.f32.mrf.mxu0
        %v1054 = vadd.f32 0.0, %v1053
        %v1055 = vpop.f32.mrf.mxu0
        %v1056 = vpop.f32.mrf.mxu0
        %v1057 = vadd.f32 0.0, %v1056
        %v1058 = vpop.f32.mrf.mxu0
        %1059 = vmatprep.mubr.bf16.mxu0 0
        %1060 = vmatmul.mubr.bf16.gmra.mxu0 %v860
        %v1061 = vpop.f32.mrf.mxu0
        %v1062 = vadd.f32 0.0, %v1061
        %v1063 = vpop.f32.mrf.mxu0
        %v1064 = vpop.f32.mrf.mxu0
        %v1065 = vadd.f32 0.0, %v1064
        %v1066 = vpop.f32.mrf.mxu0
        %1067 = vmatprep.mubr.bf16.mxu0 0
        %1068 = vmatmul.mubr.bf16.gmra.mxu0 %v863
        %v1069 = vpop.f32.mrf.mxu0
        %v1070 = vadd.f32 0.0, %v1069
        %v1071 = vpop.f32.mrf.mxu0
        %v1072 = vpop.f32.mrf.mxu0
        %v1073 = vadd.f32 0.0, %v1072
        %v1074 = vpop.f32.mrf.mxu0
        %1075 = vmatprep.mubr.bf16.mxu0 0
        %1076 = vmatmul.mubr.bf16.gmra.mxu0 %v866
        %v1077 = vpop.f32.mrf.mxu0
        %v1078 = vadd.f32 0.0, %v1077
        %v1079 = vpop.f32.mrf.mxu0
        %v1080 = vpop.f32.mrf.mxu0
        %v1081 = vadd.f32 0.0, %v1080
        %v1082 = vpop.f32.mrf.mxu0
        %1083 = vmatprep.mubr.bf16.mxu0 0
        %1084 = vmatmul.mubr.bf16.gmra.mxu0 %v869
        %v1085 = vpop.f32.mrf.mxu0
        %v1086 = vadd.f32 0.0, %v1085
        %v1087 = vpop.f32.mrf.mxu0
        %v1088 = vpop.f32.mrf.mxu0
        %v1089 = vadd.f32 0.0, %v1088
        %v1090 = vpop.f32.mrf.mxu0
        %1091 = vmatprep.mubr.bf16.mxu0 0
        %1092 = vmatmul.mubr.bf16.gmra.mxu0 %v872
        %v1093 = vpop.f32.mrf.mxu0
        %v1094 = vadd.f32 0.0, %v1093
        %v1095 = vpop.f32.mrf.mxu0
        %v1096 = vpop.f32.mrf.mxu0
        %v1097 = vadd.f32 0.0, %v1096
        %v1098 = vpop.f32.mrf.mxu0
        %1099 = vmatprep.mubr.bf16.mxu0 0
        %1100 = vmatmul.mubr.bf16.gmra.mxu0 %v875
        %v1101 = vpop.f32.mrf.mxu0
        %v1102 = vadd.f32 0.0, %v1101
        %v1103 = vpop.f32.mrf.mxu0
        %v1104 = vpop.f32.mrf.mxu0
        %v1105 = vadd.f32 0.0, %v1104
        %v1106 = vpop.f32.mrf.mxu0
        %1107 = vmatprep.mubr.bf16.mxu0 0
        %1108 = vmatmul.mubr.bf16.gmra.mxu0 %v878
        %v1109 = vpop.f32.mrf.mxu0
        %v1110 = vadd.f32 0.0, %v1109
        %v1111 = vpop.f32.mrf.mxu0
        %v1112 = vpop.f32.mrf.mxu0
        %v1113 = vadd.f32 0.0, %v1112
        %v1114 = vpop.f32.mrf.mxu0
        %1115 = vmatprep.mubr.bf16.mxu0 0
        %1116 = vmatmul.mubr.bf16.gmra.mxu0 %v881
        %v1117 = vpop.f32.mrf.mxu0
        %v1118 = vadd.f32 0.0, %v1117
        %v1119 = vpop.f32.mrf.mxu0
        %v1120 = vpop.f32.mrf.mxu0
        %v1121 = vadd.f32 0.0, %v1120
        %v1122 = vpop.f32.mrf.mxu0
        %1123 = vmatprep.mubr.bf16.mxu0 0
        %1124 = vmatmul.mubr.bf16.gmra.mxu0 %v884
        %v1125 = vpop.f32.mrf.mxu0
        %v1126 = vadd.f32 0.0, %v1125
        %v1127 = vpop.f32.mrf.mxu0
        %v1128 = vpop.f32.mrf.mxu0
        %v1129 = vadd.f32 0.0, %v1128
        %v1130 = vpop.f32.mrf.mxu0
        %1131 = vmatprep.mubr.bf16.mxu0 0
        %1132 = vmatmul.mubr.bf16.gmra.mxu0 %v887
        %v1133 = vpop.f32.mrf.mxu0
        %v1134 = vadd.f32 0.0, %v1133
        %v1135 = vpop.f32.mrf.mxu0
        %v1136 = vpop.f32.mrf.mxu0
        %v1137 = vadd.f32 0.0, %v1136
        %v1138 = vpop.f32.mrf.mxu0
        %1139 = vmatprep.mubr.bf16.mxu0 0
        %1140 = vmatmul.mubr.bf16.gmra.mxu0 %v890
        %v1141 = vpop.f32.mrf.mxu0
        %v1142 = vadd.f32 0.0, %v1141
        %v1143 = vpop.f32.mrf.mxu0
        %v1144 = vpop.f32.mrf.mxu0
        %v1145 = vadd.f32 0.0, %v1144
        %v1146 = vpop.f32.mrf.mxu0
        %1147 = vmatprep.mubr.bf16.mxu0 0
        %1148 = vmatmul.mubr.bf16.gmra.mxu0 %v893
        %v1149 = vpop.f32.mrf.mxu0
        %v1150 = vadd.f32 0.0, %v1149
        %v1151 = vpop.f32.mrf.mxu0
        %v1152 = vpop.f32.mrf.mxu0
        %v1153 = vadd.f32 0.0, %v1152
        %v1154 = vpop.f32.mrf.mxu0
        %1155 = vmatprep.mubr.bf16.mxu0 0
        %1156 = vmatmul.mubr.bf16.gmra.mxu0 %v896
        %v1157 = vpop.f32.mrf.mxu0
        %v1158 = vadd.f32 0.0, %v1157
        %v1159 = vpop.f32.mrf.mxu0
        %v1160 = vpop.f32.mrf.mxu0
        %v1161 = vadd.f32 0.0, %v1160
        %v1162 = vpop.f32.mrf.mxu0
        %1163 = vmatprep.mubr.bf16.mxu0 0
        %1164 = vmatmul.mubr.bf16.gmra.mxu0 %v899
        %v1165 = vpop.f32.mrf.mxu0
        %v1166 = vadd.f32 0.0, %v1165
        %v1167 = vpop.f32.mrf.mxu0
        %v1168 = vpop.f32.mrf.mxu0
        %v1169 = vadd.f32 0.0, %v1168
        %v1170 = vpop.f32.mrf.mxu0
        %1171 = vmatprep.mubr.bf16.mxu0 0
        %1172 = vmatmul.mubr.bf16.gmra.mxu0 %v902
        %v1173 = vpop.f32.mrf.mxu0
        %v1174 = vadd.f32 0.0, %v1173
        %v1175 = vpop.f32.mrf.mxu0
        %v1176 = vpop.f32.mrf.mxu0
        %v1177 = vadd.f32 0.0, %v1176
        %v1178 = vpop.f32.mrf.mxu0
        %1179 = vmatprep.mubr.bf16.mxu0 0
        %1180 = vmatmul.mubr.bf16.gmra.mxu0 %v905
        %v1181 = vpop.f32.mrf.mxu0
        %v1182 = vadd.f32 0.0, %v1181
        %v1183 = vpop.f32.mrf.mxu0
        %v1184 = vpop.f32.mrf.mxu0
        %v1185 = vadd.f32 0.0, %v1184
        %v1186 = vpop.f32.mrf.mxu0
        %1187 = vmatprep.mubr.bf16.mxu0 0
        %1188 = vmatmul.mubr.bf16.gmra.mxu0 %v908
        %v1189 = vpop.f32.mrf.mxu0
        %v1190 = vadd.f32 0.0, %v1189
        %v1191 = vpop.f32.mrf.mxu0
        %v1192 = vpop.f32.mrf.mxu0
        %v1193 = vadd.f32 0.0, %v1192
        %v1194 = vpop.f32.mrf.mxu0
        %1195 = vmatprep.mubr.bf16.mxu0 0
        %1196 = vmatmul.mubr.bf16.gmra.mxu0 %v911
        %v1197 = vpop.f32.mrf.mxu0
        %v1198 = vadd.f32 0.0, %v1197
        %v1199 = vpop.f32.mrf.mxu0
        %v1200 = vpop.f32.mrf.mxu0
        %v1201 = vadd.f32 0.0, %v1200
        %v1202 = vpop.f32.mrf.mxu0
        %1203 = vmatprep.mubr.bf16.mxu0 0
        %1204 = vmatmul.mubr.bf16.gmra.mxu0 %v914
        %v1205 = vpop.f32.mrf.mxu0
        %v1206 = vadd.f32 0.0, %v1205
        %v1207 = vpop.f32.mrf.mxu0
        %v1208 = vpop.f32.mrf.mxu0
        %v1209 = vadd.f32 0.0, %v1208
        %v1210 = vpop.f32.mrf.mxu0
        %1211 = vmatprep.mubr.bf16.mxu0 0
        %1212 = vmatmul.mubr.bf16.gmra.mxu0 %v917
        %v1213 = vpop.f32.mrf.mxu0
        %v1214 = vadd.f32 0.0, %v1213
        %v1215 = vpop.f32.mrf.mxu0
        %v1216 = vpop.f32.mrf.mxu0
        %v1217 = vadd.f32 0.0, %v1216
        %v1218 = vpop.f32.mrf.mxu0
        %1219 = vmatprep.mubr.bf16.mxu0 0
        %1220 = vmatmul.mubr.bf16.gmra.mxu0 %v920
        %v1221 = vpop.f32.mrf.mxu0
        %v1222 = vadd.f32 0.0, %v1221
        %v1223 = vpop.f32.mrf.mxu0
        %v1224 = vpop.f32.mrf.mxu0
        %v1225 = vadd.f32 0.0, %v1224
        %v1226 = vpop.f32.mrf.mxu0
        %1227 = vmatprep.mubr.bf16.mxu0 0
        %1228 = vmatmul.mubr.bf16.gmra.mxu0 %v923
        %v1229 = vpop.f32.mrf.mxu0
        %v1230 = vadd.f32 0.0, %v1229
        %v1231 = vpop.f32.mrf.mxu0
        %v1232 = vpop.f32.mrf.mxu0
        %v1233 = vadd.f32 0.0, %v1232
        %v1234 = vpop.f32.mrf.mxu0
        %1235 = vmatprep.mubr.bf16.mxu0 0
        %1236 = vmatmul.mubr.bf16.gmra.mxu0 %v926
        %v1237 = vpop.f32.mrf.mxu0
        %v1238 = vadd.f32 0.0, %v1237
        %v1239 = vpop.f32.mrf.mxu0
        %v1240 = vpop.f32.mrf.mxu0
        %v1241 = vadd.f32 0.0, %v1240
        %v1242 = vpop.f32.mrf.mxu0
        %1243 = vmatprep.mubr.bf16.mxu0 0
        %1244 = vmatmul.mubr.bf16.gmra.mxu0 %v929
        %v1245 = vpop.f32.mrf.mxu0
        %v1246 = vadd.f32 0.0, %v1245
        %v1247 = vpop.f32.mrf.mxu0
        %v1248 = vpop.f32.mrf.mxu0
        %v1249 = vadd.f32 0.0, %v1248
        %v1250 = vpop.f32.mrf.mxu0
        %1251 = vdwg.mxu0
        %v1252 = vlaneseq
        %v1253 = vshrl.u32 %v1252, 7
        %v1254 = vadd.s32 %v1253, 8
        %v1255 = vadd.s32 %v1253, 16
        %v1256 = vadd.s32 %v1253, 24
        %v1257 = vadd.s32 %v1253, 32
        %v1258 = vadd.s32 %v1253, 40
        %v1259 = vadd.s32 %v1253, 48
        %v1260 = vadd.s32 %v1253, 56
        %v1261 = vadd.s32 %v1253, 64
        %v1262 = vadd.s32 %v1253, 72
        %v1263 = vadd.s32 %v1253, 80
        %v1264 = vadd.s32 %v1253, 88
        %v1265 = vadd.s32 %v1253, 96
        %v1266 = vadd.s32 %v1253, 104
        %v1267 = vadd.s32 %v1253, 112
        %v1268 = vadd.s32 %v1253, 120
        %v1269 = vadd.s32 %v1253, 128
        %v1270 = vadd.s32 %v1253, 136
        %v1271 = vadd.s32 %v1253, 144
        %v1272 = vadd.s32 %v1253, 152
        %v1273 = vadd.s32 %v1253, 160
        %v1274 = vadd.s32 %v1253, 168
        %v1275 = vadd.s32 %v1253, 176
        %v1276 = vadd.s32 %v1253, 184
        %v1277 = vadd.s32 %v1253, 192
        %v1278 = vadd.s32 %v1253, 200
        %v1279 = vadd.s32 %v1253, 208
        %v1280 = vadd.s32 %v1253, 216
        %v1281 = vadd.s32 %v1253, 224
        %v1282 = vadd.s32 %v1253, 232
        %v1283 = vadd.s32 %v1253, 240
        %v1284 = vadd.s32 %v1253, 248
        %v1285 = vadd.s32 %v1253, 256
        %v1286 = vadd.s32 %v1253, 264
        %v1287 = vadd.s32 %v1253, 272
        %v1288 = vadd.s32 %v1253, 280
        %v1289 = vadd.s32 %v1253, 288
        %v1290 = vadd.s32 %v1253, 296
        %v1291 = vadd.s32 %v1253, 304
        %v1292 = vadd.s32 %v1253, 312
        %v1293 = vadd.s32 %v1253, 320
        %v1294 = vadd.s32 %v1253, 328
        %v1295 = vadd.s32 %v1253, 336
        %v1296 = vadd.s32 %v1253, 344
        %v1297 = vadd.s32 %v1253, 352
        %v1298 = vadd.s32 %v1253, 360
        %v1299 = vadd.s32 %v1253, 368
        %v1300 = vadd.s32 %v1253, 376
        %v1301 = vadd.s32 %v1253, 384
        %v1302 = vadd.s32 %v1253, 392
        %v1303 = vadd.s32 %v1253, 400
        %v1304 = vadd.s32 %v1253, 408
        %v1305 = vadd.s32 %v1253, 416
        %v1306 = vadd.s32 %v1253, 424
        %v1307 = vadd.s32 %v1253, 432
        %v1308 = vadd.s32 %v1253, 440
        %v1309 = vadd.s32 %v1253, 448
        %v1310 = vadd.s32 %v1253, 456
        %v1311 = vadd.s32 %v1253, 464
        %v1312 = vadd.s32 %v1253, 472
        %v1313 = vadd.s32 %v1253, 480
        %v1314 = vadd.s32 %v1253, 488
        %v1315 = vadd.s32 %v1253, 496
        %v1316 = vadd.s32 %v1253, 504
        %v1317 = vadd.s32 %v1253, 512
        %v1318 = vadd.s32 %v1253, 520
        %v1319 = vadd.s32 %v1253, 528
        %v1320 = vadd.s32 %v1253, 536
        %v1321 = vadd.s32 %v1253, 544
        %v1322 = vadd.s32 %v1253, 552
        %v1323 = vadd.s32 %v1253, 560
        %v1324 = vadd.s32 %v1253, 568
        %v1325 = vand.u32 %v1253, 31
        %v1326 = vand.u32 %v1254, 31
        %v1327 = vand.u32 %v1255, 31
        %v1328 = vand.u32 %v1256, 31
        %v1329 = vand.u32 %v1257, 31
        %v1330 = vand.u32 %v1258, 31
        %v1331 = vand.u32 %v1259, 31
        %v1332 = vand.u32 %v1260, 31
        %v1333 = vand.u32 %v1261, 31
        %v1334 = vand.u32 %v1262, 31
        %v1335 = vand.u32 %v1263, 31
        %v1336 = vand.u32 %v1264, 31
        %v1337 = vand.u32 %v1265, 31
        %v1338 = vand.u32 %v1266, 31
        %v1339 = vand.u32 %v1267, 31
        %v1340 = vand.u32 %v1268, 31
        %v1341 = vand.u32 %v1269, 31
        %v1342 = vand.u32 %v1270, 31
        %v1343 = vand.u32 %v1271, 31
        %v1344 = vand.u32 %v1272, 31
        %v1345 = vand.u32 %v1273, 31
        %v1346 = vand.u32 %v1274, 31
        %v1347 = vand.u32 %v1275, 31
        %v1348 = vand.u32 %v1276, 31
        %v1349 = vand.u32 %v1277, 31
        %v1350 = vand.u32 %v1278, 31
        %v1351 = vand.u32 %v1279, 31
        %v1352 = vand.u32 %v1280, 31
        %v1353 = vand.u32 %v1281, 31
        %v1354 = vand.u32 %v1282, 31
        %v1355 = vand.u32 %v1283, 31
        %v1356 = vand.u32 %v1284, 31
        %v1357 = vand.u32 %v1285, 31
        %v1358 = vand.u32 %v1286, 31
        %v1359 = vand.u32 %v1287, 31
        %v1360 = vand.u32 %v1288, 31
        %v1361 = vand.u32 %v1289, 31
        %v1362 = vand.u32 %v1290, 31
        %v1363 = vand.u32 %v1291, 31
        %v1364 = vand.u32 %v1292, 31
        %v1365 = vand.u32 %v1293, 31
        %v1366 = vand.u32 %v1294, 31
        %v1367 = vand.u32 %v1295, 31
        %v1368 = vand.u32 %v1296, 31
        %v1369 = vand.u32 %v1297, 31
        %v1370 = vand.u32 %v1298, 31
        %v1371 = vand.u32 %v1299, 31
        %v1372 = vand.u32 %v1300, 31
        %v1373 = vand.u32 %v1301, 31
        %v1374 = vand.u32 %v1302, 31
        %v1375 = vand.u32 %v1303, 31
        %v1376 = vand.u32 %v1304, 31
        %v1377 = vand.u32 %v1305, 31
        %v1378 = vand.u32 %v1306, 31
        %v1379 = vand.u32 %v1307, 31
        %v1380 = vand.u32 %v1308, 31
        %v1381 = vand.u32 %v1309, 31
        %v1382 = vand.u32 %v1310, 31
        %v1383 = vand.u32 %v1311, 31
        %v1384 = vand.u32 %v1312, 31
        %v1385 = vand.u32 %v1313, 31
        %v1386 = vand.u32 %v1314, 31
        %v1387 = vand.u32 %v1315, 31
        %v1388 = vand.u32 %v1316, 31
        %v1389 = vand.u32 %v1317, 31
        %v1390 = vand.u32 %v1318, 31
        %v1391 = vand.u32 %v1319, 31
        %v1392 = vand.u32 %v1320, 31
        %v1393 = vand.u32 %v1321, 31
        %v1394 = vand.u32 %v1322, 31
        %v1395 = vand.u32 %v1323, 31
        %v1396 = vand.u32 %v1324, 31
        %vm1397 = vcmp.ge.s32.totalorder %v1253, 32
        %vm1398 = vcmp.ge.s32.totalorder %v1254, 32
        %vm1399 = vcmp.ge.s32.totalorder %v1255, 32
        %vm1400 = vcmp.ge.s32.totalorder %v1256, 32
        %vm1401 = vcmp.ge.s32.totalorder %v1257, 32
        %vm1402 = vcmp.ge.s32.totalorder %v1258, 32
        %vm1403 = vcmp.ge.s32.totalorder %v1259, 32
        %vm1404 = vcmp.ge.s32.totalorder %v1260, 32
        %vm1405 = vcmp.ge.s32.totalorder %v1261, 32
        %vm1406 = vcmp.ge.s32.totalorder %v1262, 32
        %vm1407 = vcmp.ge.s32.totalorder %v1263, 32
        %vm1408 = vcmp.ge.s32.totalorder %v1264, 32
        %vm1409 = vcmp.ge.s32.totalorder %v1265, 32
        %vm1410 = vcmp.ge.s32.totalorder %v1266, 32
        %vm1411 = vcmp.ge.s32.totalorder %v1267, 32
        %vm1412 = vcmp.ge.s32.totalorder %v1268, 32
        %vm1413 = vcmp.ge.s32.totalorder %v1269, 32
        %vm1414 = vcmp.ge.s32.totalorder %v1270, 32
        %vm1415 = vcmp.ge.s32.totalorder %v1271, 32
        %vm1416 = vcmp.ge.s32.totalorder %v1272, 32
        %vm1417 = vcmp.ge.s32.totalorder %v1273, 32
        %vm1418 = vcmp.ge.s32.totalorder %v1274, 32
        %vm1419 = vcmp.ge.s32.totalorder %v1275, 32
        %vm1420 = vcmp.ge.s32.totalorder %v1276, 32
        %vm1421 = vcmp.ge.s32.totalorder %v1277, 32
        %vm1422 = vcmp.ge.s32.totalorder %v1278, 32
        %vm1423 = vcmp.ge.s32.totalorder %v1279, 32
        %vm1424 = vcmp.ge.s32.totalorder %v1280, 32
        %vm1425 = vcmp.ge.s32.totalorder %v1281, 32
        %vm1426 = vcmp.ge.s32.totalorder %v1282, 32
        %vm1427 = vcmp.ge.s32.totalorder %v1283, 32
        %vm1428 = vcmp.ge.s32.totalorder %v1284, 32
        %vm1429 = vcmp.ge.s32.totalorder %v1285, 32
        %vm1430 = vcmp.ge.s32.totalorder %v1286, 32
        %vm1431 = vcmp.ge.s32.totalorder %v1287, 32
        %vm1432 = vcmp.ge.s32.totalorder %v1288, 32
        %vm1433 = vcmp.ge.s32.totalorder %v1289, 32
        %vm1434 = vcmp.ge.s32.totalorder %v1290, 32
        %vm1435 = vcmp.ge.s32.totalorder %v1291, 32
        %vm1436 = vcmp.ge.s32.totalorder %v1292, 32
        %vm1437 = vcmp.ge.s32.totalorder %v1293, 32
        %vm1438 = vcmp.ge.s32.totalorder %v1294, 32
        %vm1439 = vcmp.ge.s32.totalorder %v1295, 32
        %vm1440 = vcmp.ge.s32.totalorder %v1296, 32
        %vm1441 = vcmp.ge.s32.totalorder %v1297, 32
        %vm1442 = vcmp.ge.s32.totalorder %v1298, 32
        %vm1443 = vcmp.ge.s32.totalorder %v1299, 32
        %vm1444 = vcmp.ge.s32.totalorder %v1300, 32
        %vm1445 = vcmp.ge.s32.totalorder %v1301, 32
        %vm1446 = vcmp.ge.s32.totalorder %v1302, 32
        %vm1447 = vcmp.ge.s32.totalorder %v1303, 32
        %vm1448 = vcmp.ge.s32.totalorder %v1304, 32
        %vm1449 = vcmp.ge.s32.totalorder %v1305, 32
        %vm1450 = vcmp.ge.s32.totalorder %v1306, 32
        %vm1451 = vcmp.ge.s32.totalorder %v1307, 32
        %vm1452 = vcmp.ge.s32.totalorder %v1308, 32
        %vm1453 = vcmp.ge.s32.totalorder %v1309, 32
        %vm1454 = vcmp.ge.s32.totalorder %v1310, 32
        %vm1455 = vcmp.ge.s32.totalorder %v1311, 32
        %vm1456 = vcmp.ge.s32.totalorder %v1312, 32
        %vm1457 = vcmp.ge.s32.totalorder %v1313, 32
        %vm1458 = vcmp.ge.s32.totalorder %v1314, 32
        %vm1459 = vcmp.ge.s32.totalorder %v1315, 32
        %vm1460 = vcmp.ge.s32.totalorder %v1316, 32
        %vm1461 = vcmp.ge.s32.totalorder %v1317, 32
        %vm1462 = vcmp.ge.s32.totalorder %v1318, 32
        %vm1463 = vcmp.ge.s32.totalorder %v1319, 32
        %vm1464 = vcmp.ge.s32.totalorder %v1320, 32
        %vm1465 = vcmp.ge.s32.totalorder %v1321, 32
        %vm1466 = vcmp.ge.s32.totalorder %v1322, 32
        %vm1467 = vcmp.ge.s32.totalorder %v1323, 32
        %vm1468 = vcmp.ge.s32.totalorder %v1324, 32
        %vm1469 = vcmp.lt.s32.totalorder %v1253, 544
        %vm1470 = vcmp.lt.s32.totalorder %v1254, 544
        %vm1471 = vcmp.lt.s32.totalorder %v1255, 544
        %vm1472 = vcmp.lt.s32.totalorder %v1256, 544
        %vm1473 = vcmp.lt.s32.totalorder %v1257, 544
        %vm1474 = vcmp.lt.s32.totalorder %v1258, 544
        %vm1475 = vcmp.lt.s32.totalorder %v1259, 544
        %vm1476 = vcmp.lt.s32.totalorder %v1260, 544
        %vm1477 = vcmp.lt.s32.totalorder %v1261, 544
        %vm1478 = vcmp.lt.s32.totalorder %v1262, 544
        %vm1479 = vcmp.lt.s32.totalorder %v1263, 544
        %vm1480 = vcmp.lt.s32.totalorder %v1264, 544
        %vm1481 = vcmp.lt.s32.totalorder %v1265, 544
        %vm1482 = vcmp.lt.s32.totalorder %v1266, 544
        %vm1483 = vcmp.lt.s32.totalorder %v1267, 544
        %vm1484 = vcmp.lt.s32.totalorder %v1268, 544
        %vm1485 = vcmp.lt.s32.totalorder %v1269, 544
        %vm1486 = vcmp.lt.s32.totalorder %v1270, 544
        %vm1487 = vcmp.lt.s32.totalorder %v1271, 544
        %vm1488 = vcmp.lt.s32.totalorder %v1272, 544
        %vm1489 = vcmp.lt.s32.totalorder %v1273, 544
        %vm1490 = vcmp.lt.s32.totalorder %v1274, 544
        %vm1491 = vcmp.lt.s32.totalorder %v1275, 544
        %vm1492 = vcmp.lt.s32.totalorder %v1276, 544
        %vm1493 = vcmp.lt.s32.totalorder %v1277, 544
        %vm1494 = vcmp.lt.s32.totalorder %v1278, 544
        %vm1495 = vcmp.lt.s32.totalorder %v1279, 544
        %vm1496 = vcmp.lt.s32.totalorder %v1280, 544
        %vm1497 = vcmp.lt.s32.totalorder %v1281, 544
        %vm1498 = vcmp.lt.s32.totalorder %v1282, 544
        %vm1499 = vcmp.lt.s32.totalorder %v1283, 544
        %vm1500 = vcmp.lt.s32.totalorder %v1284, 544
        %vm1501 = vcmp.lt.s32.totalorder %v1285, 544
        %vm1502 = vcmp.lt.s32.totalorder %v1286, 544
        %vm1503 = vcmp.lt.s32.totalorder %v1287, 544
        %vm1504 = vcmp.lt.s32.totalorder %v1288, 544
        %vm1505 = vcmp.lt.s32.totalorder %v1289, 544
        %vm1506 = vcmp.lt.s32.totalorder %v1290, 544
        %vm1507 = vcmp.lt.s32.totalorder %v1291, 544
        %vm1508 = vcmp.lt.s32.totalorder %v1292, 544
        %vm1509 = vcmp.lt.s32.totalorder %v1293, 544
        %vm1510 = vcmp.lt.s32.totalorder %v1294, 544
        %vm1511 = vcmp.lt.s32.totalorder %v1295, 544
        %vm1512 = vcmp.lt.s32.totalorder %v1296, 544
        %vm1513 = vcmp.lt.s32.totalorder %v1297, 544
        %vm1514 = vcmp.lt.s32.totalorder %v1298, 544
        %vm1515 = vcmp.lt.s32.totalorder %v1299, 544
        %vm1516 = vcmp.lt.s32.totalorder %v1300, 544
        %vm1517 = vcmp.lt.s32.totalorder %v1301, 544
        %vm1518 = vcmp.lt.s32.totalorder %v1302, 544
        %vm1519 = vcmp.lt.s32.totalorder %v1303, 544
        %vm1520 = vcmp.lt.s32.totalorder %v1304, 544
        %vm1521 = vcmp.lt.s32.totalorder %v1305, 544
        %vm1522 = vcmp.lt.s32.totalorder %v1306, 544
        %vm1523 = vcmp.lt.s32.totalorder %v1307, 544
        %vm1524 = vcmp.lt.s32.totalorder %v1308, 544
        %vm1525 = vcmp.lt.s32.totalorder %v1309, 544
        %vm1526 = vcmp.lt.s32.totalorder %v1310, 544
        %vm1527 = vcmp.lt.s32.totalorder %v1311, 544
        %vm1528 = vcmp.lt.s32.totalorder %v1312, 544
        %vm1529 = vcmp.lt.s32.totalorder %v1313, 544
        %vm1530 = vcmp.lt.s32.totalorder %v1314, 544
        %vm1531 = vcmp.lt.s32.totalorder %v1315, 544
        %vm1532 = vcmp.lt.s32.totalorder %v1316, 544
        %vm1533 = vcmp.lt.s32.totalorder %v1317, 544
        %vm1534 = vcmp.lt.s32.totalorder %v1318, 544
        %vm1535 = vcmp.lt.s32.totalorder %v1319, 544
        %vm1536 = vcmp.lt.s32.totalorder %v1320, 544
        %vm1537 = vcmp.lt.s32.totalorder %v1321, 544
        %vm1538 = vcmp.lt.s32.totalorder %v1322, 544
        %vm1539 = vcmp.lt.s32.totalorder %v1323, 544
        %vm1540 = vcmp.lt.s32.totalorder %v1324, 544
        %vm1541 = vmand %vm1397, %vm1469
        %vm1542 = vmand %vm1398, %vm1470
        %vm1543 = vmand %vm1399, %vm1471
        %vm1544 = vmand %vm1400, %vm1472
        %vm1545 = vmand %vm1401, %vm1473
        %vm1546 = vmand %vm1402, %vm1474
        %vm1547 = vmand %vm1403, %vm1475
        %vm1548 = vmand %vm1404, %vm1476
        %vm1549 = vmand %vm1405, %vm1477
        %vm1550 = vmand %vm1406, %vm1478
        %vm1551 = vmand %vm1407, %vm1479
        %vm1552 = vmand %vm1408, %vm1480
        %vm1553 = vmand %vm1409, %vm1481
        %vm1554 = vmand %vm1410, %vm1482
        %vm1555 = vmand %vm1411, %vm1483
        %vm1556 = vmand %vm1412, %vm1484
        %vm1557 = vmand %vm1413, %vm1485
        %vm1558 = vmand %vm1414, %vm1486
        %vm1559 = vmand %vm1415, %vm1487
        %vm1560 = vmand %vm1416, %vm1488
        %vm1561 = vmand %vm1417, %vm1489
        %vm1562 = vmand %vm1418, %vm1490
        %vm1563 = vmand %vm1419, %vm1491
        %vm1564 = vmand %vm1420, %vm1492
        %vm1565 = vmand %vm1421, %vm1493
        %vm1566 = vmand %vm1422, %vm1494
        %vm1567 = vmand %vm1423, %vm1495
        %vm1568 = vmand %vm1424, %vm1496
        %vm1569 = vmand %vm1425, %vm1497
        %vm1570 = vmand %vm1426, %vm1498
        %vm1571 = vmand %vm1427, %vm1499
        %vm1572 = vmand %vm1428, %vm1500
        %vm1573 = vmand %vm1429, %vm1501
        %vm1574 = vmand %vm1430, %vm1502
        %vm1575 = vmand %vm1431, %vm1503
        %vm1576 = vmand %vm1432, %vm1504
        %vm1577 = vmand %vm1433, %vm1505
        %vm1578 = vmand %vm1434, %vm1506
        %vm1579 = vmand %vm1435, %vm1507
        %vm1580 = vmand %vm1436, %vm1508
        %vm1581 = vmand %vm1437, %vm1509
        %vm1582 = vmand %vm1438, %vm1510
        %vm1583 = vmand %vm1439, %vm1511
        %vm1584 = vmand %vm1440, %vm1512
        %vm1585 = vmand %vm1441, %vm1513
        %vm1586 = vmand %vm1442, %vm1514
        %vm1587 = vmand %vm1443, %vm1515
        %vm1588 = vmand %vm1444, %vm1516
        %vm1589 = vmand %vm1445, %vm1517
        %vm1590 = vmand %vm1446, %vm1518
        %vm1591 = vmand %vm1447, %vm1519
        %vm1592 = vmand %vm1448, %vm1520
        %vm1593 = vmand %vm1449, %vm1521
        %vm1594 = vmand %vm1450, %vm1522
        %vm1595 = vmand %vm1451, %vm1523
        %vm1596 = vmand %vm1452, %vm1524
        %vm1597 = vmand %vm1453, %vm1525
        %vm1598 = vmand %vm1454, %vm1526
        %vm1599 = vmand %vm1455, %vm1527
        %vm1600 = vmand %vm1456, %vm1528
        %vm1601 = vmand %vm1457, %vm1529
        %vm1602 = vmand %vm1458, %vm1530
        %vm1603 = vmand %vm1459, %vm1531
        %vm1604 = vmand %vm1460, %vm1532
        %vm1605 = vmand %vm1461, %vm1533
        %vm1606 = vmand %vm1462, %vm1534
        %vm1607 = vmand %vm1463, %vm1535
        %vm1608 = vmand %vm1464, %vm1536
        %vm1609 = vmand %vm1465, %vm1537
        %vm1610 = vmand %vm1466, %vm1538
        %vm1611 = vmand %vm1467, %vm1539
        %vm1612 = vmand %vm1468, %vm1540
        %vm1613 = vcmp.ge.s32.totalorder %v1325, 1
        %vm1614 = vcmp.ge.s32.totalorder %v1326, 1
        %vm1615 = vcmp.ge.s32.totalorder %v1327, 1
        %vm1616 = vcmp.ge.s32.totalorder %v1328, 1
        %vm1617 = vcmp.ge.s32.totalorder %v1329, 1
        %vm1618 = vcmp.ge.s32.totalorder %v1330, 1
        %vm1619 = vcmp.ge.s32.totalorder %v1331, 1
        %vm1620 = vcmp.ge.s32.totalorder %v1332, 1
        %vm1621 = vcmp.ge.s32.totalorder %v1333, 1
        %vm1622 = vcmp.ge.s32.totalorder %v1334, 1
        %vm1623 = vcmp.ge.s32.totalorder %v1335, 1
        %vm1624 = vcmp.ge.s32.totalorder %v1336, 1
        %vm1625 = vcmp.ge.s32.totalorder %v1337, 1
        %vm1626 = vcmp.ge.s32.totalorder %v1338, 1
        %vm1627 = vcmp.ge.s32.totalorder %v1339, 1
        %vm1628 = vcmp.ge.s32.totalorder %v1340, 1
        %vm1629 = vcmp.ge.s32.totalorder %v1341, 1
        %vm1630 = vcmp.ge.s32.totalorder %v1342, 1
        %vm1631 = vcmp.ge.s32.totalorder %v1343, 1
        %vm1632 = vcmp.ge.s32.totalorder %v1344, 1
        %vm1633 = vcmp.ge.s32.totalorder %v1345, 1
        %vm1634 = vcmp.ge.s32.totalorder %v1346, 1
        %vm1635 = vcmp.ge.s32.totalorder %v1347, 1
        %vm1636 = vcmp.ge.s32.totalorder %v1348, 1
        %vm1637 = vcmp.ge.s32.totalorder %v1349, 1
        %vm1638 = vcmp.ge.s32.totalorder %v1350, 1
        %vm1639 = vcmp.ge.s32.totalorder %v1351, 1
        %vm1640 = vcmp.ge.s32.totalorder %v1352, 1
        %vm1641 = vcmp.ge.s32.totalorder %v1353, 1
        %vm1642 = vcmp.ge.s32.totalorder %v1354, 1
        %vm1643 = vcmp.ge.s32.totalorder %v1355, 1
        %vm1644 = vcmp.ge.s32.totalorder %v1356, 1
        %vm1645 = vcmp.ge.s32.totalorder %v1357, 1
        %vm1646 = vcmp.ge.s32.totalorder %v1358, 1
        %vm1647 = vcmp.ge.s32.totalorder %v1359, 1
        %vm1648 = vcmp.ge.s32.totalorder %v1360, 1
        %vm1649 = vcmp.ge.s32.totalorder %v1361, 1
        %vm1650 = vcmp.ge.s32.totalorder %v1362, 1
        %vm1651 = vcmp.ge.s32.totalorder %v1363, 1
        %vm1652 = vcmp.ge.s32.totalorder %v1364, 1
        %vm1653 = vcmp.ge.s32.totalorder %v1365, 1
        %vm1654 = vcmp.ge.s32.totalorder %v1366, 1
        %vm1655 = vcmp.ge.s32.totalorder %v1367, 1
        %vm1656 = vcmp.ge.s32.totalorder %v1368, 1
        %vm1657 = vcmp.ge.s32.totalorder %v1369, 1
        %vm1658 = vcmp.ge.s32.totalorder %v1370, 1
        %vm1659 = vcmp.ge.s32.totalorder %v1371, 1
        %vm1660 = vcmp.ge.s32.totalorder %v1372, 1
        %vm1661 = vcmp.ge.s32.totalorder %v1373, 1
        %vm1662 = vcmp.ge.s32.totalorder %v1374, 1
        %vm1663 = vcmp.ge.s32.totalorder %v1375, 1
        %vm1664 = vcmp.ge.s32.totalorder %v1376, 1
        %vm1665 = vcmp.ge.s32.totalorder %v1377, 1
        %vm1666 = vcmp.ge.s32.totalorder %v1378, 1
        %vm1667 = vcmp.ge.s32.totalorder %v1379, 1
        %vm1668 = vcmp.ge.s32.totalorder %v1380, 1
        %vm1669 = vcmp.ge.s32.totalorder %v1381, 1
        %vm1670 = vcmp.ge.s32.totalorder %v1382, 1
        %vm1671 = vcmp.ge.s32.totalorder %v1383, 1
        %vm1672 = vcmp.ge.s32.totalorder %v1384, 1
        %vm1673 = vcmp.ge.s32.totalorder %v1385, 1
        %vm1674 = vcmp.ge.s32.totalorder %v1386, 1
        %vm1675 = vcmp.ge.s32.totalorder %v1387, 1
        %vm1676 = vcmp.ge.s32.totalorder %v1388, 1
        %vm1677 = vcmp.ge.s32.totalorder %v1389, 1
        %vm1678 = vcmp.ge.s32.totalorder %v1390, 1
        %vm1679 = vcmp.ge.s32.totalorder %v1391, 1
        %vm1680 = vcmp.ge.s32.totalorder %v1392, 1
        %vm1681 = vcmp.ge.s32.totalorder %v1393, 1
        %vm1682 = vcmp.ge.s32.totalorder %v1394, 1
        %vm1683 = vcmp.ge.s32.totalorder %v1395, 1
        %vm1684 = vcmp.ge.s32.totalorder %v1396, 1
        %vm1685 = vmand %vm1541, %vm1613
        %vm1686 = vmand %vm1542, %vm1614
        %vm1687 = vmand %vm1543, %vm1615
        %vm1688 = vmand %vm1544, %vm1616
        %vm1689 = vmand %vm1545, %vm1617
        %vm1690 = vmand %vm1546, %vm1618
        %vm1691 = vmand %vm1547, %vm1619
        %vm1692 = vmand %vm1548, %vm1620
        %vm1693 = vmand %vm1549, %vm1621
        %vm1694 = vmand %vm1550, %vm1622
        %vm1695 = vmand %vm1551, %vm1623
        %vm1696 = vmand %vm1552, %vm1624
        %vm1697 = vmand %vm1553, %vm1625
        %vm1698 = vmand %vm1554, %vm1626
        %vm1699 = vmand %vm1555, %vm1627
        %vm1700 = vmand %vm1556, %vm1628
        %vm1701 = vmand %vm1557, %vm1629
        %vm1702 = vmand %vm1558, %vm1630
        %vm1703 = vmand %vm1559, %vm1631
        %vm1704 = vmand %vm1560, %vm1632
        %vm1705 = vmand %vm1561, %vm1633
        %vm1706 = vmand %vm1562, %vm1634
        %vm1707 = vmand %vm1563, %vm1635
        %vm1708 = vmand %vm1564, %vm1636
        %vm1709 = vmand %vm1565, %vm1637
        %vm1710 = vmand %vm1566, %vm1638
        %vm1711 = vmand %vm1567, %vm1639
        %vm1712 = vmand %vm1568, %vm1640
        %vm1713 = vmand %vm1569, %vm1641
        %vm1714 = vmand %vm1570, %vm1642
        %vm1715 = vmand %vm1571, %vm1643
        %vm1716 = vmand %vm1572, %vm1644
        %vm1717 = vmand %vm1573, %vm1645
        %vm1718 = vmand %vm1574, %vm1646
        %vm1719 = vmand %vm1575, %vm1647
        %vm1720 = vmand %vm1576, %vm1648
        %vm1721 = vmand %vm1577, %vm1649
        %vm1722 = vmand %vm1578, %vm1650
        %vm1723 = vmand %vm1579, %vm1651
        %vm1724 = vmand %vm1580, %vm1652
        %vm1725 = vmand %vm1581, %vm1653
        %vm1726 = vmand %vm1582, %vm1654
        %vm1727 = vmand %vm1583, %vm1655
        %vm1728 = vmand %vm1584, %vm1656
        %vm1729 = vmand %vm1585, %vm1657
        %vm1730 = vmand %vm1586, %vm1658
        %vm1731 = vmand %vm1587, %vm1659
        %vm1732 = vmand %vm1588, %vm1660
        %vm1733 = vmand %vm1589, %vm1661
        %vm1734 = vmand %vm1590, %vm1662
        %vm1735 = vmand %vm1591, %vm1663
        %vm1736 = vmand %vm1592, %vm1664
        %vm1737 = vmand %vm1593, %vm1665
        %vm1738 = vmand %vm1594, %vm1666
        %vm1739 = vmand %vm1595, %vm1667
        %vm1740 = vmand %vm1596, %vm1668
        %vm1741 = vmand %vm1597, %vm1669
        %vm1742 = vmand %vm1598, %vm1670
        %vm1743 = vmand %vm1599, %vm1671
        %vm1744 = vmand %vm1600, %vm1672
        %vm1745 = vmand %vm1601, %vm1673
        %vm1746 = vmand %vm1602, %vm1674
        %vm1747 = vmand %vm1603, %vm1675
        %vm1748 = vmand %vm1604, %vm1676
        %vm1749 = vmand %vm1605, %vm1677
        %vm1750 = vmand %vm1606, %vm1678
        %vm1751 = vmand %vm1607, %vm1679
        %vm1752 = vmand %vm1608, %vm1680
        %vm1753 = vmand %vm1609, %vm1681
        %vm1754 = vmand %vm1610, %vm1682
        %vm1755 = vmand %vm1611, %vm1683
        %vm1756 = vmand %vm1612, %vm1684
        %vm1757 = vcmp.le.s32.totalorder %v1325, 16
        %vm1758 = vcmp.le.s32.totalorder %v1326, 16
        %vm1759 = vcmp.le.s32.totalorder %v1327, 16
        %vm1760 = vcmp.le.s32.totalorder %v1328, 16
        %vm1761 = vcmp.le.s32.totalorder %v1329, 16
        %vm1762 = vcmp.le.s32.totalorder %v1330, 16
        %vm1763 = vcmp.le.s32.totalorder %v1331, 16
        %vm1764 = vcmp.le.s32.totalorder %v1332, 16
        %vm1765 = vcmp.le.s32.totalorder %v1333, 16
        %vm1766 = vcmp.le.s32.totalorder %v1334, 16
        %vm1767 = vcmp.le.s32.totalorder %v1335, 16
        %vm1768 = vcmp.le.s32.totalorder %v1336, 16
        %vm1769 = vcmp.le.s32.totalorder %v1337, 16
        %vm1770 = vcmp.le.s32.totalorder %v1338, 16
        %vm1771 = vcmp.le.s32.totalorder %v1339, 16
        %vm1772 = vcmp.le.s32.totalorder %v1340, 16
        %vm1773 = vcmp.le.s32.totalorder %v1341, 16
        %vm1774 = vcmp.le.s32.totalorder %v1342, 16
        %vm1775 = vcmp.le.s32.totalorder %v1343, 16
        %vm1776 = vcmp.le.s32.totalorder %v1344, 16
        %vm1777 = vcmp.le.s32.totalorder %v1345, 16
        %vm1778 = vcmp.le.s32.totalorder %v1346, 16
        %vm1779 = vcmp.le.s32.totalorder %v1347, 16
        %vm1780 = vcmp.le.s32.totalorder %v1348, 16
        %vm1781 = vcmp.le.s32.totalorder %v1349, 16
        %vm1782 = vcmp.le.s32.totalorder %v1350, 16
        %vm1783 = vcmp.le.s32.totalorder %v1351, 16
        %vm1784 = vcmp.le.s32.totalorder %v1352, 16
        %vm1785 = vcmp.le.s32.totalorder %v1353, 16
        %vm1786 = vcmp.le.s32.totalorder %v1354, 16
        %vm1787 = vcmp.le.s32.totalorder %v1355, 16
        %vm1788 = vcmp.le.s32.totalorder %v1356, 16
        %vm1789 = vcmp.le.s32.totalorder %v1357, 16
        %vm1790 = vcmp.le.s32.totalorder %v1358, 16
        %vm1791 = vcmp.le.s32.totalorder %v1359, 16
        %vm1792 = vcmp.le.s32.totalorder %v1360, 16
        %vm1793 = vcmp.le.s32.totalorder %v1361, 16
        %vm1794 = vcmp.le.s32.totalorder %v1362, 16
        %vm1795 = vcmp.le.s32.totalorder %v1363, 16
        %vm1796 = vcmp.le.s32.totalorder %v1364, 16
        %vm1797 = vcmp.le.s32.totalorder %v1365, 16
        %vm1798 = vcmp.le.s32.totalorder %v1366, 16
        %vm1799 = vcmp.le.s32.totalorder %v1367, 16
        %vm1800 = vcmp.le.s32.totalorder %v1368, 16
        %vm1801 = vcmp.le.s32.totalorder %v1369, 16
        %vm1802 = vcmp.le.s32.totalorder %v1370, 16
        %vm1803 = vcmp.le.s32.totalorder %v1371, 16
        %vm1804 = vcmp.le.s32.totalorder %v1372, 16
        %vm1805 = vcmp.le.s32.totalorder %v1373, 16
        %vm1806 = vcmp.le.s32.totalorder %v1374, 16
        %vm1807 = vcmp.le.s32.totalorder %v1375, 16
        %vm1808 = vcmp.le.s32.totalorder %v1376, 16
        %vm1809 = vcmp.le.s32.totalorder %v1377, 16
        %vm1810 = vcmp.le.s32.totalorder %v1378, 16
        %vm1811 = vcmp.le.s32.totalorder %v1379, 16
        %vm1812 = vcmp.le.s32.totalorder %v1380, 16
        %vm1813 = vcmp.le.s32.totalorder %v1381, 16
        %vm1814 = vcmp.le.s32.totalorder %v1382, 16
        %vm1815 = vcmp.le.s32.totalorder %v1383, 16
        %vm1816 = vcmp.le.s32.totalorder %v1384, 16
        %vm1817 = vcmp.le.s32.totalorder %v1385, 16
        %vm1818 = vcmp.le.s32.totalorder %v1386, 16
        %vm1819 = vcmp.le.s32.totalorder %v1387, 16
        %vm1820 = vcmp.le.s32.totalorder %v1388, 16
        %vm1821 = vcmp.le.s32.totalorder %v1389, 16
        %vm1822 = vcmp.le.s32.totalorder %v1390, 16
        %vm1823 = vcmp.le.s32.totalorder %v1391, 16
        %vm1824 = vcmp.le.s32.totalorder %v1392, 16
        %vm1825 = vcmp.le.s32.totalorder %v1393, 16
        %vm1826 = vcmp.le.s32.totalorder %v1394, 16
        %vm1827 = vcmp.le.s32.totalorder %v1395, 16
        %vm1828 = vcmp.le.s32.totalorder %v1396, 16
        %vm1829 = vmand %vm1685, %vm1757
        %vm1830 = vmand %vm1686, %vm1758
        %vm1831 = vmand %vm1687, %vm1759
        %vm1832 = vmand %vm1688, %vm1760
        %vm1833 = vmand %vm1689, %vm1761
        %vm1834 = vmand %vm1690, %vm1762
        %vm1835 = vmand %vm1691, %vm1763
        %vm1836 = vmand %vm1692, %vm1764
        %vm1837 = vmand %vm1693, %vm1765
        %vm1838 = vmand %vm1694, %vm1766
        %vm1839 = vmand %vm1695, %vm1767
        %vm1840 = vmand %vm1696, %vm1768
        %vm1841 = vmand %vm1697, %vm1769
        %vm1842 = vmand %vm1698, %vm1770
        %vm1843 = vmand %vm1699, %vm1771
        %vm1844 = vmand %vm1700, %vm1772
        %vm1845 = vmand %vm1701, %vm1773
        %vm1846 = vmand %vm1702, %vm1774
        %vm1847 = vmand %vm1703, %vm1775
        %vm1848 = vmand %vm1704, %vm1776
        %vm1849 = vmand %vm1705, %vm1777
        %vm1850 = vmand %vm1706, %vm1778
        %vm1851 = vmand %vm1707, %vm1779
        %vm1852 = vmand %vm1708, %vm1780
        %vm1853 = vmand %vm1709, %vm1781
        %vm1854 = vmand %vm1710, %vm1782
        %vm1855 = vmand %vm1711, %vm1783
        %vm1856 = vmand %vm1712, %vm1784
        %vm1857 = vmand %vm1713, %vm1785
        %vm1858 = vmand %vm1714, %vm1786
        %vm1859 = vmand %vm1715, %vm1787
        %vm1860 = vmand %vm1716, %vm1788
        %vm1861 = vmand %vm1717, %vm1789
        %vm1862 = vmand %vm1718, %vm1790
        %vm1863 = vmand %vm1719, %vm1791
        %vm1864 = vmand %vm1720, %vm1792
        %vm1865 = vmand %vm1721, %vm1793
        %vm1866 = vmand %vm1722, %vm1794
        %vm1867 = vmand %vm1723, %vm1795
        %vm1868 = vmand %vm1724, %vm1796
        %vm1869 = vmand %vm1725, %vm1797
        %vm1870 = vmand %vm1726, %vm1798
        %vm1871 = vmand %vm1727, %vm1799
        %vm1872 = vmand %vm1728, %vm1800
        %vm1873 = vmand %vm1729, %vm1801
        %vm1874 = vmand %vm1730, %vm1802
        %vm1875 = vmand %vm1731, %vm1803
        %vm1876 = vmand %vm1732, %vm1804
        %vm1877 = vmand %vm1733, %vm1805
        %vm1878 = vmand %vm1734, %vm1806
        %vm1879 = vmand %vm1735, %vm1807
        %vm1880 = vmand %vm1736, %vm1808
        %vm1881 = vmand %vm1737, %vm1809
        %vm1882 = vmand %vm1738, %vm1810
        %vm1883 = vmand %vm1739, %vm1811
        %vm1884 = vmand %vm1740, %vm1812
        %vm1885 = vmand %vm1741, %vm1813
        %vm1886 = vmand %vm1742, %vm1814
        %vm1887 = vmand %vm1743, %vm1815
        %vm1888 = vmand %vm1744, %vm1816
        %vm1889 = vmand %vm1745, %vm1817
        %vm1890 = vmand %vm1746, %vm1818
        %vm1891 = vmand %vm1747, %vm1819
        %vm1892 = vmand %vm1748, %vm1820
        %vm1893 = vmand %vm1749, %vm1821
        %vm1894 = vmand %vm1750, %vm1822
        %vm1895 = vmand %vm1751, %vm1823
        %vm1896 = vmand %vm1752, %vm1824
        %vm1897 = vmand %vm1753, %vm1825
        %vm1898 = vmand %vm1754, %vm1826
        %vm1899 = vmand %vm1755, %vm1827
        %vm1900 = vmand %vm1756, %vm1828
        %v1901 = vld [vmem:[%s2] sm:$0x1]
        %v1903 = vlaneseq
        %v1904 = vshrl.u32 %v1903, 7
        %v1905 = vsub.s32 0, %v1904
        %v1906 = vrot.slane %v1901, %v1905
        %v1908 = vmul.f32 %v966, %v1906
        %v1909 = vmul.f32 %v969, %v1906
        %v1910 = vmul.f32 %v974, %v1906
        %v1911 = vmul.f32 %v977, %v1906
        %v1912 = vmul.f32 %v982, %v1906
        %v1913 = vmul.f32 %v985, %v1906
        %v1914 = vmul.f32 %v990, %v1906
        %v1915 = vmul.f32 %v993, %v1906
        %v1916 = vmul.f32 %v998, %v1906
        %v1917 = vmul.f32 %v1001, %v1906
        %v1918 = vmul.f32 %v1006, %v1906
        %v1919 = vmul.f32 %v1009, %v1906
        %v1920 = vmul.f32 %v1014, %v1906
        %v1921 = vmul.f32 %v1017, %v1906
        %v1922 = vmul.f32 %v1022, %v1906
        %v1923 = vmul.f32 %v1025, %v1906
        %v1924 = vmul.f32 %v1030, %v1906
        %v1925 = vmul.f32 %v1033, %v1906
        %v1926 = vmul.f32 %v1038, %v1906
        %v1927 = vmul.f32 %v1041, %v1906
        %v1928 = vmul.f32 %v1046, %v1906
        %v1929 = vmul.f32 %v1049, %v1906
        %v1930 = vmul.f32 %v1054, %v1906
        %v1931 = vmul.f32 %v1057, %v1906
        %v1932 = vmul.f32 %v1062, %v1906
        %v1933 = vmul.f32 %v1065, %v1906
        %v1934 = vmul.f32 %v1070, %v1906
        %v1935 = vmul.f32 %v1073, %v1906
        %v1936 = vmul.f32 %v1078, %v1906
        %v1937 = vmul.f32 %v1081, %v1906
        %v1938 = vmul.f32 %v1086, %v1906
        %v1939 = vmul.f32 %v1089, %v1906
        %v1940 = vmul.f32 %v1094, %v1906
        %v1941 = vmul.f32 %v1097, %v1906
        %v1942 = vmul.f32 %v1102, %v1906
        %v1943 = vmul.f32 %v1105, %v1906
        %v1944 = vmul.f32 %v1110, %v1906
        %v1945 = vmul.f32 %v1113, %v1906
        %v1946 = vmul.f32 %v1118, %v1906
        %v1947 = vmul.f32 %v1121, %v1906
        %v1948 = vmul.f32 %v1126, %v1906
        %v1949 = vmul.f32 %v1129, %v1906
        %v1950 = vmul.f32 %v1134, %v1906
        %v1951 = vmul.f32 %v1137, %v1906
        %v1952 = vmul.f32 %v1142, %v1906
        %v1953 = vmul.f32 %v1145, %v1906
        %v1954 = vmul.f32 %v1150, %v1906
        %v1955 = vmul.f32 %v1153, %v1906
        %v1956 = vmul.f32 %v1158, %v1906
        %v1957 = vmul.f32 %v1161, %v1906
        %v1958 = vmul.f32 %v1166, %v1906
        %v1959 = vmul.f32 %v1169, %v1906
        %v1960 = vmul.f32 %v1174, %v1906
        %v1961 = vmul.f32 %v1177, %v1906
        %v1962 = vmul.f32 %v1182, %v1906
        %v1963 = vmul.f32 %v1185, %v1906
        %v1964 = vmul.f32 %v1190, %v1906
        %v1965 = vmul.f32 %v1193, %v1906
        %v1966 = vmul.f32 %v1198, %v1906
        %v1967 = vmul.f32 %v1201, %v1906
        %v1968 = vmul.f32 %v1206, %v1906
        %v1969 = vmul.f32 %v1209, %v1906
        %v1970 = vmul.f32 %v1214, %v1906
        %v1971 = vmul.f32 %v1217, %v1906
        %v1972 = vmul.f32 %v1222, %v1906
        %v1973 = vmul.f32 %v1225, %v1906
        %v1974 = vmul.f32 %v1230, %v1906
        %v1975 = vmul.f32 %v1233, %v1906
        %v1976 = vmul.f32 %v1238, %v1906
        %v1977 = vmul.f32 %v1241, %v1906
        %v1978 = vmul.f32 %v1246, %v1906
        %v1979 = vmul.f32 %v1249, %v1906
        %v1980 = vld [vmem:[%s3] sm:$0x1]
        %v1982 = vlaneseq
        %v1983 = vshrl.u32 %v1982, 7
        %v1984 = vsub.s32 0, %v1983
        %v1985 = vrot.slane %v1980, %v1984
        %v1987 = vadd.f32 %v1908, %v1985
        %v1988 = vadd.f32 %v1909, %v1985
        %v1989 = vadd.f32 %v1910, %v1985
        %v1990 = vadd.f32 %v1911, %v1985
        %v1991 = vadd.f32 %v1912, %v1985
        %v1992 = vadd.f32 %v1913, %v1985
        %v1993 = vadd.f32 %v1914, %v1985
        %v1994 = vadd.f32 %v1915, %v1985
        %v1995 = vadd.f32 %v1916, %v1985
        %v1996 = vadd.f32 %v1917, %v1985
        %v1997 = vadd.f32 %v1918, %v1985
        %v1998 = vadd.f32 %v1919, %v1985
        %v1999 = vadd.f32 %v1920, %v1985
        %v2000 = vadd.f32 %v1921, %v1985
        %v2001 = vadd.f32 %v1922, %v1985
        %v2002 = vadd.f32 %v1923, %v1985
        %v2003 = vadd.f32 %v1924, %v1985
        %v2004 = vadd.f32 %v1925, %v1985
        %v2005 = vadd.f32 %v1926, %v1985
        %v2006 = vadd.f32 %v1927, %v1985
        %v2007 = vadd.f32 %v1928, %v1985
        %v2008 = vadd.f32 %v1929, %v1985
        %v2009 = vadd.f32 %v1930, %v1985
        %v2010 = vadd.f32 %v1931, %v1985
        %v2011 = vadd.f32 %v1932, %v1985
        %v2012 = vadd.f32 %v1933, %v1985
        %v2013 = vadd.f32 %v1934, %v1985
        %v2014 = vadd.f32 %v1935, %v1985
        %v2015 = vadd.f32 %v1936, %v1985
        %v2016 = vadd.f32 %v1937, %v1985
        %v2017 = vadd.f32 %v1938, %v1985
        %v2018 = vadd.f32 %v1939, %v1985
        %v2019 = vadd.f32 %v1940, %v1985
        %v2020 = vadd.f32 %v1941, %v1985
        %v2021 = vadd.f32 %v1942, %v1985
        %v2022 = vadd.f32 %v1943, %v1985
        %v2023 = vadd.f32 %v1944, %v1985
        %v2024 = vadd.f32 %v1945, %v1985
        %v2025 = vadd.f32 %v1946, %v1985
        %v2026 = vadd.f32 %v1947, %v1985
        %v2027 = vadd.f32 %v1948, %v1985
        %v2028 = vadd.f32 %v1949, %v1985
        %v2029 = vadd.f32 %v1950, %v1985
        %v2030 = vadd.f32 %v1951, %v1985
        %v2031 = vadd.f32 %v1952, %v1985
        %v2032 = vadd.f32 %v1953, %v1985
        %v2033 = vadd.f32 %v1954, %v1985
        %v2034 = vadd.f32 %v1955, %v1985
        %v2035 = vadd.f32 %v1956, %v1985
        %v2036 = vadd.f32 %v1957, %v1985
        %v2037 = vadd.f32 %v1958, %v1985
        %v2038 = vadd.f32 %v1959, %v1985
        %v2039 = vadd.f32 %v1960, %v1985
        %v2040 = vadd.f32 %v1961, %v1985
        %v2041 = vadd.f32 %v1962, %v1985
        %v2042 = vadd.f32 %v1963, %v1985
        %v2043 = vadd.f32 %v1964, %v1985
        %v2044 = vadd.f32 %v1965, %v1985
        %v2045 = vadd.f32 %v1966, %v1985
        %v2046 = vadd.f32 %v1967, %v1985
        %v2047 = vadd.f32 %v1968, %v1985
        %v2048 = vadd.f32 %v1969, %v1985
        %v2049 = vadd.f32 %v1970, %v1985
        %v2050 = vadd.f32 %v1971, %v1985
        %v2051 = vadd.f32 %v1972, %v1985
        %v2052 = vadd.f32 %v1973, %v1985
        %v2053 = vadd.f32 %v1974, %v1985
        %v2054 = vadd.f32 %v1975, %v1985
        %v2055 = vadd.f32 %v1976, %v1985
        %v2056 = vadd.f32 %v1977, %v1985
        %v2057 = vadd.f32 %v1978, %v1985
        %v2058 = vadd.f32 %v1979, %v1985
        %v2059 = vmax.f32 %v1987, 0.0
        %v2060 = vmax.f32 %v1988, 0.0
        %v2061 = vmax.f32 %v1989, 0.0
        %v2062 = vmax.f32 %v1990, 0.0
        %v2063 = vmax.f32 %v1991, 0.0
        %v2064 = vmax.f32 %v1992, 0.0
        %v2065 = vmax.f32 %v1993, 0.0
        %v2066 = vmax.f32 %v1994, 0.0
        %v2067 = vmax.f32 %v1995, 0.0
        %v2068 = vmax.f32 %v1996, 0.0
        %v2069 = vmax.f32 %v1997, 0.0
        %v2070 = vmax.f32 %v1998, 0.0
        %v2071 = vmax.f32 %v1999, 0.0
        %v2072 = vmax.f32 %v2000, 0.0
        %v2073 = vmax.f32 %v2001, 0.0
        %v2074 = vmax.f32 %v2002, 0.0
        %v2075 = vmax.f32 %v2003, 0.0
        %v2076 = vmax.f32 %v2004, 0.0
        %v2077 = vmax.f32 %v2005, 0.0
        %v2078 = vmax.f32 %v2006, 0.0
        %v2079 = vmax.f32 %v2007, 0.0
        %v2080 = vmax.f32 %v2008, 0.0
        %v2081 = vmax.f32 %v2009, 0.0
        %v2082 = vmax.f32 %v2010, 0.0
        %v2083 = vmax.f32 %v2011, 0.0
        %v2084 = vmax.f32 %v2012, 0.0
        %v2085 = vmax.f32 %v2013, 0.0
        %v2086 = vmax.f32 %v2014, 0.0
        %v2087 = vmax.f32 %v2015, 0.0
        %v2088 = vmax.f32 %v2016, 0.0
        %v2089 = vmax.f32 %v2017, 0.0
        %v2090 = vmax.f32 %v2018, 0.0
        %v2091 = vmax.f32 %v2019, 0.0
        %v2092 = vmax.f32 %v2020, 0.0
        %v2093 = vmax.f32 %v2021, 0.0
        %v2094 = vmax.f32 %v2022, 0.0
        %v2095 = vmax.f32 %v2023, 0.0
        %v2096 = vmax.f32 %v2024, 0.0
        %v2097 = vmax.f32 %v2025, 0.0
        %v2098 = vmax.f32 %v2026, 0.0
        %v2099 = vmax.f32 %v2027, 0.0
        %v2100 = vmax.f32 %v2028, 0.0
        %v2101 = vmax.f32 %v2029, 0.0
        %v2102 = vmax.f32 %v2030, 0.0
        %v2103 = vmax.f32 %v2031, 0.0
        %v2104 = vmax.f32 %v2032, 0.0
        %v2105 = vmax.f32 %v2033, 0.0
        %v2106 = vmax.f32 %v2034, 0.0
        %v2107 = vmax.f32 %v2035, 0.0
        %v2108 = vmax.f32 %v2036, 0.0
        %v2109 = vmax.f32 %v2037, 0.0
        %v2110 = vmax.f32 %v2038, 0.0
        %v2111 = vmax.f32 %v2039, 0.0
        %v2112 = vmax.f32 %v2040, 0.0
        %v2113 = vmax.f32 %v2041, 0.0
        %v2114 = vmax.f32 %v2042, 0.0
        %v2115 = vmax.f32 %v2043, 0.0
        %v2116 = vmax.f32 %v2044, 0.0
        %v2117 = vmax.f32 %v2045, 0.0
        %v2118 = vmax.f32 %v2046, 0.0
        %v2119 = vmax.f32 %v2047, 0.0
        %v2120 = vmax.f32 %v2048, 0.0
        %v2121 = vmax.f32 %v2049, 0.0
        %v2122 = vmax.f32 %v2050, 0.0
        %v2123 = vmax.f32 %v2051, 0.0
        %v2124 = vmax.f32 %v2052, 0.0
        %v2125 = vmax.f32 %v2053, 0.0
        %v2126 = vmax.f32 %v2054, 0.0
        %v2127 = vmax.f32 %v2055, 0.0
        %v2128 = vmax.f32 %v2056, 0.0
        %v2129 = vmax.f32 %v2057, 0.0
        %v2130 = vmax.f32 %v2058, 0.0
        %v2131 = vsel %vm1829, 1, 0
        %v2132 = vsel %vm1830, 1, 0
        %v2133 = vsel %vm1831, 1, 0
        %v2134 = vsel %vm1832, 1, 0
        %v2135 = vsel %vm1833, 1, 0
        %v2136 = vsel %vm1834, 1, 0
        %v2137 = vsel %vm1835, 1, 0
        %v2138 = vsel %vm1836, 1, 0
        %v2139 = vsel %vm1837, 1, 0
        %v2140 = vsel %vm1838, 1, 0
        %v2141 = vsel %vm1839, 1, 0
        %v2142 = vsel %vm1840, 1, 0
        %v2143 = vsel %vm1841, 1, 0
        %v2144 = vsel %vm1842, 1, 0
        %v2145 = vsel %vm1843, 1, 0
        %v2146 = vsel %vm1844, 1, 0
        %v2147 = vsel %vm1845, 1, 0
        %v2148 = vsel %vm1846, 1, 0
        %v2149 = vsel %vm1847, 1, 0
        %v2150 = vsel %vm1848, 1, 0
        %v2151 = vsel %vm1849, 1, 0
        %v2152 = vsel %vm1850, 1, 0
        %v2153 = vsel %vm1851, 1, 0
        %v2154 = vsel %vm1852, 1, 0
        %v2155 = vsel %vm1853, 1, 0
        %v2156 = vsel %vm1854, 1, 0
        %v2157 = vsel %vm1855, 1, 0
        %v2158 = vsel %vm1856, 1, 0
        %v2159 = vsel %vm1857, 1, 0
        %v2160 = vsel %vm1858, 1, 0
        %v2161 = vsel %vm1859, 1, 0
        %v2162 = vsel %vm1860, 1, 0
        %v2163 = vsel %vm1861, 1, 0
        %v2164 = vsel %vm1862, 1, 0
        %v2165 = vsel %vm1863, 1, 0
        %v2166 = vsel %vm1864, 1, 0
        %v2167 = vsel %vm1865, 1, 0
        %v2168 = vsel %vm1866, 1, 0
        %v2169 = vsel %vm1867, 1, 0
        %v2170 = vsel %vm1868, 1, 0
        %v2171 = vsel %vm1869, 1, 0
        %v2172 = vsel %vm1870, 1, 0
        %v2173 = vsel %vm1871, 1, 0
        %v2174 = vsel %vm1872, 1, 0
        %v2175 = vsel %vm1873, 1, 0
        %v2176 = vsel %vm1874, 1, 0
        %v2177 = vsel %vm1875, 1, 0
        %v2178 = vsel %vm1876, 1, 0
        %v2179 = vsel %vm1877, 1, 0
        %v2180 = vsel %vm1878, 1, 0
        %v2181 = vsel %vm1879, 1, 0
        %v2182 = vsel %vm1880, 1, 0
        %v2183 = vsel %vm1881, 1, 0
        %v2184 = vsel %vm1882, 1, 0
        %v2185 = vsel %vm1883, 1, 0
        %v2186 = vsel %vm1884, 1, 0
        %v2187 = vsel %vm1885, 1, 0
        %v2188 = vsel %vm1886, 1, 0
        %v2189 = vsel %vm1887, 1, 0
        %v2190 = vsel %vm1888, 1, 0
        %v2191 = vsel %vm1889, 1, 0
        %v2192 = vsel %vm1890, 1, 0
        %v2193 = vsel %vm1891, 1, 0
        %v2194 = vsel %vm1892, 1, 0
        %v2195 = vsel %vm1893, 1, 0
        %v2196 = vsel %vm1894, 1, 0
        %v2197 = vsel %vm1895, 1, 0
        %v2198 = vsel %vm1896, 1, 0
        %v2199 = vsel %vm1897, 1, 0
        %v2200 = vsel %vm1898, 1, 0
        %v2201 = vsel %vm1899, 1, 0
        %v2202 = vsel %vm1900, 1, 0
        %vm2203 = vcmp.eq.s32.totalorder %v2131, 1
        %vm2204 = vcmp.eq.s32.totalorder %v2132, 1
        %vm2205 = vcmp.eq.s32.totalorder %v2133, 1
        %vm2206 = vcmp.eq.s32.totalorder %v2134, 1
        %vm2207 = vcmp.eq.s32.totalorder %v2135, 1
        %vm2208 = vcmp.eq.s32.totalorder %v2136, 1
        %vm2209 = vcmp.eq.s32.totalorder %v2137, 1
        %vm2210 = vcmp.eq.s32.totalorder %v2138, 1
        %vm2211 = vcmp.eq.s32.totalorder %v2139, 1
        %vm2212 = vcmp.eq.s32.totalorder %v2140, 1
        %vm2213 = vcmp.eq.s32.totalorder %v2141, 1
        %vm2214 = vcmp.eq.s32.totalorder %v2142, 1
        %vm2215 = vcmp.eq.s32.totalorder %v2143, 1
        %vm2216 = vcmp.eq.s32.totalorder %v2144, 1
        %vm2217 = vcmp.eq.s32.totalorder %v2145, 1
        %vm2218 = vcmp.eq.s32.totalorder %v2146, 1
        %vm2219 = vcmp.eq.s32.totalorder %v2147, 1
        %vm2220 = vcmp.eq.s32.totalorder %v2148, 1
        %vm2221 = vcmp.eq.s32.totalorder %v2149, 1
        %vm2222 = vcmp.eq.s32.totalorder %v2150, 1
        %vm2223 = vcmp.eq.s32.totalorder %v2151, 1
        %vm2224 = vcmp.eq.s32.totalorder %v2152, 1
        %vm2225 = vcmp.eq.s32.totalorder %v2153, 1
        %vm2226 = vcmp.eq.s32.totalorder %v2154, 1
        %vm2227 = vcmp.eq.s32.totalorder %v2155, 1
        %vm2228 = vcmp.eq.s32.totalorder %v2156, 1
        %vm2229 = vcmp.eq.s32.totalorder %v2157, 1
        %vm2230 = vcmp.eq.s32.totalorder %v2158, 1
        %vm2231 = vcmp.eq.s32.totalorder %v2159, 1
        %vm2232 = vcmp.eq.s32.totalorder %v2160, 1
        %vm2233 = vcmp.eq.s32.totalorder %v2161, 1
        %vm2234 = vcmp.eq.s32.totalorder %v2162, 1
        %vm2235 = vcmp.eq.s32.totalorder %v2163, 1
        %vm2236 = vcmp.eq.s32.totalorder %v2164, 1
        %vm2237 = vcmp.eq.s32.totalorder %v2165, 1
        %vm2238 = vcmp.eq.s32.totalorder %v2166, 1
        %vm2239 = vcmp.eq.s32.totalorder %v2167, 1
        %vm2240 = vcmp.eq.s32.totalorder %v2168, 1
        %vm2241 = vcmp.eq.s32.totalorder %v2169, 1
        %vm2242 = vcmp.eq.s32.totalorder %v2170, 1
        %vm2243 = vcmp.eq.s32.totalorder %v2171, 1
        %vm2244 = vcmp.eq.s32.totalorder %v2172, 1
        %vm2245 = vcmp.eq.s32.totalorder %v2173, 1
        %vm2246 = vcmp.eq.s32.totalorder %v2174, 1
        %vm2247 = vcmp.eq.s32.totalorder %v2175, 1
        %vm2248 = vcmp.eq.s32.totalorder %v2176, 1
        %vm2249 = vcmp.eq.s32.totalorder %v2177, 1
        %vm2250 = vcmp.eq.s32.totalorder %v2178, 1
        %vm2251 = vcmp.eq.s32.totalorder %v2179, 1
        %vm2252 = vcmp.eq.s32.totalorder %v2180, 1
        %vm2253 = vcmp.eq.s32.totalorder %v2181, 1
        %vm2254 = vcmp.eq.s32.totalorder %v2182, 1
        %vm2255 = vcmp.eq.s32.totalorder %v2183, 1
        %vm2256 = vcmp.eq.s32.totalorder %v2184, 1
        %vm2257 = vcmp.eq.s32.totalorder %v2185, 1
        %vm2258 = vcmp.eq.s32.totalorder %v2186, 1
        %vm2259 = vcmp.eq.s32.totalorder %v2187, 1
        %vm2260 = vcmp.eq.s32.totalorder %v2188, 1
        %vm2261 = vcmp.eq.s32.totalorder %v2189, 1
        %vm2262 = vcmp.eq.s32.totalorder %v2190, 1
        %vm2263 = vcmp.eq.s32.totalorder %v2191, 1
        %vm2264 = vcmp.eq.s32.totalorder %v2192, 1
        %vm2265 = vcmp.eq.s32.totalorder %v2193, 1
        %vm2266 = vcmp.eq.s32.totalorder %v2194, 1
        %vm2267 = vcmp.eq.s32.totalorder %v2195, 1
        %vm2268 = vcmp.eq.s32.totalorder %v2196, 1
        %vm2269 = vcmp.eq.s32.totalorder %v2197, 1
        %vm2270 = vcmp.eq.s32.totalorder %v2198, 1
        %vm2271 = vcmp.eq.s32.totalorder %v2199, 1
        %vm2272 = vcmp.eq.s32.totalorder %v2200, 1
        %vm2273 = vcmp.eq.s32.totalorder %v2201, 1
        %vm2274 = vcmp.eq.s32.totalorder %v2202, 1
        %v2275 = vsel %vm2203, %v2059, 0.0
        %v2276 = vsel %vm2204, %v2060, 0.0
        %v2277 = vsel %vm2205, %v2061, 0.0
        %v2278 = vsel %vm2206, %v2062, 0.0
        %v2279 = vsel %vm2207, %v2063, 0.0
        %v2280 = vsel %vm2208, %v2064, 0.0
        %v2281 = vsel %vm2209, %v2065, 0.0
        %v2282 = vsel %vm2210, %v2066, 0.0
        %v2283 = vsel %vm2211, %v2067, 0.0
        %v2284 = vsel %vm2212, %v2068, 0.0
        %v2285 = vsel %vm2213, %v2069, 0.0
        %v2286 = vsel %vm2214, %v2070, 0.0
        %v2287 = vsel %vm2215, %v2071, 0.0
        %v2288 = vsel %vm2216, %v2072, 0.0
        %v2289 = vsel %vm2217, %v2073, 0.0
        %v2290 = vsel %vm2218, %v2074, 0.0
        %v2291 = vsel %vm2219, %v2075, 0.0
        %v2292 = vsel %vm2220, %v2076, 0.0
        %v2293 = vsel %vm2221, %v2077, 0.0
        %v2294 = vsel %vm2222, %v2078, 0.0
        %v2295 = vsel %vm2223, %v2079, 0.0
        %v2296 = vsel %vm2224, %v2080, 0.0
        %v2297 = vsel %vm2225, %v2081, 0.0
        %v2298 = vsel %vm2226, %v2082, 0.0
        %v2299 = vsel %vm2227, %v2083, 0.0
        %v2300 = vsel %vm2228, %v2084, 0.0
        %v2301 = vsel %vm2229, %v2085, 0.0
        %v2302 = vsel %vm2230, %v2086, 0.0
        %v2303 = vsel %vm2231, %v2087, 0.0
        %v2304 = vsel %vm2232, %v2088, 0.0
        %v2305 = vsel %vm2233, %v2089, 0.0
        %v2306 = vsel %vm2234, %v2090, 0.0
        %v2307 = vsel %vm2235, %v2091, 0.0
        %v2308 = vsel %vm2236, %v2092, 0.0
        %v2309 = vsel %vm2237, %v2093, 0.0
        %v2310 = vsel %vm2238, %v2094, 0.0
        %v2311 = vsel %vm2239, %v2095, 0.0
        %v2312 = vsel %vm2240, %v2096, 0.0
        %v2313 = vsel %vm2241, %v2097, 0.0
        %v2314 = vsel %vm2242, %v2098, 0.0
        %v2315 = vsel %vm2243, %v2099, 0.0
        %v2316 = vsel %vm2244, %v2100, 0.0
        %v2317 = vsel %vm2245, %v2101, 0.0
        %v2318 = vsel %vm2246, %v2102, 0.0
        %v2319 = vsel %vm2247, %v2103, 0.0
        %v2320 = vsel %vm2248, %v2104, 0.0
        %v2321 = vsel %vm2249, %v2105, 0.0
        %v2322 = vsel %vm2250, %v2106, 0.0
        %v2323 = vsel %vm2251, %v2107, 0.0
        %v2324 = vsel %vm2252, %v2108, 0.0
        %v2325 = vsel %vm2253, %v2109, 0.0
        %v2326 = vsel %vm2254, %v2110, 0.0
        %v2327 = vsel %vm2255, %v2111, 0.0
        %v2328 = vsel %vm2256, %v2112, 0.0
        %v2329 = vsel %vm2257, %v2113, 0.0
        %v2330 = vsel %vm2258, %v2114, 0.0
        %v2331 = vsel %vm2259, %v2115, 0.0
        %v2332 = vsel %vm2260, %v2116, 0.0
        %v2333 = vsel %vm2261, %v2117, 0.0
        %v2334 = vsel %vm2262, %v2118, 0.0
        %v2335 = vsel %vm2263, %v2119, 0.0
        %v2336 = vsel %vm2264, %v2120, 0.0
        %v2337 = vsel %vm2265, %v2121, 0.0
        %v2338 = vsel %vm2266, %v2122, 0.0
        %v2339 = vsel %vm2267, %v2123, 0.0
        %v2340 = vsel %vm2268, %v2124, 0.0
        %v2341 = vsel %vm2269, %v2125, 0.0
        %v2342 = vsel %vm2270, %v2126, 0.0
        %v2343 = vsel %vm2271, %v2127, 0.0
        %v2344 = vsel %vm2272, %v2128, 0.0
        %v2345 = vsel %vm2273, %v2129, 0.0
        %v2346 = vsel %vm2274, %v2130, 0.0
        %2347 = vst.msk [vmem:[#allocation2 + $0x28] sm:$0xff] %vm495, %v2275
        %2348 = vst.msk [vmem:[#allocation2 + $0x30] sm:$0xff] %vm495, %v2276
        %2349 = vst.msk [vmem:[#allocation2 + $0x38] sm:$0xff] %vm495, %v2277
        %2350 = vst.msk [vmem:[#allocation2 + $0x40] sm:$0xff] %vm495, %v2278
        %2351 = vst.msk [vmem:[#allocation2 + $0x48] sm:$0xff] %vm495, %v2279
        %2352 = vst.msk [vmem:[#allocation2 + $0x50] sm:$0xff] %vm495, %v2280
        %2353 = vst.msk [vmem:[#allocation2 + $0x58] sm:$0xff] %vm495, %v2281
        %2354 = vst.msk [vmem:[#allocation2 + $0x60] sm:$0xff] %vm495, %v2282
        %2355 = vst.msk [vmem:[#allocation2 + $0x68] sm:$0xff] %vm495, %v2283
        %2356 = vst.msk [vmem:[#allocation2 + $0x70] sm:$0xff] %vm495, %v2284
        %2357 = vst.msk [vmem:[#allocation2 + $0x78] sm:$0xff] %vm495, %v2285
        %2358 = vst.msk [vmem:[#allocation2 + $0x80] sm:$0xff] %vm495, %v2286
        %2359 = vst.msk [vmem:[#allocation2 + $0x88] sm:$0xff] %vm495, %v2287
        %2360 = vst.msk [vmem:[#allocation2 + $0x90] sm:$0xff] %vm495, %v2288
        %2361 = vst.msk [vmem:[#allocation2 + $0x98] sm:$0xff] %vm495, %v2289
        %2362 = vst.msk [vmem:[#allocation2 + $0xa0] sm:$0xff] %vm495, %v2290
        %2363 = vst.msk [vmem:[#allocation2 + $0xa8] sm:$0xff] %vm495, %v2291
        %2364 = vst.msk [vmem:[#allocation2 + $0xb0] sm:$0xff] %vm495, %v2292
        %2365 = vst.msk [vmem:[#allocation2 + $0xb8] sm:$0xff] %vm495, %v2293
        %2366 = vst.msk [vmem:[#allocation2 + $0xc0] sm:$0xff] %vm495, %v2294
        %2367 = vst.msk [vmem:[#allocation2 + $0xc8] sm:$0xff] %vm495, %v2295
        %2368 = vst.msk [vmem:[#allocation2 + $0xd0] sm:$0xff] %vm495, %v2296
        %2369 = vst.msk [vmem:[#allocation2 + $0xd8] sm:$0xff] %vm495, %v2297
        %2370 = vst.msk [vmem:[#allocation2 + $0xe0] sm:$0xff] %vm495, %v2298
        %2371 = vst.msk [vmem:[#allocation2 + $0xe8] sm:$0xff] %vm495, %v2299
        %2372 = vst.msk [vmem:[#allocation2 + $0xf0] sm:$0xff] %vm495, %v2300
        %2373 = vst.msk [vmem:[#allocation2 + $0xf8] sm:$0xff] %vm495, %v2301
        %2374 = vst.msk [vmem:[#allocation2 + $0x100] sm:$0xff] %vm495, %v2302
        %2375 = vst.msk [vmem:[#allocation2 + $0x108] sm:$0xff] %vm495, %v2303
        %2376 = vst.msk [vmem:[#allocation2 + $0x110] sm:$0xff] %vm495, %v2304
        %2377 = vst.msk [vmem:[#allocation2 + $0x118] sm:$0xff] %vm495, %v2305
        %2378 = vst.msk [vmem:[#allocation2 + $0x120] sm:$0xff] %vm495, %v2306
        %2379 = vst.msk [vmem:[#allocation2 + $0x128] sm:$0xff] %vm495, %v2307
        %2380 = vst.msk [vmem:[#allocation2 + $0x130] sm:$0xff] %vm495, %v2308
        %2381 = vst.msk [vmem:[#allocation2 + $0x138] sm:$0xff] %vm495, %v2309
        %2382 = vst.msk [vmem:[#allocation2 + $0x140] sm:$0xff] %vm495, %v2310
        %2383 = vst.msk [vmem:[#allocation2 + $0x148] sm:$0xff] %vm495, %v2311
        %2384 = vst.msk [vmem:[#allocation2 + $0x150] sm:$0xff] %vm495, %v2312
        %2385 = vst.msk [vmem:[#allocation2 + $0x158] sm:$0xff] %vm495, %v2313
        %2386 = vst.msk [vmem:[#allocation2 + $0x160] sm:$0xff] %vm495, %v2314
        %2387 = vst.msk [vmem:[#allocation2 + $0x168] sm:$0xff] %vm495, %v2315
        %2388 = vst.msk [vmem:[#allocation2 + $0x170] sm:$0xff] %vm495, %v2316
        %2389 = vst.msk [vmem:[#allocation2 + $0x178] sm:$0xff] %vm495, %v2317
        %2390 = vst.msk [vmem:[#allocation2 + $0x180] sm:$0xff] %vm495, %v2318
        %2391 = vst.msk [vmem:[#allocation2 + $0x188] sm:$0xff] %vm495, %v2319
        %2392 = vst.msk [vmem:[#allocation2 + $0x190] sm:$0xff] %vm495, %v2320
        %2393 = vst.msk [vmem:[#allocation2 + $0x198] sm:$0xff] %vm495, %v2321
        %2394 = vst.msk [vmem:[#allocation2 + $0x1a0] sm:$0xff] %vm495, %v2322
        %2395 = vst.msk [vmem:[#allocation2 + $0x1a8] sm:$0xff] %vm495, %v2323
        %2396 = vst.msk [vmem:[#allocation2 + $0x1b0] sm:$0xff] %vm495, %v2324
        %2397 = vst.msk [vmem:[#allocation2 + $0x1b8] sm:$0xff] %vm495, %v2325
        %2398 = vst.msk [vmem:[#allocation2 + $0x1c0] sm:$0xff] %vm495, %v2326
        %2399 = vst.msk [vmem:[#allocation2 + $0x1c8] sm:$0xff] %vm495, %v2327
        %2400 = vst.msk [vmem:[#allocation2 + $0x1d0] sm:$0xff] %vm495, %v2328
        %2401 = vst.msk [vmem:[#allocation2 + $0x1d8] sm:$0xff] %vm495, %v2329
        %2402 = vst.msk [vmem:[#allocation2 + $0x1e0] sm:$0xff] %vm495, %v2330
        %2403 = vst.msk [vmem:[#allocation2 + $0x1e8] sm:$0xff] %vm495, %v2331
        %2404 = vst.msk [vmem:[#allocation2 + $0x1f0] sm:$0xff] %vm495, %v2332
        %2405 = vst.msk [vmem:[#allocation2 + $0x1f8] sm:$0xff] %vm495, %v2333
        %2406 = vst.msk [vmem:[#allocation2 + $0x200] sm:$0xff] %vm495, %v2334
        %2407 = vst.msk [vmem:[#allocation2 + $0x208] sm:$0xff] %vm495, %v2335
        %2408 = vst.msk [vmem:[#allocation2 + $0x210] sm:$0xff] %vm495, %v2336
        %2409 = vst.msk [vmem:[#allocation2 + $0x218] sm:$0xff] %vm495, %v2337
        %2410 = vst.msk [vmem:[#allocation2 + $0x220] sm:$0xff] %vm495, %v2338
        %2411 = vst.msk [vmem:[#allocation2 + $0x228] sm:$0xff] %vm495, %v2339
        %2412 = vst.msk [vmem:[#allocation2 + $0x230] sm:$0xff] %vm495, %v2340
        %2413 = vst.msk [vmem:[#allocation2 + $0x238] sm:$0xff] %vm495, %v2341
        %2414 = vst.msk [vmem:[#allocation2 + $0x240] sm:$0xff] %vm495, %v2342
        %2415 = vst.msk [vmem:[#allocation2 + $0x248] sm:$0xff] %vm495, %v2343
        %2416 = vst.msk [vmem:[#allocation2 + $0x250] sm:$0xff] %vm495, %v2344
        %2417 = vst.msk [vmem:[#allocation2 + $0x258] sm:$0xff] %vm495, %v2345
        %2418 = vst.msk [vmem:[#allocation2 + $0x260] sm:$0xff] %vm495, %v2346
        %s2419 = scalar_lea.vmem [#allocation2], 40
        %v2420 = vld [vmem:[%s2419] ss:$2 sm:$0xff]
        %s2421 = scalar_lea.vmem [#allocation2], 41
        %v2422 = vld [vmem:[%s2421] ss:$2 sm:$0xff]
        %v2423 = vmax.f32 %v2420, %v2422
        %s2424 = scalar_lea.vmem [#allocation2], 42
        %v2425 = vld [vmem:[%s2424] ss:$2 sm:$0xff]
        %v2426 = vmax.f32 %v2423, %v2425
        %s2427 = scalar_lea.vmem [#allocation2], 72
        %v2428 = vld [vmem:[%s2427] ss:$2 sm:$0xff]
        %v2429 = vmax.f32 %v2426, %v2428
        %s2430 = scalar_lea.vmem [#allocation2], 73
        %v2431 = vld [vmem:[%s2430] ss:$2 sm:$0xff]
        %v2432 = vmax.f32 %v2429, %v2431
        %s2433 = scalar_lea.vmem [#allocation2], 74
        %v2434 = vld [vmem:[%s2433] ss:$2 sm:$0xff]
        %v2435 = vmax.f32 %v2432, %v2434
        %s2436 = scalar_lea.vmem [#allocation2], 104
        %v2437 = vld [vmem:[%s2436] ss:$2 sm:$0xff]
        %v2438 = vmax.f32 %v2435, %v2437
        %s2439 = scalar_lea.vmem [#allocation2], 105
        %v2440 = vld [vmem:[%s2439] ss:$2 sm:$0xff]
        %v2441 = vmax.f32 %v2438, %v2440
        %s2442 = scalar_lea.vmem [#allocation2], 106
        %v2443 = vld [vmem:[%s2442] ss:$2 sm:$0xff]
        %v2444 = vmax.f32 %v2441, %v2443
        %2445 = vst.msk [vmem:[#allocation3 + $0x29] sm:$0xff] %vm495, %v2444
        %v2446 = vld [vmem:[%s2436] ss:$2 sm:$0xff]
        %v2447 = vld [vmem:[%s2439] ss:$2 sm:$0xff]
        %v2448 = vmax.f32 %v2446, %v2447
        %v2449 = vld [vmem:[%s2442] ss:$2 sm:$0xff]
        %v2450 = vmax.f32 %v2448, %v2449
        %s2451 = scalar_lea.vmem [#allocation2], 136
        %v2452 = vld [vmem:[%s2451] ss:$2 sm:$0xff]
        %v2453 = vmax.f32 %v2450, %v2452
        %s2454 = scalar_lea.vmem [#allocation2], 137
        %v2455 = vld [vmem:[%s2454] ss:$2 sm:$0xff]
        %v2456 = vmax.f32 %v2453, %v2455
        %s2457 = scalar_lea.vmem [#allocation2], 138
        %v2458 = vld [vmem:[%s2457] ss:$2 sm:$0xff]
        %v2459 = vmax.f32 %v2456, %v2458
        %s2460 = scalar_lea.vmem [#allocation2], 168
        %v2461 = vld [vmem:[%s2460] ss:$2 sm:$0xff]
        %v2462 = vmax.f32 %v2459, %v2461
        %s2463 = scalar_lea.vmem [#allocation2], 169
        %v2464 = vld [vmem:[%s2463] ss:$2 sm:$0xff]
        %v2465 = vmax.f32 %v2462, %v2464
        %s2466 = scalar_lea.vmem [#allocation2], 170
        %v2467 = vld [vmem:[%s2466] ss:$2 sm:$0xff]
        %v2468 = vmax.f32 %v2465, %v2467
        %2469 = vst.msk [vmem:[#allocation3 + $0x39] sm:$0xff] %vm495, %v2468
        %v2470 = vld [vmem:[%s2460] ss:$2 sm:$0xff]
        %v2471 = vld [vmem:[%s2463] ss:$2 sm:$0xff]
        %v2472 = vmax.f32 %v2470, %v2471
        %v2473 = vld [vmem:[%s2466] ss:$2 sm:$0xff]
        %v2474 = vmax.f32 %v2472, %v2473
        %s2475 = scalar_lea.vmem [#allocation2], 200
        %v2476 = vld [vmem:[%s2475] ss:$2 sm:$0xff]
        %v2477 = vmax.f32 %v2474, %v2476
        %s2478 = scalar_lea.vmem [#allocation2], 201
        %v2479 = vld [vmem:[%s2478] ss:$2 sm:$0xff]
        %v2480 = vmax.f32 %v2477, %v2479
        %s2481 = scalar_lea.vmem [#allocation2], 202
        %v2482 = vld [vmem:[%s2481] ss:$2 sm:$0xff]
        %v2483 = vmax.f32 %v2480, %v2482
        %s2484 = scalar_lea.vmem [#allocation2], 232
        %v2485 = vld [vmem:[%s2484] ss:$2 sm:$0xff]
        %v2486 = vmax.f32 %v2483, %v2485
        %s2487 = scalar_lea.vmem [#allocation2], 233
        %v2488 = vld [vmem:[%s2487] ss:$2 sm:$0xff]
        %v2489 = vmax.f32 %v2486, %v2488
        %s2490 = scalar_lea.vmem [#allocation2], 234
        %v2491 = vld [vmem:[%s2490] ss:$2 sm:$0xff]
        %v2492 = vmax.f32 %v2489, %v2491
        %2493 = vst.msk [vmem:[#allocation3 + $0x49] sm:$0xff] %vm495, %v2492
        %v2494 = vld [vmem:[%s2484] ss:$2 sm:$0xff]
        %v2495 = vld [vmem:[%s2487] ss:$2 sm:$0xff]
        %v2496 = vmax.f32 %v2494, %v2495
        %v2497 = vld [vmem:[%s2490] ss:$2 sm:$0xff]
        %v2498 = vmax.f32 %v2496, %v2497
        %s2499 = scalar_lea.vmem [#allocation2], 264
        %v2500 = vld [vmem:[%s2499] ss:$2 sm:$0xff]
        %v2501 = vmax.f32 %v2498, %v2500
        %s2502 = scalar_lea.vmem [#allocation2], 265
        %v2503 = vld [vmem:[%s2502] ss:$2 sm:$0xff]
        %v2504 = vmax.f32 %v2501, %v2503
        %s2505 = scalar_lea.vmem [#allocation2], 266
        %v2506 = vld [vmem:[%s2505] ss:$2 sm:$0xff]
        %v2507 = vmax.f32 %v2504, %v2506
        %s2508 = scalar_lea.vmem [#allocation2], 296
        %v2509 = vld [vmem:[%s2508] ss:$2 sm:$0xff]
        %v2510 = vmax.f32 %v2507, %v2509
        %s2511 = scalar_lea.vmem [#allocation2], 297
        %v2512 = vld [vmem:[%s2511] ss:$2 sm:$0xff]
        %v2513 = vmax.f32 %v2510, %v2512
        %s2514 = scalar_lea.vmem [#allocation2], 298
        %v2515 = vld [vmem:[%s2514] ss:$2 sm:$0xff]
        %v2516 = vmax.f32 %v2513, %v2515
        %2517 = vst.msk [vmem:[#allocation3 + $0x59] sm:$0xff] %vm495, %v2516
        %v2518 = vld [vmem:[%s2508] ss:$2 sm:$0xff]
        %v2519 = vld [vmem:[%s2511] ss:$2 sm:$0xff]
        %v2520 = vmax.f32 %v2518, %v2519
        %v2521 = vld [vmem:[%s2514] ss:$2 sm:$0xff]
        %v2522 = vmax.f32 %v2520, %v2521
        %s2523 = scalar_lea.vmem [#allocation2], 328
        %v2524 = vld [vmem:[%s2523] ss:$2 sm:$0xff]
        %v2525 = vmax.f32 %v2522, %v2524
        %s2526 = scalar_lea.vmem [#allocation2], 329
        %v2527 = vld [vmem:[%s2526] ss:$2 sm:$0xff]
        %v2528 = vmax.f32 %v2525, %v2527
        %s2529 = scalar_lea.vmem [#allocation2], 330
        %v2530 = vld [vmem:[%s2529] ss:$2 sm:$0xff]
        %v2531 = vmax.f32 %v2528, %v2530
        %s2532 = scalar_lea.vmem [#allocation2], 360
        %v2533 = vld [vmem:[%s2532] ss:$2 sm:$0xff]
        %v2534 = vmax.f32 %v2531, %v2533
        %s2535 = scalar_lea.vmem [#allocation2], 361
        %v2536 = vld [vmem:[%s2535] ss:$2 sm:$0xff]
        %v2537 = vmax.f32 %v2534, %v2536
        %s2538 = scalar_lea.vmem [#allocation2], 362
        %v2539 = vld [vmem:[%s2538] ss:$2 sm:$0xff]
        %v2540 = vmax.f32 %v2537, %v2539
        %2541 = vst.msk [vmem:[#allocation3 + $0x69] sm:$0xff] %vm495, %v2540
        %v2542 = vld [vmem:[%s2532] ss:$2 sm:$0xff]
        %v2543 = vld [vmem:[%s2535] ss:$2 sm:$0xff]
        %v2544 = vmax.f32 %v2542, %v2543
        %v2545 = vld [vmem:[%s2538] ss:$2 sm:$0xff]
        %v2546 = vmax.f32 %v2544, %v2545
        %s2547 = scalar_lea.vmem [#allocation2], 392
        %v2548 = vld [vmem:[%s2547] ss:$2 sm:$0xff]
        %v2549 = vmax.f32 %v2546, %v2548
        %s2550 = scalar_lea.vmem [#allocation2], 393
        %v2551 = vld [vmem:[%s2550] ss:$2 sm:$0xff]
        %v2552 = vmax.f32 %v2549, %v2551
        %s2553 = scalar_lea.vmem [#allocation2], 394
        %v2554 = vld [vmem:[%s2553] ss:$2 sm:$0xff]
        %v2555 = vmax.f32 %v2552, %v2554
        %s2556 = scalar_lea.vmem [#allocation2], 424
        %v2557 = vld [vmem:[%s2556] ss:$2 sm:$0xff]
        %v2558 = vmax.f32 %v2555, %v2557
        %s2559 = scalar_lea.vmem [#allocation2], 425
        %v2560 = vld [vmem:[%s2559] ss:$2 sm:$0xff]
        %v2561 = vmax.f32 %v2558, %v2560
        %s2562 = scalar_lea.vmem [#allocation2], 426
        %v2563 = vld [vmem:[%s2562] ss:$2 sm:$0xff]
        %v2564 = vmax.f32 %v2561, %v2563
        %2565 = vst.msk [vmem:[#allocation3 + $0x79] sm:$0xff] %vm495, %v2564
        %v2566 = vld [vmem:[%s2556] ss:$2 sm:$0xff]
        %v2567 = vld [vmem:[%s2559] ss:$2 sm:$0xff]
        %v2568 = vmax.f32 %v2566, %v2567
        %v2569 = vld [vmem:[%s2562] ss:$2 sm:$0xff]
        %v2570 = vmax.f32 %v2568, %v2569
        %s2571 = scalar_lea.vmem [#allocation2], 456
        %v2572 = vld [vmem:[%s2571] ss:$2 sm:$0xff]
        %v2573 = vmax.f32 %v2570, %v2572
        %s2574 = scalar_lea.vmem [#allocation2], 457
        %v2575 = vld [vmem:[%s2574] ss:$2 sm:$0xff]
        %v2576 = vmax.f32 %v2573, %v2575
        %s2577 = scalar_lea.vmem [#allocation2], 458
        %v2578 = vld [vmem:[%s2577] ss:$2 sm:$0xff]
        %v2579 = vmax.f32 %v2576, %v2578
        %s2580 = scalar_lea.vmem [#allocation2], 488
        %v2581 = vld [vmem:[%s2580] ss:$2 sm:$0xff]
        %v2582 = vmax.f32 %v2579, %v2581
        %s2583 = scalar_lea.vmem [#allocation2], 489
        %v2584 = vld [vmem:[%s2583] ss:$2 sm:$0xff]
        %v2585 = vmax.f32 %v2582, %v2584
        %s2586 = scalar_lea.vmem [#allocation2], 490
        %v2587 = vld [vmem:[%s2586] ss:$2 sm:$0xff]
        %v2588 = vmax.f32 %v2585, %v2587
        %2589 = vst.msk [vmem:[#allocation3 + $0x89] sm:$0xff] %vm495, %v2588
        %v2590 = vld [vmem:[%s2580] ss:$2 sm:$0xff]
        %v2591 = vld [vmem:[%s2583] ss:$2 sm:$0xff]
        %v2592 = vmax.f32 %v2590, %v2591
        %v2593 = vld [vmem:[%s2586] ss:$2 sm:$0xff]
        %v2594 = vmax.f32 %v2592, %v2593
        %s2595 = scalar_lea.vmem [#allocation2], 520
        %v2596 = vld [vmem:[%s2595] ss:$2 sm:$0xff]
        %v2597 = vmax.f32 %v2594, %v2596
        %s2598 = scalar_lea.vmem [#allocation2], 521
        %v2599 = vld [vmem:[%s2598] ss:$2 sm:$0xff]
        %v2600 = vmax.f32 %v2597, %v2599
        %s2601 = scalar_lea.vmem [#allocation2], 522
        %v2602 = vld [vmem:[%s2601] ss:$2 sm:$0xff]
        %v2603 = vmax.f32 %v2600, %v2602
        %s2604 = scalar_lea.vmem [#allocation2], 552
        %v2605 = vld [vmem:[%s2604] ss:$2 sm:$0xff]
        %v2606 = vmax.f32 %v2603, %v2605
        %s2607 = scalar_lea.vmem [#allocation2], 553
        %v2608 = vld [vmem:[%s2607] ss:$2 sm:$0xff]
        %v2609 = vmax.f32 %v2606, %v2608
        %s2610 = scalar_lea.vmem [#allocation2], 554
        %v2611 = vld [vmem:[%s2610] ss:$2 sm:$0xff]
        %v2612 = vmax.f32 %v2609, %v2611
        %2613 = vst.msk [vmem:[#allocation3 + $0x99] sm:$0xff] %vm495, %v2612
        %v2614 = vld [vmem:[#allocation3 + $0x7] sm:$0xff]
        %v2615 = vld [vmem:[#allocation3 + $0xf] sm:$0xff]
        %v2616 = vld [vmem:[#allocation3 + $0x17] sm:$0xff]
        %v2617 = vld [vmem:[#allocation3 + $0x1f] sm:$0xff]
        %v2618 = vld [vmem:[#allocation3 + $0x27] sm:$0xff]
        %v2619 = vld [vmem:[#allocation3 + $0x2f] sm:$0xff]
        %v2620 = vld [vmem:[#allocation3 + $0x37] sm:$0xff]
        %v2621 = vld [vmem:[#allocation3 + $0x3f] sm:$0xff]
        %v2622 = vld [vmem:[#allocation3 + $0x47] sm:$0xff]
        %v2623 = vld [vmem:[#allocation3 + $0x4f] sm:$0xff]
        %v2624 = vld [vmem:[#allocation3 + $0x57] sm:$0xff]
        %v2625 = vld [vmem:[#allocation3 + $0x5f] sm:$0xff]
        %v2626 = vld [vmem:[#allocation3 + $0x67] sm:$0xff]
        %v2627 = vld [vmem:[#allocation3 + $0x6f] sm:$0xff]
        %v2628 = vld [vmem:[#allocation3 + $0x77] sm:$0xff]
        %v2629 = vld [vmem:[#allocation3 + $0x7f] sm:$0xff]
        %v2630 = vld [vmem:[#allocation3 + $0x87] sm:$0xff]
        %v2631 = vld [vmem:[#allocation3 + $0x8f] sm:$0xff]
        %v2632 = vld [vmem:[#allocation3 + $0x97] sm:$0xff]
        %v2633 = vld [vmem:[#allocation3 + $0x9f] sm:$0xff]
        %v2634 = vld [vmem:[#allocation3 + $0xa7] sm:$0xff]
        %v2635 = vld [vmem:[#allocation3 + $0xaf] sm:$0xff]
        %v2636 = vld [vmem:[#allocation3 + $0xb7] sm:$0xff]
        %v2637 = vld [vmem:[#allocation3 + $0xbf] sm:$0xff]
        %2638 = vst.msk [vmem:[#allocation4 + $0x8] sm:$0xff] %vm495, %v2614
        %2639 = vst.msk [vmem:[#allocation4 + $0x10] sm:$0xff] %vm495, %v2615
        %2640 = vst.msk [vmem:[#allocation4 + $0x18] sm:$0xff] %vm495, %v2616
        %2641 = vst.msk [vmem:[#allocation4 + $0x20] sm:$0xff] %vm495, %v2617
        %2642 = vst.msk [vmem:[#allocation4 + $0x28] sm:$0xff] %vm495, %v2618
        %2643 = vst.msk [vmem:[#allocation4 + $0x30] sm:$0xff] %vm495, %v2619
        %2644 = vst.msk [vmem:[#allocation4 + $0x38] sm:$0xff] %vm495, %v2620
        %2645 = vst.msk [vmem:[#allocation4 + $0x40] sm:$0xff] %vm495, %v2621
        %2646 = vst.msk [vmem:[#allocation4 + $0x48] sm:$0xff] %vm495, %v2622
        %2647 = vst.msk [vmem:[#allocation4 + $0x50] sm:$0xff] %vm495, %v2623
        %2648 = vst.msk [vmem:[#allocation4 + $0x58] sm:$0xff] %vm495, %v2624
        %2649 = vst.msk [vmem:[#allocation4 + $0x60] sm:$0xff] %vm495, %v2625
        %2650 = vst.msk [vmem:[#allocation4 + $0x68] sm:$0xff] %vm495, %v2626
        %2651 = vst.msk [vmem:[#allocation4 + $0x70] sm:$0xff] %vm495, %v2627
        %2652 = vst.msk [vmem:[#allocation4 + $0x78] sm:$0xff] %vm495, %v2628
        %2653 = vst.msk [vmem:[#allocation4 + $0x80] sm:$0xff] %vm495, %v2629
        %2654 = vst.msk [vmem:[#allocation4 + $0x88] sm:$0xff] %vm495, %v2630
        %2655 = vst.msk [vmem:[#allocation4 + $0x90] sm:$0xff] %vm495, %v2631
        %2656 = vst.msk [vmem:[#allocation4 + $0x98] sm:$0xff] %vm495, %v2632
        %2657 = vst.msk [vmem:[#allocation4 + $0xa0] sm:$0xff] %vm495, %v2633
        %2658 = vst.msk [vmem:[#allocation4 + $0xa8] sm:$0xff] %vm495, %v2634
        %2659 = vst.msk [vmem:[#allocation4 + $0xb0] sm:$0xff] %vm495, %v2635
        %2660 = vst.msk [vmem:[#allocation4 + $0xb8] sm:$0xff] %vm495, %v2636
        %2661 = vst.msk [vmem:[#allocation4 + $0xc0] sm:$0xff] %vm495, %v2637
        %v2662 = vld [vmem:[#allocation3 + $0x8] sm:$0xff]
        %v2663 = vld [vmem:[#allocation3 + $0x10] sm:$0xff]
        %v2664 = vld [vmem:[#allocation3 + $0x18] sm:$0xff]
        %v2665 = vld [vmem:[#allocation3 + $0x20] sm:$0xff]
        %v2666 = vld [vmem:[#allocation3 + $0x28] sm:$0xff]
        %v2667 = vld [vmem:[#allocation3 + $0x30] sm:$0xff]
        %v2668 = vld [vmem:[#allocation3 + $0x38] sm:$0xff]
        %v2669 = vld [vmem:[#allocation3 + $0x40] sm:$0xff]
        %v2670 = vld [vmem:[#allocation3 + $0x48] sm:$0xff]
        %v2671 = vld [vmem:[#allocation3 + $0x50] sm:$0xff]
        %v2672 = vld [vmem:[#allocation3 + $0x58] sm:$0xff]
        %v2673 = vld [vmem:[#allocation3 + $0x60] sm:$0xff]
        %v2674 = vld [vmem:[#allocation3 + $0x68] sm:$0xff]
        %v2675 = vld [vmem:[#allocation3 + $0x70] sm:$0xff]
        %v2676 = vld [vmem:[#allocation3 + $0x78] sm:$0xff]
        %v2677 = vld [vmem:[#allocation3 + $0x80] sm:$0xff]
        %v2678 = vld [vmem:[#allocation3 + $0x88] sm:$0xff]
        %v2679 = vld [vmem:[#allocation3 + $0x90] sm:$0xff]
        %v2680 = vld [vmem:[#allocation3 + $0x98] sm:$0xff]
        %v2681 = vld [vmem:[#allocation3 + $0xa0] sm:$0xff]
        %v2682 = vld [vmem:[#allocation3 + $0xa8] sm:$0xff]
        %v2683 = vld [vmem:[#allocation3 + $0xb0] sm:$0xff]
        %v2684 = vld [vmem:[#allocation3 + $0xb8] sm:$0xff]
        %v2685 = vld [vmem:[#allocation3 + $0xc0] sm:$0xff]
        %2710 = vrot.lane.b32.xlu0 %v2662, 32
        %v2711 = vpop.permute.xlu0 %2710
        %2712 = vrot.lane.b32.xlu0 %v2663, 32
        %v2713 = vpop.permute.xlu0 %2712
        %2714 = vrot.lane.b32.xlu0 %v2664, 32
        %v2715 = vpop.permute.xlu0 %2714
        %2716 = vrot.lane.b32.xlu0 %v2665, 32
        %v2717 = vpop.permute.xlu0 %2716
        %2718 = vrot.lane.b32.xlu0 %v2666, 32
        %v2719 = vpop.permute.xlu0 %2718
        %2720 = vrot.lane.b32.xlu0 %v2667, 32
        %v2721 = vpop.permute.xlu0 %2720
        %2722 = vrot.lane.b32.xlu0 %v2668, 32
        %v2723 = vpop.permute.xlu0 %2722
        %2724 = vrot.lane.b32.xlu0 %v2669, 32
        %v2725 = vpop.permute.xlu0 %2724
        %2726 = vrot.lane.b32.xlu0 %v2670, 32
        %v2727 = vpop.permute.xlu0 %2726
        %2728 = vrot.lane.b32.xlu0 %v2671, 32
        %v2729 = vpop.permute.xlu0 %2728
        %2730 = vrot.lane.b32.xlu0 %v2672, 32
        %v2731 = vpop.permute.xlu0 %2730
        %2732 = vrot.lane.b32.xlu0 %v2673, 32
        %v2733 = vpop.permute.xlu0 %2732
        %2734 = vrot.lane.b32.xlu0 %v2674, 32
        %v2735 = vpop.permute.xlu0 %2734
        %2736 = vrot.lane.b32.xlu0 %v2675, 32
        %v2737 = vpop.permute.xlu0 %2736
        %2738 = vrot.lane.b32.xlu0 %v2676, 32
        %v2739 = vpop.permute.xlu0 %2738
        %2740 = vrot.lane.b32.xlu0 %v2677, 32
        %v2741 = vpop.permute.xlu0 %2740
        %2742 = vrot.lane.b32.xlu0 %v2678, 32
        %v2743 = vpop.permute.xlu0 %2742
        %2744 = vrot.lane.b32.xlu0 %v2679, 32
        %v2745 = vpop.permute.xlu0 %2744
        %2746 = vrot.lane.b32.xlu0 %v2680, 32
        %v2747 = vpop.permute.xlu0 %2746
        %2748 = vrot.lane.b32.xlu0 %v2681, 32
        %v2749 = vpop.permute.xlu0 %2748
        %2750 = vrot.lane.b32.xlu0 %v2682, 32
        %v2751 = vpop.permute.xlu0 %2750
        %2752 = vrot.lane.b32.xlu0 %v2683, 32
        %v2753 = vpop.permute.xlu0 %2752
        %2754 = vrot.lane.b32.xlu0 %v2684, 32
        %v2755 = vpop.permute.xlu0 %2754
        %2756 = vrot.lane.b32.xlu0 %v2685, 32
        %v2757 = vpop.permute.xlu0 %2756
        %vm2782 = vcmask 523520
        %2783 = vst.msk [vmem:[#allocation4 + $0x8] sm:$0xff] %vm2782, %v2711
        %2784 = vst.msk [vmem:[#allocation4 + $0x10] sm:$0xff] %vm2782, %v2713
        %2785 = vst.msk [vmem:[#allocation4 + $0x18] sm:$0xff] %vm2782, %v2715
        %2786 = vst.msk [vmem:[#allocation4 + $0x20] sm:$0xff] %vm2782, %v2717
        %2787 = vst.msk [vmem:[#allocation4 + $0x28] sm:$0xff] %vm2782, %v2719
        %2788 = vst.msk [vmem:[#allocation4 + $0x30] sm:$0xff] %vm2782, %v2721
        %2789 = vst.msk [vmem:[#allocation4 + $0x38] sm:$0xff] %vm2782, %v2723
        %2790 = vst.msk [vmem:[#allocation4 + $0x40] sm:$0xff] %vm2782, %v2725
        %2791 = vst.msk [vmem:[#allocation4 + $0x48] sm:$0xff] %vm2782, %v2727
        %2792 = vst.msk [vmem:[#allocation4 + $0x50] sm:$0xff] %vm2782, %v2729
        %2793 = vst.msk [vmem:[#allocation4 + $0x58] sm:$0xff] %vm2782, %v2731
        %2794 = vst.msk [vmem:[#allocation4 + $0x60] sm:$0xff] %vm2782, %v2733
        %2795 = vst.msk [vmem:[#allocation4 + $0x68] sm:$0xff] %vm2782, %v2735
        %2796 = vst.msk [vmem:[#allocation4 + $0x70] sm:$0xff] %vm2782, %v2737
        %2797 = vst.msk [vmem:[#allocation4 + $0x78] sm:$0xff] %vm2782, %v2739
        %2798 = vst.msk [vmem:[#allocation4 + $0x80] sm:$0xff] %vm2782, %v2741
        %2799 = vst.msk [vmem:[#allocation4 + $0x88] sm:$0xff] %vm2782, %v2743
        %2800 = vst.msk [vmem:[#allocation4 + $0x90] sm:$0xff] %vm2782, %v2745
        %2801 = vst.msk [vmem:[#allocation4 + $0x98] sm:$0xff] %vm2782, %v2747
        %2802 = vst.msk [vmem:[#allocation4 + $0xa0] sm:$0xff] %vm2782, %v2749
        %2803 = vst.msk [vmem:[#allocation4 + $0xa8] sm:$0xff] %vm2782, %v2751
        %2804 = vst.msk [vmem:[#allocation4 + $0xb0] sm:$0xff] %vm2782, %v2753
        %2805 = vst.msk [vmem:[#allocation4 + $0xb8] sm:$0xff] %vm2782, %v2755
        %2806 = vst.msk [vmem:[#allocation4 + $0xc0] sm:$0xff] %vm2782, %v2757
        %v2807 = vld [vmem:[#allocation3 + $0x9] sm:$0xff]
        %v2808 = vld [vmem:[#allocation3 + $0x11] sm:$0xff]
        %v2809 = vld [vmem:[#allocation3 + $0x19] sm:$0xff]
        %v2810 = vld [vmem:[#allocation3 + $0x21] sm:$0xff]
        %v2811 = vld [vmem:[#allocation3 + $0x29] sm:$0xff]
        %v2812 = vld [vmem:[#allocation3 + $0x31] sm:$0xff]
        %v2813 = vld [vmem:[#allocation3 + $0x39] sm:$0xff]
        %v2814 = vld [vmem:[#allocation3 + $0x41] sm:$0xff]
        %v2815 = vld [vmem:[#allocation3 + $0x49] sm:$0xff]
        %v2816 = vld [vmem:[#allocation3 + $0x51] sm:$0xff]
        %v2817 = vld [vmem:[#allocation3 + $0x59] sm:$0xff]
        %v2818 = vld [vmem:[#allocation3 + $0x61] sm:$0xff]
        %v2819 = vld [vmem:[#allocation3 + $0x69] sm:$0xff]
        %v2820 = vld [vmem:[#allocation3 + $0x71] sm:$0xff]
        %v2821 = vld [vmem:[#allocation3 + $0x79] sm:$0xff]
        %v2822 = vld [vmem:[#allocation3 + $0x81] sm:$0xff]
        %v2823 = vld [vmem:[#allocation3 + $0x89] sm:$0xff]
        %v2824 = vld [vmem:[#allocation3 + $0x91] sm:$0xff]
        %v2825 = vld [vmem:[#allocation3 + $0x99] sm:$0xff]
        %v2826 = vld [vmem:[#allocation3 + $0xa1] sm:$0xff]
        %v2827 = vld [vmem:[#allocation3 + $0xa9] sm:$0xff]
        %v2828 = vld [vmem:[#allocation3 + $0xb1] sm:$0xff]
        %v2829 = vld [vmem:[#allocation3 + $0xb9] sm:$0xff]
        %v2830 = vld [vmem:[#allocation3 + $0xc1] sm:$0xff]
        %2855 = vrot.lane.b32.xlu0 %v2807, 64
        %v2856 = vpop.permute.xlu0 %2855
        %2857 = vrot.lane.b32.xlu0 %v2808, 64
        %v2858 = vpop.permute.xlu0 %2857
        %2859 = vrot.lane.b32.xlu0 %v2809, 64
        %v2860 = vpop.permute.xlu0 %2859
        %2861 = vrot.lane.b32.xlu0 %v2810, 64
        %v2862 = vpop.permute.xlu0 %2861
        %2863 = vrot.lane.b32.xlu0 %v2811, 64
        %v2864 = vpop.permute.xlu0 %2863
        %2865 = vrot.lane.b32.xlu0 %v2812, 64
        %v2866 = vpop.permute.xlu0 %2865
        %2867 = vrot.lane.b32.xlu0 %v2813, 64
        %v2868 = vpop.permute.xlu0 %2867
        %2869 = vrot.lane.b32.xlu0 %v2814, 64
        %v2870 = vpop.permute.xlu0 %2869
        %2871 = vrot.lane.b32.xlu0 %v2815, 64
        %v2872 = vpop.permute.xlu0 %2871
        %2873 = vrot.lane.b32.xlu0 %v2816, 64
        %v2874 = vpop.permute.xlu0 %2873
        %2875 = vrot.lane.b32.xlu0 %v2817, 64
        %v2876 = vpop.permute.xlu0 %2875
        %2877 = vrot.lane.b32.xlu0 %v2818, 64
        %v2878 = vpop.permute.xlu0 %2877
        %2879 = vrot.lane.b32.xlu0 %v2819, 64
        %v2880 = vpop.permute.xlu0 %2879
        %2881 = vrot.lane.b32.xlu0 %v2820, 64
        %v2882 = vpop.permute.xlu0 %2881
        %2883 = vrot.lane.b32.xlu0 %v2821, 64
        %v2884 = vpop.permute.xlu0 %2883
        %2885 = vrot.lane.b32.xlu0 %v2822, 64
        %v2886 = vpop.permute.xlu0 %2885
        %2887 = vrot.lane.b32.xlu0 %v2823, 64
        %v2888 = vpop.permute.xlu0 %2887
        %2889 = vrot.lane.b32.xlu0 %v2824, 64
        %v2890 = vpop.permute.xlu0 %2889
        %2891 = vrot.lane.b32.xlu0 %v2825, 64
        %v2892 = vpop.permute.xlu0 %2891
        %2893 = vrot.lane.b32.xlu0 %v2826, 64
        %v2894 = vpop.permute.xlu0 %2893
        %2895 = vrot.lane.b32.xlu0 %v2827, 64
        %v2896 = vpop.permute.xlu0 %2895
        %2897 = vrot.lane.b32.xlu0 %v2828, 64
        %v2898 = vpop.permute.xlu0 %2897
        %2899 = vrot.lane.b32.xlu0 %v2829, 64
        %v2900 = vpop.permute.xlu0 %2899
        %2901 = vrot.lane.b32.xlu0 %v2830, 64
        %v2902 = vpop.permute.xlu0 %2901
        %vm2927 = vcmask 785920
        %2928 = vst.msk [vmem:[#allocation4 + $0x8] sm:$0xff] %vm2927, %v2856
        %2929 = vst.msk [vmem:[#allocation4 + $0x10] sm:$0xff] %vm2927, %v2858
        %2930 = vst.msk [vmem:[#allocation4 + $0x18] sm:$0xff] %vm2927, %v2860
        %2931 = vst.msk [vmem:[#allocation4 + $0x20] sm:$0xff] %vm2927, %v2862
        %2932 = vst.msk [vmem:[#allocation4 + $0x28] sm:$0xff] %vm2927, %v2864
        %2933 = vst.msk [vmem:[#allocation4 + $0x30] sm:$0xff] %vm2927, %v2866
        %2934 = vst.msk [vmem:[#allocation4 + $0x38] sm:$0xff] %vm2927, %v2868
        %2935 = vst.msk [vmem:[#allocation4 + $0x40] sm:$0xff] %vm2927, %v2870
        %2936 = vst.msk [vmem:[#allocation4 + $0x48] sm:$0xff] %vm2927, %v2872
        %2937 = vst.msk [vmem:[#allocation4 + $0x50] sm:$0xff] %vm2927, %v2874
        %2938 = vst.msk [vmem:[#allocation4 + $0x58] sm:$0xff] %vm2927, %v2876
        %2939 = vst.msk [vmem:[#allocation4 + $0x60] sm:$0xff] %vm2927, %v2878
        %2940 = vst.msk [vmem:[#allocation4 + $0x68] sm:$0xff] %vm2927, %v2880
        %2941 = vst.msk [vmem:[#allocation4 + $0x70] sm:$0xff] %vm2927, %v2882
        %2942 = vst.msk [vmem:[#allocation4 + $0x78] sm:$0xff] %vm2927, %v2884
        %2943 = vst.msk [vmem:[#allocation4 + $0x80] sm:$0xff] %vm2927, %v2886
        %2944 = vst.msk [vmem:[#allocation4 + $0x88] sm:$0xff] %vm2927, %v2888
        %2945 = vst.msk [vmem:[#allocation4 + $0x90] sm:$0xff] %vm2927, %v2890
        %2946 = vst.msk [vmem:[#allocation4 + $0x98] sm:$0xff] %vm2927, %v2892
        %2947 = vst.msk [vmem:[#allocation4 + $0xa0] sm:$0xff] %vm2927, %v2894
        %2948 = vst.msk [vmem:[#allocation4 + $0xa8] sm:$0xff] %vm2927, %v2896
        %2949 = vst.msk [vmem:[#allocation4 + $0xb0] sm:$0xff] %vm2927, %v2898
        %2950 = vst.msk [vmem:[#allocation4 + $0xb8] sm:$0xff] %vm2927, %v2900
        %2951 = vst.msk [vmem:[#allocation4 + $0xc0] sm:$0xff] %vm2927, %v2902
        %v2952 = vld [vmem:[#allocation4 + $0x8] sm:$0xff]
        %v2953 = vld [vmem:[#allocation4 + $0x10] sm:$0xff]
        %v2954 = vld [vmem:[#allocation4 + $0x18] sm:$0xff]
        %v2955 = vld [vmem:[#allocation4 + $0x20] sm:$0xff]
        %v2956 = vld [vmem:[#allocation4 + $0x28] sm:$0xff]
        %v2957 = vld [vmem:[#allocation4 + $0x30] sm:$0xff]
        %v2958 = vld [vmem:[#allocation4 + $0x38] sm:$0xff]
        %v2959 = vld [vmem:[#allocation4 + $0x40] sm:$0xff]
        %v2960 = vld [vmem:[#allocation4 + $0x48] sm:$0xff]
        %v2961 = vld [vmem:[#allocation4 + $0x50] sm:$0xff]
        %v2962 = vld [vmem:[#allocation4 + $0x58] sm:$0xff]
        %v2963 = vld [vmem:[#allocation4 + $0x60] sm:$0xff]
        %v2964 = vld [vmem:[#allocation4 + $0x68] sm:$0xff]
        %v2965 = vld [vmem:[#allocation4 + $0x70] sm:$0xff]
        %v2966 = vld [vmem:[#allocation4 + $0x78] sm:$0xff]
        %v2967 = vld [vmem:[#allocation4 + $0x80] sm:$0xff]
        %v2968 = vld [vmem:[#allocation4 + $0x88] sm:$0xff]
        %v2969 = vld [vmem:[#allocation4 + $0x90] sm:$0xff]
        %v2970 = vld [vmem:[#allocation4 + $0x98] sm:$0xff]
        %v2971 = vld [vmem:[#allocation4 + $0xa0] sm:$0xff]
        %v2972 = vpack.c.bf16 %v2953, %v2952
        %v2973 = vpack.c.bf16 %v2955, %v2954
        %v2974 = vpack.c.bf16 %v2957, %v2956
        %v2975 = vpack.c.bf16 %v2959, %v2958
        %v2976 = vpack.c.bf16 %v2961, %v2960
        %v2977 = vpack.c.bf16 %v2963, %v2962
        %v2978 = vpack.c.bf16 %v2965, %v2964
        %v2979 = vpack.c.bf16 %v2967, %v2966
        %v2980 = vpack.c.bf16 %v2969, %v2968
        %v2981 = vpack.c.bf16 %v2971, %v2970
        %v2982 = vld [vmem:[%s4] sm:$0xf]
        %v2983 = vld [vmem:[%s4 + $0x4] sm:$0xf]
        %v2984 = vld [vmem:[%s4 + $0x8] sm:$0xf]
        %v2985 = vld [vmem:[%s4 + $0xc] sm:$0xf]
        %v2986 = vld [vmem:[%s4 + $0x10] sm:$0xf]
        %v2987 = vld [vmem:[%s4 + $0x14] sm:$0xf]
        %v2988 = vld [vmem:[%s4 + $0x18] sm:$0xf]
        %v2989 = vld [vmem:[%s4 + $0x1c] sm:$0xf]
        %v2990 = vld [vmem:[%s4 + $0x20] sm:$0xf]
        %v2991 = vld [vmem:[%s4 + $0x24] sm:$0xf]
        %v2992 = vld [vmem:[%s4 + $0x28] sm:$0xf]
        %v2993 = vld [vmem:[%s4 + $0x2c] sm:$0xf]
        %v2994 = vld [vmem:[#allocation4 + $0xa8] sm:$0xff]
        %v2995 = vld [vmem:[#allocation4 + $0xb0] sm:$0xff]
        %v2996 = vpack.c.bf16 %v2995, %v2994
        %v2997 = vld [vmem:[%s4 + $0x30] sm:$0xf]
        %v2998 = vld [vmem:[%s4 + $0x34] sm:$0xf]
        %v2999 = vld [vmem:[%s4 + $0x38] sm:$0xf]
        %v3000 = vld [vmem:[%s4 + $0x3c] sm:$0xf]
        %v3001 = vld [vmem:[%s4 + $0x40] sm:$0xf]
        %v3002 = vld [vmem:[%s4 + $0x44] sm:$0xf]
        %v3003 = vld [vmem:[%s4 + $0x48] sm:$0xf]
        %v3004 = vld [vmem:[%s4 + $0x4c] sm:$0xf]
        %v3005 = vld [vmem:[%s4 + $0x50] sm:$0xf]
        %v3006 = vld [vmem:[%s4 + $0x54] sm:$0xf]
        %v3007 = vld [vmem:[%s4 + $0x58] sm:$0xf]
        %v3008 = vld [vmem:[%s4 + $0x5c] sm:$0xf]
        %v3021 = vunpack.c.l.b16 %v2997
        %v3022 = vunpack.c.l.b16 %v2998
        %v3023 = vunpack.c.l.b16 %v2999
        %v3024 = vunpack.c.l.b16 %v3000
        %v3025 = vunpack.c.l.b16 %v3001
        %v3026 = vunpack.c.l.b16 %v3002
        %v3027 = vunpack.c.l.b16 %v3003
        %v3028 = vunpack.c.l.b16 %v3004
        %v3029 = vunpack.c.l.b16 %v3005
        %v3030 = vunpack.c.l.b16 %v3006
        %v3031 = vunpack.c.l.b16 %v3007
        %v3032 = vunpack.c.l.b16 %v3008
        %v3033 = vpack.c.b16 %v3022, %v3021
        %v3034 = vpack.c.b16 %v3024, %v3023
        %v3035 = vpack.c.b16 %v3026, %v3025
        %v3036 = vpack.c.b16 %v3028, %v3027
        %v3037 = vpack.c.b16 %v3030, %v3029
        %v3038 = vpack.c.b16 %v3032, %v3031
        %vm3045 = vcmask 785408
        %v3047 = vsel %vm3045, %v2973, 0
        %v3050 = vsel %vm3045, %v2974, 0
        %v3053 = vsel %vm3045, %v2975, 0
        %v3056 = vsel %vm3045, %v2976, 0
        %v3059 = vsel %vm3045, %v2977, 0
        %v3062 = vsel %vm3045, %v2978, 0
        %v3065 = vsel %vm3045, %v2979, 0
        %v3068 = vsel %vm3045, %v2980, 0
        %v3071 = vsel %vm3045, %v2981, 0
        %v3074 = vsel %vm3045, %v2996, 0
        %3076 = vmatprep.subr.bf16.mxu0 0
        %3077 = vmatpush1.bf16.msra.mxu0 0
        %3078 = vmatprep.subr.bf16.mxu0 0
        %3079 = vmatpush1.bf16.msra.mxu0 0
        %3080 = vmatprep.subr.bf16.mxu0 0
        %3081 = vmatpush1.bf16.msra.mxu0 %v3038
        %3082 = vmatprep.subr.bf16.mxu0 0
        %3083 = vmatpush1.bf16.msra.mxu0 %v3037
        %3084 = vmatprep.subr.bf16.mxu0 0
        %3085 = vmatpush1.bf16.msra.mxu0 %v3036
        %3086 = vmatprep.subr.bf16.mxu0 0
        %3087 = vmatpush1.bf16.msra.mxu0 %v3035
        %3088 = vmatprep.subr.bf16.mxu0 0
        %3089 = vmatpush1.bf16.msra.mxu0 %v3034
        %3090 = vmatprep.subr.bf16.mxu0 0
        %3091 = vmatpush1.bf16.msra.mxu0 %v3033
        %3092 = vmatprep.subr.bf16.mxu0 0
        %3093 = vmatpush2.bf16.msra.mxu0 0
        %3094 = vmatprep.subr.bf16.mxu0 0
        %3095 = vmatpush2.bf16.msra.mxu0 0
        %3096 = vmatprep.subr.bf16.mxu0 0
        %3097 = vmatpush2.bf16.msra.mxu0 0
        %3098 = vmatprep.subr.bf16.mxu0 0
        %3099 = vmatpush2.bf16.msra.mxu0 0
        %3100 = vmatprep.subr.bf16.mxu0 0
        %3101 = vmatpush2.bf16.msra.mxu0 0
        %3102 = vmatprep.subr.bf16.mxu0 0
        %3103 = vmatpush2.bf16.msra.mxu0 0
        %3104 = vmatprep.subr.bf16.mxu0 0
        %3105 = vmatpush2.bf16.msra.mxu0 0
        %3106 = vmatprep.subr.bf16.mxu0 0
        %3107 = vmatpush2.bf16.msra.mxu0 0
        %3108 = vmatprep.mubr.bf16.mxu0 0
        %3109 = vmatmul.mubr.bf16.gmra.mxu0 %v3047
        %v3110 = vpop.f32.mrf.mxu0
        %v3111 = vadd.f32 0.0, %v3110
        %v3112 = vpop.f32.mrf.mxu0
        %v3113 = vpop.f32.mrf.mxu0
        %v3114 = vadd.f32 0.0, %v3113
        %v3115 = vpop.f32.mrf.mxu0
        %3116 = vmatprep.mubr.bf16.mxu0 0
        %3117 = vmatmul.mubr.bf16.gmra.mxu0 %v3050
        %v3118 = vpop.f32.mrf.mxu0
        %v3119 = vadd.f32 0.0, %v3118
        %v3120 = vpop.f32.mrf.mxu0
        %v3121 = vpop.f32.mrf.mxu0
        %v3122 = vadd.f32 0.0, %v3121
        %v3123 = vpop.f32.mrf.mxu0
        %3124 = vmatprep.mubr.bf16.mxu0 0
        %3125 = vmatmul.mubr.bf16.gmra.mxu0 %v3053
        %v3126 = vpop.f32.mrf.mxu0
        %v3127 = vadd.f32 0.0, %v3126
        %v3128 = vpop.f32.mrf.mxu0
        %v3129 = vpop.f32.mrf.mxu0
        %v3130 = vadd.f32 0.0, %v3129
        %v3131 = vpop.f32.mrf.mxu0
        %3132 = vmatprep.mubr.bf16.mxu0 0
        %3133 = vmatmul.mubr.bf16.gmra.mxu0 %v3056
        %v3134 = vpop.f32.mrf.mxu0
        %v3135 = vadd.f32 0.0, %v3134
        %v3136 = vpop.f32.mrf.mxu0
        %v3137 = vpop.f32.mrf.mxu0
        %v3138 = vadd.f32 0.0, %v3137
        %v3139 = vpop.f32.mrf.mxu0
        %3140 = vmatprep.mubr.bf16.mxu0 0
        %3141 = vmatmul.mubr.bf16.gmra.mxu0 %v3059
        %v3142 = vpop.f32.mrf.mxu0
        %v3143 = vadd.f32 0.0, %v3142
        %v3144 = vpop.f32.mrf.mxu0
        %v3145 = vpop.f32.mrf.mxu0
        %v3146 = vadd.f32 0.0, %v3145
        %v3147 = vpop.f32.mrf.mxu0
        %3148 = vmatprep.mubr.bf16.mxu0 0
        %3149 = vmatmul.mubr.bf16.gmra.mxu0 %v3062
        %v3150 = vpop.f32.mrf.mxu0
        %v3151 = vadd.f32 0.0, %v3150
        %v3152 = vpop.f32.mrf.mxu0
        %v3153 = vpop.f32.mrf.mxu0
        %v3154 = vadd.f32 0.0, %v3153
        %v3155 = vpop.f32.mrf.mxu0
        %3156 = vmatprep.mubr.bf16.mxu0 0
        %3157 = vmatmul.mubr.bf16.gmra.mxu0 %v3065
        %v3158 = vpop.f32.mrf.mxu0
        %v3159 = vadd.f32 0.0, %v3158
        %v3160 = vpop.f32.mrf.mxu0
        %v3161 = vpop.f32.mrf.mxu0
        %v3162 = vadd.f32 0.0, %v3161
        %v3163 = vpop.f32.mrf.mxu0
        %3164 = vmatprep.mubr.bf16.mxu0 0
        %3165 = vmatmul.mubr.bf16.gmra.mxu0 %v3068
        %v3166 = vpop.f32.mrf.mxu0
        %v3167 = vadd.f32 0.0, %v3166
        %v3168 = vpop.f32.mrf.mxu0
        %v3169 = vpop.f32.mrf.mxu0
        %v3170 = vadd.f32 0.0, %v3169
        %v3171 = vpop.f32.mrf.mxu0
        %3172 = vmatprep.mubr.bf16.mxu0 0
        %3173 = vmatmul.mubr.bf16.gmra.mxu0 %v3071
        %v3174 = vpop.f32.mrf.mxu0
        %v3175 = vadd.f32 0.0, %v3174
        %v3176 = vpop.f32.mrf.mxu0
        %v3177 = vpop.f32.mrf.mxu0
        %v3178 = vadd.f32 0.0, %v3177
        %v3179 = vpop.f32.mrf.mxu0
        %3180 = vmatprep.mubr.bf16.mxu0 0
        %3181 = vmatmul.mubr.bf16.gmra.mxu0 %v3074
        %v3182 = vpop.f32.mrf.mxu0
        %v3183 = vadd.f32 0.0, %v3182
        %v3184 = vpop.f32.mrf.mxu0
        %v3185 = vpop.f32.mrf.mxu0
        %v3186 = vadd.f32 0.0, %v3185
        %v3187 = vpop.f32.mrf.mxu0
        %3188 = vdwg.mxu0
        %v3201 = vunpack.c.l.b16 %v2982
        %v3202 = vunpack.c.l.b16 %v2983
        %v3203 = vunpack.c.l.b16 %v2984
        %v3204 = vunpack.c.l.b16 %v2985
        %v3205 = vunpack.c.l.b16 %v2986
        %v3206 = vunpack.c.l.b16 %v2987
        %v3207 = vunpack.c.l.b16 %v2988
        %v3208 = vunpack.c.l.b16 %v2989
        %v3209 = vunpack.c.l.b16 %v2990
        %v3210 = vunpack.c.l.b16 %v2991
        %v3211 = vunpack.c.l.b16 %v2992
        %v3212 = vunpack.c.l.b16 %v2993
        %v3213 = vpack.c.b16 %v3202, %v3201
        %v3214 = vpack.c.b16 %v3204, %v3203
        %v3215 = vpack.c.b16 %v3206, %v3205
        %v3216 = vpack.c.b16 %v3208, %v3207
        %v3217 = vpack.c.b16 %v3210, %v3209
        %v3218 = vpack.c.b16 %v3212, %v3211
        %v3226 = vsel %vm3045, %v2972, 0
        %3228 = vmatprep.subr.bf16.mxu0 0
        %3229 = vmatpush1.bf16.msra.mxu0 0
        %3230 = vmatprep.subr.bf16.mxu0 0
        %3231 = vmatpush1.bf16.msra.mxu0 0
        %3232 = vmatprep.subr.bf16.mxu0 0
        %3233 = vmatpush1.bf16.msra.mxu0 %v3218
        %3234 = vmatprep.subr.bf16.mxu0 0
        %3235 = vmatpush1.bf16.msra.mxu0 %v3217
        %3236 = vmatprep.subr.bf16.mxu0 0
        %3237 = vmatpush1.bf16.msra.mxu0 %v3216
        %3238 = vmatprep.subr.bf16.mxu0 0
        %3239 = vmatpush1.bf16.msra.mxu0 %v3215
        %3240 = vmatprep.subr.bf16.mxu0 0
        %3241 = vmatpush1.bf16.msra.mxu0 %v3214
        %3242 = vmatprep.subr.bf16.mxu0 0
        %3243 = vmatpush1.bf16.msra.mxu0 %v3213
        %3244 = vmatprep.subr.bf16.mxu0 0
        %3245 = vmatpush2.bf16.msra.mxu0 0
        %3246 = vmatprep.subr.bf16.mxu0 0
        %3247 = vmatpush2.bf16.msra.mxu0 0
        %3248 = vmatprep.subr.bf16.mxu0 0
        %3249 = vmatpush2.bf16.msra.mxu0 0
        %3250 = vmatprep.subr.bf16.mxu0 0
        %3251 = vmatpush2.bf16.msra.mxu0 0
        %3252 = vmatprep.subr.bf16.mxu0 0
        %3253 = vmatpush2.bf16.msra.mxu0 0
        %3254 = vmatprep.subr.bf16.mxu0 0
        %3255 = vmatpush2.bf16.msra.mxu0 0
        %3256 = vmatprep.subr.bf16.mxu0 0
        %3257 = vmatpush2.bf16.msra.mxu0 0
        %3258 = vmatprep.subr.bf16.mxu0 0
        %3259 = vmatpush2.bf16.msra.mxu0 0
        %3260 = vmatprep.mubr.bf16.mxu0 0
        %3261 = vmatmul.mubr.bf16.gmra.mxu0 %v3226
        %v3262 = vpop.f32.mrf.mxu0
        %v3263 = vadd.f32 %v3111, %v3262
        %v3264 = vpop.f32.mrf.mxu0
        %v3265 = vpop.f32.mrf.mxu0
        %v3266 = vadd.f32 %v3114, %v3265
        %v3267 = vpop.f32.mrf.mxu0
        %3268 = vmatprep.mubr.bf16.mxu0 0
        %3269 = vmatmul.mubr.bf16.gmra.mxu0 %v3047
        %v3270 = vpop.f32.mrf.mxu0
        %v3271 = vadd.f32 %v3119, %v3270
        %v3272 = vpop.f32.mrf.mxu0
        %v3273 = vpop.f32.mrf.mxu0
        %v3274 = vadd.f32 %v3122, %v3273
        %v3275 = vpop.f32.mrf.mxu0
        %3276 = vmatprep.mubr.bf16.mxu0 0
        %3277 = vmatmul.mubr.bf16.gmra.mxu0 %v3050
        %v3278 = vpop.f32.mrf.mxu0
        %v3279 = vadd.f32 %v3127, %v3278
        %v3280 = vpop.f32.mrf.mxu0
        %v3281 = vpop.f32.mrf.mxu0
        %v3282 = vadd.f32 %v3130, %v3281
        %v3283 = vpop.f32.mrf.mxu0
        %3284 = vmatprep.mubr.bf16.mxu0 0
        %3285 = vmatmul.mubr.bf16.gmra.mxu0 %v3053
        %v3286 = vpop.f32.mrf.mxu0
        %v3287 = vadd.f32 %v3135, %v3286
        %v3288 = vpop.f32.mrf.mxu0
        %v3289 = vpop.f32.mrf.mxu0
        %v3290 = vadd.f32 %v3138, %v3289
        %v3291 = vpop.f32.mrf.mxu0
        %3292 = vmatprep.mubr.bf16.mxu0 0
        %3293 = vmatmul.mubr.bf16.gmra.mxu0 %v3056
        %v3294 = vpop.f32.mrf.mxu0
        %v3295 = vadd.f32 %v3143, %v3294
        %v3296 = vpop.f32.mrf.mxu0
        %v3297 = vpop.f32.mrf.mxu0
        %v3298 = vadd.f32 %v3146, %v3297
        %v3299 = vpop.f32.mrf.mxu0
        %3300 = vmatprep.mubr.bf16.mxu0 0
        %3301 = vmatmul.mubr.bf16.gmra.mxu0 %v3059
        %v3302 = vpop.f32.mrf.mxu0
        %v3303 = vadd.f32 %v3151, %v3302
        %v3304 = vpop.f32.mrf.mxu0
        %v3305 = vpop.f32.mrf.mxu0
        %v3306 = vadd.f32 %v3154, %v3305
        %v3307 = vpop.f32.mrf.mxu0
        %3308 = vmatprep.mubr.bf16.mxu0 0
        %3309 = vmatmul.mubr.bf16.gmra.mxu0 %v3062
        %v3310 = vpop.f32.mrf.mxu0
        %v3311 = vadd.f32 %v3159, %v3310
        %v3312 = vpop.f32.mrf.mxu0
        %v3313 = vpop.f32.mrf.mxu0
        %v3314 = vadd.f32 %v3162, %v3313
        %v3315 = vpop.f32.mrf.mxu0
        %3316 = vmatprep.mubr.bf16.mxu0 0
        %3317 = vmatmul.mubr.bf16.gmra.mxu0 %v3065
        %v3318 = vpop.f32.mrf.mxu0
        %v3319 = vadd.f32 %v3167, %v3318
        %v3320 = vpop.f32.mrf.mxu0
        %v3321 = vpop.f32.mrf.mxu0
        %v3322 = vadd.f32 %v3170, %v3321
        %v3323 = vpop.f32.mrf.mxu0
        %3324 = vmatprep.mubr.bf16.mxu0 0
        %3325 = vmatmul.mubr.bf16.gmra.mxu0 %v3068
        %v3326 = vpop.f32.mrf.mxu0
        %v3327 = vadd.f32 %v3175, %v3326
        %v3328 = vpop.f32.mrf.mxu0
        %v3329 = vpop.f32.mrf.mxu0
        %v3330 = vadd.f32 %v3178, %v3329
        %v3331 = vpop.f32.mrf.mxu0
        %3332 = vmatprep.mubr.bf16.mxu0 0
        %3333 = vmatmul.mubr.bf16.gmra.mxu0 %v3071
        %v3334 = vpop.f32.mrf.mxu0
        %v3335 = vadd.f32 %v3183, %v3334
        %v3336 = vpop.f32.mrf.mxu0
        %v3337 = vpop.f32.mrf.mxu0
        %v3338 = vadd.f32 %v3186, %v3337
        %v3339 = vpop.f32.mrf.mxu0
        %3340 = vdwg.mxu0
        %v3341 = vld [vmem:[#allocation4 + $0x28] sm:$0xff]
        %v3342 = vld [vmem:[#allocation4 + $0x30] sm:$0xff]
        %v3343 = vld [vmem:[#allocation4 + $0x38] sm:$0xff]
        %v3344 = vld [vmem:[#allocation4 + $0x40] sm:$0xff]
        %v3345 = vld [vmem:[#allocation4 + $0x48] sm:$0xff]
        %v3346 = vld [vmem:[#allocation4 + $0x50] sm:$0xff]
        %v3347 = vld [vmem:[#allocation4 + $0x58] sm:$0xff]
        %v3348 = vld [vmem:[#allocation4 + $0x60] sm:$0xff]
        %v3349 = vld [vmem:[#allocation4 + $0x68] sm:$0xff]
        %v3350 = vld [vmem:[#allocation4 + $0x70] sm:$0xff]
        %v3351 = vld [vmem:[#allocation4 + $0x78] sm:$0xff]
        %v3352 = vld [vmem:[#allocation4 + $0x80] sm:$0xff]
        %v3353 = vld [vmem:[#allocation4 + $0x88] sm:$0xff]
        %v3354 = vld [vmem:[#allocation4 + $0x90] sm:$0xff]
        %v3355 = vld [vmem:[#allocation4 + $0x98] sm:$0xff]
        %v3356 = vld [vmem:[#allocation4 + $0xa0] sm:$0xff]
        %v3357 = vld [vmem:[#allocation4 + $0xa8] sm:$0xff]
        %v3358 = vld [vmem:[#allocation4 + $0xb0] sm:$0xff]
        %v3359 = vld [vmem:[#allocation4 + $0xb8] sm:$0xff]
        %v3360 = vld [vmem:[#allocation4 + $0xc0] sm:$0xff]
        %v3361 = vpack.c.bf16 %v3342, %v3341
        %v3362 = vpack.c.bf16 %v3344, %v3343
        %v3363 = vpack.c.bf16 %v3346, %v3345
        %v3364 = vpack.c.bf16 %v3348, %v3347
        %v3365 = vpack.c.bf16 %v3350, %v3349
        %v3366 = vpack.c.bf16 %v3352, %v3351
        %v3367 = vpack.c.bf16 %v3354, %v3353
        %v3368 = vpack.c.bf16 %v3356, %v3355
        %v3369 = vpack.c.bf16 %v3358, %v3357
        %v3370 = vpack.c.bf16 %v3360, %v3359
        %v3371 = vld [vmem:[%s4 + $0x60] sm:$0xf]
        %v3372 = vld [vmem:[%s4 + $0x64] sm:$0xf]
        %v3373 = vld [vmem:[%s4 + $0x68] sm:$0xf]
        %v3374 = vld [vmem:[%s4 + $0x6c] sm:$0xf]
        %v3375 = vld [vmem:[%s4 + $0x70] sm:$0xf]
        %v3376 = vld [vmem:[%s4 + $0x74] sm:$0xf]
        %v3377 = vld [vmem:[%s4 + $0x78] sm:$0xf]
        %v3378 = vld [vmem:[%s4 + $0x7c] sm:$0xf]
        %v3379 = vld [vmem:[%s4 + $0x80] sm:$0xf]
        %v3380 = vld [vmem:[%s4 + $0x84] sm:$0xf]
        %v3381 = vld [vmem:[%s4 + $0x88] sm:$0xf]
        %v3382 = vld [vmem:[%s4 + $0x8c] sm:$0xf]
        %v3395 = vunpack.c.l.b16 %v3371
        %v3396 = vunpack.c.l.b16 %v3372
        %v3397 = vunpack.c.l.b16 %v3373
        %v3398 = vunpack.c.l.b16 %v3374
        %v3399 = vunpack.c.l.b16 %v3375
        %v3400 = vunpack.c.l.b16 %v3376
        %v3401 = vunpack.c.l.b16 %v3377
        %v3402 = vunpack.c.l.b16 %v3378
        %v3403 = vunpack.c.l.b16 %v3379
        %v3404 = vunpack.c.l.b16 %v3380
        %v3405 = vunpack.c.l.b16 %v3381
        %v3406 = vunpack.c.l.b16 %v3382
        %v3407 = vpack.c.b16 %v3396, %v3395
        %v3408 = vpack.c.b16 %v3398, %v3397
        %v3409 = vpack.c.b16 %v3400, %v3399
        %v3410 = vpack.c.b16 %v3402, %v3401
        %v3411 = vpack.c.b16 %v3404, %v3403
        %v3412 = vpack.c.b16 %v3406, %v3405
        %v3420 = vsel %vm3045, %v3361, 0
        %v3423 = vsel %vm3045, %v3362, 0
        %v3426 = vsel %vm3045, %v3363, 0
        %v3429 = vsel %vm3045, %v3364, 0
        %v3432 = vsel %vm3045, %v3365, 0
        %v3435 = vsel %vm3045, %v3366, 0
        %v3438 = vsel %vm3045, %v3367, 0
        %v3441 = vsel %vm3045, %v3368, 0
        %v3444 = vsel %vm3045, %v3369, 0
        %v3447 = vsel %vm3045, %v3370, 0
        %3449 = vmatprep.subr.bf16.mxu0 0
        %3450 = vmatpush1.bf16.msra.mxu0 0
        %3451 = vmatprep.subr.bf16.mxu0 0
        %3452 = vmatpush1.bf16.msra.mxu0 0
        %3453 = vmatprep.subr.bf16.mxu0 0
        %3454 = vmatpush1.bf16.msra.mxu0 %v3412
        %3455 = vmatprep.subr.bf16.mxu0 0
        %3456 = vmatpush1.bf16.msra.mxu0 %v3411
        %3457 = vmatprep.subr.bf16.mxu0 0
        %3458 = vmatpush1.bf16.msra.mxu0 %v3410
        %3459 = vmatprep.subr.bf16.mxu0 0
        %3460 = vmatpush1.bf16.msra.mxu0 %v3409
        %3461 = vmatprep.subr.bf16.mxu0 0
        %3462 = vmatpush1.bf16.msra.mxu0 %v3408
        %3463 = vmatprep.subr.bf16.mxu0 0
        %3464 = vmatpush1.bf16.msra.mxu0 %v3407
        %3465 = vmatprep.subr.bf16.mxu0 0
        %3466 = vmatpush2.bf16.msra.mxu0 0
        %3467 = vmatprep.subr.bf16.mxu0 0
        %3468 = vmatpush2.bf16.msra.mxu0 0
        %3469 = vmatprep.subr.bf16.mxu0 0
        %3470 = vmatpush2.bf16.msra.mxu0 0
        %3471 = vmatprep.subr.bf16.mxu0 0
        %3472 = vmatpush2.bf16.msra.mxu0 0
        %3473 = vmatprep.subr.bf16.mxu0 0
        %3474 = vmatpush2.bf16.msra.mxu0 0
        %3475 = vmatprep.subr.bf16.mxu0 0
        %3476 = vmatpush2.bf16.msra.mxu0 0
        %3477 = vmatprep.subr.bf16.mxu0 0
        %3478 = vmatpush2.bf16.msra.mxu0 0
        %3479 = vmatprep.subr.bf16.mxu0 0
        %3480 = vmatpush2.bf16.msra.mxu0 0
        %3481 = vmatprep.mubr.bf16.mxu0 0
        %3482 = vmatmul.mubr.bf16.gmra.mxu0 %v3420
        %v3483 = vpop.f32.mrf.mxu0
        %v3484 = vadd.f32 0.0, %v3483
        %v3485 = vpop.f32.mrf.mxu0
        %v3486 = vpop.f32.mrf.mxu0
        %v3487 = vadd.f32 0.0, %v3486
        %v3488 = vpop.f32.mrf.mxu0
        %3489 = vmatprep.mubr.bf16.mxu0 0
        %3490 = vmatmul.mubr.bf16.gmra.mxu0 %v3423
        %v3491 = vpop.f32.mrf.mxu0
        %v3492 = vadd.f32 0.0, %v3491
        %v3493 = vpop.f32.mrf.mxu0
        %v3494 = vpop.f32.mrf.mxu0
        %v3495 = vadd.f32 0.0, %v3494
        %v3496 = vpop.f32.mrf.mxu0
        %3497 = vmatprep.mubr.bf16.mxu0 0
        %3498 = vmatmul.mubr.bf16.gmra.mxu0 %v3426
        %v3499 = vpop.f32.mrf.mxu0
        %v3500 = vadd.f32 0.0, %v3499
        %v3501 = vpop.f32.mrf.mxu0
        %v3502 = vpop.f32.mrf.mxu0
        %v3503 = vadd.f32 0.0, %v3502
        %v3504 = vpop.f32.mrf.mxu0
        %3505 = vmatprep.mubr.bf16.mxu0 0
        %3506 = vmatmul.mubr.bf16.gmra.mxu0 %v3429
        %v3507 = vpop.f32.mrf.mxu0
        %v3508 = vadd.f32 0.0, %v3507
        %v3509 = vpop.f32.mrf.mxu0
        %v3510 = vpop.f32.mrf.mxu0
        %v3511 = vadd.f32 0.0, %v3510
        %v3512 = vpop.f32.mrf.mxu0
        %3513 = vmatprep.mubr.bf16.mxu0 0
        %3514 = vmatmul.mubr.bf16.gmra.mxu0 %v3432
        %v3515 = vpop.f32.mrf.mxu0
        %v3516 = vadd.f32 0.0, %v3515
        %v3517 = vpop.f32.mrf.mxu0
        %v3518 = vpop.f32.mrf.mxu0
        %v3519 = vadd.f32 0.0, %v3518
        %v3520 = vpop.f32.mrf.mxu0
        %3521 = vmatprep.mubr.bf16.mxu0 0
        %3522 = vmatmul.mubr.bf16.gmra.mxu0 %v3435
        %v3523 = vpop.f32.mrf.mxu0
        %v3524 = vadd.f32 0.0, %v3523
        %v3525 = vpop.f32.mrf.mxu0
        %v3526 = vpop.f32.mrf.mxu0
        %v3527 = vadd.f32 0.0, %v3526
        %v3528 = vpop.f32.mrf.mxu0
        %3529 = vmatprep.mubr.bf16.mxu0 0
        %3530 = vmatmul.mubr.bf16.gmra.mxu0 %v3438
        %v3531 = vpop.f32.mrf.mxu0
        %v3532 = vadd.f32 0.0, %v3531
        %v3533 = vpop.f32.mrf.mxu0
        %v3534 = vpop.f32.mrf.mxu0
        %v3535 = vadd.f32 0.0, %v3534
        %v3536 = vpop.f32.mrf.mxu0
        %3537 = vmatprep.mubr.bf16.mxu0 0
        %3538 = vmatmul.mubr.bf16.gmra.mxu0 %v3441
        %v3539 = vpop.f32.mrf.mxu0
        %v3540 = vadd.f32 0.0, %v3539
        %v3541 = vpop.f32.mrf.mxu0
        %v3542 = vpop.f32.mrf.mxu0
        %v3543 = vadd.f32 0.0, %v3542
        %v3544 = vpop.f32.mrf.mxu0
        %3545 = vmatprep.mubr.bf16.mxu0 0
        %3546 = vmatmul.mubr.bf16.gmra.mxu0 %v3444
        %v3547 = vpop.f32.mrf.mxu0
        %v3548 = vadd.f32 0.0, %v3547
        %v3549 = vpop.f32.mrf.mxu0
        %v3550 = vpop.f32.mrf.mxu0
        %v3551 = vadd.f32 0.0, %v3550
        %v3552 = vpop.f32.mrf.mxu0
        %3553 = vmatprep.mubr.bf16.mxu0 0
        %3554 = vmatmul.mubr.bf16.gmra.mxu0 %v3447
        %v3555 = vpop.f32.mrf.mxu0
        %v3556 = vadd.f32 0.0, %v3555
        %v3557 = vpop.f32.mrf.mxu0
        %v3558 = vpop.f32.mrf.mxu0
        %v3559 = vadd.f32 0.0, %v3558
        %v3560 = vpop.f32.mrf.mxu0
        %3561 = vdwg.mxu0
        %v3562 = vadd.f32 %v3263, %v3484
        %v3563 = vadd.f32 %v3266, %v3487
        %v3564 = vadd.f32 %v3271, %v3492
        %v3565 = vadd.f32 %v3274, %v3495
        %v3566 = vadd.f32 %v3279, %v3500
        %v3567 = vadd.f32 %v3282, %v3503
        %v3568 = vadd.f32 %v3287, %v3508
        %v3569 = vadd.f32 %v3290, %v3511
        %v3570 = vadd.f32 %v3295, %v3516
        %v3571 = vadd.f32 %v3298, %v3519
        %v3572 = vadd.f32 %v3303, %v3524
        %v3573 = vadd.f32 %v3306, %v3527
        %v3574 = vadd.f32 %v3311, %v3532
        %v3575 = vadd.f32 %v3314, %v3535
        %v3576 = vadd.f32 %v3319, %v3540
        %v3577 = vadd.f32 %v3322, %v3543
        %v3578 = vadd.f32 %v3327, %v3548
        %v3579 = vadd.f32 %v3330, %v3551
        %v3580 = vadd.f32 %v3335, %v3556
        %v3581 = vadd.f32 %v3338, %v3559
        %v3582 = vand.u32 %v1253, 15
        %v3583 = vand.u32 %v1254, 15
        %v3584 = vand.u32 %v1255, 15
        %v3585 = vand.u32 %v1256, 15
        %v3586 = vand.u32 %v1257, 15
        %v3587 = vand.u32 %v1258, 15
        %v3588 = vand.u32 %v1259, 15
        %v3589 = vand.u32 %v1260, 15
        %v3590 = vand.u32 %v1261, 15
        %v3591 = vand.u32 %v1262, 15
        %v3592 = vand.u32 %v1263, 15
        %v3593 = vand.u32 %v1264, 15
        %v3594 = vand.u32 %v1265, 15
        %v3595 = vand.u32 %v1266, 15
        %v3596 = vand.u32 %v1267, 15
        %v3597 = vand.u32 %v1268, 15
        %v3598 = vand.u32 %v1269, 15
        %v3599 = vand.u32 %v1270, 15
        %v3600 = vand.u32 %v1271, 15
        %v3601 = vand.u32 %v1272, 15
        %vm3602 = vcmp.ge.s32.totalorder %v1253, 16
        %vm3603 = vcmp.ge.s32.totalorder %v1254, 16
        %vm3604 = vcmp.ge.s32.totalorder %v1255, 16
        %vm3605 = vcmp.ge.s32.totalorder %v1256, 16
        %vm3606 = vcmp.ge.s32.totalorder %v1257, 16
        %vm3607 = vcmp.ge.s32.totalorder %v1258, 16
        %vm3608 = vcmp.ge.s32.totalorder %v1259, 16
        %vm3609 = vcmp.ge.s32.totalorder %v1260, 16
        %vm3610 = vcmp.ge.s32.totalorder %v1261, 16
        %vm3611 = vcmp.ge.s32.totalorder %v1262, 16
        %vm3612 = vcmp.ge.s32.totalorder %v1263, 16
        %vm3613 = vcmp.ge.s32.totalorder %v1264, 16
        %vm3614 = vcmp.ge.s32.totalorder %v1265, 16
        %vm3615 = vcmp.ge.s32.totalorder %v1266, 16
        %vm3616 = vcmp.ge.s32.totalorder %v1267, 16
        %vm3617 = vcmp.ge.s32.totalorder %v1268, 16
        %vm3618 = vcmp.ge.s32.totalorder %v1269, 16
        %vm3619 = vcmp.ge.s32.totalorder %v1270, 16
        %vm3620 = vcmp.ge.s32.totalorder %v1271, 16
        %vm3621 = vcmp.ge.s32.totalorder %v1272, 16
        %vm3622 = vcmp.lt.s32.totalorder %v1253, 144
        %vm3623 = vcmp.lt.s32.totalorder %v1254, 144
        %vm3624 = vcmp.lt.s32.totalorder %v1255, 144
        %vm3625 = vcmp.lt.s32.totalorder %v1256, 144
        %vm3626 = vcmp.lt.s32.totalorder %v1257, 144
        %vm3627 = vcmp.lt.s32.totalorder %v1258, 144
        %vm3628 = vcmp.lt.s32.totalorder %v1259, 144
        %vm3629 = vcmp.lt.s32.totalorder %v1260, 144
        %vm3630 = vcmp.lt.s32.totalorder %v1261, 144
        %vm3631 = vcmp.lt.s32.totalorder %v1262, 144
        %vm3632 = vcmp.lt.s32.totalorder %v1263, 144
        %vm3633 = vcmp.lt.s32.totalorder %v1264, 144
        %vm3634 = vcmp.lt.s32.totalorder %v1265, 144
        %vm3635 = vcmp.lt.s32.totalorder %v1266, 144
        %vm3636 = vcmp.lt.s32.totalorder %v1267, 144
        %vm3637 = vcmp.lt.s32.totalorder %v1268, 144
        %vm3638 = vcmp.lt.s32.totalorder %v1269, 144
        %vm3639 = vcmp.lt.s32.totalorder %v1270, 144
        %vm3640 = vcmp.lt.s32.totalorder %v1271, 144
        %vm3641 = vcmp.lt.s32.totalorder %v1272, 144
        %vm3642 = vmand %vm3602, %vm3622
        %vm3643 = vmand %vm3603, %vm3623
        %vm3644 = vmand %vm3604, %vm3624
        %vm3645 = vmand %vm3605, %vm3625
        %vm3646 = vmand %vm3606, %vm3626
        %vm3647 = vmand %vm3607, %vm3627
        %vm3648 = vmand %vm3608, %vm3628
        %vm3649 = vmand %vm3609, %vm3629
        %vm3650 = vmand %vm3610, %vm3630
        %vm3651 = vmand %vm3611, %vm3631
        %vm3652 = vmand %vm3612, %vm3632
        %vm3653 = vmand %vm3613, %vm3633
        %vm3654 = vmand %vm3614, %vm3634
        %vm3655 = vmand %vm3615, %vm3635
        %vm3656 = vmand %vm3616, %vm3636
        %vm3657 = vmand %vm3617, %vm3637
        %vm3658 = vmand %vm3618, %vm3638
        %vm3659 = vmand %vm3619, %vm3639
        %vm3660 = vmand %vm3620, %vm3640
        %vm3661 = vmand %vm3621, %vm3641
        %vm3662 = vcmp.ge.s32.totalorder %v3582, 1
        %vm3663 = vcmp.ge.s32.totalorder %v3583, 1
        %vm3664 = vcmp.ge.s32.totalorder %v3584, 1
        %vm3665 = vcmp.ge.s32.totalorder %v3585, 1
        %vm3666 = vcmp.ge.s32.totalorder %v3586, 1
        %vm3667 = vcmp.ge.s32.totalorder %v3587, 1
        %vm3668 = vcmp.ge.s32.totalorder %v3588, 1
        %vm3669 = vcmp.ge.s32.totalorder %v3589, 1
        %vm3670 = vcmp.ge.s32.totalorder %v3590, 1
        %vm3671 = vcmp.ge.s32.totalorder %v3591, 1
        %vm3672 = vcmp.ge.s32.totalorder %v3592, 1
        %vm3673 = vcmp.ge.s32.totalorder %v3593, 1
        %vm3674 = vcmp.ge.s32.totalorder %v3594, 1
        %vm3675 = vcmp.ge.s32.totalorder %v3595, 1
        %vm3676 = vcmp.ge.s32.totalorder %v3596, 1
        %vm3677 = vcmp.ge.s32.totalorder %v3597, 1
        %vm3678 = vcmp.ge.s32.totalorder %v3598, 1
        %vm3679 = vcmp.ge.s32.totalorder %v3599, 1
        %vm3680 = vcmp.ge.s32.totalorder %v3600, 1
        %vm3681 = vcmp.ge.s32.totalorder %v3601, 1
        %vm3682 = vmand %vm3642, %vm3662
        %vm3683 = vmand %vm3643, %vm3663
        %vm3684 = vmand %vm3644, %vm3664
        %vm3685 = vmand %vm3645, %vm3665
        %vm3686 = vmand %vm3646, %vm3666
        %vm3687 = vmand %vm3647, %vm3667
        %vm3688 = vmand %vm3648, %vm3668
        %vm3689 = vmand %vm3649, %vm3669
        %vm3690 = vmand %vm3650, %vm3670
        %vm3691 = vmand %vm3651, %vm3671
        %vm3692 = vmand %vm3652, %vm3672
        %vm3693 = vmand %vm3653, %vm3673
        %vm3694 = vmand %vm3654, %vm3674
        %vm3695 = vmand %vm3655, %vm3675
        %vm3696 = vmand %vm3656, %vm3676
        %vm3697 = vmand %vm3657, %vm3677
        %vm3698 = vmand %vm3658, %vm3678
        %vm3699 = vmand %vm3659, %vm3679
        %vm3700 = vmand %vm3660, %vm3680
        %vm3701 = vmand %vm3661, %vm3681
        %vm3702 = vcmp.le.s32.totalorder %v3582, 8
        %vm3703 = vcmp.le.s32.totalorder %v3583, 8
        %vm3704 = vcmp.le.s32.totalorder %v3584, 8
        %vm3705 = vcmp.le.s32.totalorder %v3585, 8
        %vm3706 = vcmp.le.s32.totalorder %v3586, 8
        %vm3707 = vcmp.le.s32.totalorder %v3587, 8
        %vm3708 = vcmp.le.s32.totalorder %v3588, 8
        %vm3709 = vcmp.le.s32.totalorder %v3589, 8
        %vm3710 = vcmp.le.s32.totalorder %v3590, 8
        %vm3711 = vcmp.le.s32.totalorder %v3591, 8
        %vm3712 = vcmp.le.s32.totalorder %v3592, 8
        %vm3713 = vcmp.le.s32.totalorder %v3593, 8
        %vm3714 = vcmp.le.s32.totalorder %v3594, 8
        %vm3715 = vcmp.le.s32.totalorder %v3595, 8
        %vm3716 = vcmp.le.s32.totalorder %v3596, 8
        %vm3717 = vcmp.le.s32.totalorder %v3597, 8
        %vm3718 = vcmp.le.s32.totalorder %v3598, 8
        %vm3719 = vcmp.le.s32.totalorder %v3599, 8
        %vm3720 = vcmp.le.s32.totalorder %v3600, 8
        %vm3721 = vcmp.le.s32.totalorder %v3601, 8
        %vm3722 = vmand %vm3682, %vm3702
        %vm3723 = vmand %vm3683, %vm3703
        %vm3724 = vmand %vm3684, %vm3704
        %vm3725 = vmand %vm3685, %vm3705
        %vm3726 = vmand %vm3686, %vm3706
        %vm3727 = vmand %vm3687, %vm3707
        %vm3728 = vmand %vm3688, %vm3708
        %vm3729 = vmand %vm3689, %vm3709
        %vm3730 = vmand %vm3690, %vm3710
        %vm3731 = vmand %vm3691, %vm3711
        %vm3732 = vmand %vm3692, %vm3712
        %vm3733 = vmand %vm3693, %vm3713
        %vm3734 = vmand %vm3694, %vm3714
        %vm3735 = vmand %vm3695, %vm3715
        %vm3736 = vmand %vm3696, %vm3716
        %vm3737 = vmand %vm3697, %vm3717
        %vm3738 = vmand %vm3698, %vm3718
        %vm3739 = vmand %vm3699, %vm3719
        %vm3740 = vmand %vm3700, %vm3720
        %vm3741 = vmand %vm3701, %vm3721
        %v3742 = vld [vmem:[%s5] sm:$0x1]
        %v3744 = vlaneseq
        %v3745 = vshrl.u32 %v3744, 7
        %v3746 = vsub.s32 0, %v3745
        %v3747 = vrot.slane %v3742, %v3746
        %v3749 = vmul.f32 %v3562, %v3747
        %v3750 = vmul.f32 %v3563, %v3747
        %v3751 = vmul.f32 %v3564, %v3747
        %v3752 = vmul.f32 %v3565, %v3747
        %v3753 = vmul.f32 %v3566, %v3747
        %v3754 = vmul.f32 %v3567, %v3747
        %v3755 = vmul.f32 %v3568, %v3747
        %v3756 = vmul.f32 %v3569, %v3747
        %v3757 = vmul.f32 %v3570, %v3747
        %v3758 = vmul.f32 %v3571, %v3747
        %v3759 = vmul.f32 %v3572, %v3747
        %v3760 = vmul.f32 %v3573, %v3747
        %v3761 = vmul.f32 %v3574, %v3747
        %v3762 = vmul.f32 %v3575, %v3747
        %v3763 = vmul.f32 %v3576, %v3747
        %v3764 = vmul.f32 %v3577, %v3747
        %v3765 = vmul.f32 %v3578, %v3747
        %v3766 = vmul.f32 %v3579, %v3747
        %v3767 = vmul.f32 %v3580, %v3747
        %v3768 = vmul.f32 %v3581, %v3747
        %v3769 = vld [vmem:[%s6] sm:$0x1]
        %v3771 = vlaneseq
        %v3772 = vshrl.u32 %v3771, 7
        %v3773 = vsub.s32 0, %v3772
        %v3774 = vrot.slane %v3769, %v3773
        %v3776 = vadd.f32 %v3749, %v3774
        %v3777 = vadd.f32 %v3750, %v3774
        %v3778 = vadd.f32 %v3751, %v3774
        %v3779 = vadd.f32 %v3752, %v3774
        %v3780 = vadd.f32 %v3753, %v3774
        %v3781 = vadd.f32 %v3754, %v3774
        %v3782 = vadd.f32 %v3755, %v3774
        %v3783 = vadd.f32 %v3756, %v3774
        %v3784 = vadd.f32 %v3757, %v3774
        %v3785 = vadd.f32 %v3758, %v3774
        %v3786 = vadd.f32 %v3759, %v3774
        %v3787 = vadd.f32 %v3760, %v3774
        %v3788 = vadd.f32 %v3761, %v3774
        %v3789 = vadd.f32 %v3762, %v3774
        %v3790 = vadd.f32 %v3763, %v3774
        %v3791 = vadd.f32 %v3764, %v3774
        %v3792 = vadd.f32 %v3765, %v3774
        %v3793 = vadd.f32 %v3766, %v3774
        %v3794 = vadd.f32 %v3767, %v3774
        %v3795 = vadd.f32 %v3768, %v3774
        %v3796 = vmax.f32 %v3776, 0.0
        %v3797 = vmax.f32 %v3777, 0.0
        %v3798 = vmax.f32 %v3778, 0.0
        %v3799 = vmax.f32 %v3779, 0.0
        %v3800 = vmax.f32 %v3780, 0.0
        %v3801 = vmax.f32 %v3781, 0.0
        %v3802 = vmax.f32 %v3782, 0.0
        %v3803 = vmax.f32 %v3783, 0.0
        %v3804 = vmax.f32 %v3784, 0.0
        %v3805 = vmax.f32 %v3785, 0.0
        %v3806 = vmax.f32 %v3786, 0.0
        %v3807 = vmax.f32 %v3787, 0.0
        %v3808 = vmax.f32 %v3788, 0.0
        %v3809 = vmax.f32 %v3789, 0.0
        %v3810 = vmax.f32 %v3790, 0.0
        %v3811 = vmax.f32 %v3791, 0.0
        %v3812 = vmax.f32 %v3792, 0.0
        %v3813 = vmax.f32 %v3793, 0.0
        %v3814 = vmax.f32 %v3794, 0.0
        %v3815 = vmax.f32 %v3795, 0.0
        %v3816 = vsel %vm3722, 1, 0
        %v3817 = vsel %vm3723, 1, 0
        %v3818 = vsel %vm3724, 1, 0
        %v3819 = vsel %vm3725, 1, 0
        %v3820 = vsel %vm3726, 1, 0
        %v3821 = vsel %vm3727, 1, 0
        %v3822 = vsel %vm3728, 1, 0
        %v3823 = vsel %vm3729, 1, 0
        %v3824 = vsel %vm3730, 1, 0
        %v3825 = vsel %vm3731, 1, 0
        %v3826 = vsel %vm3732, 1, 0
        %v3827 = vsel %vm3733, 1, 0
        %v3828 = vsel %vm3734, 1, 0
        %v3829 = vsel %vm3735, 1, 0
        %v3830 = vsel %vm3736, 1, 0
        %v3831 = vsel %vm3737, 1, 0
        %v3832 = vsel %vm3738, 1, 0
        %v3833 = vsel %vm3739, 1, 0
        %v3834 = vsel %vm3740, 1, 0
        %v3835 = vsel %vm3741, 1, 0
        %vm3836 = vcmp.eq.s32.totalorder %v3816, 1
        %vm3837 = vcmp.eq.s32.totalorder %v3817, 1
        %vm3838 = vcmp.eq.s32.totalorder %v3818, 1
        %vm3839 = vcmp.eq.s32.totalorder %v3819, 1
        %vm3840 = vcmp.eq.s32.totalorder %v3820, 1
        %vm3841 = vcmp.eq.s32.totalorder %v3821, 1
        %vm3842 = vcmp.eq.s32.totalorder %v3822, 1
        %vm3843 = vcmp.eq.s32.totalorder %v3823, 1
        %vm3844 = vcmp.eq.s32.totalorder %v3824, 1
        %vm3845 = vcmp.eq.s32.totalorder %v3825, 1
        %vm3846 = vcmp.eq.s32.totalorder %v3826, 1
        %vm3847 = vcmp.eq.s32.totalorder %v3827, 1
        %vm3848 = vcmp.eq.s32.totalorder %v3828, 1
        %vm3849 = vcmp.eq.s32.totalorder %v3829, 1
        %vm3850 = vcmp.eq.s32.totalorder %v3830, 1
        %vm3851 = vcmp.eq.s32.totalorder %v3831, 1
        %vm3852 = vcmp.eq.s32.totalorder %v3832, 1
        %vm3853 = vcmp.eq.s32.totalorder %v3833, 1
        %vm3854 = vcmp.eq.s32.totalorder %v3834, 1
        %vm3855 = vcmp.eq.s32.totalorder %v3835, 1
        %v3856 = vsel %vm3836, %v3796, 0.0
        %v3857 = vsel %vm3837, %v3797, 0.0
        %v3858 = vsel %vm3838, %v3798, 0.0
        %v3859 = vsel %vm3839, %v3799, 0.0
        %v3860 = vsel %vm3840, %v3800, 0.0
        %v3861 = vsel %vm3841, %v3801, 0.0
        %v3862 = vsel %vm3842, %v3802, 0.0
        %v3863 = vsel %vm3843, %v3803, 0.0
        %v3864 = vsel %vm3844, %v3804, 0.0
        %v3865 = vsel %vm3845, %v3805, 0.0
        %v3866 = vsel %vm3846, %v3806, 0.0
        %v3867 = vsel %vm3847, %v3807, 0.0
        %v3868 = vsel %vm3848, %v3808, 0.0
        %v3869 = vsel %vm3849, %v3809, 0.0
        %v3870 = vsel %vm3850, %v3810, 0.0
        %v3871 = vsel %vm3851, %v3811, 0.0
        %v3872 = vsel %vm3852, %v3812, 0.0
        %v3873 = vsel %vm3853, %v3813, 0.0
        %v3874 = vsel %vm3854, %v3814, 0.0
        %v3875 = vsel %vm3855, %v3815, 0.0
        %3876 = vst.msk [vmem:[#allocation5 + $0x18] sm:$0xff] %vm522, %v3856
        %3877 = vst.msk [vmem:[#allocation5 + $0x20] sm:$0xff] %vm522, %v3857
        %3878 = vst.msk [vmem:[#allocation5 + $0x28] sm:$0xff] %vm522, %v3858
        %3879 = vst.msk [vmem:[#allocation5 + $0x30] sm:$0xff] %vm522, %v3859
        %3880 = vst.msk [vmem:[#allocation5 + $0x38] sm:$0xff] %vm522, %v3860
        %3881 = vst.msk [vmem:[#allocation5 + $0x40] sm:$0xff] %vm522, %v3861
        %3882 = vst.msk [vmem:[#allocation5 + $0x48] sm:$0xff] %vm522, %v3862
        %3883 = vst.msk [vmem:[#allocation5 + $0x50] sm:$0xff] %vm522, %v3863
        %3884 = vst.msk [vmem:[#allocation5 + $0x58] sm:$0xff] %vm522, %v3864
        %3885 = vst.msk [vmem:[#allocation5 + $0x60] sm:$0xff] %vm522, %v3865
        %3886 = vst.msk [vmem:[#allocation5 + $0x68] sm:$0xff] %vm522, %v3866
        %3887 = vst.msk [vmem:[#allocation5 + $0x70] sm:$0xff] %vm522, %v3867
        %3888 = vst.msk [vmem:[#allocation5 + $0x78] sm:$0xff] %vm522, %v3868
        %3889 = vst.msk [vmem:[#allocation5 + $0x80] sm:$0xff] %vm522, %v3869
        %3890 = vst.msk [vmem:[#allocation5 + $0x88] sm:$0xff] %vm522, %v3870
        %3891 = vst.msk [vmem:[#allocation5 + $0x90] sm:$0xff] %vm522, %v3871
        %3892 = vst.msk [vmem:[#allocation5 + $0x98] sm:$0xff] %vm522, %v3872
        %3893 = vst.msk [vmem:[#allocation5 + $0xa0] sm:$0xff] %vm522, %v3873
        %3894 = vst.msk [vmem:[#allocation5 + $0xa8] sm:$0xff] %vm522, %v3874
        %3895 = vst.msk [vmem:[#allocation5 + $0xb0] sm:$0xff] %vm522, %v3875
        %s3896 = scalar_lea.vmem [#allocation5], 24
        %v3897 = vld [vmem:[%s3896] ss:$2 sm:$0xf]
        %s3898 = scalar_lea.vmem [#allocation5], 25
        %v3899 = vld [vmem:[%s3898] ss:$2 sm:$0xf]
        %v3900 = vmax.f32 %v3897, %v3899
        %s3901 = scalar_lea.vmem [#allocation5], 26
        %v3902 = vld [vmem:[%s3901] ss:$2 sm:$0xf]
        %v3903 = vmax.f32 %v3900, %v3902
        %s3904 = scalar_lea.vmem [#allocation5], 40
        %v3905 = vld [vmem:[%s3904] ss:$2 sm:$0xf]
        %v3906 = vmax.f32 %v3903, %v3905
        %s3907 = scalar_lea.vmem [#allocation5], 41
        %v3908 = vld [vmem:[%s3907] ss:$2 sm:$0xf]
        %v3909 = vmax.f32 %v3906, %v3908
        %s3910 = scalar_lea.vmem [#allocation5], 42
        %v3911 = vld [vmem:[%s3910] ss:$2 sm:$0xf]
        %v3912 = vmax.f32 %v3909, %v3911
        %s3913 = scalar_lea.vmem [#allocation5], 56
        %v3914 = vld [vmem:[%s3913] ss:$2 sm:$0xf]
        %v3915 = vmax.f32 %v3912, %v3914
        %s3916 = scalar_lea.vmem [#allocation5], 57
        %v3917 = vld [vmem:[%s3916] ss:$2 sm:$0xf]
        %v3918 = vmax.f32 %v3915, %v3917
        %s3919 = scalar_lea.vmem [#allocation5], 58
        %v3920 = vld [vmem:[%s3919] ss:$2 sm:$0xf]
        %v3921 = vmax.f32 %v3918, %v3920
        %vm3922 = vcmask 519168
        %3923 = vst.msk [vmem:[#allocation6 + $0x19] sm:$0xf] %vm3922, %v3921
        %v3924 = vld [vmem:[%s3913] ss:$2 sm:$0xf]
        %v3925 = vld [vmem:[%s3916] ss:$2 sm:$0xf]
        %v3926 = vmax.f32 %v3924, %v3925
        %v3927 = vld [vmem:[%s3919] ss:$2 sm:$0xf]
        %v3928 = vmax.f32 %v3926, %v3927
        %s3929 = scalar_lea.vmem [#allocation5], 72
        %v3930 = vld [vmem:[%s3929] ss:$2 sm:$0xf]
        %v3931 = vmax.f32 %v3928, %v3930
        %s3932 = scalar_lea.vmem [#allocation5], 73
        %v3933 = vld [vmem:[%s3932] ss:$2 sm:$0xf]
        %v3934 = vmax.f32 %v3931, %v3933
        %s3935 = scalar_lea.vmem [#allocation5], 74
        %v3936 = vld [vmem:[%s3935] ss:$2 sm:$0xf]
        %v3937 = vmax.f32 %v3934, %v3936
        %s3938 = scalar_lea.vmem [#allocation5], 88
        %v3939 = vld [vmem:[%s3938] ss:$2 sm:$0xf]
        %v3940 = vmax.f32 %v3937, %v3939
        %s3941 = scalar_lea.vmem [#allocation5], 89
        %v3942 = vld [vmem:[%s3941] ss:$2 sm:$0xf]
        %v3943 = vmax.f32 %v3940, %v3942
        %s3944 = scalar_lea.vmem [#allocation5], 90
        %v3945 = vld [vmem:[%s3944] ss:$2 sm:$0xf]
        %v3946 = vmax.f32 %v3943, %v3945
        %3947 = vst.msk [vmem:[#allocation6 + $0x21] sm:$0xf] %vm3922, %v3946
        %v3948 = vld [vmem:[%s3938] ss:$2 sm:$0xf]
        %v3949 = vld [vmem:[%s3941] ss:$2 sm:$0xf]
        %v3950 = vmax.f32 %v3948, %v3949
        %v3951 = vld [vmem:[%s3944] ss:$2 sm:$0xf]
        %v3952 = vmax.f32 %v3950, %v3951
        %s3953 = scalar_lea.vmem [#allocation5], 104
        %v3954 = vld [vmem:[%s3953] ss:$2 sm:$0xf]
        %v3955 = vmax.f32 %v3952, %v3954
        %s3956 = scalar_lea.vmem [#allocation5], 105
        %v3957 = vld [vmem:[%s3956] ss:$2 sm:$0xf]
        %v3958 = vmax.f32 %v3955, %v3957
        %s3959 = scalar_lea.vmem [#allocation5], 106
        %v3960 = vld [vmem:[%s3959] ss:$2 sm:$0xf]
        %v3961 = vmax.f32 %v3958, %v3960
        %s3962 = scalar_lea.vmem [#allocation5], 120
        %v3963 = vld [vmem:[%s3962] ss:$2 sm:$0xf]
        %v3964 = vmax.f32 %v3961, %v3963
        %s3965 = scalar_lea.vmem [#allocation5], 121
        %v3966 = vld [vmem:[%s3965] ss:$2 sm:$0xf]
        %v3967 = vmax.f32 %v3964, %v3966
        %s3968 = scalar_lea.vmem [#allocation5], 122
        %v3969 = vld [vmem:[%s3968] ss:$2 sm:$0xf]
        %v3970 = vmax.f32 %v3967, %v3969
        %3971 = vst.msk [vmem:[#allocation6 + $0x29] sm:$0xf] %vm3922, %v3970
        %v3972 = vld [vmem:[%s3962] ss:$2 sm:$0xf]
        %v3973 = vld [vmem:[%s3965] ss:$2 sm:$0xf]
        %v3974 = vmax.f32 %v3972, %v3973
        %v3975 = vld [vmem:[%s3968] ss:$2 sm:$0xf]
        %v3976 = vmax.f32 %v3974, %v3975
        %s3977 = scalar_lea.vmem [#allocation5], 136
        %v3978 = vld [vmem:[%s3977] ss:$2 sm:$0xf]
        %v3979 = vmax.f32 %v3976, %v3978
        %s3980 = scalar_lea.vmem [#allocation5], 137
        %v3981 = vld [vmem:[%s3980] ss:$2 sm:$0xf]
        %v3982 = vmax.f32 %v3979, %v3981
        %s3983 = scalar_lea.vmem [#allocation5], 138
        %v3984 = vld [vmem:[%s3983] ss:$2 sm:$0xf]
        %v3985 = vmax.f32 %v3982, %v3984
        %s3986 = scalar_lea.vmem [#allocation5], 152
        %v3987 = vld [vmem:[%s3986] ss:$2 sm:$0xf]
        %v3988 = vmax.f32 %v3985, %v3987
        %s3989 = scalar_lea.vmem [#allocation5], 153
        %v3990 = vld [vmem:[%s3989] ss:$2 sm:$0xf]
        %v3991 = vmax.f32 %v3988, %v3990
        %s3992 = scalar_lea.vmem [#allocation5], 154
        %v3993 = vld [vmem:[%s3992] ss:$2 sm:$0xf]
        %v3994 = vmax.f32 %v3991, %v3993
        %3995 = vst.msk [vmem:[#allocation6 + $0x31] sm:$0xf] %vm3922, %v3994
        %v3996 = vld [vmem:[#allocation6 + $0x7] sm:$0xff]
        %v3997 = vld [vmem:[#allocation6 + $0xf] sm:$0xff]
        %v3998 = vld [vmem:[#allocation6 + $0x17] sm:$0xff]
        %v3999 = vld [vmem:[#allocation6 + $0x1f] sm:$0xff]
        %v4000 = vld [vmem:[#allocation6 + $0x27] sm:$0xff]
        %v4001 = vld [vmem:[#allocation6 + $0x2f] sm:$0xff]
        %v4002 = vld [vmem:[#allocation6 + $0x37] sm:$0xff]
        %v4003 = vld [vmem:[#allocation6 + $0x3f] sm:$0xff]
        %4004 = vst.msk [vmem:[#allocation7 + $0x10] sm:$0xff] %vm522, %v3996
        %4005 = vst.msk [vmem:[#allocation7 + $0x20] sm:$0xff] %vm522, %v3997
        %4006 = vst.msk [vmem:[#allocation7 + $0x30] sm:$0xff] %vm522, %v3998
        %4007 = vst.msk [vmem:[#allocation7 + $0x40] sm:$0xff] %vm522, %v3999
        %4008 = vst.msk [vmem:[#allocation7 + $0x50] sm:$0xff] %vm522, %v4000
        %4009 = vst.msk [vmem:[#allocation7 + $0x60] sm:$0xff] %vm522, %v4001
        %4010 = vst.msk [vmem:[#allocation7 + $0x70] sm:$0xff] %vm522, %v4002
        %4011 = vst.msk [vmem:[#allocation7 + $0x80] sm:$0xff] %vm522, %v4003
        %v4012 = vld [vmem:[#allocation6 + $0x8] sm:$0xff]
        %v4013 = vld [vmem:[#allocation6 + $0x10] sm:$0xff]
        %v4014 = vld [vmem:[#allocation6 + $0x18] sm:$0xff]
        %v4015 = vld [vmem:[#allocation6 + $0x20] sm:$0xff]
        %v4016 = vld [vmem:[#allocation6 + $0x28] sm:$0xff]
        %v4017 = vld [vmem:[#allocation6 + $0x30] sm:$0xff]
        %v4018 = vld [vmem:[#allocation6 + $0x38] sm:$0xff]
        %v4019 = vld [vmem:[#allocation6 + $0x40] sm:$0xff]
        %4028 = vrot.lane.b32.xlu0 %v4012, 64
        %v4029 = vpop.permute.xlu0 %4028
        %4030 = vrot.lane.b32.xlu0 %v4013, 64
        %v4031 = vpop.permute.xlu0 %4030
        %4032 = vrot.lane.b32.xlu0 %v4014, 64
        %v4033 = vpop.permute.xlu0 %4032
        %4034 = vrot.lane.b32.xlu0 %v4015, 64
        %v4035 = vpop.permute.xlu0 %4034
        %4036 = vrot.lane.b32.xlu0 %v4016, 64
        %v4037 = vpop.permute.xlu0 %4036
        %4038 = vrot.lane.b32.xlu0 %v4017, 64
        %v4039 = vpop.permute.xlu0 %4038
        %4040 = vrot.lane.b32.xlu0 %v4018, 64
        %v4041 = vpop.permute.xlu0 %4040
        %4042 = vrot.lane.b32.xlu0 %v4019, 64
        %v4043 = vpop.permute.xlu0 %4042
        %vm4052 = vcmask 1048064
        %4053 = vst.msk [vmem:[#allocation7 + $0x10] sm:$0xff] %vm4052, %v4029
        %4054 = vst.msk [vmem:[#allocation7 + $0x20] sm:$0xff] %vm4052, %v4031
        %4055 = vst.msk [vmem:[#allocation7 + $0x30] sm:$0xff] %vm4052, %v4033
        %4056 = vst.msk [vmem:[#allocation7 + $0x40] sm:$0xff] %vm4052, %v4035
        %4057 = vst.msk [vmem:[#allocation7 + $0x50] sm:$0xff] %vm4052, %v4037
        %4058 = vst.msk [vmem:[#allocation7 + $0x60] sm:$0xff] %vm4052, %v4039
        %4059 = vst.msk [vmem:[#allocation7 + $0x70] sm:$0xff] %vm4052, %v4041
        %4060 = vst.msk [vmem:[#allocation7 + $0x80] sm:$0xff] %vm4052, %v4043
        %v4061 = vld [vmem:[#allocation6 + $0x9] sm:$0xff]
        %v4062 = vld [vmem:[#allocation6 + $0x11] sm:$0xff]
        %v4063 = vld [vmem:[#allocation6 + $0x19] sm:$0xff]
        %v4064 = vld [vmem:[#allocation6 + $0x21] sm:$0xff]
        %v4065 = vld [vmem:[#allocation6 + $0x29] sm:$0xff]
        %v4066 = vld [vmem:[#allocation6 + $0x31] sm:$0xff]
        %v4067 = vld [vmem:[#allocation6 + $0x39] sm:$0xff]
        %v4068 = vld [vmem:[#allocation6 + $0x41] sm:$0xff]
        %4069 = vst.msk [vmem:[#allocation7 + $0x18] sm:$0xff] %vm522, %v4061
        %4070 = vst.msk [vmem:[#allocation7 + $0x28] sm:$0xff] %vm522, %v4062
        %4071 = vst.msk [vmem:[#allocation7 + $0x38] sm:$0xff] %vm522, %v4063
        %4072 = vst.msk [vmem:[#allocation7 + $0x48] sm:$0xff] %vm522, %v4064
        %4073 = vst.msk [vmem:[#allocation7 + $0x58] sm:$0xff] %vm522, %v4065
        %4074 = vst.msk [vmem:[#allocation7 + $0x68] sm:$0xff] %vm522, %v4066
        %4075 = vst.msk [vmem:[#allocation7 + $0x78] sm:$0xff] %vm522, %v4067
        %4076 = vst.msk [vmem:[#allocation7 + $0x88] sm:$0xff] %vm522, %v4068
        %v4077 = vld [vmem:[#allocation7 + $0x10] sm:$0xff]
        %v4078 = vld [vmem:[#allocation7 + $0x18] sm:$0xff]
        %v4079 = vld [vmem:[#allocation7 + $0x20] sm:$0xff]
        %v4080 = vld [vmem:[#allocation7 + $0x28] sm:$0xff]
        %v4081 = vld [vmem:[#allocation7 + $0x30] sm:$0xff]
        %v4082 = vld [vmem:[#allocation7 + $0x38] sm:$0xff]
        %v4083 = vld [vmem:[#allocation7 + $0x40] sm:$0xff]
        %v4084 = vld [vmem:[#allocation7 + $0x48] sm:$0xff]
        %v4085 = vld [vmem:[#allocation7 + $0x50] sm:$0xff]
        %v4086 = vld [vmem:[#allocation7 + $0x58] sm:$0xff]
        %v4087 = vld [vmem:[#allocation7 + $0x60] sm:$0xff]
        %v4088 = vld [vmem:[#allocation7 + $0x68] sm:$0xff]
        %v4089 = vpack.c.bf16 %v4079, %v4077
        %v4090 = vpack.c.bf16 %v4080, %v4078
        %v4091 = vpack.c.bf16 %v4083, %v4081
        %v4092 = vpack.c.bf16 %v4084, %v4082
        %v4093 = vpack.c.bf16 %v4087, %v4085
        %v4094 = vpack.c.bf16 %v4088, %v4086
        %v4095 = vld [vmem:[%s7] sm:$0xf]
        %v4096 = vld [vmem:[%s7 + $0x4] sm:$0xf]
        %v4097 = vld [vmem:[%s7 + $0x8] sm:$0xf]
        %v4098 = vld [vmem:[%s7 + $0xc] sm:$0xf]
        %v4099 = vld [vmem:[%s7 + $0x10] sm:$0xf]
        %v4100 = vld [vmem:[%s7 + $0x14] sm:$0xf]
        %v4101 = vld [vmem:[%s7 + $0x18] sm:$0xf]
        %v4102 = vld [vmem:[%s7 + $0x1c] sm:$0xf]
        %v4103 = vld [vmem:[%s7 + $0x20] sm:$0xf]
        %v4104 = vld [vmem:[%s7 + $0x24] sm:$0xf]
        %v4105 = vld [vmem:[%s7 + $0x28] sm:$0xf]
        %v4106 = vld [vmem:[%s7 + $0x2c] sm:$0xf]
        %v4107 = vld [vmem:[%s7 + $0x30] sm:$0xf]
        %v4108 = vld [vmem:[%s7 + $0x34] sm:$0xf]
        %v4109 = vld [vmem:[%s7 + $0x38] sm:$0xf]
        %v4110 = vld [vmem:[%s7 + $0x3c] sm:$0xf]
        %v4111 = vld [vmem:[%s7 + $0x40] sm:$0xf]
        %v4112 = vld [vmem:[%s7 + $0x44] sm:$0xf]
        %v4113 = vld [vmem:[%s7 + $0x48] sm:$0xf]
        %v4114 = vld [vmem:[%s7 + $0x4c] sm:$0xf]
        %v4115 = vld [vmem:[%s7 + $0x50] sm:$0xf]
        %v4116 = vld [vmem:[%s7 + $0x54] sm:$0xf]
        %v4117 = vld [vmem:[%s7 + $0x58] sm:$0xf]
        %v4118 = vld [vmem:[%s7 + $0x5c] sm:$0xf]
        %v4119 = vld [vmem:[#allocation7 + $0x70] sm:$0xff]
        %v4120 = vld [vmem:[#allocation7 + $0x78] sm:$0xff]
        %v4121 = vpack.c.bf16 %v4081, %v4079
        %v4122 = vpack.c.bf16 %v4082, %v4080
        %v4123 = vpack.c.bf16 %v4085, %v4083
        %v4124 = vpack.c.bf16 %v4086, %v4084
        %v4125 = vpack.c.bf16 %v4119, %v4087
        %v4126 = vpack.c.bf16 %v4120, %v4088
        %v4127 = vld [vmem:[%s7 + $0x60] sm:$0xf]
        %v4128 = vld [vmem:[%s7 + $0x64] sm:$0xf]
        %v4129 = vld [vmem:[%s7 + $0x68] sm:$0xf]
        %v4130 = vld [vmem:[%s7 + $0x6c] sm:$0xf]
        %v4131 = vld [vmem:[%s7 + $0x70] sm:$0xf]
        %v4132 = vld [vmem:[%s7 + $0x74] sm:$0xf]
        %v4133 = vld [vmem:[%s7 + $0x78] sm:$0xf]
        %v4134 = vld [vmem:[%s7 + $0x7c] sm:$0xf]
        %v4135 = vld [vmem:[%s7 + $0x80] sm:$0xf]
        %v4136 = vld [vmem:[%s7 + $0x84] sm:$0xf]
        %v4137 = vld [vmem:[%s7 + $0x88] sm:$0xf]
        %v4138 = vld [vmem:[%s7 + $0x8c] sm:$0xf]
        %v4139 = vld [vmem:[%s7 + $0x90] sm:$0xf]
        %v4140 = vld [vmem:[%s7 + $0x94] sm:$0xf]
        %v4141 = vld [vmem:[%s7 + $0x98] sm:$0xf]
        %v4142 = vld [vmem:[%s7 + $0x9c] sm:$0xf]
        %v4143 = vld [vmem:[%s7 + $0xa0] sm:$0xf]
        %v4144 = vld [vmem:[%s7 + $0xa4] sm:$0xf]
        %v4145 = vld [vmem:[%s7 + $0xa8] sm:$0xf]
        %v4146 = vld [vmem:[%s7 + $0xac] sm:$0xf]
        %v4147 = vld [vmem:[%s7 + $0xb0] sm:$0xf]
        %v4148 = vld [vmem:[%s7 + $0xb4] sm:$0xf]
        %v4149 = vld [vmem:[%s7 + $0xb8] sm:$0xf]
        %v4150 = vld [vmem:[%s7 + $0xbc] sm:$0xf]
        %v4175 = vunpack.c.l.b16 %v4127
        %v4176 = vunpack.c.l.b16 %v4128
        %v4177 = vunpack.c.l.b16 %v4129
        %v4178 = vunpack.c.l.b16 %v4130
        %v4179 = vunpack.c.l.b16 %v4131
        %v4180 = vunpack.c.l.b16 %v4132
        %v4181 = vunpack.c.l.b16 %v4133
        %v4182 = vunpack.c.l.b16 %v4134
        %v4183 = vunpack.c.l.b16 %v4135
        %v4184 = vunpack.c.l.b16 %v4136
        %v4185 = vunpack.c.l.b16 %v4137
        %v4186 = vunpack.c.l.b16 %v4138
        %v4187 = vunpack.c.l.b16 %v4139
        %v4188 = vunpack.c.l.b16 %v4140
        %v4189 = vunpack.c.l.b16 %v4141
        %v4190 = vunpack.c.l.b16 %v4142
        %v4191 = vunpack.c.l.b16 %v4143
        %v4192 = vunpack.c.l.b16 %v4144
        %v4193 = vunpack.c.l.b16 %v4145
        %v4194 = vunpack.c.l.b16 %v4146
        %v4195 = vunpack.c.l.b16 %v4147
        %v4196 = vunpack.c.l.b16 %v4148
        %v4197 = vunpack.c.l.b16 %v4149
        %v4198 = vunpack.c.l.b16 %v4150
        %v4199 = vpack.c.b16 %v4176, %v4175
        %v4200 = vpack.c.b16 %v4178, %v4177
        %v4201 = vpack.c.b16 %v4180, %v4179
        %v4202 = vpack.c.b16 %v4182, %v4181
        %v4203 = vpack.c.b16 %v4184, %v4183
        %v4204 = vpack.c.b16 %v4186, %v4185
        %v4205 = vpack.c.b16 %v4188, %v4187
        %v4206 = vpack.c.b16 %v4190, %v4189
        %v4207 = vpack.c.b16 %v4192, %v4191
        %v4208 = vpack.c.b16 %v4194, %v4193
        %v4209 = vpack.c.b16 %v4196, %v4195
        %v4210 = vpack.c.b16 %v4198, %v4197
        %v4224 = vsel %vm522, %v4122, 0
        %v4227 = vsel %vm522, %v4124, 0
        %v4230 = vsel %vm522, %v4126, 0
        %4232 = vmatprep.subr.bf16.mxu0 0
        %4233 = vmatpush1.bf16.msra.mxu0 %v4206
        %4234 = vmatprep.subr.bf16.mxu0 0
        %4235 = vmatpush1.bf16.msra.mxu0 %v4205
        %4236 = vmatprep.subr.bf16.mxu0 0
        %4237 = vmatpush1.bf16.msra.mxu0 %v4204
        %4238 = vmatprep.subr.bf16.mxu0 0
        %4239 = vmatpush1.bf16.msra.mxu0 %v4203
        %4240 = vmatprep.subr.bf16.mxu0 0
        %4241 = vmatpush1.bf16.msra.mxu0 %v4202
        %4242 = vmatprep.subr.bf16.mxu0 0
        %4243 = vmatpush1.bf16.msra.mxu0 %v4201
        %4244 = vmatprep.subr.bf16.mxu0 0
        %4245 = vmatpush1.bf16.msra.mxu0 %v4200
        %4246 = vmatprep.subr.bf16.mxu0 0
        %4247 = vmatpush1.bf16.msra.mxu0 %v4199
        %4248 = vmatprep.subr.bf16.mxu0 0
        %4249 = vmatpush2.bf16.msra.mxu0 0
        %4250 = vmatprep.subr.bf16.mxu0 0
        %4251 = vmatpush2.bf16.msra.mxu0 0
        %4252 = vmatprep.subr.bf16.mxu0 0
        %4253 = vmatpush2.bf16.msra.mxu0 0
        %4254 = vmatprep.subr.bf16.mxu0 0
        %4255 = vmatpush2.bf16.msra.mxu0 0
        %4256 = vmatprep.subr.bf16.mxu0 0
        %4257 = vmatpush2.bf16.msra.mxu0 %v4210
        %4258 = vmatprep.subr.bf16.mxu0 0
        %4259 = vmatpush2.bf16.msra.mxu0 %v4209
        %4260 = vmatprep.subr.bf16.mxu0 0
        %4261 = vmatpush2.bf16.msra.mxu0 %v4208
        %4262 = vmatprep.subr.bf16.mxu0 0
        %4263 = vmatpush2.bf16.msra.mxu0 %v4207
        %4264 = vmatprep.mubr.bf16.mxu0 %v4224
        %4265 = vmatmul.mubr.bf16.gmra.mxu0 %v4121
        %v4266 = vpop.f32.mrf.mxu0
        %v4267 = vadd.f32 0.0, %v4266
        %v4268 = vpop.f32.mrf.mxu0
        %v4269 = vpop.f32.mrf.mxu0
        %v4270 = vadd.f32 0.0, %v4269
        %v4271 = vpop.f32.mrf.mxu0
        %4272 = vmatprep.mubr.bf16.mxu0 %v4227
        %4273 = vmatmul.mubr.bf16.gmra.mxu0 %v4123
        %v4274 = vpop.f32.mrf.mxu0
        %v4275 = vadd.f32 0.0, %v4274
        %v4276 = vpop.f32.mrf.mxu0
        %v4277 = vpop.f32.mrf.mxu0
        %v4278 = vadd.f32 0.0, %v4277
        %v4279 = vpop.f32.mrf.mxu0
        %4280 = vmatprep.mubr.bf16.mxu0 %v4230
        %4281 = vmatmul.mubr.bf16.gmra.mxu0 %v4125
        %v4282 = vpop.f32.mrf.mxu0
        %v4283 = vadd.f32 0.0, %v4282
        %v4284 = vpop.f32.mrf.mxu0
        %v4285 = vpop.f32.mrf.mxu0
        %v4286 = vadd.f32 0.0, %v4285
        %v4287 = vpop.f32.mrf.mxu0
        %4288 = vdwg.mxu0
        %v4313 = vunpack.c.l.b16 %v4095
        %v4314 = vunpack.c.l.b16 %v4096
        %v4315 = vunpack.c.l.b16 %v4097
        %v4316 = vunpack.c.l.b16 %v4098
        %v4317 = vunpack.c.l.b16 %v4099
        %v4318 = vunpack.c.l.b16 %v4100
        %v4319 = vunpack.c.l.b16 %v4101
        %v4320 = vunpack.c.l.b16 %v4102
        %v4321 = vunpack.c.l.b16 %v4103
        %v4322 = vunpack.c.l.b16 %v4104
        %v4323 = vunpack.c.l.b16 %v4105
        %v4324 = vunpack.c.l.b16 %v4106
        %v4325 = vunpack.c.l.b16 %v4107
        %v4326 = vunpack.c.l.b16 %v4108
        %v4327 = vunpack.c.l.b16 %v4109
        %v4328 = vunpack.c.l.b16 %v4110
        %v4329 = vunpack.c.l.b16 %v4111
        %v4330 = vunpack.c.l.b16 %v4112
        %v4331 = vunpack.c.l.b16 %v4113
        %v4332 = vunpack.c.l.b16 %v4114
        %v4333 = vunpack.c.l.b16 %v4115
        %v4334 = vunpack.c.l.b16 %v4116
        %v4335 = vunpack.c.l.b16 %v4117
        %v4336 = vunpack.c.l.b16 %v4118
        %v4337 = vpack.c.b16 %v4314, %v4313
        %v4338 = vpack.c.b16 %v4316, %v4315
        %v4339 = vpack.c.b16 %v4318, %v4317
        %v4340 = vpack.c.b16 %v4320, %v4319
        %v4341 = vpack.c.b16 %v4322, %v4321
        %v4342 = vpack.c.b16 %v4324, %v4323
        %v4343 = vpack.c.b16 %v4326, %v4325
        %v4344 = vpack.c.b16 %v4328, %v4327
        %v4345 = vpack.c.b16 %v4330, %v4329
        %v4346 = vpack.c.b16 %v4332, %v4331
        %v4347 = vpack.c.b16 %v4334, %v4333
        %v4348 = vpack.c.b16 %v4336, %v4335
        %v4362 = vsel %vm522, %v4090, 0
        %v4365 = vsel %vm522, %v4092, 0
        %v4368 = vsel %vm522, %v4094, 0
        %4370 = vmatprep.subr.bf16.mxu0 0
        %4371 = vmatpush1.bf16.msra.mxu0 %v4344
        %4372 = vmatprep.subr.bf16.mxu0 0
        %4373 = vmatpush1.bf16.msra.mxu0 %v4343
        %4374 = vmatprep.subr.bf16.mxu0 0
        %4375 = vmatpush1.bf16.msra.mxu0 %v4342
        %4376 = vmatprep.subr.bf16.mxu0 0
        %4377 = vmatpush1.bf16.msra.mxu0 %v4341
        %4378 = vmatprep.subr.bf16.mxu0 0
        %4379 = vmatpush1.bf16.msra.mxu0 %v4340
        %4380 = vmatprep.subr.bf16.mxu0 0
        %4381 = vmatpush1.bf16.msra.mxu0 %v4339
        %4382 = vmatprep.subr.bf16.mxu0 0
        %4383 = vmatpush1.bf16.msra.mxu0 %v4338
        %4384 = vmatprep.subr.bf16.mxu0 0
        %4385 = vmatpush1.bf16.msra.mxu0 %v4337
        %4386 = vmatprep.subr.bf16.mxu0 0
        %4387 = vmatpush2.bf16.msra.mxu0 0
        %4388 = vmatprep.subr.bf16.mxu0 0
        %4389 = vmatpush2.bf16.msra.mxu0 0
        %4390 = vmatprep.subr.bf16.mxu0 0
        %4391 = vmatpush2.bf16.msra.mxu0 0
        %4392 = vmatprep.subr.bf16.mxu0 0
        %4393 = vmatpush2.bf16.msra.mxu0 0
        %4394 = vmatprep.subr.bf16.mxu0 0
        %4395 = vmatpush2.bf16.msra.mxu0 %v4348
        %4396 = vmatprep.subr.bf16.mxu0 0
        %4397 = vmatpush2.bf16.msra.mxu0 %v4347
        %4398 = vmatprep.subr.bf16.mxu0 0
        %4399 = vmatpush2.bf16.msra.mxu0 %v4346
        %4400 = vmatprep.subr.bf16.mxu0 0
        %4401 = vmatpush2.bf16.msra.mxu0 %v4345
        %4402 = vmatprep.mubr.bf16.mxu0 %v4362
        %4403 = vmatmul.mubr.bf16.gmra.mxu0 %v4089
        %v4404 = vpop.f32.mrf.mxu0
        %v4405 = vadd.f32 %v4267, %v4404
        %v4406 = vpop.f32.mrf.mxu0
        %v4407 = vpop.f32.mrf.mxu0
        %v4408 = vadd.f32 %v4270, %v4407
        %v4409 = vpop.f32.mrf.mxu0
        %4410 = vmatprep.mubr.bf16.mxu0 %v4365
        %4411 = vmatmul.mubr.bf16.gmra.mxu0 %v4091
        %v4412 = vpop.f32.mrf.mxu0
        %v4413 = vadd.f32 %v4275, %v4412
        %v4414 = vpop.f32.mrf.mxu0
        %v4415 = vpop.f32.mrf.mxu0
        %v4416 = vadd.f32 %v4278, %v4415
        %v4417 = vpop.f32.mrf.mxu0
        %4418 = vmatprep.mubr.bf16.mxu0 %v4368
        %4419 = vmatmul.mubr.bf16.gmra.mxu0 %v4093
        %v4420 = vpop.f32.mrf.mxu0
        %v4421 = vadd.f32 %v4283, %v4420
        %v4422 = vpop.f32.mrf.mxu0
        %v4423 = vpop.f32.mrf.mxu0
        %v4424 = vadd.f32 %v4286, %v4423
        %v4425 = vpop.f32.mrf.mxu0
        %4426 = vdwg.mxu0
        %v4427 = vld [vmem:[#allocation7 + $0x30] sm:$0xff]
        %v4428 = vld [vmem:[#allocation7 + $0x38] sm:$0xff]
        %v4429 = vld [vmem:[#allocation7 + $0x40] sm:$0xff]
        %v4430 = vld [vmem:[#allocation7 + $0x48] sm:$0xff]
        %v4431 = vld [vmem:[#allocation7 + $0x50] sm:$0xff]
        %v4432 = vld [vmem:[#allocation7 + $0x58] sm:$0xff]
        %v4433 = vld [vmem:[#allocation7 + $0x60] sm:$0xff]
        %v4434 = vld [vmem:[#allocation7 + $0x68] sm:$0xff]
        %v4435 = vld [vmem:[#allocation7 + $0x70] sm:$0xff]
        %v4436 = vld [vmem:[#allocation7 + $0x78] sm:$0xff]
        %v4437 = vld [vmem:[#allocation7 + $0x80] sm:$0xff]
        %v4438 = vld [vmem:[#allocation7 + $0x88] sm:$0xff]
        %v4439 = vpack.c.bf16 %v4429, %v4427
        %v4440 = vpack.c.bf16 %v4430, %v4428
        %v4441 = vpack.c.bf16 %v4433, %v4431
        %v4442 = vpack.c.bf16 %v4434, %v4432
        %v4443 = vpack.c.bf16 %v4437, %v4435
        %v4444 = vpack.c.bf16 %v4438, %v4436
        %v4445 = vld [vmem:[%s7 + $0xc0] sm:$0xf]
        %v4446 = vld [vmem:[%s7 + $0xc4] sm:$0xf]
        %v4447 = vld [vmem:[%s7 + $0xc8] sm:$0xf]
        %v4448 = vld [vmem:[%s7 + $0xcc] sm:$0xf]
        %v4449 = vld [vmem:[%s7 + $0xd0] sm:$0xf]
        %v4450 = vld [vmem:[%s7 + $0xd4] sm:$0xf]
        %v4451 = vld [vmem:[%s7 + $0xd8] sm:$0xf]
        %v4452 = vld [vmem:[%s7 + $0xdc] sm:$0xf]
        %v4453 = vld [vmem:[%s7 + $0xe0] sm:$0xf]
        %v4454 = vld [vmem:[%s7 + $0xe4] sm:$0xf]
        %v4455 = vld [vmem:[%s7 + $0xe8] sm:$0xf]
        %v4456 = vld [vmem:[%s7 + $0xec] sm:$0xf]
        %v4457 = vld [vmem:[%s7 + $0xf0] sm:$0xf]
        %v4458 = vld [vmem:[%s7 + $0xf4] sm:$0xf]
        %v4459 = vld [vmem:[%s7 + $0xf8] sm:$0xf]
        %v4460 = vld [vmem:[%s7 + $0xfc] sm:$0xf]
        %v4461 = vld [vmem:[%s7 + $0x100] sm:$0xf]
        %v4462 = vld [vmem:[%s7 + $0x104] sm:$0xf]
        %v4463 = vld [vmem:[%s7 + $0x108] sm:$0xf]
        %v4464 = vld [vmem:[%s7 + $0x10c] sm:$0xf]
        %v4465 = vld [vmem:[%s7 + $0x110] sm:$0xf]
        %v4466 = vld [vmem:[%s7 + $0x114] sm:$0xf]
        %v4467 = vld [vmem:[%s7 + $0x118] sm:$0xf]
        %v4468 = vld [vmem:[%s7 + $0x11c] sm:$0xf]
        %v4493 = vunpack.c.l.b16 %v4445
        %v4494 = vunpack.c.l.b16 %v4446
        %v4495 = vunpack.c.l.b16 %v4447
        %v4496 = vunpack.c.l.b16 %v4448
        %v4497 = vunpack.c.l.b16 %v4449
        %v4498 = vunpack.c.l.b16 %v4450
        %v4499 = vunpack.c.l.b16 %v4451
        %v4500 = vunpack.c.l.b16 %v4452
        %v4501 = vunpack.c.l.b16 %v4453
        %v4502 = vunpack.c.l.b16 %v4454
        %v4503 = vunpack.c.l.b16 %v4455
        %v4504 = vunpack.c.l.b16 %v4456
        %v4505 = vunpack.c.l.b16 %v4457
        %v4506 = vunpack.c.l.b16 %v4458
        %v4507 = vunpack.c.l.b16 %v4459
        %v4508 = vunpack.c.l.b16 %v4460
        %v4509 = vunpack.c.l.b16 %v4461
        %v4510 = vunpack.c.l.b16 %v4462
        %v4511 = vunpack.c.l.b16 %v4463
        %v4512 = vunpack.c.l.b16 %v4464
        %v4513 = vunpack.c.l.b16 %v4465
        %v4514 = vunpack.c.l.b16 %v4466
        %v4515 = vunpack.c.l.b16 %v4467
        %v4516 = vunpack.c.l.b16 %v4468
        %v4517 = vpack.c.b16 %v4494, %v4493
        %v4518 = vpack.c.b16 %v4496, %v4495
        %v4519 = vpack.c.b16 %v4498, %v4497
        %v4520 = vpack.c.b16 %v4500, %v4499
        %v4521 = vpack.c.b16 %v4502, %v4501
        %v4522 = vpack.c.b16 %v4504, %v4503
        %v4523 = vpack.c.b16 %v4506, %v4505
        %v4524 = vpack.c.b16 %v4508, %v4507
        %v4525 = vpack.c.b16 %v4510, %v4509
        %v4526 = vpack.c.b16 %v4512, %v4511
        %v4527 = vpack.c.b16 %v4514, %v4513
        %v4528 = vpack.c.b16 %v4516, %v4515
        %v4542 = vsel %vm522, %v4440, 0
        %v4545 = vsel %vm522, %v4442, 0
        %v4548 = vsel %vm522, %v4444, 0
        %4550 = vmatprep.subr.bf16.mxu0 0
        %4551 = vmatpush1.bf16.msra.mxu0 %v4524
        %4552 = vmatprep.subr.bf16.mxu0 0
        %4553 = vmatpush1.bf16.msra.mxu0 %v4523
        %4554 = vmatprep.subr.bf16.mxu0 0
        %4555 = vmatpush1.bf16.msra.mxu0 %v4522
        %4556 = vmatprep.subr.bf16.mxu0 0
        %4557 = vmatpush1.bf16.msra.mxu0 %v4521
        %4558 = vmatprep.subr.bf16.mxu0 0
        %4559 = vmatpush1.bf16.msra.mxu0 %v4520
        %4560 = vmatprep.subr.bf16.mxu0 0
        %4561 = vmatpush1.bf16.msra.mxu0 %v4519
        %4562 = vmatprep.subr.bf16.mxu0 0
        %4563 = vmatpush1.bf16.msra.mxu0 %v4518
        %4564 = vmatprep.subr.bf16.mxu0 0
        %4565 = vmatpush1.bf16.msra.mxu0 %v4517
        %4566 = vmatprep.subr.bf16.mxu0 0
        %4567 = vmatpush2.bf16.msra.mxu0 0
        %4568 = vmatprep.subr.bf16.mxu0 0
        %4569 = vmatpush2.bf16.msra.mxu0 0
        %4570 = vmatprep.subr.bf16.mxu0 0
        %4571 = vmatpush2.bf16.msra.mxu0 0
        %4572 = vmatprep.subr.bf16.mxu0 0
        %4573 = vmatpush2.bf16.msra.mxu0 0
        %4574 = vmatprep.subr.bf16.mxu0 0
        %4575 = vmatpush2.bf16.msra.mxu0 %v4528
        %4576 = vmatprep.subr.bf16.mxu0 0
        %4577 = vmatpush2.bf16.msra.mxu0 %v4527
        %4578 = vmatprep.subr.bf16.mxu0 0
        %4579 = vmatpush2.bf16.msra.mxu0 %v4526
        %4580 = vmatprep.subr.bf16.mxu0 0
        %4581 = vmatpush2.bf16.msra.mxu0 %v4525
        %4582 = vmatprep.mubr.bf16.mxu0 %v4542
        %4583 = vmatmul.mubr.bf16.gmra.mxu0 %v4439
        %v4584 = vpop.f32.mrf.mxu0
        %v4585 = vadd.f32 0.0, %v4584
        %v4586 = vpop.f32.mrf.mxu0
        %v4587 = vpop.f32.mrf.mxu0
        %v4588 = vadd.f32 0.0, %v4587
        %v4589 = vpop.f32.mrf.mxu0
        %4590 = vmatprep.mubr.bf16.mxu0 %v4545
        %4591 = vmatmul.mubr.bf16.gmra.mxu0 %v4441
        %v4592 = vpop.f32.mrf.mxu0
        %v4593 = vadd.f32 0.0, %v4592
        %v4594 = vpop.f32.mrf.mxu0
        %v4595 = vpop.f32.mrf.mxu0
        %v4596 = vadd.f32 0.0, %v4595
        %v4597 = vpop.f32.mrf.mxu0
        %4598 = vmatprep.mubr.bf16.mxu0 %v4548
        %4599 = vmatmul.mubr.bf16.gmra.mxu0 %v4443
        %v4600 = vpop.f32.mrf.mxu0
        %v4601 = vadd.f32 0.0, %v4600
        %v4602 = vpop.f32.mrf.mxu0
        %v4603 = vpop.f32.mrf.mxu0
        %v4604 = vadd.f32 0.0, %v4603
        %v4605 = vpop.f32.mrf.mxu0
        %4606 = vdwg.mxu0
        %v4607 = vadd.f32 %v4405, %v4585
        %v4608 = vadd.f32 %v4408, %v4588
        %v4609 = vadd.f32 %v4413, %v4593
        %v4610 = vadd.f32 %v4416, %v4596
        %v4611 = vadd.f32 %v4421, %v4601
        %v4612 = vadd.f32 %v4424, %v4604
        %v4613 = vand.u32 %v1253, 7
        %v4614 = vand.u32 %v1254, 7
        %v4615 = vand.u32 %v1255, 7
        %v4616 = vand.u32 %v1256, 7
        %v4617 = vand.u32 %v1257, 7
        %v4618 = vand.u32 %v1258, 7
        %vm4619 = vcmp.ge.s32.totalorder %v1253, 8
        %vm4620 = vcmp.ge.s32.totalorder %v1254, 8
        %vm4621 = vcmp.ge.s32.totalorder %v1255, 8
        %vm4622 = vcmp.ge.s32.totalorder %v1256, 8
        %vm4623 = vcmp.ge.s32.totalorder %v1257, 8
        %vm4624 = vcmp.ge.s32.totalorder %v1258, 8
        %vm4625 = vcmp.lt.s32.totalorder %v1253, 40
        %vm4626 = vcmp.lt.s32.totalorder %v1254, 40
        %vm4627 = vcmp.lt.s32.totalorder %v1255, 40
        %vm4628 = vcmp.lt.s32.totalorder %v1256, 40
        %vm4629 = vcmp.lt.s32.totalorder %v1257, 40
        %vm4630 = vcmp.lt.s32.totalorder %v1258, 40
        %vm4631 = vmand %vm4619, %vm4625
        %vm4632 = vmand %vm4620, %vm4626
        %vm4633 = vmand %vm4621, %vm4627
        %vm4634 = vmand %vm4622, %vm4628
        %vm4635 = vmand %vm4623, %vm4629
        %vm4636 = vmand %vm4624, %vm4630
        %vm4637 = vcmp.ge.s32.totalorder %v4613, 1
        %vm4638 = vcmp.ge.s32.totalorder %v4614, 1
        %vm4639 = vcmp.ge.s32.totalorder %v4615, 1
        %vm4640 = vcmp.ge.s32.totalorder %v4616, 1
        %vm4641 = vcmp.ge.s32.totalorder %v4617, 1
        %vm4642 = vcmp.ge.s32.totalorder %v4618, 1
        %vm4643 = vmand %vm4631, %vm4637
        %vm4644 = vmand %vm4632, %vm4638
        %vm4645 = vmand %vm4633, %vm4639
        %vm4646 = vmand %vm4634, %vm4640
        %vm4647 = vmand %vm4635, %vm4641
        %vm4648 = vmand %vm4636, %vm4642
        %vm4649 = vcmp.le.s32.totalorder %v4613, 4
        %vm4650 = vcmp.le.s32.totalorder %v4614, 4
        %vm4651 = vcmp.le.s32.totalorder %v4615, 4
        %vm4652 = vcmp.le.s32.totalorder %v4616, 4
        %vm4653 = vcmp.le.s32.totalorder %v4617, 4
        %vm4654 = vcmp.le.s32.totalorder %v4618, 4
        %vm4655 = vmand %vm4643, %vm4649
        %vm4656 = vmand %vm4644, %vm4650
        %vm4657 = vmand %vm4645, %vm4651
        %vm4658 = vmand %vm4646, %vm4652
        %vm4659 = vmand %vm4647, %vm4653
        %vm4660 = vmand %vm4648, %vm4654
        %v4661 = vld [vmem:[%s8] sm:$0x1]
        %v4663 = vlaneseq
        %v4664 = vshrl.u32 %v4663, 7
        %v4665 = vsub.s32 0, %v4664
        %v4666 = vrot.slane %v4661, %v4665
        %v4668 = vmul.f32 %v4607, %v4666
        %v4669 = vmul.f32 %v4608, %v4666
        %v4670 = vmul.f32 %v4609, %v4666
        %v4671 = vmul.f32 %v4610, %v4666
        %v4672 = vmul.f32 %v4611, %v4666
        %v4673 = vmul.f32 %v4612, %v4666
        %v4674 = vld [vmem:[%s9] sm:$0x1]
        %v4676 = vlaneseq
        %v4677 = vshrl.u32 %v4676, 7
        %v4678 = vsub.s32 0, %v4677
        %v4679 = vrot.slane %v4674, %v4678
        %v4681 = vadd.f32 %v4668, %v4679
        %v4682 = vadd.f32 %v4669, %v4679
        %v4683 = vadd.f32 %v4670, %v4679
        %v4684 = vadd.f32 %v4671, %v4679
        %v4685 = vadd.f32 %v4672, %v4679
        %v4686 = vadd.f32 %v4673, %v4679
        %v4687 = vmax.f32 %v4681, 0.0
        %v4688 = vmax.f32 %v4682, 0.0
        %v4689 = vmax.f32 %v4683, 0.0
        %v4690 = vmax.f32 %v4684, 0.0
        %v4691 = vmax.f32 %v4685, 0.0
        %v4692 = vmax.f32 %v4686, 0.0
        %v4693 = vsel %vm4655, 1, 0
        %v4694 = vsel %vm4656, 1, 0
        %v4695 = vsel %vm4657, 1, 0
        %v4696 = vsel %vm4658, 1, 0
        %v4697 = vsel %vm4659, 1, 0
        %v4698 = vsel %vm4660, 1, 0
        %vm4699 = vcmp.eq.s32.totalorder %v4693, 1
        %vm4700 = vcmp.eq.s32.totalorder %v4694, 1
        %vm4701 = vcmp.eq.s32.totalorder %v4695, 1
        %vm4702 = vcmp.eq.s32.totalorder %v4696, 1
        %vm4703 = vcmp.eq.s32.totalorder %v4697, 1
        %vm4704 = vcmp.eq.s32.totalorder %v4698, 1
        %v4705 = vsel %vm4699, %v4687, 0.0
        %v4706 = vsel %vm4700, %v4688, 0.0
        %v4707 = vsel %vm4701, %v4689, 0.0
        %v4708 = vsel %vm4702, %v4690, 0.0
        %v4709 = vsel %vm4703, %v4691, 0.0
        %v4710 = vsel %vm4704, %v4692, 0.0
        %4711 = vst [vmem:[#allocation8 + $0x10] sm:$0xff] %v4705
        %4712 = vst [vmem:[#allocation8 + $0x18] sm:$0xff] %v4706
        %4713 = vst [vmem:[#allocation8 + $0x20] sm:$0xff] %v4707
        %4714 = vst [vmem:[#allocation8 + $0x28] sm:$0xff] %v4708
        %4715 = vst [vmem:[#allocation8 + $0x30] sm:$0xff] %v4709
        %4716 = vst [vmem:[#allocation8 + $0x38] sm:$0xff] %v4710
        %s4717 = scalar_lea.vmem [#allocation8], 16
        %v4718 = vld [vmem:[%s4717] ss:$2 sm:$0x3]
        %s4719 = scalar_lea.vmem [#allocation8], 17
        %v4720 = vld [vmem:[%s4719] ss:$2 sm:$0x3]
        %v4721 = vmax.f32 %v4718, %v4720
        %s4722 = scalar_lea.vmem [#allocation8], 18
        %v4723 = vld [vmem:[%s4722] ss:$2 sm:$0x3]
        %v4724 = vmax.f32 %v4721, %v4723
        %s4725 = scalar_lea.vmem [#allocation8], 24
        %v4726 = vld [vmem:[%s4725] ss:$2 sm:$0x3]
        %v4727 = vmax.f32 %v4724, %v4726
        %s4728 = scalar_lea.vmem [#allocation8], 25
        %v4729 = vld [vmem:[%s4728] ss:$2 sm:$0x3]
        %v4730 = vmax.f32 %v4727, %v4729
        %s4731 = scalar_lea.vmem [#allocation8], 26
        %v4732 = vld [vmem:[%s4731] ss:$2 sm:$0x3]
        %v4733 = vmax.f32 %v4730, %v4732
        %s4734 = scalar_lea.vmem [#allocation8], 32
        %v4735 = vld [vmem:[%s4734] ss:$2 sm:$0x3]
        %v4736 = vmax.f32 %v4733, %v4735
        %s4737 = scalar_lea.vmem [#allocation8], 33
        %v4738 = vld [vmem:[%s4737] ss:$2 sm:$0x3]
        %v4739 = vmax.f32 %v4736, %v4738
        %s4740 = scalar_lea.vmem [#allocation8], 34
        %v4741 = vld [vmem:[%s4740] ss:$2 sm:$0x3]
        %v4742 = vmax.f32 %v4739, %v4741
        %4743 = vst [vmem:[#allocation9 + $0x19] sm:$0x3] %v4742
        %v4744 = vld [vmem:[%s4734] ss:$2 sm:$0x3]
        %v4745 = vld [vmem:[%s4737] ss:$2 sm:$0x3]
        %v4746 = vmax.f32 %v4744, %v4745
        %v4747 = vld [vmem:[%s4740] ss:$2 sm:$0x3]
        %v4748 = vmax.f32 %v4746, %v4747
        %s4749 = scalar_lea.vmem [#allocation8], 40
        %v4750 = vld [vmem:[%s4749] ss:$2 sm:$0x3]
        %v4751 = vmax.f32 %v4748, %v4750
        %s4752 = scalar_lea.vmem [#allocation8], 41
        %v4753 = vld [vmem:[%s4752] ss:$2 sm:$0x3]
        %v4754 = vmax.f32 %v4751, %v4753
        %s4755 = scalar_lea.vmem [#allocation8], 42
        %v4756 = vld [vmem:[%s4755] ss:$2 sm:$0x3]
        %v4757 = vmax.f32 %v4754, %v4756
        %s4758 = scalar_lea.vmem [#allocation8], 48
        %v4759 = vld [vmem:[%s4758] ss:$2 sm:$0x3]
        %v4760 = vmax.f32 %v4757, %v4759
        %s4761 = scalar_lea.vmem [#allocation8], 49
        %v4762 = vld [vmem:[%s4761] ss:$2 sm:$0x3]
        %v4763 = vmax.f32 %v4760, %v4762
        %s4764 = scalar_lea.vmem [#allocation8], 50
        %v4765 = vld [vmem:[%s4764] ss:$2 sm:$0x3]
        %v4766 = vmax.f32 %v4763, %v4765
        %4767 = vst [vmem:[#allocation9 + $0x21] sm:$0x3] %v4766
        %v4768 = vld [vmem:[#allocation9 + $0x7] sm:$0xff]
        %v4769 = vld [vmem:[#allocation9 + $0xf] sm:$0xff]
        %v4770 = vld [vmem:[#allocation9 + $0x17] sm:$0xff]
        %v4771 = vld [vmem:[#allocation9 + $0x1f] sm:$0xff]
        %v4772 = vld [vmem:[#allocation9 + $0x27] sm:$0xff]
        %v4773 = vld [vmem:[#allocation9 + $0x2f] sm:$0xff]
        %4774 = vst [vmem:[#allocation10 + $0x18] sm:$0xff] %v4768
        %4775 = vst [vmem:[#allocation10 + $0x30] sm:$0xff] %v4769
        %4776 = vst [vmem:[#allocation10 + $0x48] sm:$0xff] %v4770
        %4777 = vst [vmem:[#allocation10 + $0x60] sm:$0xff] %v4771
        %4778 = vst [vmem:[#allocation10 + $0x78] sm:$0xff] %v4772
        %4779 = vst [vmem:[#allocation10 + $0x90] sm:$0xff] %v4773
        %v4780 = vld [vmem:[#allocation9 + $0x8] sm:$0xff]
        %v4781 = vld [vmem:[#allocation9 + $0x10] sm:$0xff]
        %v4782 = vld [vmem:[#allocation9 + $0x18] sm:$0xff]
        %v4783 = vld [vmem:[#allocation9 + $0x20] sm:$0xff]
        %v4784 = vld [vmem:[#allocation9 + $0x28] sm:$0xff]
        %v4785 = vld [vmem:[#allocation9 + $0x30] sm:$0xff]
        %4786 = vst [vmem:[#allocation10 + $0x20] sm:$0xff] %v4780
        %4787 = vst [vmem:[#allocation10 + $0x38] sm:$0xff] %v4781
        %4788 = vst [vmem:[#allocation10 + $0x50] sm:$0xff] %v4782
        %4789 = vst [vmem:[#allocation10 + $0x68] sm:$0xff] %v4783
        %4790 = vst [vmem:[#allocation10 + $0x80] sm:$0xff] %v4784
        %4791 = vst [vmem:[#allocation10 + $0x98] sm:$0xff] %v4785
        %v4792 = vld [vmem:[#allocation9 + $0x9] sm:$0xff]
        %v4793 = vld [vmem:[#allocation9 + $0x11] sm:$0xff]
        %v4794 = vld [vmem:[#allocation9 + $0x19] sm:$0xff]
        %v4795 = vld [vmem:[#allocation9 + $0x21] sm:$0xff]
        %v4796 = vld [vmem:[#allocation9 + $0x29] sm:$0xff]
        %v4797 = vld [vmem:[#allocation9 + $0x31] sm:$0xff]
        %4798 = vst [vmem:[#allocation10 + $0x28] sm:$0xff] %v4792
        %4799 = vst [vmem:[#allocation10 + $0x40] sm:$0xff] %v4793
        %4800 = vst [vmem:[#allocation10 + $0x58] sm:$0xff] %v4794
        %4801 = vst [vmem:[#allocation10 + $0x70] sm:$0xff] %v4795
        %4802 = vst [vmem:[#allocation10 + $0x88] sm:$0xff] %v4796
        %4803 = vst [vmem:[#allocation10 + $0xa0] sm:$0xff] %v4797
        %v4804 = vld [vmem:[#allocation10 + $0x18] sm:$0xff]
        %v4805 = vld [vmem:[#allocation10 + $0x20] sm:$0xff]
        %v4806 = vld [vmem:[#allocation10 + $0x28] sm:$0xff]
        %v4807 = vld [vmem:[#allocation10 + $0x30] sm:$0xff]
        %v4808 = vld [vmem:[#allocation10 + $0x38] sm:$0xff]
        %v4809 = vld [vmem:[#allocation10 + $0x40] sm:$0xff]
        %v4810 = vld [vmem:[#allocation10 + $0x48] sm:$0xff]
        %v4811 = vld [vmem:[#allocation10 + $0x50] sm:$0xff]
        %v4812 = vld [vmem:[#allocation10 + $0x58] sm:$0xff]
        %v4813 = vld [vmem:[#allocation10 + $0x60] sm:$0xff]
        %v4814 = vld [vmem:[#allocation10 + $0x68] sm:$0xff]
        %v4815 = vld [vmem:[#allocation10 + $0x70] sm:$0xff]
        %v4816 = vpack.c.bf16 %v4807, %v4804
        %v4817 = vpack.c.bf16 %v4808, %v4805
        %v4818 = vpack.c.bf16 %v4809, %v4806
        %v4819 = vpack.c.bf16 %v4813, %v4810
        %v4820 = vpack.c.bf16 %v4814, %v4811
        %v4821 = vpack.c.bf16 %v4815, %v4812
        %v4822 = vld [vmem:[%s10] sm:$0xff]
        %v4823 = vld [vmem:[%s10 + $0x8] sm:$0xff]
        %v4824 = vld [vmem:[%s10 + $0x10] sm:$0xff]
        %v4825 = vld [vmem:[%s10 + $0x18] sm:$0xff]
        %v4826 = vld [vmem:[%s10 + $0x20] sm:$0xff]
        %v4827 = vld [vmem:[%s10 + $0x28] sm:$0xff]
        %v4828 = vld [vmem:[%s10 + $0x30] sm:$0xff]
        %v4829 = vld [vmem:[%s10 + $0x38] sm:$0xff]
        %v4830 = vld [vmem:[%s10 + $0x40] sm:$0xff]
        %v4831 = vld [vmem:[%s10 + $0x48] sm:$0xff]
        %v4832 = vld [vmem:[%s10 + $0x50] sm:$0xff]
        %v4833 = vld [vmem:[%s10 + $0x58] sm:$0xff]
        %v4834 = vld [vmem:[%s10 + $0x60] sm:$0xff]
        %v4835 = vld [vmem:[%s10 + $0x68] sm:$0xff]
        %v4836 = vld [vmem:[%s10 + $0x70] sm:$0xff]
        %v4837 = vld [vmem:[%s10 + $0x78] sm:$0xff]
        %v4838 = vld [vmem:[%s10 + $0x80] sm:$0xff]
        %v4839 = vld [vmem:[%s10 + $0x88] sm:$0xff]
        %v4840 = vld [vmem:[%s10 + $0x90] sm:$0xff]
        %v4841 = vld [vmem:[%s10 + $0x98] sm:$0xff]
        %v4842 = vld [vmem:[%s10 + $0xa0] sm:$0xff]
        %v4843 = vld [vmem:[%s10 + $0xa8] sm:$0xff]
        %v4844 = vld [vmem:[%s10 + $0xb0] sm:$0xff]
        %v4845 = vld [vmem:[%s10 + $0xb8] sm:$0xff]
        %v4846 = vld [vmem:[%s10 + $0xc0] sm:$0xff]
        %v4847 = vld [vmem:[%s10 + $0xc8] sm:$0xff]
        %v4848 = vld [vmem:[%s10 + $0xd0] sm:$0xff]
        %v4849 = vld [vmem:[%s10 + $0xd8] sm:$0xff]
        %v4850 = vld [vmem:[%s10 + $0xe0] sm:$0xff]
        %v4851 = vld [vmem:[%s10 + $0xe8] sm:$0xff]
        %v4852 = vld [vmem:[%s10 + $0xf0] sm:$0xff]
        %v4853 = vld [vmem:[%s10 + $0xf8] sm:$0xff]
        %v4854 = vld [vmem:[%s10 + $0x100] sm:$0xff]
        %v4855 = vld [vmem:[%s10 + $0x108] sm:$0xff]
        %v4856 = vld [vmem:[%s10 + $0x110] sm:$0xff]
        %v4857 = vld [vmem:[%s10 + $0x118] sm:$0xff]
        %v4858 = vld [vmem:[%s10 + $0x120] sm:$0xff]
        %v4859 = vld [vmem:[%s10 + $0x128] sm:$0xff]
        %v4860 = vld [vmem:[%s10 + $0x130] sm:$0xff]
        %v4861 = vld [vmem:[%s10 + $0x138] sm:$0xff]
        %v4862 = vld [vmem:[%s10 + $0x140] sm:$0xff]
        %v4863 = vld [vmem:[%s10 + $0x148] sm:$0xff]
        %v4864 = vld [vmem:[%s10 + $0x150] sm:$0xff]
        %v4865 = vld [vmem:[%s10 + $0x158] sm:$0xff]
        %v4866 = vld [vmem:[%s10 + $0x160] sm:$0xff]
        %v4867 = vld [vmem:[%s10 + $0x168] sm:$0xff]
        %v4868 = vld [vmem:[%s10 + $0x170] sm:$0xff]
        %v4869 = vld [vmem:[%s10 + $0x178] sm:$0xff]
        %v4870 = vld [vmem:[#allocation10 + $0x78] sm:$0xff]
        %v4871 = vld [vmem:[#allocation10 + $0x80] sm:$0xff]
        %v4872 = vld [vmem:[#allocation10 + $0x88] sm:$0xff]
        %v4873 = vpack.c.bf16 %v4810, %v4807
        %v4874 = vpack.c.bf16 %v4811, %v4808
        %v4875 = vpack.c.bf16 %v4812, %v4809
        %v4876 = vpack.c.bf16 %v4870, %v4813
        %v4877 = vpack.c.bf16 %v4871, %v4814
        %v4878 = vpack.c.bf16 %v4872, %v4815
        %v4879 = vld [vmem:[%s10 + $0x180] sm:$0xff]
        %v4880 = vld [vmem:[%s10 + $0x188] sm:$0xff]
        %v4881 = vld [vmem:[%s10 + $0x190] sm:$0xff]
        %v4882 = vld [vmem:[%s10 + $0x198] sm:$0xff]
        %v4883 = vld [vmem:[%s10 + $0x1a0] sm:$0xff]
        %v4884 = vld [vmem:[%s10 + $0x1a8] sm:$0xff]
        %v4885 = vld [vmem:[%s10 + $0x1b0] sm:$0xff]
        %v4886 = vld [vmem:[%s10 + $0x1b8] sm:$0xff]
        %v4887 = vld [vmem:[%s10 + $0x1c0] sm:$0xff]
        %v4888 = vld [vmem:[%s10 + $0x1c8] sm:$0xff]
        %v4889 = vld [vmem:[%s10 + $0x1d0] sm:$0xff]
        %v4890 = vld [vmem:[%s10 + $0x1d8] sm:$0xff]
        %v4891 = vld [vmem:[%s10 + $0x1e0] sm:$0xff]
        %v4892 = vld [vmem:[%s10 + $0x1e8] sm:$0xff]
        %v4893 = vld [vmem:[%s10 + $0x1f0] sm:$0xff]
        %v4894 = vld [vmem:[%s10 + $0x1f8] sm:$0xff]
        %v4895 = vld [vmem:[%s10 + $0x200] sm:$0xff]
        %v4896 = vld [vmem:[%s10 + $0x208] sm:$0xff]
        %v4897 = vld [vmem:[%s10 + $0x210] sm:$0xff]
        %v4898 = vld [vmem:[%s10 + $0x218] sm:$0xff]
        %v4899 = vld [vmem:[%s10 + $0x220] sm:$0xff]
        %v4900 = vld [vmem:[%s10 + $0x228] sm:$0xff]
        %v4901 = vld [vmem:[%s10 + $0x230] sm:$0xff]
        %v4902 = vld [vmem:[%s10 + $0x238] sm:$0xff]
        %v4903 = vld [vmem:[%s10 + $0x240] sm:$0xff]
        %v4904 = vld [vmem:[%s10 + $0x248] sm:$0xff]
        %v4905 = vld [vmem:[%s10 + $0x250] sm:$0xff]
        %v4906 = vld [vmem:[%s10 + $0x258] sm:$0xff]
        %v4907 = vld [vmem:[%s10 + $0x260] sm:$0xff]
        %v4908 = vld [vmem:[%s10 + $0x268] sm:$0xff]
        %v4909 = vld [vmem:[%s10 + $0x270] sm:$0xff]
        %v4910 = vld [vmem:[%s10 + $0x278] sm:$0xff]
        %v4911 = vld [vmem:[%s10 + $0x280] sm:$0xff]
        %v4912 = vld [vmem:[%s10 + $0x288] sm:$0xff]
        %v4913 = vld [vmem:[%s10 + $0x290] sm:$0xff]
        %v4914 = vld [vmem:[%s10 + $0x298] sm:$0xff]
        %v4915 = vld [vmem:[%s10 + $0x2a0] sm:$0xff]
        %v4916 = vld [vmem:[%s10 + $0x2a8] sm:$0xff]
        %v4917 = vld [vmem:[%s10 + $0x2b0] sm:$0xff]
        %v4918 = vld [vmem:[%s10 + $0x2b8] sm:$0xff]
        %v4919 = vld [vmem:[%s10 + $0x2c0] sm:$0xff]
        %v4920 = vld [vmem:[%s10 + $0x2c8] sm:$0xff]
        %v4921 = vld [vmem:[%s10 + $0x2d0] sm:$0xff]
        %v4922 = vld [vmem:[%s10 + $0x2d8] sm:$0xff]
        %v4923 = vld [vmem:[%s10 + $0x2e0] sm:$0xff]
        %v4924 = vld [vmem:[%s10 + $0x2e8] sm:$0xff]
        %v4925 = vld [vmem:[%s10 + $0x2f0] sm:$0xff]
        %v4926 = vld [vmem:[%s10 + $0x2f8] sm:$0xff]
        %v4975 = vunpack.c.l.b16 %v4879
        %v4976 = vunpack.c.h.b16 %v4879
        %v4977 = vunpack.c.l.b16 %v4880
        %v4978 = vunpack.c.h.b16 %v4880
        %v4979 = vunpack.c.l.b16 %v4881
        %v4980 = vunpack.c.h.b16 %v4881
        %v4981 = vunpack.c.l.b16 %v4882
        %v4982 = vunpack.c.h.b16 %v4882
        %v4983 = vunpack.c.l.b16 %v4883
        %v4984 = vunpack.c.h.b16 %v4883
        %v4985 = vunpack.c.l.b16 %v4884
        %v4986 = vunpack.c.h.b16 %v4884
        %v4987 = vunpack.c.l.b16 %v4885
        %v4988 = vunpack.c.h.b16 %v4885
        %v4989 = vunpack.c.l.b16 %v4886
        %v4990 = vunpack.c.h.b16 %v4886
        %v4991 = vunpack.c.l.b16 %v4887
        %v4992 = vunpack.c.h.b16 %v4887
        %v4993 = vunpack.c.l.b16 %v4888
        %v4994 = vunpack.c.h.b16 %v4888
        %v4995 = vunpack.c.l.b16 %v4889
        %v4996 = vunpack.c.h.b16 %v4889
        %v4997 = vunpack.c.l.b16 %v4890
        %v4998 = vunpack.c.h.b16 %v4890
        %v4999 = vunpack.c.l.b16 %v4891
        %v5000 = vunpack.c.h.b16 %v4891
        %v5001 = vunpack.c.l.b16 %v4892
        %v5002 = vunpack.c.h.b16 %v4892
        %v5003 = vunpack.c.l.b16 %v4893
        %v5004 = vunpack.c.h.b16 %v4893
        %v5005 = vunpack.c.l.b16 %v4894
        %v5006 = vunpack.c.h.b16 %v4894
        %v5007 = vunpack.c.l.b16 %v4895
        %v5008 = vunpack.c.h.b16 %v4895
        %v5009 = vunpack.c.l.b16 %v4896
        %v5010 = vunpack.c.h.b16 %v4896
        %v5011 = vunpack.c.l.b16 %v4897
        %v5012 = vunpack.c.h.b16 %v4897
        %v5013 = vunpack.c.l.b16 %v4898
        %v5014 = vunpack.c.h.b16 %v4898
        %v5015 = vunpack.c.l.b16 %v4899
        %v5016 = vunpack.c.h.b16 %v4899
        %v5017 = vunpack.c.l.b16 %v4900
        %v5018 = vunpack.c.h.b16 %v4900
        %v5019 = vunpack.c.l.b16 %v4901
        %v5020 = vunpack.c.h.b16 %v4901
        %v5021 = vunpack.c.l.b16 %v4902
        %v5022 = vunpack.c.h.b16 %v4902
        %v5023 = vunpack.c.l.b16 %v4903
        %v5024 = vunpack.c.h.b16 %v4903
        %v5025 = vunpack.c.l.b16 %v4904
        %v5026 = vunpack.c.h.b16 %v4904
        %v5027 = vunpack.c.l.b16 %v4905
        %v5028 = vunpack.c.h.b16 %v4905
        %v5029 = vunpack.c.l.b16 %v4906
        %v5030 = vunpack.c.h.b16 %v4906
        %v5031 = vunpack.c.l.b16 %v4907
        %v5032 = vunpack.c.h.b16 %v4907
        %v5033 = vunpack.c.l.b16 %v4908
        %v5034 = vunpack.c.h.b16 %v4908
        %v5035 = vunpack.c.l.b16 %v4909
        %v5036 = vunpack.c.h.b16 %v4909
        %v5037 = vunpack.c.l.b16 %v4910
        %v5038 = vunpack.c.h.b16 %v4910
        %v5039 = vunpack.c.l.b16 %v4911
        %v5040 = vunpack.c.h.b16 %v4911
        %v5041 = vunpack.c.l.b16 %v4912
        %v5042 = vunpack.c.h.b16 %v4912
        %v5043 = vunpack.c.l.b16 %v4913
        %v5044 = vunpack.c.h.b16 %v4913
        %v5045 = vunpack.c.l.b16 %v4914
        %v5046 = vunpack.c.h.b16 %v4914
        %v5047 = vunpack.c.l.b16 %v4915
        %v5048 = vunpack.c.h.b16 %v4915
        %v5049 = vunpack.c.l.b16 %v4916
        %v5050 = vunpack.c.h.b16 %v4916
        %v5051 = vunpack.c.l.b16 %v4917
        %v5052 = vunpack.c.h.b16 %v4917
        %v5053 = vunpack.c.l.b16 %v4918
        %v5054 = vunpack.c.h.b16 %v4918
        %v5055 = vunpack.c.l.b16 %v4919
        %v5056 = vunpack.c.h.b16 %v4919
        %v5057 = vunpack.c.l.b16 %v4920
        %v5058 = vunpack.c.h.b16 %v4920
        %v5059 = vunpack.c.l.b16 %v4921
        %v5060 = vunpack.c.h.b16 %v4921
        %v5061 = vunpack.c.l.b16 %v4922
        %v5062 = vunpack.c.h.b16 %v4922
        %v5063 = vunpack.c.l.b16 %v4923
        %v5064 = vunpack.c.h.b16 %v4923
        %v5065 = vunpack.c.l.b16 %v4924
        %v5066 = vunpack.c.h.b16 %v4924
        %v5067 = vunpack.c.l.b16 %v4925
        %v5068 = vunpack.c.h.b16 %v4925
        %v5069 = vunpack.c.l.b16 %v4926
        %v5070 = vunpack.c.h.b16 %v4926
        %v5071 = vpack.c.b16 %v4977, %v4975
        %v5072 = vpack.c.b16 %v4978, %v4976
        %v5073 = vpack.c.b16 %v4981, %v4979
        %v5074 = vpack.c.b16 %v4982, %v4980
        %v5075 = vpack.c.b16 %v4985, %v4983
        %v5076 = vpack.c.b16 %v4986, %v4984
        %v5077 = vpack.c.b16 %v4989, %v4987
        %v5078 = vpack.c.b16 %v4990, %v4988
        %v5079 = vpack.c.b16 %v4993, %v4991
        %v5080 = vpack.c.b16 %v4994, %v4992
        %v5081 = vpack.c.b16 %v4997, %v4995
        %v5082 = vpack.c.b16 %v4998, %v4996
        %v5083 = vpack.c.b16 %v5001, %v4999
        %v5084 = vpack.c.b16 %v5002, %v5000
        %v5085 = vpack.c.b16 %v5005, %v5003
        %v5086 = vpack.c.b16 %v5006, %v5004
        %v5087 = vpack.c.b16 %v5009, %v5007
        %v5088 = vpack.c.b16 %v5010, %v5008
        %v5089 = vpack.c.b16 %v5013, %v5011
        %v5090 = vpack.c.b16 %v5014, %v5012
        %v5091 = vpack.c.b16 %v5017, %v5015
        %v5092 = vpack.c.b16 %v5018, %v5016
        %v5093 = vpack.c.b16 %v5021, %v5019
        %v5094 = vpack.c.b16 %v5022, %v5020
        %v5095 = vpack.c.b16 %v5025, %v5023
        %v5096 = vpack.c.b16 %v5026, %v5024
        %v5097 = vpack.c.b16 %v5029, %v5027
        %v5098 = vpack.c.b16 %v5030, %v5028
        %v5099 = vpack.c.b16 %v5033, %v5031
        %v5100 = vpack.c.b16 %v5034, %v5032
        %v5101 = vpack.c.b16 %v5037, %v5035
        %v5102 = vpack.c.b16 %v5038, %v5036
        %v5103 = vpack.c.b16 %v5041, %v5039
        %v5104 = vpack.c.b16 %v5042, %v5040
        %v5105 = vpack.c.b16 %v5045, %v5043
        %v5106 = vpack.c.b16 %v5046, %v5044
        %v5107 = vpack.c.b16 %v5049, %v5047
        %v5108 = vpack.c.b16 %v5050, %v5048
        %v5109 = vpack.c.b16 %v5053, %v5051
        %v5110 = vpack.c.b16 %v5054, %v5052
        %v5111 = vpack.c.b16 %v5057, %v5055
        %v5112 = vpack.c.b16 %v5058, %v5056
        %v5113 = vpack.c.b16 %v5061, %v5059
        %v5114 = vpack.c.b16 %v5062, %v5060
        %v5115 = vpack.c.b16 %v5065, %v5063
        %v5116 = vpack.c.b16 %v5066, %v5064
        %v5117 = vpack.c.b16 %v5069, %v5067
        %v5118 = vpack.c.b16 %v5070, %v5068
        %5167 = vmatprep.subr.bf16.mxu0 %v5086
        %5168 = vmatpush1.bf16.msra.mxu0 %v5085
        %5169 = vmatprep.subr.bf16.mxu0 %v5084
        %5170 = vmatpush1.bf16.msra.mxu0 %v5083
        %5171 = vmatprep.subr.bf16.mxu0 %v5082
        %5172 = vmatpush1.bf16.msra.mxu0 %v5081
        %5173 = vmatprep.subr.bf16.mxu0 %v5080
        %5174 = vmatpush1.bf16.msra.mxu0 %v5079
        %5175 = vmatprep.subr.bf16.mxu0 %v5078
        %5176 = vmatpush1.bf16.msra.mxu0 %v5077
        %5177 = vmatprep.subr.bf16.mxu0 %v5076
        %5178 = vmatpush1.bf16.msra.mxu0 %v5075
        %5179 = vmatprep.subr.bf16.mxu0 %v5074
        %5180 = vmatpush1.bf16.msra.mxu0 %v5073
        %5181 = vmatprep.subr.bf16.mxu0 %v5072
        %5182 = vmatpush1.bf16.msra.mxu0 %v5071
        %5183 = vmatprep.subr.bf16.mxu0 %v5102
        %5184 = vmatpush2.bf16.msra.mxu0 %v5101
        %5185 = vmatprep.subr.bf16.mxu0 %v5100
        %5186 = vmatpush2.bf16.msra.mxu0 %v5099
        %5187 = vmatprep.subr.bf16.mxu0 %v5098
        %5188 = vmatpush2.bf16.msra.mxu0 %v5097
        %5189 = vmatprep.subr.bf16.mxu0 %v5096
        %5190 = vmatpush2.bf16.msra.mxu0 %v5095
        %5191 = vmatprep.subr.bf16.mxu0 %v5094
        %5192 = vmatpush2.bf16.msra.mxu0 %v5093
        %5193 = vmatprep.subr.bf16.mxu0 %v5092
        %5194 = vmatpush2.bf16.msra.mxu0 %v5091
        %5195 = vmatprep.subr.bf16.mxu0 %v5090
        %5196 = vmatpush2.bf16.msra.mxu0 %v5089
        %5197 = vmatprep.subr.bf16.mxu0 %v5088
        %5198 = vmatpush2.bf16.msra.mxu0 %v5087
        %5199 = vmatprep.mubr.bf16.mxu0 %v4874
        %5200 = vmatmul.mubr.bf16.gmra.mxu0 %v4873
        %v5201 = vpop.f32.mrf.mxu0
        %v5202 = vadd.f32 0.0, %v5201
        %v5203 = vpop.f32.mrf.mxu0
        %v5204 = vadd.f32 0.0, %v5203
        %v5205 = vpop.f32.mrf.mxu0
        %v5206 = vadd.f32 0.0, %v5205
        %v5207 = vpop.f32.mrf.mxu0
        %v5208 = vadd.f32 0.0, %v5207
        %5209 = vmatprep.mubr.bf16.mxu0 %v4877
        %5210 = vmatmul.mubr.bf16.gmra.mxu0 %v4876
        %v5211 = vpop.f32.mrf.mxu0
        %v5212 = vadd.f32 0.0, %v5211
        %v5213 = vpop.f32.mrf.mxu0
        %v5214 = vadd.f32 0.0, %v5213
        %v5215 = vpop.f32.mrf.mxu0
        %v5216 = vadd.f32 0.0, %v5215
        %v5217 = vpop.f32.mrf.mxu0
        %v5218 = vadd.f32 0.0, %v5217
        %5219 = vdwg.mxu0
        %5220 = vmatprep.subr.bf16.mxu0 %v5118
        %5221 = vmatpush1.bf16.msra.mxu0 %v5117
        %5222 = vmatprep.subr.bf16.mxu0 %v5116
        %5223 = vmatpush1.bf16.msra.mxu0 %v5115
        %5224 = vmatprep.subr.bf16.mxu0 %v5114
        %5225 = vmatpush1.bf16.msra.mxu0 %v5113
        %5226 = vmatprep.subr.bf16.mxu0 %v5112
        %5227 = vmatpush1.bf16.msra.mxu0 %v5111
        %5228 = vmatprep.subr.bf16.mxu0 %v5110
        %5229 = vmatpush1.bf16.msra.mxu0 %v5109
        %5230 = vmatprep.subr.bf16.mxu0 %v5108
        %5231 = vmatpush1.bf16.msra.mxu0 %v5107
        %5232 = vmatprep.subr.bf16.mxu0 %v5106
        %5233 = vmatpush1.bf16.msra.mxu0 %v5105
        %5234 = vmatprep.subr.bf16.mxu0 %v5104
        %5235 = vmatpush1.bf16.msra.mxu0 %v5103
        %5236 = vmatprep.subr.bf16.mxu0 0
        %5237 = vmatpush2.bf16.msra.mxu0 0
        %5238 = vmatprep.subr.bf16.mxu0 0
        %5239 = vmatpush2.bf16.msra.mxu0 0
        %5240 = vmatprep.subr.bf16.mxu0 0
        %5241 = vmatpush2.bf16.msra.mxu0 0
        %5242 = vmatprep.subr.bf16.mxu0 0
        %5243 = vmatpush2.bf16.msra.mxu0 0
        %5244 = vmatprep.subr.bf16.mxu0 0
        %5245 = vmatpush2.bf16.msra.mxu0 0
        %5246 = vmatprep.subr.bf16.mxu0 0
        %5247 = vmatpush2.bf16.msra.mxu0 0
        %5248 = vmatprep.subr.bf16.mxu0 0
        %5249 = vmatpush2.bf16.msra.mxu0 0
        %5250 = vmatprep.subr.bf16.mxu0 0
        %5251 = vmatpush2.bf16.msra.mxu0 0
        %5252 = vmatprep.mubr.bf16.mxu0 0
        %5253 = vmatmul.mubr.bf16.gmra.mxu0 %v4875
        %v5254 = vpop.f32.mrf.mxu0
        %v5255 = vadd.f32 %v5202, %v5254
        %v5256 = vpop.f32.mrf.mxu0
        %v5257 = vadd.f32 %v5204, %v5256
        %v5258 = vpop.f32.mrf.mxu0
        %v5259 = vadd.f32 %v5206, %v5258
        %v5260 = vpop.f32.mrf.mxu0
        %v5261 = vadd.f32 %v5208, %v5260
        %5262 = vmatprep.mubr.bf16.mxu0 0
        %5263 = vmatmul.mubr.bf16.gmra.mxu0 %v4878
        %v5264 = vpop.f32.mrf.mxu0
        %v5265 = vadd.f32 %v5212, %v5264
        %v5266 = vpop.f32.mrf.mxu0
        %v5267 = vadd.f32 %v5214, %v5266
        %v5268 = vpop.f32.mrf.mxu0
        %v5269 = vadd.f32 %v5216, %v5268
        %v5270 = vpop.f32.mrf.mxu0
        %v5271 = vadd.f32 %v5218, %v5270
        %5272 = vdwg.mxu0
        %v5321 = vunpack.c.l.b16 %v4822
        %v5322 = vunpack.c.h.b16 %v4822
        %v5323 = vunpack.c.l.b16 %v4823
        %v5324 = vunpack.c.h.b16 %v4823
        %v5325 = vunpack.c.l.b16 %v4824
        %v5326 = vunpack.c.h.b16 %v4824
        %v5327 = vunpack.c.l.b16 %v4825
        %v5328 = vunpack.c.h.b16 %v4825
        %v5329 = vunpack.c.l.b16 %v4826
        %v5330 = vunpack.c.h.b16 %v4826
        %v5331 = vunpack.c.l.b16 %v4827
        %v5332 = vunpack.c.h.b16 %v4827
        %v5333 = vunpack.c.l.b16 %v4828
        %v5334 = vunpack.c.h.b16 %v4828
        %v5335 = vunpack.c.l.b16 %v4829
        %v5336 = vunpack.c.h.b16 %v4829
        %v5337 = vunpack.c.l.b16 %v4830
        %v5338 = vunpack.c.h.b16 %v4830
        %v5339 = vunpack.c.l.b16 %v4831
        %v5340 = vunpack.c.h.b16 %v4831
        %v5341 = vunpack.c.l.b16 %v4832
        %v5342 = vunpack.c.h.b16 %v4832
        %v5343 = vunpack.c.l.b16 %v4833
        %v5344 = vunpack.c.h.b16 %v4833
        %v5345 = vunpack.c.l.b16 %v4834
        %v5346 = vunpack.c.h.b16 %v4834
        %v5347 = vunpack.c.l.b16 %v4835
        %v5348 = vunpack.c.h.b16 %v4835
        %v5349 = vunpack.c.l.b16 %v4836
        %v5350 = vunpack.c.h.b16 %v4836
        %v5351 = vunpack.c.l.b16 %v4837
        %v5352 = vunpack.c.h.b16 %v4837
        %v5353 = vunpack.c.l.b16 %v4838
        %v5354 = vunpack.c.h.b16 %v4838
        %v5355 = vunpack.c.l.b16 %v4839
        %v5356 = vunpack.c.h.b16 %v4839
        %v5357 = vunpack.c.l.b16 %v4840
        %v5358 = vunpack.c.h.b16 %v4840
        %v5359 = vunpack.c.l.b16 %v4841
        %v5360 = vunpack.c.h.b16 %v4841
        %v5361 = vunpack.c.l.b16 %v4842
        %v5362 = vunpack.c.h.b16 %v4842
        %v5363 = vunpack.c.l.b16 %v4843
        %v5364 = vunpack.c.h.b16 %v4843
        %v5365 = vunpack.c.l.b16 %v4844
        %v5366 = vunpack.c.h.b16 %v4844
        %v5367 = vunpack.c.l.b16 %v4845
        %v5368 = vunpack.c.h.b16 %v4845
        %v5369 = vunpack.c.l.b16 %v4846
        %v5370 = vunpack.c.h.b16 %v4846
        %v5371 = vunpack.c.l.b16 %v4847
        %v5372 = vunpack.c.h.b16 %v4847
        %v5373 = vunpack.c.l.b16 %v4848
        %v5374 = vunpack.c.h.b16 %v4848
        %v5375 = vunpack.c.l.b16 %v4849
        %v5376 = vunpack.c.h.b16 %v4849
        %v5377 = vunpack.c.l.b16 %v4850
        %v5378 = vunpack.c.h.b16 %v4850
        %v5379 = vunpack.c.l.b16 %v4851
        %v5380 = vunpack.c.h.b16 %v4851
        %v5381 = vunpack.c.l.b16 %v4852
        %v5382 = vunpack.c.h.b16 %v4852
        %v5383 = vunpack.c.l.b16 %v4853
        %v5384 = vunpack.c.h.b16 %v4853
        %v5385 = vunpack.c.l.b16 %v4854
        %v5386 = vunpack.c.h.b16 %v4854
        %v5387 = vunpack.c.l.b16 %v4855
        %v5388 = vunpack.c.h.b16 %v4855
        %v5389 = vunpack.c.l.b16 %v4856
        %v5390 = vunpack.c.h.b16 %v4856
        %v5391 = vunpack.c.l.b16 %v4857
        %v5392 = vunpack.c.h.b16 %v4857
        %v5393 = vunpack.c.l.b16 %v4858
        %v5394 = vunpack.c.h.b16 %v4858
        %v5395 = vunpack.c.l.b16 %v4859
        %v5396 = vunpack.c.h.b16 %v4859
        %v5397 = vunpack.c.l.b16 %v4860
        %v5398 = vunpack.c.h.b16 %v4860
        %v5399 = vunpack.c.l.b16 %v4861
        %v5400 = vunpack.c.h.b16 %v4861
        %v5401 = vunpack.c.l.b16 %v4862
        %v5402 = vunpack.c.h.b16 %v4862
        %v5403 = vunpack.c.l.b16 %v4863
        %v5404 = vunpack.c.h.b16 %v4863
        %v5405 = vunpack.c.l.b16 %v4864
        %v5406 = vunpack.c.h.b16 %v4864
        %v5407 = vunpack.c.l.b16 %v4865
        %v5408 = vunpack.c.h.b16 %v4865
        %v5409 = vunpack.c.l.b16 %v4866
        %v5410 = vunpack.c.h.b16 %v4866
        %v5411 = vunpack.c.l.b16 %v4867
        %v5412 = vunpack.c.h.b16 %v4867
        %v5413 = vunpack.c.l.b16 %v4868
        %v5414 = vunpack.c.h.b16 %v4868
        %v5415 = vunpack.c.l.b16 %v4869
        %v5416 = vunpack.c.h.b16 %v4869
        %v5417 = vpack.c.b16 %v5323, %v5321
        %v5418 = vpack.c.b16 %v5324, %v5322
        %v5419 = vpack.c.b16 %v5327, %v5325
        %v5420 = vpack.c.b16 %v5328, %v5326
        %v5421 = vpack.c.b16 %v5331, %v5329
        %v5422 = vpack.c.b16 %v5332, %v5330
        %v5423 = vpack.c.b16 %v5335, %v5333
        %v5424 = vpack.c.b16 %v5336, %v5334
        %v5425 = vpack.c.b16 %v5339, %v5337
        %v5426 = vpack.c.b16 %v5340, %v5338
        %v5427 = vpack.c.b16 %v5343, %v5341
        %v5428 = vpack.c.b16 %v5344, %v5342
        %v5429 = vpack.c.b16 %v5347, %v5345
        %v5430 = vpack.c.b16 %v5348, %v5346
        %v5431 = vpack.c.b16 %v5351, %v5349
        %v5432 = vpack.c.b16 %v5352, %v5350
        %v5433 = vpack.c.b16 %v5355, %v5353
        %v5434 = vpack.c.b16 %v5356, %v5354
        %v5435 = vpack.c.b16 %v5359, %v5357
        %v5436 = vpack.c.b16 %v5360, %v5358
        %v5437 = vpack.c.b16 %v5363, %v5361
        %v5438 = vpack.c.b16 %v5364, %v5362
        %v5439 = vpack.c.b16 %v5367, %v5365
        %v5440 = vpack.c.b16 %v5368, %v5366
        %v5441 = vpack.c.b16 %v5371, %v5369
        %v5442 = vpack.c.b16 %v5372, %v5370
        %v5443 = vpack.c.b16 %v5375, %v5373
        %v5444 = vpack.c.b16 %v5376, %v5374
        %v5445 = vpack.c.b16 %v5379, %v5377
        %v5446 = vpack.c.b16 %v5380, %v5378
        %v5447 = vpack.c.b16 %v5383, %v5381
        %v5448 = vpack.c.b16 %v5384, %v5382
        %v5449 = vpack.c.b16 %v5387, %v5385
        %v5450 = vpack.c.b16 %v5388, %v5386
        %v5451 = vpack.c.b16 %v5391, %v5389
        %v5452 = vpack.c.b16 %v5392, %v5390
        %v5453 = vpack.c.b16 %v5395, %v5393
        %v5454 = vpack.c.b16 %v5396, %v5394
        %v5455 = vpack.c.b16 %v5399, %v5397
        %v5456 = vpack.c.b16 %v5400, %v5398
        %v5457 = vpack.c.b16 %v5403, %v5401
        %v5458 = vpack.c.b16 %v5404, %v5402
        %v5459 = vpack.c.b16 %v5407, %v5405
        %v5460 = vpack.c.b16 %v5408, %v5406
        %v5461 = vpack.c.b16 %v5411, %v5409
        %v5462 = vpack.c.b16 %v5412, %v5410
        %v5463 = vpack.c.b16 %v5415, %v5413
        %v5464 = vpack.c.b16 %v5416, %v5414
        %5513 = vmatprep.subr.bf16.mxu0 %v5432
        %5514 = vmatpush1.bf16.msra.mxu0 %v5431
        %5515 = vmatprep.subr.bf16.mxu0 %v5430
        %5516 = vmatpush1.bf16.msra.mxu0 %v5429
        %5517 = vmatprep.subr.bf16.mxu0 %v5428
        %5518 = vmatpush1.bf16.msra.mxu0 %v5427
        %5519 = vmatprep.subr.bf16.mxu0 %v5426
        %5520 = vmatpush1.bf16.msra.mxu0 %v5425
        %5521 = vmatprep.subr.bf16.mxu0 %v5424
        %5522 = vmatpush1.bf16.msra.mxu0 %v5423
        %5523 = vmatprep.subr.bf16.mxu0 %v5422
        %5524 = vmatpush1.bf16.msra.mxu0 %v5421
        %5525 = vmatprep.subr.bf16.mxu0 %v5420
        %5526 = vmatpush1.bf16.msra.mxu0 %v5419
        %5527 = vmatprep.subr.bf16.mxu0 %v5418
        %5528 = vmatpush1.bf16.msra.mxu0 %v5417
        %5529 = vmatprep.subr.bf16.mxu0 %v5448
        %5530 = vmatpush2.bf16.msra.mxu0 %v5447
        %5531 = vmatprep.subr.bf16.mxu0 %v5446
        %5532 = vmatpush2.bf16.msra.mxu0 %v5445
        %5533 = vmatprep.subr.bf16.mxu0 %v5444
        %5534 = vmatpush2.bf16.msra.mxu0 %v5443
        %5535 = vmatprep.subr.bf16.mxu0 %v5442
        %5536 = vmatpush2.bf16.msra.mxu0 %v5441
        %5537 = vmatprep.subr.bf16.mxu0 %v5440
        %5538 = vmatpush2.bf16.msra.mxu0 %v5439
        %5539 = vmatprep.subr.bf16.mxu0 %v5438
        %5540 = vmatpush2.bf16.msra.mxu0 %v5437
        %5541 = vmatprep.subr.bf16.mxu0 %v5436
        %5542 = vmatpush2.bf16.msra.mxu0 %v5435
        %5543 = vmatprep.subr.bf16.mxu0 %v5434
        %5544 = vmatpush2.bf16.msra.mxu0 %v5433
        %5545 = vmatprep.mubr.bf16.mxu0 %v4817
        %5546 = vmatmul.mubr.bf16.gmra.mxu0 %v4816
        %v5547 = vpop.f32.mrf.mxu0
        %v5548 = vadd.f32 %v5255, %v5547
        %v5549 = vpop.f32.mrf.mxu0
        %v5550 = vadd.f32 %v5257, %v5549
        %v5551 = vpop.f32.mrf.mxu0
        %v5552 = vadd.f32 %v5259, %v5551
        %v5553 = vpop.f32.mrf.mxu0
        %v5554 = vadd.f32 %v5261, %v5553
        %5555 = vmatprep.mubr.bf16.mxu0 %v4820
        %5556 = vmatmul.mubr.bf16.gmra.mxu0 %v4819
        %v5557 = vpop.f32.mrf.mxu0
        %v5558 = vadd.f32 %v5265, %v5557
        %v5559 = vpop.f32.mrf.mxu0
        %v5560 = vadd.f32 %v5267, %v5559
        %v5561 = vpop.f32.mrf.mxu0
        %v5562 = vadd.f32 %v5269, %v5561
        %v5563 = vpop.f32.mrf.mxu0
        %v5564 = vadd.f32 %v5271, %v5563
        %5565 = vdwg.mxu0
        %5566 = vmatprep.subr.bf16.mxu0 %v5464
        %5567 = vmatpush1.bf16.msra.mxu0 %v5463
        %5568 = vmatprep.subr.bf16.mxu0 %v5462
        %5569 = vmatpush1.bf16.msra.mxu0 %v5461
        %5570 = vmatprep.subr.bf16.mxu0 %v5460
        %5571 = vmatpush1.bf16.msra.mxu0 %v5459
        %5572 = vmatprep.subr.bf16.mxu0 %v5458
        %5573 = vmatpush1.bf16.msra.mxu0 %v5457
        %5574 = vmatprep.subr.bf16.mxu0 %v5456
        %5575 = vmatpush1.bf16.msra.mxu0 %v5455
        %5576 = vmatprep.subr.bf16.mxu0 %v5454
        %5577 = vmatpush1.bf16.msra.mxu0 %v5453
        %5578 = vmatprep.subr.bf16.mxu0 %v5452
        %5579 = vmatpush1.bf16.msra.mxu0 %v5451
        %5580 = vmatprep.subr.bf16.mxu0 %v5450
        %5581 = vmatpush1.bf16.msra.mxu0 %v5449
        %5582 = vmatprep.subr.bf16.mxu0 0
        %5583 = vmatpush2.bf16.msra.mxu0 0
        %5584 = vmatprep.subr.bf16.mxu0 0
        %5585 = vmatpush2.bf16.msra.mxu0 0
        %5586 = vmatprep.subr.bf16.mxu0 0
        %5587 = vmatpush2.bf16.msra.mxu0 0
        %5588 = vmatprep.subr.bf16.mxu0 0
        %5589 = vmatpush2.bf16.msra.mxu0 0
        %5590 = vmatprep.subr.bf16.mxu0 0
        %5591 = vmatpush2.bf16.msra.mxu0 0
        %5592 = vmatprep.subr.bf16.mxu0 0
        %5593 = vmatpush2.bf16.msra.mxu0 0
        %5594 = vmatprep.subr.bf16.mxu0 0
        %5595 = vmatpush2.bf16.msra.mxu0 0
        %5596 = vmatprep.subr.bf16.mxu0 0
        %5597 = vmatpush2.bf16.msra.mxu0 0
        %5598 = vmatprep.mubr.bf16.mxu0 0
        %5599 = vmatmul.mubr.bf16.gmra.mxu0 %v4818
        %v5600 = vpop.f32.mrf.mxu0
        %v5601 = vadd.f32 %v5548, %v5600
        %v5602 = vpop.f32.mrf.mxu0
        %v5603 = vadd.f32 %v5550, %v5602
        %v5604 = vpop.f32.mrf.mxu0
        %v5605 = vadd.f32 %v5552, %v5604
        %v5606 = vpop.f32.mrf.mxu0
        %v5607 = vadd.f32 %v5554, %v5606
        %5608 = vmatprep.mubr.bf16.mxu0 0
        %5609 = vmatmul.mubr.bf16.gmra.mxu0 %v4821
        %v5610 = vpop.f32.mrf.mxu0
        %v5611 = vadd.f32 %v5558, %v5610
        %v5612 = vpop.f32.mrf.mxu0
        %v5613 = vadd.f32 %v5560, %v5612
        %v5614 = vpop.f32.mrf.mxu0
        %v5615 = vadd.f32 %v5562, %v5614
        %v5616 = vpop.f32.mrf.mxu0
        %v5617 = vadd.f32 %v5564, %v5616
        %5618 = vdwg.mxu0
        %v5619 = vld [vmem:[#allocation10 + $0x48] sm:$0xff]
        %v5620 = vld [vmem:[#allocation10 + $0x50] sm:$0xff]
        %v5621 = vld [vmem:[#allocation10 + $0x58] sm:$0xff]
        %v5622 = vld [vmem:[#allocation10 + $0x60] sm:$0xff]
        %v5623 = vld [vmem:[#allocation10 + $0x68] sm:$0xff]
        %v5624 = vld [vmem:[#allocation10 + $0x70] sm:$0xff]
        %v5625 = vld [vmem:[#allocation10 + $0x78] sm:$0xff]
        %v5626 = vld [vmem:[#allocation10 + $0x80] sm:$0xff]
        %v5627 = vld [vmem:[#allocation10 + $0x88] sm:$0xff]
        %v5628 = vld [vmem:[#allocation10 + $0x90] sm:$0xff]
        %v5629 = vld [vmem:[#allocation10 + $0x98] sm:$0xff]
        %v5630 = vld [vmem:[#allocation10 + $0xa0] sm:$0xff]
        %v5631 = vpack.c.bf16 %v5622, %v5619
        %v5632 = vpack.c.bf16 %v5623, %v5620
        %v5633 = vpack.c.bf16 %v5624, %v5621
        %v5634 = vpack.c.bf16 %v5628, %v5625
        %v5635 = vpack.c.bf16 %v5629, %v5626
        %v5636 = vpack.c.bf16 %v5630, %v5627
        %v5637 = vld [vmem:[%s10 + $0x300] sm:$0xff]
        %v5638 = vld [vmem:[%s10 + $0x308] sm:$0xff]
        %v5639 = vld [vmem:[%s10 + $0x310] sm:$0xff]
        %v5640 = vld [vmem:[%s10 + $0x318] sm:$0xff]
        %v5641 = vld [vmem:[%s10 + $0x320] sm:$0xff]
        %v5642 = vld [vmem:[%s10 + $0x328] sm:$0xff]
        %v5643 = vld [vmem:[%s10 + $0x330] sm:$0xff]
        %v5644 = vld [vmem:[%s10 + $0x338] sm:$0xff]
        %v5645 = vld [vmem:[%s10 + $0x340] sm:$0xff]
        %v5646 = vld [vmem:[%s10 + $0x348] sm:$0xff]
        %v5647 = vld [vmem:[%s10 + $0x350] sm:$0xff]
        %v5648 = vld [vmem:[%s10 + $0x358] sm:$0xff]
        %v5649 = vld [vmem:[%s10 + $0x360] sm:$0xff]
        %v5650 = vld [vmem:[%s10 + $0x368] sm:$0xff]
        %v5651 = vld [vmem:[%s10 + $0x370] sm:$0xff]
        %v5652 = vld [vmem:[%s10 + $0x378] sm:$0xff]
        %v5653 = vld [vmem:[%s10 + $0x380] sm:$0xff]
        %v5654 = vld [vmem:[%s10 + $0x388] sm:$0xff]
        %v5655 = vld [vmem:[%s10 + $0x390] sm:$0xff]
        %v5656 = vld [vmem:[%s10 + $0x398] sm:$0xff]
        %v5657 = vld [vmem:[%s10 + $0x3a0] sm:$0xff]
        %v5658 = vld [vmem:[%s10 + $0x3a8] sm:$0xff]
        %v5659 = vld [vmem:[%s10 + $0x3b0] sm:$0xff]
        %v5660 = vld [vmem:[%s10 + $0x3b8] sm:$0xff]
        %v5661 = vld [vmem:[%s10 + $0x3c0] sm:$0xff]
        %v5662 = vld [vmem:[%s10 + $0x3c8] sm:$0xff]
        %v5663 = vld [vmem:[%s10 + $0x3d0] sm:$0xff]
        %v5664 = vld [vmem:[%s10 + $0x3d8] sm:$0xff]
        %v5665 = vld [vmem:[%s10 + $0x3e0] sm:$0xff]
        %v5666 = vld [vmem:[%s10 + $0x3e8] sm:$0xff]
        %v5667 = vld [vmem:[%s10 + $0x3f0] sm:$0xff]
        %v5668 = vld [vmem:[%s10 + $0x3f8] sm:$0xff]
        %v5669 = vld [vmem:[%s10 + $0x400] sm:$0xff]
        %v5670 = vld [vmem:[%s10 + $0x408] sm:$0xff]
        %v5671 = vld [vmem:[%s10 + $0x410] sm:$0xff]
        %v5672 = vld [vmem:[%s10 + $0x418] sm:$0xff]
        %v5673 = vld [vmem:[%s10 + $0x420] sm:$0xff]
        %v5674 = vld [vmem:[%s10 + $0x428] sm:$0xff]
        %v5675 = vld [vmem:[%s10 + $0x430] sm:$0xff]
        %v5676 = vld [vmem:[%s10 + $0x438] sm:$0xff]
        %v5677 = vld [vmem:[%s10 + $0x440] sm:$0xff]
        %v5678 = vld [vmem:[%s10 + $0x448] sm:$0xff]
        %v5679 = vld [vmem:[%s10 + $0x450] sm:$0xff]
        %v5680 = vld [vmem:[%s10 + $0x458] sm:$0xff]
        %v5681 = vld [vmem:[%s10 + $0x460] sm:$0xff]
        %v5682 = vld [vmem:[%s10 + $0x468] sm:$0xff]
        %v5683 = vld [vmem:[%s10 + $0x470] sm:$0xff]
        %v5684 = vld [vmem:[%s10 + $0x478] sm:$0xff]
        %v5733 = vunpack.c.l.b16 %v5637
        %v5734 = vunpack.c.h.b16 %v5637
        %v5735 = vunpack.c.l.b16 %v5638
        %v5736 = vunpack.c.h.b16 %v5638
        %v5737 = vunpack.c.l.b16 %v5639
        %v5738 = vunpack.c.h.b16 %v5639
        %v5739 = vunpack.c.l.b16 %v5640
        %v5740 = vunpack.c.h.b16 %v5640
        %v5741 = vunpack.c.l.b16 %v5641
        %v5742 = vunpack.c.h.b16 %v5641
        %v5743 = vunpack.c.l.b16 %v5642
        %v5744 = vunpack.c.h.b16 %v5642
        %v5745 = vunpack.c.l.b16 %v5643
        %v5746 = vunpack.c.h.b16 %v5643
        %v5747 = vunpack.c.l.b16 %v5644
        %v5748 = vunpack.c.h.b16 %v5644
        %v5749 = vunpack.c.l.b16 %v5645
        %v5750 = vunpack.c.h.b16 %v5645
        %v5751 = vunpack.c.l.b16 %v5646
        %v5752 = vunpack.c.h.b16 %v5646
        %v5753 = vunpack.c.l.b16 %v5647
        %v5754 = vunpack.c.h.b16 %v5647
        %v5755 = vunpack.c.l.b16 %v5648
        %v5756 = vunpack.c.h.b16 %v5648
        %v5757 = vunpack.c.l.b16 %v5649
        %v5758 = vunpack.c.h.b16 %v5649
        %v5759 = vunpack.c.l.b16 %v5650
        %v5760 = vunpack.c.h.b16 %v5650
        %v5761 = vunpack.c.l.b16 %v5651
        %v5762 = vunpack.c.h.b16 %v5651
        %v5763 = vunpack.c.l.b16 %v5652
        %v5764 = vunpack.c.h.b16 %v5652
        %v5765 = vunpack.c.l.b16 %v5653
        %v5766 = vunpack.c.h.b16 %v5653
        %v5767 = vunpack.c.l.b16 %v5654
        %v5768 = vunpack.c.h.b16 %v5654
        %v5769 = vunpack.c.l.b16 %v5655
        %v5770 = vunpack.c.h.b16 %v5655
        %v5771 = vunpack.c.l.b16 %v5656
        %v5772 = vunpack.c.h.b16 %v5656
        %v5773 = vunpack.c.l.b16 %v5657
        %v5774 = vunpack.c.h.b16 %v5657
        %v5775 = vunpack.c.l.b16 %v5658
        %v5776 = vunpack.c.h.b16 %v5658
        %v5777 = vunpack.c.l.b16 %v5659
        %v5778 = vunpack.c.h.b16 %v5659
        %v5779 = vunpack.c.l.b16 %v5660
        %v5780 = vunpack.c.h.b16 %v5660
        %v5781 = vunpack.c.l.b16 %v5661
        %v5782 = vunpack.c.h.b16 %v5661
        %v5783 = vunpack.c.l.b16 %v5662
        %v5784 = vunpack.c.h.b16 %v5662
        %v5785 = vunpack.c.l.b16 %v5663
        %v5786 = vunpack.c.h.b16 %v5663
        %v5787 = vunpack.c.l.b16 %v5664
        %v5788 = vunpack.c.h.b16 %v5664
        %v5789 = vunpack.c.l.b16 %v5665
        %v5790 = vunpack.c.h.b16 %v5665
        %v5791 = vunpack.c.l.b16 %v5666
        %v5792 = vunpack.c.h.b16 %v5666
        %v5793 = vunpack.c.l.b16 %v5667
        %v5794 = vunpack.c.h.b16 %v5667
        %v5795 = vunpack.c.l.b16 %v5668
        %v5796 = vunpack.c.h.b16 %v5668
        %v5797 = vunpack.c.l.b16 %v5669
        %v5798 = vunpack.c.h.b16 %v5669
        %v5799 = vunpack.c.l.b16 %v5670
        %v5800 = vunpack.c.h.b16 %v5670
        %v5801 = vunpack.c.l.b16 %v5671
        %v5802 = vunpack.c.h.b16 %v5671
        %v5803 = vunpack.c.l.b16 %v5672
        %v5804 = vunpack.c.h.b16 %v5672
        %v5805 = vunpack.c.l.b16 %v5673
        %v5806 = vunpack.c.h.b16 %v5673
        %v5807 = vunpack.c.l.b16 %v5674
        %v5808 = vunpack.c.h.b16 %v5674
        %v5809 = vunpack.c.l.b16 %v5675
        %v5810 = vunpack.c.h.b16 %v5675
        %v5811 = vunpack.c.l.b16 %v5676
        %v5812 = vunpack.c.h.b16 %v5676
        %v5813 = vunpack.c.l.b16 %v5677
        %v5814 = vunpack.c.h.b16 %v5677
        %v5815 = vunpack.c.l.b16 %v5678
        %v5816 = vunpack.c.h.b16 %v5678
        %v5817 = vunpack.c.l.b16 %v5679
        %v5818 = vunpack.c.h.b16 %v5679
        %v5819 = vunpack.c.l.b16 %v5680
        %v5820 = vunpack.c.h.b16 %v5680
        %v5821 = vunpack.c.l.b16 %v5681
        %v5822 = vunpack.c.h.b16 %v5681
        %v5823 = vunpack.c.l.b16 %v5682
        %v5824 = vunpack.c.h.b16 %v5682
        %v5825 = vunpack.c.l.b16 %v5683
        %v5826 = vunpack.c.h.b16 %v5683
        %v5827 = vunpack.c.l.b16 %v5684
        %v5828 = vunpack.c.h.b16 %v5684
        %v5829 = vpack.c.b16 %v5735, %v5733
        %v5830 = vpack.c.b16 %v5736, %v5734
        %v5831 = vpack.c.b16 %v5739, %v5737
        %v5832 = vpack.c.b16 %v5740, %v5738
        %v5833 = vpack.c.b16 %v5743, %v5741
        %v5834 = vpack.c.b16 %v5744, %v5742
        %v5835 = vpack.c.b16 %v5747, %v5745
        %v5836 = vpack.c.b16 %v5748, %v5746
        %v5837 = vpack.c.b16 %v5751, %v5749
        %v5838 = vpack.c.b16 %v5752, %v5750
        %v5839 = vpack.c.b16 %v5755, %v5753
        %v5840 = vpack.c.b16 %v5756, %v5754
        %v5841 = vpack.c.b16 %v5759, %v5757
        %v5842 = vpack.c.b16 %v5760, %v5758
        %v5843 = vpack.c.b16 %v5763, %v5761
        %v5844 = vpack.c.b16 %v5764, %v5762
        %v5845 = vpack.c.b16 %v5767, %v5765
        %v5846 = vpack.c.b16 %v5768, %v5766
        %v5847 = vpack.c.b16 %v5771, %v5769
        %v5848 = vpack.c.b16 %v5772, %v5770
        %v5849 = vpack.c.b16 %v5775, %v5773
        %v5850 = vpack.c.b16 %v5776, %v5774
        %v5851 = vpack.c.b16 %v5779, %v5777
        %v5852 = vpack.c.b16 %v5780, %v5778
        %v5853 = vpack.c.b16 %v5783, %v5781
        %v5854 = vpack.c.b16 %v5784, %v5782
        %v5855 = vpack.c.b16 %v5787, %v5785
        %v5856 = vpack.c.b16 %v5788, %v5786
        %v5857 = vpack.c.b16 %v5791, %v5789
        %v5858 = vpack.c.b16 %v5792, %v5790
        %v5859 = vpack.c.b16 %v5795, %v5793
        %v5860 = vpack.c.b16 %v5796, %v5794
        %v5861 = vpack.c.b16 %v5799, %v5797
        %v5862 = vpack.c.b16 %v5800, %v5798
        %v5863 = vpack.c.b16 %v5803, %v5801
        %v5864 = vpack.c.b16 %v5804, %v5802
        %v5865 = vpack.c.b16 %v5807, %v5805
        %v5866 = vpack.c.b16 %v5808, %v5806
        %v5867 = vpack.c.b16 %v5811, %v5809
        %v5868 = vpack.c.b16 %v5812, %v5810
        %v5869 = vpack.c.b16 %v5815, %v5813
        %v5870 = vpack.c.b16 %v5816, %v5814
        %v5871 = vpack.c.b16 %v5819, %v5817
        %v5872 = vpack.c.b16 %v5820, %v5818
        %v5873 = vpack.c.b16 %v5823, %v5821
        %v5874 = vpack.c.b16 %v5824, %v5822
        %v5875 = vpack.c.b16 %v5827, %v5825
        %v5876 = vpack.c.b16 %v5828, %v5826
        %5925 = vmatprep.subr.bf16.mxu0 %v5844
        %5926 = vmatpush1.bf16.msra.mxu0 %v5843
        %5927 = vmatprep.subr.bf16.mxu0 %v5842
        %5928 = vmatpush1.bf16.msra.mxu0 %v5841
        %5929 = vmatprep.subr.bf16.mxu0 %v5840
        %5930 = vmatpush1.bf16.msra.mxu0 %v5839
        %5931 = vmatprep.subr.bf16.mxu0 %v5838
        %5932 = vmatpush1.bf16.msra.mxu0 %v5837
        %5933 = vmatprep.subr.bf16.mxu0 %v5836
        %5934 = vmatpush1.bf16.msra.mxu0 %v5835
        %5935 = vmatprep.subr.bf16.mxu0 %v5834
        %5936 = vmatpush1.bf16.msra.mxu0 %v5833
        %5937 = vmatprep.subr.bf16.mxu0 %v5832
        %5938 = vmatpush1.bf16.msra.mxu0 %v5831
        %5939 = vmatprep.subr.bf16.mxu0 %v5830
        %5940 = vmatpush1.bf16.msra.mxu0 %v5829
        %5941 = vmatprep.subr.bf16.mxu0 %v5860
        %5942 = vmatpush2.bf16.msra.mxu0 %v5859
        %5943 = vmatprep.subr.bf16.mxu0 %v5858
        %5944 = vmatpush2.bf16.msra.mxu0 %v5857
        %5945 = vmatprep.subr.bf16.mxu0 %v5856
        %5946 = vmatpush2.bf16.msra.mxu0 %v5855
        %5947 = vmatprep.subr.bf16.mxu0 %v5854
        %5948 = vmatpush2.bf16.msra.mxu0 %v5853
        %5949 = vmatprep.subr.bf16.mxu0 %v5852
        %5950 = vmatpush2.bf16.msra.mxu0 %v5851
        %5951 = vmatprep.subr.bf16.mxu0 %v5850
        %5952 = vmatpush2.bf16.msra.mxu0 %v5849
        %5953 = vmatprep.subr.bf16.mxu0 %v5848
        %5954 = vmatpush2.bf16.msra.mxu0 %v5847
        %5955 = vmatprep.subr.bf16.mxu0 %v5846
        %5956 = vmatpush2.bf16.msra.mxu0 %v5845
        %5957 = vmatprep.mubr.bf16.mxu0 %v5632
        %5958 = vmatmul.mubr.bf16.gmra.mxu0 %v5631
        %v5959 = vpop.f32.mrf.mxu0
        %v5960 = vadd.f32 0.0, %v5959
        %v5961 = vpop.f32.mrf.mxu0
        %v5962 = vadd.f32 0.0, %v5961
        %v5963 = vpop.f32.mrf.mxu0
        %v5964 = vadd.f32 0.0, %v5963
        %v5965 = vpop.f32.mrf.mxu0
        %v5966 = vadd.f32 0.0, %v5965
        %5967 = vmatprep.mubr.bf16.mxu0 %v5635
        %5968 = vmatmul.mubr.bf16.gmra.mxu0 %v5634
        %v5969 = vpop.f32.mrf.mxu0
        %v5970 = vadd.f32 0.0, %v5969
        %v5971 = vpop.f32.mrf.mxu0
        %v5972 = vadd.f32 0.0, %v5971
        %v5973 = vpop.f32.mrf.mxu0
        %v5974 = vadd.f32 0.0, %v5973
        %v5975 = vpop.f32.mrf.mxu0
        %v5976 = vadd.f32 0.0, %v5975
        %5977 = vdwg.mxu0
        %5978 = vmatprep.subr.bf16.mxu0 %v5876
        %5979 = vmatpush1.bf16.msra.mxu0 %v5875
        %5980 = vmatprep.subr.bf16.mxu0 %v5874
        %5981 = vmatpush1.bf16.msra.mxu0 %v5873
        %5982 = vmatprep.subr.bf16.mxu0 %v5872
        %5983 = vmatpush1.bf16.msra.mxu0 %v5871
        %5984 = vmatprep.subr.bf16.mxu0 %v5870
        %5985 = vmatpush1.bf16.msra.mxu0 %v5869
        %5986 = vmatprep.subr.bf16.mxu0 %v5868
        %5987 = vmatpush1.bf16.msra.mxu0 %v5867
        %5988 = vmatprep.subr.bf16.mxu0 %v5866
        %5989 = vmatpush1.bf16.msra.mxu0 %v5865
        %5990 = vmatprep.subr.bf16.mxu0 %v5864
        %5991 = vmatpush1.bf16.msra.mxu0 %v5863
        %5992 = vmatprep.subr.bf16.mxu0 %v5862
        %5993 = vmatpush1.bf16.msra.mxu0 %v5861
        %5994 = vmatprep.subr.bf16.mxu0 0
        %5995 = vmatpush2.bf16.msra.mxu0 0
        %5996 = vmatprep.subr.bf16.mxu0 0
        %5997 = vmatpush2.bf16.msra.mxu0 0
        %5998 = vmatprep.subr.bf16.mxu0 0
        %5999 = vmatpush2.bf16.msra.mxu0 0
        %6000 = vmatprep.subr.bf16.mxu0 0
        %6001 = vmatpush2.bf16.msra.mxu0 0
        %6002 = vmatprep.subr.bf16.mxu0 0
        %6003 = vmatpush2.bf16.msra.mxu0 0
        %6004 = vmatprep.subr.bf16.mxu0 0
        %6005 = vmatpush2.bf16.msra.mxu0 0
        %6006 = vmatprep.subr.bf16.mxu0 0
        %6007 = vmatpush2.bf16.msra.mxu0 0
        %6008 = vmatprep.subr.bf16.mxu0 0
        %6009 = vmatpush2.bf16.msra.mxu0 0
        %6010 = vmatprep.mubr.bf16.mxu0 0
        %6011 = vmatmul.mubr.bf16.gmra.mxu0 %v5633
        %v6012 = vpop.f32.mrf.mxu0
        %v6013 = vadd.f32 %v5960, %v6012
        %v6014 = vpop.f32.mrf.mxu0
        %v6015 = vadd.f32 %v5962, %v6014
        %v6016 = vpop.f32.mrf.mxu0
        %v6017 = vadd.f32 %v5964, %v6016
        %v6018 = vpop.f32.mrf.mxu0
        %v6019 = vadd.f32 %v5966, %v6018
        %6020 = vmatprep.mubr.bf16.mxu0 0
        %6021 = vmatmul.mubr.bf16.gmra.mxu0 %v5636
        %v6022 = vpop.f32.mrf.mxu0
        %v6023 = vadd.f32 %v5970, %v6022
        %v6024 = vpop.f32.mrf.mxu0
        %v6025 = vadd.f32 %v5972, %v6024
        %v6026 = vpop.f32.mrf.mxu0
        %v6027 = vadd.f32 %v5974, %v6026
        %v6028 = vpop.f32.mrf.mxu0
        %v6029 = vadd.f32 %v5976, %v6028
        %6030 = vdwg.mxu0
        %v6031 = vadd.f32 %v5601, %v6013
        %v6032 = vadd.f32 %v5603, %v6015
        %v6033 = vadd.f32 %v5605, %v6017
        %v6034 = vadd.f32 %v5607, %v6019
        %v6035 = vadd.f32 %v5611, %v6023
        %v6036 = vadd.f32 %v5613, %v6025
        %v6037 = vadd.f32 %v5615, %v6027
        %v6038 = vadd.f32 %v5617, %v6029
        %vm6039 = vcmp.lt.s32.totalorder %v1253, 24
        %vm6040 = vcmp.lt.s32.totalorder %v1254, 24
        %vm6041 = vcmp.lt.s32.totalorder %v1255, 24
        %vm6042 = vcmp.lt.s32.totalorder %v1256, 24
        %vm6043 = vmand %vm4619, %vm6039
        %vm6044 = vmand %vm4620, %vm6040
        %vm6045 = vmand %vm4621, %vm6041
        %vm6046 = vmand %vm4622, %vm6042
        %vm6047 = vmand %vm6043, %vm4637
        %vm6048 = vmand %vm6044, %vm4638
        %vm6049 = vmand %vm6045, %vm4639
        %vm6050 = vmand %vm6046, %vm4640
        %vm6051 = vcmp.le.s32.totalorder %v4613, 2
        %vm6052 = vcmp.le.s32.totalorder %v4614, 2
        %vm6053 = vcmp.le.s32.totalorder %v4615, 2
        %vm6054 = vcmp.le.s32.totalorder %v4616, 2
        %vm6055 = vmand %vm6047, %vm6051
        %vm6056 = vmand %vm6048, %vm6052
        %vm6057 = vmand %vm6049, %vm6053
        %vm6058 = vmand %vm6050, %vm6054
        %v6059 = vld [vmem:[%s11] sm:$0x3]
        %v6061 = vlaneseq
        %v6062 = vshrl.u32 %v6061, 7
        %v6063 = vsub.s32 0, %v6062
        %v6064 = vrot.slane %v6059, %v6063
        %v6065 = vlaneseq
        %v6066 = vshrl.u32 %v6065, 7
        %v6067 = vsub.s32 1, %v6066
        %v6068 = vrot.slane %v6059, %v6067
        %v6071 = vmul.f32 %v6031, %v6064
        %v6072 = vmul.f32 %v6032, %v6068
        %v6073 = vmul.f32 %v6033, %v6064
        %v6074 = vmul.f32 %v6034, %v6068
        %v6075 = vmul.f32 %v6035, %v6064
        %v6076 = vmul.f32 %v6036, %v6068
        %v6077 = vmul.f32 %v6037, %v6064
        %v6078 = vmul.f32 %v6038, %v6068
        %v6079 = vld [vmem:[%s12] sm:$0x3]
        %v6081 = vlaneseq
        %v6082 = vshrl.u32 %v6081, 7
        %v6083 = vsub.s32 0, %v6082
        %v6084 = vrot.slane %v6079, %v6083
        %v6085 = vlaneseq
        %v6086 = vshrl.u32 %v6085, 7
        %v6087 = vsub.s32 1, %v6086
        %v6088 = vrot.slane %v6079, %v6087
        %v6091 = vadd.f32 %v6071, %v6084
        %v6092 = vadd.f32 %v6072, %v6088
        %v6093 = vadd.f32 %v6073, %v6084
        %v6094 = vadd.f32 %v6074, %v6088
        %v6095 = vadd.f32 %v6075, %v6084
        %v6096 = vadd.f32 %v6076, %v6088
        %v6097 = vadd.f32 %v6077, %v6084
        %v6098 = vadd.f32 %v6078, %v6088
        %v6099 = vmax.f32 %v6091, 0.0
        %v6100 = vmax.f32 %v6092, 0.0
        %v6101 = vmax.f32 %v6093, 0.0
        %v6102 = vmax.f32 %v6094, 0.0
        %v6103 = vmax.f32 %v6095, 0.0
        %v6104 = vmax.f32 %v6096, 0.0
        %v6105 = vmax.f32 %v6097, 0.0
        %v6106 = vmax.f32 %v6098, 0.0
        %v6107 = vsel %vm6055, 1, 0
        %v6108 = vsel %vm6056, 1, 0
        %v6109 = vsel %vm6057, 1, 0
        %v6110 = vsel %vm6058, 1, 0
        %vm6111 = vcmp.eq.s32.totalorder %v6107, 1
        %vm6112 = vcmp.eq.s32.totalorder %v6108, 1
        %vm6113 = vcmp.eq.s32.totalorder %v6109, 1
        %vm6114 = vcmp.eq.s32.totalorder %v6110, 1
        %v6115 = vsel %vm6111, %v6099, 0.0
        %v6116 = vsel %vm6111, %v6100, 0.0
        %v6117 = vsel %vm6112, %v6101, 0.0
        %v6118 = vsel %vm6112, %v6102, 0.0
        %v6119 = vsel %vm6113, %v6103, 0.0
        %v6120 = vsel %vm6113, %v6104, 0.0
        %v6121 = vsel %vm6114, %v6105, 0.0
        %v6122 = vsel %vm6114, %v6106, 0.0
        %6123 = vst [vmem:[#allocation11 + $0x20] sm:$0xff] %v6115
        %6124 = vst [vmem:[#allocation11 + $0x28] sm:$0xff] %v6116
        %6125 = vst [vmem:[#allocation11 + $0x30] sm:$0xff] %v6117
        %6126 = vst [vmem:[#allocation11 + $0x38] sm:$0xff] %v6118
        %6127 = vst [vmem:[#allocation11 + $0x40] sm:$0xff] %v6119
        %6128 = vst [vmem:[#allocation11 + $0x48] sm:$0xff] %v6120
        %6129 = vst [vmem:[#allocation11 + $0x50] sm:$0xff] %v6121
        %6130 = vst [vmem:[#allocation11 + $0x58] sm:$0xff] %v6122
        %s6131 = scalar_lea.vmem [#allocation11], 32
        %v6132 = vld [vmem:[%s6131] ss:$8 sm:$0x3]
        %s6133 = scalar_lea.vmem [#allocation11], 33
        %v6134 = vld [vmem:[%s6133] ss:$8 sm:$0x3]
        %v6135 = vmax.f32 %v6132, %v6134
        %s6136 = scalar_lea.vmem [#allocation11], 34
        %v6137 = vld [vmem:[%s6136] ss:$8 sm:$0x3]
        %v6138 = vmax.f32 %v6135, %v6137
        %s6139 = scalar_lea.vmem [#allocation11], 48
        %v6140 = vld [vmem:[%s6139] ss:$8 sm:$0x3]
        %v6141 = vmax.f32 %v6138, %v6140
        %s6142 = scalar_lea.vmem [#allocation11], 49
        %v6143 = vld [vmem:[%s6142] ss:$8 sm:$0x3]
        %v6144 = vmax.f32 %v6141, %v6143
        %s6145 = scalar_lea.vmem [#allocation11], 50
        %v6146 = vld [vmem:[%s6145] ss:$8 sm:$0x3]
        %v6147 = vmax.f32 %v6144, %v6146
        %s6148 = scalar_lea.vmem [#allocation11], 64
        %v6149 = vld [vmem:[%s6148] ss:$8 sm:$0x3]
        %v6150 = vmax.f32 %v6147, %v6149
        %s6151 = scalar_lea.vmem [#allocation11], 65
        %v6152 = vld [vmem:[%s6151] ss:$8 sm:$0x3]
        %v6153 = vmax.f32 %v6150, %v6152
        %s6154 = scalar_lea.vmem [#allocation11], 66
        %v6155 = vld [vmem:[%s6154] ss:$8 sm:$0x3]
        %v6156 = vmax.f32 %v6153, %v6155
        %v6157 = vlaneseq
        %vm6158 = vcmp.ge.s32.totalorder %v6157, 0
        %vm6159 = vcmp.lt.s32.totalorder %v6157, 256
        %vm6160 = vmand %vm6158, %vm6159
        %s6161 = scalar_lea.vmem [#allocation12], 49
        %6162 = vst.msk [vmem:[%s6161] ss:$8 sm:$0x3] %vm6160, %v6156
        %6163 = vst.msk [vmem:[%s6161] ss:$8 sm:$0x0] %vm6160, %v6156
        %v6164 = vld [vmem:[%s6161] ss:$8 sm:$0x3]
        %v6166 = vlaneseq
        %v6167 = vshrl.u32 %v6166, 7
        %v6168 = vsub.s32 0, %v6167
        %v6169 = vrot.slane %v6164, %v6168
        %v6170 = vlaneseq
        %v6171 = vshrl.u32 %v6170, 7
        %v6172 = vsub.s32 1, %v6171
        %v6173 = vrot.slane %v6164, %v6172
        %v6176 = vpack.c.bf16 %v6169, %v6169
        %v6177 = vpack.c.bf16 %v6173, %v6173
        %v6178 = vld [vmem:[%s13] sm:$0xf]
        %v6179 = vld [vmem:[%s13 + $0x4] sm:$0xf]
        %v6180 = vld [vmem:[%s13 + $0x8] sm:$0xf]
        %v6181 = vld [vmem:[%s13 + $0xc] sm:$0xf]
        %v6182 = vld [vmem:[%s13 + $0x10] sm:$0xf]
        %v6183 = vld [vmem:[%s13 + $0x14] sm:$0xf]
        %v6184 = vld [vmem:[%s13 + $0x18] sm:$0xf]
        %v6185 = vld [vmem:[%s13 + $0x1c] sm:$0xf]
        %v6186 = vld [vmem:[%s13 + $0x20] sm:$0xf]
        %v6187 = vld [vmem:[%s13 + $0x24] sm:$0xf]
        %v6188 = vld [vmem:[%s13 + $0x28] sm:$0xf]
        %v6189 = vld [vmem:[%s13 + $0x2c] sm:$0xf]
        %v6190 = vld [vmem:[%s13 + $0x30] sm:$0xf]
        %v6191 = vld [vmem:[%s13 + $0x34] sm:$0xf]
        %v6192 = vld [vmem:[%s13 + $0x38] sm:$0xf]
        %v6193 = vld [vmem:[%s13 + $0x3c] sm:$0xf]
        %v6194 = vld [vmem:[%s13 + $0x40] sm:$0xf]
        %v6195 = vld [vmem:[%s13 + $0x44] sm:$0xf]
        %v6196 = vld [vmem:[%s13 + $0x48] sm:$0xf]
        %v6197 = vld [vmem:[%s13 + $0x4c] sm:$0xf]
        %v6198 = vld [vmem:[%s13 + $0x50] sm:$0xf]
        %v6199 = vld [vmem:[%s13 + $0x54] sm:$0xf]
        %v6200 = vld [vmem:[%s13 + $0x58] sm:$0xf]
        %v6201 = vld [vmem:[%s13 + $0x5c] sm:$0xf]
        %v6202 = vld [vmem:[%s13 + $0x60] sm:$0xf]
        %v6203 = vld [vmem:[%s13 + $0x64] sm:$0xf]
        %v6204 = vld [vmem:[%s13 + $0x68] sm:$0xf]
        %v6205 = vld [vmem:[%s13 + $0x6c] sm:$0xf]
        %v6206 = vld [vmem:[%s13 + $0x70] sm:$0xf]
        %v6207 = vld [vmem:[%s13 + $0x74] sm:$0xf]
        %v6208 = vld [vmem:[%s13 + $0x78] sm:$0xf]
        %v6209 = vld [vmem:[%s13 + $0x7c] sm:$0xf]
        %v6210 = vld [vmem:[%s14] sm:$0x1]
        %v6243 = vunpack.c.l.b16 %v6178
        %v6244 = vunpack.c.l.b16 %v6179
        %v6245 = vunpack.c.l.b16 %v6180
        %v6246 = vunpack.c.l.b16 %v6181
        %v6247 = vunpack.c.l.b16 %v6182
        %v6248 = vunpack.c.l.b16 %v6183
        %v6249 = vunpack.c.l.b16 %v6184
        %v6250 = vunpack.c.l.b16 %v6185
        %v6251 = vunpack.c.l.b16 %v6186
        %v6252 = vunpack.c.l.b16 %v6187
        %v6253 = vunpack.c.l.b16 %v6188
        %v6254 = vunpack.c.l.b16 %v6189
        %v6255 = vunpack.c.l.b16 %v6190
        %v6256 = vunpack.c.l.b16 %v6191
        %v6257 = vunpack.c.l.b16 %v6192
        %v6258 = vunpack.c.l.b16 %v6193
        %v6259 = vunpack.c.l.b16 %v6194
        %v6260 = vunpack.c.l.b16 %v6195
        %v6261 = vunpack.c.l.b16 %v6196
        %v6262 = vunpack.c.l.b16 %v6197
        %v6263 = vunpack.c.l.b16 %v6198
        %v6264 = vunpack.c.l.b16 %v6199
        %v6265 = vunpack.c.l.b16 %v6200
        %v6266 = vunpack.c.l.b16 %v6201
        %v6267 = vunpack.c.l.b16 %v6202
        %v6268 = vunpack.c.l.b16 %v6203
        %v6269 = vunpack.c.l.b16 %v6204
        %v6270 = vunpack.c.l.b16 %v6205
        %v6271 = vunpack.c.l.b16 %v6206
        %v6272 = vunpack.c.l.b16 %v6207
        %v6273 = vunpack.c.l.b16 %v6208
        %v6274 = vunpack.c.l.b16 %v6209
        %v6275 = vpack.c.b16 %v6244, %v6243
        %v6276 = vpack.c.b16 %v6246, %v6245
        %v6277 = vpack.c.b16 %v6248, %v6247
        %v6278 = vpack.c.b16 %v6250, %v6249
        %v6279 = vpack.c.b16 %v6252, %v6251
        %v6280 = vpack.c.b16 %v6254, %v6253
        %v6281 = vpack.c.b16 %v6256, %v6255
        %v6282 = vpack.c.b16 %v6258, %v6257
        %v6283 = vpack.c.b16 %v6260, %v6259
        %v6284 = vpack.c.b16 %v6262, %v6261
        %v6285 = vpack.c.b16 %v6264, %v6263
        %v6286 = vpack.c.b16 %v6266, %v6265
        %v6287 = vpack.c.b16 %v6268, %v6267
        %v6288 = vpack.c.b16 %v6270, %v6269
        %v6289 = vpack.c.b16 %v6272, %v6271
        %v6290 = vpack.c.b16 %v6274, %v6273
        %6307 = vmatprep.subr.bf16.mxu0 0
        %6308 = vmatpush1.bf16.msra.mxu0 %v6282
        %6309 = vmatprep.subr.bf16.mxu0 0
        %6310 = vmatpush1.bf16.msra.mxu0 %v6281
        %6311 = vmatprep.subr.bf16.mxu0 0
        %6312 = vmatpush1.bf16.msra.mxu0 %v6280
        %6313 = vmatprep.subr.bf16.mxu0 0
        %6314 = vmatpush1.bf16.msra.mxu0 %v6279
        %6315 = vmatprep.subr.bf16.mxu0 0
        %6316 = vmatpush1.bf16.msra.mxu0 %v6278
        %6317 = vmatprep.subr.bf16.mxu0 0
        %6318 = vmatpush1.bf16.msra.mxu0 %v6277
        %6319 = vmatprep.subr.bf16.mxu0 0
        %6320 = vmatpush1.bf16.msra.mxu0 %v6276
        %6321 = vmatprep.subr.bf16.mxu0 0
        %6322 = vmatpush1.bf16.msra.mxu0 %v6275
        %6323 = vmatprep.subr.bf16.mxu0 0
        %6324 = vmatpush2.bf16.msra.mxu0 %v6290
        %6325 = vmatprep.subr.bf16.mxu0 0
        %6326 = vmatpush2.bf16.msra.mxu0 %v6289
        %6327 = vmatprep.subr.bf16.mxu0 0
        %6328 = vmatpush2.bf16.msra.mxu0 %v6288
        %6329 = vmatprep.subr.bf16.mxu0 0
        %6330 = vmatpush2.bf16.msra.mxu0 %v6287
        %6331 = vmatprep.subr.bf16.mxu0 0
        %6332 = vmatpush2.bf16.msra.mxu0 %v6286
        %6333 = vmatprep.subr.bf16.mxu0 0
        %6334 = vmatpush2.bf16.msra.mxu0 %v6285
        %6335 = vmatprep.subr.bf16.mxu0 0
        %6336 = vmatpush2.bf16.msra.mxu0 %v6284
        %6337 = vmatprep.subr.bf16.mxu0 0
        %6338 = vmatpush2.bf16.msra.mxu0 %v6283
        %6339 = vmatprep.mubr.bf16.mxu0 %v6177
        %6340 = vmatmul.mubr.bf16.gmra.mxu0 %v6176
        %v6341 = vpop.f32.mrf.mxu0
        %v6342 = vadd.f32 %v6210, %v6341
        %v6343 = vpop.f32.mrf.mxu0
        %v6344 = vpop.f32.mrf.mxu0
        %v6345 = vpop.f32.mrf.mxu0
        %6346 = vdwg.mxu0
        %6347 = vst [vmem:[%s487] sm:$0x1] %v6342
        %s6348 = sand.u32 %s357, 1
        %s6349 = scalar_lea.sflag [#allocation14], %s6348
        %s6350 = sand.u32 %s357, 1
        %s6351 = scalar_lea.vmem [#allocation13], %s6350
        // Predicated region
        $region81: #{discriminator_2d_forward.1} parent=79 // pred_check
          %p6352 = pneg %p367
        $region82: #{discriminator_2d_forward.1} parent=79 // pred_check_branch
          %6354 = sbr.rel (%p6352) target = $region84
        $region83: #{discriminator_2d_forward.1} parent=79 // pred_region
          %s6356 = ssub.s32 16, 16
          %6357 = vsyncadd %s6349, %s6356
          %s6358 = smul.addr %s29, 16
          %s6359 = scalar_lea.hbm %s15, %s6358
          %s6361 = sshll.u32 %s6351, 4
          %s6362 = int_to_ptr.vmem [resolvable:$true] %s6361
          %6364 = dma.vmem_to_hbm [thread:$0]  %s6362, 16, %s6359, %s6349
        $region84: #{discriminator_2d_forward.1} parent=79 // pred_fallthru
          _
      $region80: #{discriminator_2d_forward.1} parent=5 // pred_fallthru
        _
      %p6365 = scmp.le.s32.totalorder 2, %s24
      // Predicated region
      $region85: #{discriminator_2d_forward.1} parent=5 // pred_check
        %p6366 = pneg %p6365
      $region86: #{discriminator_2d_forward.1} parent=5 // pred_check_branch
        %6368 = sbr.rel (%p6366) target = $region88
      $region87: #{discriminator_2d_forward.1} parent=5 // pred_region
        %s6369 = ssub.s32 %s24, 2
        // Predicated region
        $region89: #{discriminator_2d_forward.1} parent=87 // pred_check
          %p6370 = pneg %p373
        $region90: #{discriminator_2d_forward.1} parent=87 // pred_check_branch
          %6372 = sbr.rel (%p6370) target = $region92
        $region91: #{discriminator_2d_forward.1} parent=87 // pred_region
          %s6373 = sand.u32 %s358, 1
          %s6374 = scalar_lea.sflag [#allocation14], %s6373
          %s6375 = sand.u32 %s358, 1
          %s6376 = scalar_lea.vmem [#allocation13], %s6375
          %6377 = dma.done %s6374, 16
        $region92: #{discriminator_2d_forward.1} parent=87 // pred_fallthru
          _
      $region88: #{discriminator_2d_forward.1} parent=5 // pred_fallthru
        _
    $region6: #{discriminator_2d_forward.1} parent=1 // loop_footer
      %s28 = sadd.s32 1, %s24
    $region7: #{discriminator_2d_forward.1} parent=1 // loop_footer_branch
      %23 = sbr.rel target = $region3
    $region8: #{discriminator_2d_forward.1} parent=1 // loop_exit
      _
    %6378 = vsyncpa [#allocation14], 1
    %s6379 = scalar_lea.sflag [#allocation14], 1
    %6380 = vsyncpa %s6379, 1

</llo_original>
